<compile_context>
chip_gen: v7x
topology: tpu7x:2x2x1
jax: 0.10.0
libtpu: 0.0.40
codegen_flags: <defaults>
</compile_context>

<pallas_src>
import functools

import jax
import jax.numpy as jnp
import numpy as np
from jax.experimental import pallas as pl
from jax.experimental.pallas import tpu as pltpu


def _bottleneck_kernel(x_ref, w1_ref, w2_ref, w3_ref,
                       b1_ref, b2_ref, b3_ref,
                       o_ref, pad_ref, *, rows_blk):
    # x_ref : (1, H, W, C)  bf16, one image per grid step (C = Cin padded to 128k)
    # w1_ref: (C, Pp)       bf16, conv1 1x1 weight, bn1 scale folded
    # w2_ref: (9, Pp, Pp)   bf16, conv2 3x3 weight (ky*3+kx unrolled), bn2 folded
    # w3_ref: (Pp, C)       bf16, conv3 1x1 weight, bn3 scale folded
    # b*_ref: (1, Pp|C)     f32, folded BN biases
    # pad_ref: ((H+2)*(W+2)+2, Pp) bf16, flat zero-padded conv2 input scratch
    _, H, W, C = x_ref.shape
    Pp = w1_ref.shape[1]
    Wp = W + 2
    RB = rows_blk
    nblk = H // RB
    R = pad_ref.shape[0]
    f32 = jnp.float32

    # ---- zero the top/bottom halo rows of the flat padded scratch ----------
    # (re-done every grid step: the scratch is core-local and reused)
    pad_ref[0:Wp, :] = jnp.zeros((Wp, Pp), pad_ref.dtype)
    pad_ref[(H + 1) * Wp:R, :] = jnp.zeros((R - (H + 1) * Wp, Pp), pad_ref.dtype)

    # ---- conv1 (1x1) + bn1 + relu -> scratch interior, per row block -------
    # Left/right zero halo columns are folded into the same contiguous store.
    for blk in range(nblk):
        r0 = blk * RB
        xb = x_ref[0, r0:r0 + RB, :, :].reshape(RB * W, C)               # bf16
        h1 = jnp.dot(xb, w1_ref[...], preferred_element_type=f32)
        h1 = jnp.maximum(h1 + b1_ref[...], 0.0)                          # f32
        h1 = h1.astype(pad_ref.dtype).reshape(RB, W, Pp)                 # bf16
        zcol = jnp.zeros((RB, 1, Pp), pad_ref.dtype)
        wide = jnp.concatenate([zcol, h1, zcol], axis=1).reshape(RB * Wp, Pp)
        s0 = (r0 + 1) * Wp
        pad_ref[s0:s0 + RB * Wp, :] = wide

    # ---- conv2 (3x3, pad=1) + bn2 + relu, conv3 (1x1) + bn3 + add + relu ---
    # Each tap is one contiguous slice of the flat scratch; the accumulator
    # carries Wp "wide" columns and the 2 halo columns are dropped once per
    # block, right before conv3.
    for blk in range(nblk):
        r0 = blk * RB
        q0 = r0 * Wp
        acc = jnp.zeros((RB * Wp, Pp), f32)
        for t in range(9):
            off = q0 + (t // 3) * Wp + (t % 3)
            win = pad_ref[off:off + RB * Wp, :]                          # bf16
            acc = acc + jnp.dot(win, w2_ref[t], preferred_element_type=f32)
        acc = acc.reshape(RB, Wp, Pp)[:, :W, :].reshape(RB * W, Pp)      # drop halo
        h2 = jnp.maximum(acc + b2_ref[...], 0.0)                         # f32
        h3 = jnp.dot(h2.astype(jnp.bfloat16), w3_ref[...],
                     preferred_element_type=f32)
        res = x_ref[0, r0:r0 + RB, :, :].reshape(RB * W, C).astype(f32)
        out = jnp.maximum(h3 + b3_ref[...] + res, 0.0)
        o_ref[0, r0:r0 + RB, :, :] = out.reshape(RB, W, C).astype(o_ref.dtype)


def prepare_bottleneck_params(w1, w2, w3, bn1, bn2, bn3, eps=1e-5):
    """One-time weight prep: fold eval-mode BN into the conv weights, cast to
    bf16 and zero-pad channels to lane-friendly (multiple-of-128) shapes.
    Call once, outside the per-step hot path."""
    Cin, P = w1.shape
    assert w3.shape == (P, Cin), "stride=1 / downsample=None requires Cout == Cin"

    def fold(bn):
        g, b, m, v = bn
        s = g / jnp.sqrt(v + eps)
        return s, b - m * s

    s1, c1 = fold(bn1)
    s2, c2 = fold(bn2)
    s3, c3 = fold(bn3)

    pad_c = (-Cin) % 128
    pad_p = (-P) % 128
    C, Pp = Cin + pad_c, P + pad_p

    w1f = jnp.pad(w1 * s1[None, :], ((0, pad_c), (0, pad_p))).astype(jnp.bfloat16)
    w2f = jnp.pad(w2.reshape(9, P, P) * s2[None, None, :],
                  ((0, 0), (0, pad_p), (0, pad_p))).astype(jnp.bfloat16)
    w3f = jnp.pad(w3 * s3[None, :], ((0, pad_p), (0, pad_c))).astype(jnp.bfloat16)
    b1 = jnp.pad(c1, (0, pad_p)).reshape(1, Pp).astype(jnp.float32)
    b2 = jnp.pad(c2, (0, pad_p)).reshape(1, Pp).astype(jnp.float32)
    b3 = jnp.pad(c3, (0, pad_c)).reshape(1, C).astype(jnp.float32)
    return (w1f, w2f, w3f, b1, b2, b3)


def _pick_rows_block(H, Wp, max_wide_rows=256):
    """Largest divisor of H whose wide-row block (rows*Wp, 128 lanes, f32)
    stays ~<=128 KiB so the 9-tap accumulator is register-resident."""
    best = 1
    for d in range(1, H + 1):
        if H % d == 0 and d * Wp <= max_wide_rows:
            best = d
    return best


def bottleneck_pallas(x, params):
    """HRNet Bottleneck forward (stride=1, downsample=None), eval-mode BN.

    x      : (N, H, W, Cin) NHWC activations (any float dtype; stored as bf16)
    params : output of prepare_bottleneck_params(...)
    returns: (N, H, W, Cin) bf16
    """
    w1f, w2f, w3f, b1, b2, b3 = params
    N, H, W, Cin = x.shape
    C, Pp = w1f.shape
    pad_c = C - Cin
    Wp = W + 2
    R = (H + 2) * Wp + 2                      # flat padded-input scratch rows
    rows_blk = _pick_rows_block(H, Wp)

    # bf16 activations in HBM (kernel is HBM-bandwidth bound); channel pad to a
    # multiple of 128 for lane-dense, unmasked loads/stores.
    x_p = jnp.pad(x.astype(jnp.bfloat16), ((0, 0), (0, 0), (0, 0), (0, pad_c)))

    def full(a):
        r = a.ndim
        return pl.BlockSpec(a.shape, lambda n: (0,) * r)

    flops = 2 * N * H * (W * C * Pp + 9 * Wp * Pp * Pp + W * Pp * C)
    bytes_accessed = (2 * N * H * W * C * 2                   # x in + out, bf16
                      + (C * Pp + 9 * Pp * Pp + Pp * C) * 2   # bf16 weights
                      + (2 * Pp + C) * 4)                     # f32 biases

    out = pl.pallas_call(
        functools.partial(_bottleneck_kernel, rows_blk=rows_blk),
        out_shape=jax.ShapeDtypeStruct((N, H, W, C), jnp.bfloat16),
        grid_spec=pltpu.PrefetchScalarGridSpec(
            num_scalar_prefetch=0,
            grid=(N,),
            in_specs=[
                pl.BlockSpec((1, H, W, C), lambda n: (n, 0, 0, 0)),   # x
                full(w1f), full(w2f), full(w3f),                      # weights
                full(b1), full(b2), full(b3),                         # biases
            ],
            out_specs=pl.BlockSpec((1, H, W, C), lambda n: (n, 0, 0, 0)),
            scratch_shapes=[pltpu.VMEM((R, Pp), jnp.bfloat16)],
        ),
        compiler_params=pltpu.CompilerParams(
            dimension_semantics=("parallel",),
            # comfortably under v7x's 64 MiB physical VMEM at HRNet shapes
            vmem_limit_bytes=32 * 1024 * 1024),
        cost_estimate=pl.CostEstimate(flops=flops, transcendentals=0,
                                      bytes_accessed=bytes_accessed),
    )(x_p, w1f, w2f, w3f, b1, b2, b3)

    return out[..., :Cin] if pad_c else out


# ---------------------------------------------------------------------------
# pure-JAX f32 reference (module semantics: conv -> eval-mode BN -> relu)
# ---------------------------------------------------------------------------
def _ref_bottleneck(x, w1, w2, w3, bn1, bn2, bn3, eps=1e-5):
    def conv(a, w, pad):
        return jax.lax.conv_general_dilated(
            a, w, window_strides=(1, 1), padding=[(pad, pad), (pad, pad)],
            dimension_numbers=("NHWC", "HWIO", "NHWC"))

    def bn(a, p):
        g, b, m, v = p
        return (a - m) / jnp.sqrt(v + eps) * g + b

    out = jax.nn.relu(bn(conv(x, w1, 0), bn1))
    out = jax.nn.relu(bn(conv(out, w2, 1), bn2))
    out = bn(conv(out, w3, 0), bn3)
    return jax.nn.relu(out + x)


if __name__ == "__main__":
    N, H, W = 2, 16, 16
    planes = 8
    expansion = 4
    inplanes = planes * expansion      # 32; residual add requires Cout == Cin
    eps = 1e-5

    key = jax.random.PRNGKey(0)
    ks = jax.random.split(key, 8)

    x = jax.random.normal(ks[0], (N, H, W, inplanes), jnp.float32)

    # conv weights (bias=False in the module)
    w1 = jax.random.normal(ks[1], (inplanes, planes), jnp.float32) * 0.1            # 1x1
    w2 = jax.random.normal(ks[2], (3, 3, planes, planes), jnp.float32) * 0.1        # 3x3 HWIO
    w3 = jax.random.normal(ks[3], (planes, planes * expansion), jnp.float32) * 0.1  # 1x1

    # deterministic, non-trivial BN params (gamma, beta, running_mean, running_var)
    def make_bn(c, k):
        g = 1.0 + 0.1 * jnp.arange(c, dtype=jnp.float32) / c
        b = 0.05 * jnp.arange(c, dtype=jnp.float32) / c - 0.02
        m = 0.1 * jax.random.normal(k, (c,), jnp.float32)
        v = 1.0 + 0.2 * jnp.abs(jax.random.normal(jax.random.fold_in(k, 1), (c,), jnp.float32))
        return g, b, m, v

    bn1 = make_bn(planes, ks[4])
    bn2 = make_bn(planes, ks[5])
    bn3 = make_bn(planes * expansion, ks[6])

    # one-time weight prep (BN folding, bf16 cast, channel padding)
    params = prepare_bottleneck_params(w1, w2, w3, bn1, bn2, bn3, eps=eps)
    fwd = jax.jit(bottleneck_pallas)

    out = jax.block_until_ready(fwd(x, params))

    ref = _ref_bottleneck(x,
                          w1.reshape(1, 1, inplanes, planes),
                          w2,
                          w3.reshape(1, 1, planes, planes * expansion),
                          bn1, bn2, bn3, eps=eps)
    ref = jax.block_until_ready(ref)

    # bf16 activations in HBM + bf16 MXU operands (f32 accumulation and
    # elementwise math) vs. an all-f32 reference -> loosened tolerance.
    np.testing.assert_allclose(np.asarray(out, dtype=np.float32),
                               np.asarray(ref), rtol=5e-2, atol=5e-2)
    print("KERNEL_OK")
</pallas_src>

<mosaic_0001>
module attributes {stable_mosaic.version = 11 : i64} {
  func.func @_bottleneck_kernel(%arg0: i32, %arg1: memref<1x16x16x128xbf16, #tpu.memory_space<vmem>>, %arg2: memref<128x128xbf16, #tpu.memory_space<vmem>>, %arg3: memref<9x128x128xbf16, #tpu.memory_space<vmem>>, %arg4: memref<128x128xbf16, #tpu.memory_space<vmem>>, %arg5: memref<1x128xf32, #tpu.memory_space<vmem>>, %arg6: memref<1x128xf32, #tpu.memory_space<vmem>>, %arg7: memref<1x128xf32, #tpu.memory_space<vmem>>, %arg8: memref<1x16x16x128xbf16, #tpu.memory_space<vmem>>, %arg9: memref<326x128xbf16, #tpu.memory_space<vmem>>) attributes {dimension_semantics = [#tpu.dimension_semantics<parallel>], iteration_bounds = array<i64: 2>, scalar_prefetch = 0 : i64, scratch_operands = 1 : i64, tpu.core_type = #tpu.core_type<tc>, window_params = [{transform_indices = @transform_0, window_bounds = array<i64: 1, 16, 16, 128>}, {pipeline_mode = #tpu.pipeline_mode<synchronous>, transform_indices = @transform_1, window_bounds = array<i64: 128, 128>}, {pipeline_mode = #tpu.pipeline_mode<synchronous>, transform_indices = @transform_2, window_bounds = array<i64: 9, 128, 128>}, {pipeline_mode = #tpu.pipeline_mode<synchronous>, transform_indices = @transform_3, window_bounds = array<i64: 128, 128>}, {pipeline_mode = #tpu.pipeline_mode<synchronous>, transform_indices = @transform_4, window_bounds = array<i64: 1, 128>}, {pipeline_mode = #tpu.pipeline_mode<synchronous>, transform_indices = @transform_5, window_bounds = array<i64: 1, 128>}, {pipeline_mode = #tpu.pipeline_mode<synchronous>, transform_indices = @transform_6, window_bounds = array<i64: 1, 128>}, {transform_indices = @transform_7, window_bounds = array<i64: 1, 16, 16, 128>}]} {
    %cst = arith.constant 0.000000e+00 : bf16
    %0 = vector.broadcast %cst : bf16 to vector<18x128xbf16>
    %c0 = arith.constant 0 : index
    %c0_0 = arith.constant 0 : index
    %1 = vector.load %arg9[%c0, %c0_0] : memref<326x128xbf16, #tpu.memory_space<vmem>>, vector<18x128xbf16>
    tpu.vector_store %arg9[%c0, %c0_0], %0 {strides = array<i32>} : memref<326x128xbf16, #tpu.memory_space<vmem>>, vector<18x128xbf16>,
    %cst_1 = arith.constant 0.000000e+00 : bf16
    %2 = vector.broadcast %cst_1 : bf16 to vector<20x128xbf16>
    %c306 = arith.constant 306 : index
    %c0_2 = arith.constant 0 : index
    %3 = vector.load %arg9[%c306, %c0_2] : memref<326x128xbf16, #tpu.memory_space<vmem>>, vector<20x128xbf16>
    tpu.vector_store %arg9[%c306, %c0_2], %2 {strides = array<i32>} : memref<326x128xbf16, #tpu.memory_space<vmem>>, vector<20x128xbf16>,
    %c0_3 = arith.constant 0 : index
    %c0_4 = arith.constant 0 : index
    %c0_5 = arith.constant 0 : index
    %c0_6 = arith.constant 0 : index
    %4 = vector.load %arg1[%c0_3, %c0_4, %c0_5, %c0_6] : memref<1x16x16x128xbf16, #tpu.memory_space<vmem>>, vector<1x8x16x128xbf16>
    %5 = vector.shape_cast %4 : vector<1x8x16x128xbf16> to vector<8x16x128xbf16>
    %6 = vector.shape_cast %5 : vector<8x16x128xbf16> to vector<128x128xbf16>
    %c0_7 = arith.constant 0 : index
    %c0_8 = arith.constant 0 : index
    %7 = vector.load %arg2[%c0_7, %c0_8] : memref<128x128xbf16, #tpu.memory_space<vmem>>, vector<128x128xbf16>
    %cst_9 = arith.constant dense<0.000000e+00> : vector<128x128xf32>
    %8 = tpu.matmul %6, %7, %cst_9 {dimension_numbers = #tpu.dot_dimension_numbers<[1], [0], [0], [1], [0, 0, 1, 1], [], []>} : vector<128x128xbf16>, vector<128x128xbf16>, vector<128x128xf32> -> vector<128x128xf32>
    %c0_10 = arith.constant 0 : index
    %c0_11 = arith.constant 0 : index
    %9 = vector.load %arg5[%c0_10, %c0_11] : memref<1x128xf32, #tpu.memory_space<vmem>>, vector<1x128xf32>
    %10 = vector.broadcast %9 : vector<1x128xf32> to vector<128x128xf32>
    %11 = arith.addf %8, %10 : vector<128x128xf32>
    %cst_12 = arith.constant 0.000000e+00 : f32
    %12 = vector.broadcast %cst_12 : f32 to vector<128x128xf32>
    %13 = arith.maximumf %11, %12 : vector<128x128xf32>
    %14 = arith.truncf %13 : vector<128x128xf32> to vector<128x128xbf16>
    %15 = vector.shape_cast %14 : vector<128x128xbf16> to vector<8x16x128xbf16>
    %cst_13 = arith.constant 0.000000e+00 : bf16
    %16 = vector.broadcast %cst_13 : bf16 to vector<8x1x128xbf16>
    %17 = tpu.concatenate %16, %15, %16 in 1 : vector<8x1x128xbf16>, vector<8x16x128xbf16>, vector<8x1x128xbf16> -> vector<8x18x128xbf16>
    %18 = vector.shape_cast %17 : vector<8x18x128xbf16> to vector<144x128xbf16>
    %c18 = arith.constant 18 : index
    %c0_14 = arith.constant 0 : index
    %19 = vector.load %arg9[%c18, %c0_14] : memref<326x128xbf16, #tpu.memory_space<vmem>>, vector<144x128xbf16>
    tpu.vector_store %arg9[%c18, %c0_14], %18 {strides = array<i32>} : memref<326x128xbf16, #tpu.memory_space<vmem>>, vector<144x128xbf16>,
    %c0_15 = arith.constant 0 : index
    %c8 = arith.constant 8 : index
    %c0_16 = arith.constant 0 : index
    %c0_17 = arith.constant 0 : index
    %20 = vector.load %arg1[%c0_15, %c8, %c0_16, %c0_17] : memref<1x16x16x128xbf16, #tpu.memory_space<vmem>>, vector<1x8x16x128xbf16>
    %21 = vector.shape_cast %20 : vector<1x8x16x128xbf16> to vector<8x16x128xbf16>
    %22 = vector.shape_cast %21 : vector<8x16x128xbf16> to vector<128x128xbf16>
    %c0_18 = arith.constant 0 : index
    %c0_19 = arith.constant 0 : index
    %23 = vector.load %arg2[%c0_18, %c0_19] : memref<128x128xbf16, #tpu.memory_space<vmem>>, vector<128x128xbf16>
    %cst_20 = arith.constant dense<0.000000e+00> : vector<128x128xf32>
    %24 = tpu.matmul %22, %23, %cst_20 {dimension_numbers = #tpu.dot_dimension_numbers<[1], [0], [0], [1], [0, 0, 1, 1], [], []>} : vector<128x128xbf16>, vector<128x128xbf16>, vector<128x128xf32> -> vector<128x128xf32>
    %c0_21 = arith.constant 0 : index
    %c0_22 = arith.constant 0 : index
    %25 = vector.load %arg5[%c0_21, %c0_22] : memref<1x128xf32, #tpu.memory_space<vmem>>, vector<1x128xf32>
    %26 = vector.broadcast %25 : vector<1x128xf32> to vector<128x128xf32>
    %27 = arith.addf %24, %26 : vector<128x128xf32>
    %cst_23 = arith.constant 0.000000e+00 : f32
    %28 = vector.broadcast %cst_23 : f32 to vector<128x128xf32>
    %29 = arith.maximumf %27, %28 : vector<128x128xf32>
    %30 = arith.truncf %29 : vector<128x128xf32> to vector<128x128xbf16>
    %31 = vector.shape_cast %30 : vector<128x128xbf16> to vector<8x16x128xbf16>
    %cst_24 = arith.constant 0.000000e+00 : bf16
    %32 = vector.broadcast %cst_24 : bf16 to vector<8x1x128xbf16>
    %33 = tpu.concatenate %32, %31, %32 in 1 : vector<8x1x128xbf16>, vector<8x16x128xbf16>, vector<8x1x128xbf16> -> vector<8x18x128xbf16>
    %34 = vector.shape_cast %33 : vector<8x18x128xbf16> to vector<144x128xbf16>
    %c162 = arith.constant 162 : index
    %c0_25 = arith.constant 0 : index
    %35 = vector.load %arg9[%c162, %c0_25] : memref<326x128xbf16, #tpu.memory_space<vmem>>, vector<144x128xbf16>
    tpu.vector_store %arg9[%c162, %c0_25], %34 {strides = array<i32>} : memref<326x128xbf16, #tpu.memory_space<vmem>>, vector<144x128xbf16>,
    %cst_26 = arith.constant 0.000000e+00 : f32
    %36 = vector.broadcast %cst_26 : f32 to vector<144x128xf32>
    %c0_27 = arith.constant 0 : index
    %c0_28 = arith.constant 0 : index
    %37 = vector.load %arg9[%c0_27, %c0_28] : memref<326x128xbf16, #tpu.memory_space<vmem>>, vector<144x128xbf16>
    %c0_29 = arith.constant 0 : index
    %c0_30 = arith.constant 0 : index
    %c0_31 = arith.constant 0 : index
    %38 = vector.load %arg3[%c0_29, %c0_30, %c0_31] : memref<9x128x128xbf16, #tpu.memory_space<vmem>>, vector<1x128x128xbf16>
    %39 = vector.shape_cast %38 : vector<1x128x128xbf16> to vector<128x128xbf16>
    %cst_32 = arith.constant dense<0.000000e+00> : vector<144x128xf32>
    %40 = tpu.matmul %37, %39, %cst_32 {dimension_numbers = #tpu.dot_dimension_numbers<[1], [0], [0], [1], [0, 0, 1, 1], [], []>} : vector<144x128xbf16>, vector<128x128xbf16>, vector<144x128xf32> -> vector<144x128xf32>
    %41 = arith.addf %36, %40 : vector<144x128xf32>
    %c1 = arith.constant 1 : index
    %c0_33 = arith.constant 0 : index
    %42 = vector.load %arg9[%c1, %c0_33] : memref<326x128xbf16, #tpu.memory_space<vmem>>, vector<144x128xbf16>
    %c1_34 = arith.constant 1 : index
    %c0_35 = arith.constant 0 : index
    %c0_36 = arith.constant 0 : index
    %43 = vector.load %arg3[%c1_34, %c0_35, %c0_36] : memref<9x128x128xbf16, #tpu.memory_space<vmem>>, vector<1x128x128xbf16>
    %44 = vector.shape_cast %43 : vector<1x128x128xbf16> to vector<128x128xbf16>
    %cst_37 = arith.constant dense<0.000000e+00> : vector<144x128xf32>
    %45 = tpu.matmul %42, %44, %cst_37 {dimension_numbers = #tpu.dot_dimension_numbers<[1], [0], [0], [1], [0, 0, 1, 1], [], []>} : vector<144x128xbf16>, vector<128x128xbf16>, vector<144x128xf32> -> vector<144x128xf32>
    %46 = arith.addf %41, %45 : vector<144x128xf32>
    %c2 = arith.constant 2 : index
    %c0_38 = arith.constant 0 : index
    %47 = vector.load %arg9[%c2, %c0_38] : memref<326x128xbf16, #tpu.memory_space<vmem>>, vector<144x128xbf16>
    %c2_39 = arith.constant 2 : index
    %c0_40 = arith.constant 0 : index
    %c0_41 = arith.constant 0 : index
    %48 = vector.load %arg3[%c2_39, %c0_40, %c0_41] : memref<9x128x128xbf16, #tpu.memory_space<vmem>>, vector<1x128x128xbf16>
    %49 = vector.shape_cast %48 : vector<1x128x128xbf16> to vector<128x128xbf16>
    %cst_42 = arith.constant dense<0.000000e+00> : vector<144x128xf32>
    %50 = tpu.matmul %47, %49, %cst_42 {dimension_numbers = #tpu.dot_dimension_numbers<[1], [0], [0], [1], [0, 0, 1, 1], [], []>} : vector<144x128xbf16>, vector<128x128xbf16>, vector<144x128xf32> -> vector<144x128xf32>
    %51 = arith.addf %46, %50 : vector<144x128xf32>
    %c18_43 = arith.constant 18 : index
    %c0_44 = arith.constant 0 : index
    %52 = vector.load %arg9[%c18_43, %c0_44] : memref<326x128xbf16, #tpu.memory_space<vmem>>, vector<144x128xbf16>
    %c3 = arith.constant 3 : index
    %c0_45 = arith.constant 0 : index
    %c0_46 = arith.constant 0 : index
    %53 = vector.load %arg3[%c3, %c0_45, %c0_46] : memref<9x128x128xbf16, #tpu.memory_space<vmem>>, vector<1x128x128xbf16>
    %54 = vector.shape_cast %53 : vector<1x128x128xbf16> to vector<128x128xbf16>
    %cst_47 = arith.constant dense<0.000000e+00> : vector<144x128xf32>
    %55 = tpu.matmul %52, %54, %cst_47 {dimension_numbers = #tpu.dot_dimension_numbers<[1], [0], [0], [1], [0, 0, 1, 1], [], []>} : vector<144x128xbf16>, vector<128x128xbf16>, vector<144x128xf32> -> vector<144x128xf32>
    %56 = arith.addf %51, %55 : vector<144x128xf32>
    %c19 = arith.constant 19 : index
    %c0_48 = arith.constant 0 : index
    %57 = vector.load %arg9[%c19, %c0_48] : memref<326x128xbf16, #tpu.memory_space<vmem>>, vector<144x128xbf16>
    %c4 = arith.constant 4 : index
    %c0_49 = arith.constant 0 : index
    %c0_50 = arith.constant 0 : index
    %58 = vector.load %arg3[%c4, %c0_49, %c0_50] : memref<9x128x128xbf16, #tpu.memory_space<vmem>>, vector<1x128x128xbf16>
    %59 = vector.shape_cast %58 : vector<1x128x128xbf16> to vector<128x128xbf16>
    %cst_51 = arith.constant dense<0.000000e+00> : vector<144x128xf32>
    %60 = tpu.matmul %57, %59, %cst_51 {dimension_numbers = #tpu.dot_dimension_numbers<[1], [0], [0], [1], [0, 0, 1, 1], [], []>} : vector<144x128xbf16>, vector<128x128xbf16>, vector<144x128xf32> -> vector<144x128xf32>
    %61 = arith.addf %56, %60 : vector<144x128xf32>
    %c20 = arith.constant 20 : index
    %c0_52 = arith.constant 0 : index
    %62 = vector.load %arg9[%c20, %c0_52] : memref<326x128xbf16, #tpu.memory_space<vmem>>, vector<144x128xbf16>
    %c5 = arith.constant 5 : index
    %c0_53 = arith.constant 0 : index
    %c0_54 = arith.constant 0 : index
    %63 = vector.load %arg3[%c5, %c0_53, %c0_54] : memref<9x128x128xbf16, #tpu.memory_space<vmem>>, vector<1x128x128xbf16>
    %64 = vector.shape_cast %63 : vector<1x128x128xbf16> to vector<128x128xbf16>
    %cst_55 = arith.constant dense<0.000000e+00> : vector<144x128xf32>
    %65 = tpu.matmul %62, %64, %cst_55 {dimension_numbers = #tpu.dot_dimension_numbers<[1], [0], [0], [1], [0, 0, 1, 1], [], []>} : vector<144x128xbf16>, vector<128x128xbf16>, vector<144x128xf32> -> vector<144x128xf32>
    %66 = arith.addf %61, %65 : vector<144x128xf32>
    %c36 = arith.constant 36 : index
    %c0_56 = arith.constant 0 : index
    %67 = vector.load %arg9[%c36, %c0_56] : memref<326x128xbf16, #tpu.memory_space<vmem>>, vector<144x128xbf16>
    %c6 = arith.constant 6 : index
    %c0_57 = arith.constant 0 : index
    %c0_58 = arith.constant 0 : index
    %68 = vector.load %arg3[%c6, %c0_57, %c0_58] : memref<9x128x128xbf16, #tpu.memory_space<vmem>>, vector<1x128x128xbf16>
    %69 = vector.shape_cast %68 : vector<1x128x128xbf16> to vector<128x128xbf16>
    %cst_59 = arith.constant dense<0.000000e+00> : vector<144x128xf32>
    %70 = tpu.matmul %67, %69, %cst_59 {dimension_numbers = #tpu.dot_dimension_numbers<[1], [0], [0], [1], [0, 0, 1, 1], [], []>} : vector<144x128xbf16>, vector<128x128xbf16>, vector<144x128xf32> -> vector<144x128xf32>
    %71 = arith.addf %66, %70 : vector<144x128xf32>
    %c37 = arith.constant 37 : index
    %c0_60 = arith.constant 0 : index
    %72 = vector.load %arg9[%c37, %c0_60] : memref<326x128xbf16, #tpu.memory_space<vmem>>, vector<144x128xbf16>
    %c7 = arith.constant 7 : index
    %c0_61 = arith.constant 0 : index
    %c0_62 = arith.constant 0 : index
    %73 = vector.load %arg3[%c7, %c0_61, %c0_62] : memref<9x128x128xbf16, #tpu.memory_space<vmem>>, vector<1x128x128xbf16>
    %74 = vector.shape_cast %73 : vector<1x128x128xbf16> to vector<128x128xbf16>
    %cst_63 = arith.constant dense<0.000000e+00> : vector<144x128xf32>
    %75 = tpu.matmul %72, %74, %cst_63 {dimension_numbers = #tpu.dot_dimension_numbers<[1], [0], [0], [1], [0, 0, 1, 1], [], []>} : vector<144x128xbf16>, vector<128x128xbf16>, vector<144x128xf32> -> vector<144x128xf32>
    %76 = arith.addf %71, %75 : vector<144x128xf32>
    %c38 = arith.constant 38 : index
    %c0_64 = arith.constant 0 : index
    %77 = vector.load %arg9[%c38, %c0_64] : memref<326x128xbf16, #tpu.memory_space<vmem>>, vector<144x128xbf16>
    %c8_65 = arith.constant 8 : index
    %c0_66 = arith.constant 0 : index
    %c0_67 = arith.constant 0 : index
    %78 = vector.load %arg3[%c8_65, %c0_66, %c0_67] : memref<9x128x128xbf16, #tpu.memory_space<vmem>>, vector<1x128x128xbf16>
    %79 = vector.shape_cast %78 : vector<1x128x128xbf16> to vector<128x128xbf16>
    %cst_68 = arith.constant dense<0.000000e+00> : vector<144x128xf32>
    %80 = tpu.matmul %77, %79, %cst_68 {dimension_numbers = #tpu.dot_dimension_numbers<[1], [0], [0], [1], [0, 0, 1, 1], [], []>} : vector<144x128xbf16>, vector<128x128xbf16>, vector<144x128xf32> -> vector<144x128xf32>
    %81 = arith.addf %76, %80 : vector<144x128xf32>
    %82 = vector.shape_cast %81 : vector<144x128xf32> to vector<8x18x128xf32>
    %83 = vector.extract_strided_slice %82 {offsets = [0, 0, 0], sizes = [8, 16, 128], strides = [1, 1, 1]} : vector<8x18x128xf32> to vector<8x16x128xf32>
    %84 = vector.shape_cast %83 : vector<8x16x128xf32> to vector<128x128xf32>
    %c0_69 = arith.constant 0 : index
    %c0_70 = arith.constant 0 : index
    %85 = vector.load %arg6[%c0_69, %c0_70] : memref<1x128xf32, #tpu.memory_space<vmem>>, vector<1x128xf32>
    %86 = vector.broadcast %85 : vector<1x128xf32> to vector<128x128xf32>
    %87 = arith.addf %84, %86 : vector<128x128xf32>
    %cst_71 = arith.constant 0.000000e+00 : f32
    %88 = vector.broadcast %cst_71 : f32 to vector<128x128xf32>
    %89 = arith.maximumf %87, %88 : vector<128x128xf32>
    %90 = arith.truncf %89 : vector<128x128xf32> to vector<128x128xbf16>
    %c0_72 = arith.constant 0 : index
    %c0_73 = arith.constant 0 : index
    %91 = vector.load %arg4[%c0_72, %c0_73] : memref<128x128xbf16, #tpu.memory_space<vmem>>, vector<128x128xbf16>
    %cst_74 = arith.constant dense<0.000000e+00> : vector<128x128xf32>
    %92 = tpu.matmul %90, %91, %cst_74 {dimension_numbers = #tpu.dot_dimension_numbers<[1], [0], [0], [1], [0, 0, 1, 1], [], []>} : vector<128x128xbf16>, vector<128x128xbf16>, vector<128x128xf32> -> vector<128x128xf32>
    %c0_75 = arith.constant 0 : index
    %c0_76 = arith.constant 0 : index
    %c0_77 = arith.constant 0 : index
    %c0_78 = arith.constant 0 : index
    %93 = vector.load %arg1[%c0_75, %c0_76, %c0_77, %c0_78] : memref<1x16x16x128xbf16, #tpu.memory_space<vmem>>, vector<1x8x16x128xbf16>
    %94 = vector.shape_cast %93 : vector<1x8x16x128xbf16> to vector<8x16x128xbf16>
    %95 = vector.shape_cast %94 : vector<8x16x128xbf16> to vector<128x128xbf16>
    %96 = arith.extf %95 : vector<128x128xbf16> to vector<128x128xf32>
    %c0_79 = arith.constant 0 : index
    %c0_80 = arith.constant 0 : index
    %97 = vector.load %arg7[%c0_79, %c0_80] : memref<1x128xf32, #tpu.memory_space<vmem>>, vector<1x128xf32>
    %98 = vector.broadcast %97 : vector<1x128xf32> to vector<128x128xf32>
    %99 = arith.addf %92, %98 : vector<128x128xf32>
    %100 = arith.addf %99, %96 : vector<128x128xf32>
    %cst_81 = arith.constant 0.000000e+00 : f32
    %101 = vector.broadcast %cst_81 : f32 to vector<128x128xf32>
    %102 = arith.maximumf %100, %101 : vector<128x128xf32>
    %103 = vector.shape_cast %102 : vector<128x128xf32> to vector<8x16x128xf32>
    %104 = arith.truncf %103 : vector<8x16x128xf32> to vector<8x16x128xbf16>
    %c0_82 = arith.constant 0 : index
    %c0_83 = arith.constant 0 : index
    %c0_84 = arith.constant 0 : index
    %c0_85 = arith.constant 0 : index
    %105 = vector.load %arg8[%c0_82, %c0_83, %c0_84, %c0_85] : memref<1x16x16x128xbf16, #tpu.memory_space<vmem>>, vector<1x8x16x128xbf16>
    %106 = vector.shape_cast %105 : vector<1x8x16x128xbf16> to vector<8x16x128xbf16>
    %107 = vector.shape_cast %104 : vector<8x16x128xbf16> to vector<1x8x16x128xbf16>
    tpu.vector_store %arg8[%c0_82, %c0_83, %c0_84, %c0_85], %107 {strides = array<i32>} : memref<1x16x16x128xbf16, #tpu.memory_space<vmem>>, vector<1x8x16x128xbf16>,
    %cst_86 = arith.constant 0.000000e+00 : f32
    %108 = vector.broadcast %cst_86 : f32 to vector<144x128xf32>
    %c144 = arith.constant 144 : index
    %c0_87 = arith.constant 0 : index
    %109 = vector.load %arg9[%c144, %c0_87] : memref<326x128xbf16, #tpu.memory_space<vmem>>, vector<144x128xbf16>
    %c0_88 = arith.constant 0 : index
    %c0_89 = arith.constant 0 : index
    %c0_90 = arith.constant 0 : index
    %110 = vector.load %arg3[%c0_88, %c0_89, %c0_90] : memref<9x128x128xbf16, #tpu.memory_space<vmem>>, vector<1x128x128xbf16>
    %111 = vector.shape_cast %110 : vector<1x128x128xbf16> to vector<128x128xbf16>
    %cst_91 = arith.constant dense<0.000000e+00> : vector<144x128xf32>
    %112 = tpu.matmul %109, %111, %cst_91 {dimension_numbers = #tpu.dot_dimension_numbers<[1], [0], [0], [1], [0, 0, 1, 1], [], []>} : vector<144x128xbf16>, vector<128x128xbf16>, vector<144x128xf32> -> vector<144x128xf32>
    %113 = arith.addf %108, %112 : vector<144x128xf32>
    %c145 = arith.constant 145 : index
    %c0_92 = arith.constant 0 : index
    %114 = vector.load %arg9[%c145, %c0_92] : memref<326x128xbf16, #tpu.memory_space<vmem>>, vector<144x128xbf16>
    %c1_93 = arith.constant 1 : index
    %c0_94 = arith.constant 0 : index
    %c0_95 = arith.constant 0 : index
    %115 = vector.load %arg3[%c1_93, %c0_94, %c0_95] : memref<9x128x128xbf16, #tpu.memory_space<vmem>>, vector<1x128x128xbf16>
    %116 = vector.shape_cast %115 : vector<1x128x128xbf16> to vector<128x128xbf16>
    %cst_96 = arith.constant dense<0.000000e+00> : vector<144x128xf32>
    %117 = tpu.matmul %114, %116, %cst_96 {dimension_numbers = #tpu.dot_dimension_numbers<[1], [0], [0], [1], [0, 0, 1, 1], [], []>} : vector<144x128xbf16>, vector<128x128xbf16>, vector<144x128xf32> -> vector<144x128xf32>
    %118 = arith.addf %113, %117 : vector<144x128xf32>
    %c146 = arith.constant 146 : index
    %c0_97 = arith.constant 0 : index
    %119 = vector.load %arg9[%c146, %c0_97] : memref<326x128xbf16, #tpu.memory_space<vmem>>, vector<144x128xbf16>
    %c2_98 = arith.constant 2 : index
    %c0_99 = arith.constant 0 : index
    %c0_100 = arith.constant 0 : index
    %120 = vector.load %arg3[%c2_98, %c0_99, %c0_100] : memref<9x128x128xbf16, #tpu.memory_space<vmem>>, vector<1x128x128xbf16>
    %121 = vector.shape_cast %120 : vector<1x128x128xbf16> to vector<128x128xbf16>
    %cst_101 = arith.constant dense<0.000000e+00> : vector<144x128xf32>
    %122 = tpu.matmul %119, %121, %cst_101 {dimension_numbers = #tpu.dot_dimension_numbers<[1], [0], [0], [1], [0, 0, 1, 1], [], []>} : vector<144x128xbf16>, vector<128x128xbf16>, vector<144x128xf32> -> vector<144x128xf32>
    %123 = arith.addf %118, %122 : vector<144x128xf32>
    %c162_102 = arith.constant 162 : index
    %c0_103 = arith.constant 0 : index
    %124 = vector.load %arg9[%c162_102, %c0_103] : memref<326x128xbf16, #tpu.memory_space<vmem>>, vector<144x128xbf16>
    %c3_104 = arith.constant 3 : index
    %c0_105 = arith.constant 0 : index
    %c0_106 = arith.constant 0 : index
    %125 = vector.load %arg3[%c3_104, %c0_105, %c0_106] : memref<9x128x128xbf16, #tpu.memory_space<vmem>>, vector<1x128x128xbf16>
    %126 = vector.shape_cast %125 : vector<1x128x128xbf16> to vector<128x128xbf16>
    %cst_107 = arith.constant dense<0.000000e+00> : vector<144x128xf32>
    %127 = tpu.matmul %124, %126, %cst_107 {dimension_numbers = #tpu.dot_dimension_numbers<[1], [0], [0], [1], [0, 0, 1, 1], [], []>} : vector<144x128xbf16>, vector<128x128xbf16>, vector<144x128xf32> -> vector<144x128xf32>
    %128 = arith.addf %123, %127 : vector<144x128xf32>
    %c163 = arith.constant 163 : index
    %c0_108 = arith.constant 0 : index
    %129 = vector.load %arg9[%c163, %c0_108] : memref<326x128xbf16, #tpu.memory_space<vmem>>, vector<144x128xbf16>
    %c4_109 = arith.constant 4 : index
    %c0_110 = arith.constant 0 : index
    %c0_111 = arith.constant 0 : index
    %130 = vector.load %arg3[%c4_109, %c0_110, %c0_111] : memref<9x128x128xbf16, #tpu.memory_space<vmem>>, vector<1x128x128xbf16>
    %131 = vector.shape_cast %130 : vector<1x128x128xbf16> to vector<128x128xbf16>
    %cst_112 = arith.constant dense<0.000000e+00> : vector<144x128xf32>
    %132 = tpu.matmul %129, %131, %cst_112 {dimension_numbers = #tpu.dot_dimension_numbers<[1], [0], [0], [1], [0, 0, 1, 1], [], []>} : vector<144x128xbf16>, vector<128x128xbf16>, vector<144x128xf32> -> vector<144x128xf32>
    %133 = arith.addf %128, %132 : vector<144x128xf32>
    %c164 = arith.constant 164 : index
    %c0_113 = arith.constant 0 : index
    %134 = vector.load %arg9[%c164, %c0_113] : memref<326x128xbf16, #tpu.memory_space<vmem>>, vector<144x128xbf16>
    %c5_114 = arith.constant 5 : index
    %c0_115 = arith.constant 0 : index
    %c0_116 = arith.constant 0 : index
    %135 = vector.load %arg3[%c5_114, %c0_115, %c0_116] : memref<9x128x128xbf16, #tpu.memory_space<vmem>>, vector<1x128x128xbf16>
    %136 = vector.shape_cast %135 : vector<1x128x128xbf16> to vector<128x128xbf16>
    %cst_117 = arith.constant dense<0.000000e+00> : vector<144x128xf32>
    %137 = tpu.matmul %134, %136, %cst_117 {dimension_numbers = #tpu.dot_dimension_numbers<[1], [0], [0], [1], [0, 0, 1, 1], [], []>} : vector<144x128xbf16>, vector<128x128xbf16>, vector<144x128xf32> -> vector<144x128xf32>
    %138 = arith.addf %133, %137 : vector<144x128xf32>
    %c180 = arith.constant 180 : index
    %c0_118 = arith.constant 0 : index
    %139 = vector.load %arg9[%c180, %c0_118] : memref<326x128xbf16, #tpu.memory_space<vmem>>, vector<144x128xbf16>
    %c6_119 = arith.constant 6 : index
    %c0_120 = arith.constant 0 : index
    %c0_121 = arith.constant 0 : index
    %140 = vector.load %arg3[%c6_119, %c0_120, %c0_121] : memref<9x128x128xbf16, #tpu.memory_space<vmem>>, vector<1x128x128xbf16>
    %141 = vector.shape_cast %140 : vector<1x128x128xbf16> to vector<128x128xbf16>
    %cst_122 = arith.constant dense<0.000000e+00> : vector<144x128xf32>
    %142 = tpu.matmul %139, %141, %cst_122 {dimension_numbers = #tpu.dot_dimension_numbers<[1], [0], [0], [1], [0, 0, 1, 1], [], []>} : vector<144x128xbf16>, vector<128x128xbf16>, vector<144x128xf32> -> vector<144x128xf32>
    %143 = arith.addf %138, %142 : vector<144x128xf32>
    %c181 = arith.constant 181 : index
    %c0_123 = arith.constant 0 : index
    %144 = vector.load %arg9[%c181, %c0_123] : memref<326x128xbf16, #tpu.memory_space<vmem>>, vector<144x128xbf16>
    %c7_124 = arith.constant 7 : index
    %c0_125 = arith.constant 0 : index
    %c0_126 = arith.constant 0 : index
    %145 = vector.load %arg3[%c7_124, %c0_125, %c0_126] : memref<9x128x128xbf16, #tpu.memory_space<vmem>>, vector<1x128x128xbf16>
    %146 = vector.shape_cast %145 : vector<1x128x128xbf16> to vector<128x128xbf16>
    %cst_127 = arith.constant dense<0.000000e+00> : vector<144x128xf32>
    %147 = tpu.matmul %144, %146, %cst_127 {dimension_numbers = #tpu.dot_dimension_numbers<[1], [0], [0], [1], [0, 0, 1, 1], [], []>} : vector<144x128xbf16>, vector<128x128xbf16>, vector<144x128xf32> -> vector<144x128xf32>
    %148 = arith.addf %143, %147 : vector<144x128xf32>
    %c182 = arith.constant 182 : index
    %c0_128 = arith.constant 0 : index
    %149 = vector.load %arg9[%c182, %c0_128] : memref<326x128xbf16, #tpu.memory_space<vmem>>, vector<144x128xbf16>
    %c8_129 = arith.constant 8 : index
    %c0_130 = arith.constant 0 : index
    %c0_131 = arith.constant 0 : index
    %150 = vector.load %arg3[%c8_129, %c0_130, %c0_131] : memref<9x128x128xbf16, #tpu.memory_space<vmem>>, vector<1x128x128xbf16>
    %151 = vector.shape_cast %150 : vector<1x128x128xbf16> to vector<128x128xbf16>
    %cst_132 = arith.constant dense<0.000000e+00> : vector<144x128xf32>
    %152 = tpu.matmul %149, %151, %cst_132 {dimension_numbers = #tpu.dot_dimension_numbers<[1], [0], [0], [1], [0, 0, 1, 1], [], []>} : vector<144x128xbf16>, vector<128x128xbf16>, vector<144x128xf32> -> vector<144x128xf32>
    %153 = arith.addf %148, %152 : vector<144x128xf32>
    %154 = vector.shape_cast %153 : vector<144x128xf32> to vector<8x18x128xf32>
    %155 = vector.extract_strided_slice %154 {offsets = [0, 0, 0], sizes = [8, 16, 128], strides = [1, 1, 1]} : vector<8x18x128xf32> to vector<8x16x128xf32>
    %156 = vector.shape_cast %155 : vector<8x16x128xf32> to vector<128x128xf32>
    %c0_133 = arith.constant 0 : index
    %c0_134 = arith.constant 0 : index
    %157 = vector.load %arg6[%c0_133, %c0_134] : memref<1x128xf32, #tpu.memory_space<vmem>>, vector<1x128xf32>
    %158 = vector.broadcast %157 : vector<1x128xf32> to vector<128x128xf32>
    %159 = arith.addf %156, %158 : vector<128x128xf32>
    %cst_135 = arith.constant 0.000000e+00 : f32
    %160 = vector.broadcast %cst_135 : f32 to vector<128x128xf32>
    %161 = arith.maximumf %159, %160 : vector<128x128xf32>
    %162 = arith.truncf %161 : vector<128x128xf32> to vector<128x128xbf16>
    %c0_136 = arith.constant 0 : index
    %c0_137 = arith.constant 0 : index
    %163 = vector.load %arg4[%c0_136, %c0_137] : memref<128x128xbf16, #tpu.memory_space<vmem>>, vector<128x128xbf16>
    %cst_138 = arith.constant dense<0.000000e+00> : vector<128x128xf32>
    %164 = tpu.matmul %162, %163, %cst_138 {dimension_numbers = #tpu.dot_dimension_numbers<[1], [0], [0], [1], [0, 0, 1, 1], [], []>} : vector<128x128xbf16>, vector<128x128xbf16>, vector<128x128xf32> -> vector<128x128xf32>
    %c0_139 = arith.constant 0 : index
    %c8_140 = arith.constant 8 : index
    %c0_141 = arith.constant 0 : index
    %c0_142 = arith.constant 0 : index
    %165 = vector.load %arg1[%c0_139, %c8_140, %c0_141, %c0_142] : memref<1x16x16x128xbf16, #tpu.memory_space<vmem>>, vector<1x8x16x128xbf16>
    %166 = vector.shape_cast %165 : vector<1x8x16x128xbf16> to vector<8x16x128xbf16>
    %167 = vector.shape_cast %166 : vector<8x16x128xbf16> to vector<128x128xbf16>
    %168 = arith.extf %167 : vector<128x128xbf16> to vector<128x128xf32>
    %c0_143 = arith.constant 0 : index
    %c0_144 = arith.constant 0 : index
    %169 = vector.load %arg7[%c0_143, %c0_144] : memref<1x128xf32, #tpu.memory_space<vmem>>, vector<1x128xf32>
    %170 = vector.broadcast %169 : vector<1x128xf32> to vector<128x128xf32>
    %171 = arith.addf %164, %170 : vector<128x128xf32>
    %172 = arith.addf %171, %168 : vector<128x128xf32>
    %cst_145 = arith.constant 0.000000e+00 : f32
    %173 = vector.broadcast %cst_145 : f32 to vector<128x128xf32>
    %174 = arith.maximumf %172, %173 : vector<128x128xf32>
    %175 = vector.shape_cast %174 : vector<128x128xf32> to vector<8x16x128xf32>
    %176 = arith.truncf %175 : vector<8x16x128xf32> to vector<8x16x128xbf16>
    %c0_146 = arith.constant 0 : index
    %c8_147 = arith.constant 8 : index
    %c0_148 = arith.constant 0 : index
    %c0_149 = arith.constant 0 : index
    %177 = vector.load %arg8[%c0_146, %c8_147, %c0_148, %c0_149] : memref<1x16x16x128xbf16, #tpu.memory_space<vmem>>, vector<1x8x16x128xbf16>
    %178 = vector.shape_cast %177 : vector<1x8x16x128xbf16> to vector<8x16x128xbf16>
    %179 = vector.shape_cast %176 : vector<8x16x128xbf16> to vector<1x8x16x128xbf16>
    tpu.vector_store %arg8[%c0_146, %c8_147, %c0_148, %c0_149], %179 {strides = array<i32>} : memref<1x16x16x128xbf16, #tpu.memory_space<vmem>>, vector<1x8x16x128xbf16>,
    return
  }
  func.func @transform_0(%arg0: i32) -> (i32, i32, i32, i32) {
    %c0_i32 = arith.constant 0 : i32
    %c0_i32_0 = arith.constant 0 : i32
    %c0_i32_1 = arith.constant 0 : i32
    %c0_i32_2 = arith.constant 0 : i32
    return %arg0, %c0_i32, %c0_i32_0, %c0_i32_1 : i32, i32, i32, i32
  }
  func.func @transform_1(%arg0: i32) -> (i32, i32) {
    %c0_i32 = arith.constant 0 : i32
    %c0_i32_0 = arith.constant 0 : i32
    %c0_i32_1 = arith.constant 0 : i32
    return %c0_i32, %c0_i32_0 : i32, i32
  }
  func.func @transform_2(%arg0: i32) -> (i32, i32, i32) {
    %c0_i32 = arith.constant 0 : i32
    %c0_i32_0 = arith.constant 0 : i32
    %c0_i32_1 = arith.constant 0 : i32
    %c0_i32_2 = arith.constant 0 : i32
    return %c0_i32, %c0_i32_0, %c0_i32_1 : i32, i32, i32
  }
  func.func @transform_3(%arg0: i32) -> (i32, i32) {
    %c0_i32 = arith.constant 0 : i32
    %c0_i32_0 = arith.constant 0 : i32
    %c0_i32_1 = arith.constant 0 : i32
    return %c0_i32, %c0_i32_0 : i32, i32
  }
  func.func @transform_4(%arg0: i32) -> (i32, i32) {
    %c0_i32 = arith.constant 0 : i32
    %c0_i32_0 = arith.constant 0 : i32
    %c0_i32_1 = arith.constant 0 : i32
    return %c0_i32, %c0_i32_0 : i32, i32
  }
  func.func @transform_5(%arg0: i32) -> (i32, i32) {
    %c0_i32 = arith.constant 0 : i32
    %c0_i32_0 = arith.constant 0 : i32
    %c0_i32_1 = arith.constant 0 : i32
    return %c0_i32, %c0_i32_0 : i32, i32
  }
  func.func @transform_6(%arg0: i32) -> (i32, i32) {
    %c0_i32 = arith.constant 0 : i32
    %c0_i32_0 = arith.constant 0 : i32
    %c0_i32_1 = arith.constant 0 : i32
    return %c0_i32, %c0_i32_0 : i32, i32
  }
  func.func @transform_7(%arg0: i32) -> (i32, i32, i32, i32) {
    %c0_i32 = arith.constant 0 : i32
    %c0_i32_0 = arith.constant 0 : i32
    %c0_i32_1 = arith.constant 0 : i32
    %c0_i32_2 = arith.constant 0 : i32
    return %arg0, %c0_i32, %c0_i32_0, %c0_i32_1 : i32, i32, i32, i32
  }
}

</mosaic_0001>

<llo_original>
// kernel: bottleneck_pallas.1
$region0: #{bottleneck_pallas.1}
  #allocation0 [shape = 'u32[]', space=smem, size = 0x4, offset = 0x4, fixed_abs, tag = 'smem constant byte address 0x4 - core index']
  #allocation1 [shape = 'u32[144,128]{1,0:T(1,128)}', space=vmem, size = 0x12000, scoped, tag = 'internal scratch']
  #allocation2 [shape = 'bf16[326,128]{1,0:T(8,128)(2,1)}', space=vmem, size = 0x14800, scoped, tag = 'scratch operand']
  %s0 = inlined_call_operand.vmem [shape: bf16[2,16,16,128], index: 0, kind: input, shape index: {}]
  %s1 = inlined_call_operand.vmem [shape: bf16[128,128], index: 1, kind: input, shape index: {}]
  %s2 = inlined_call_operand.vmem [shape: bf16[9,128,128], index: 2, kind: input, shape index: {}]
  %s3 = inlined_call_operand.vmem [shape: bf16[128,128], index: 3, kind: input, shape index: {}]
  %s4 = inlined_call_operand.vmem [shape: f32[1,128], index: 4, kind: input, shape index: {}]
  %s5 = inlined_call_operand.vmem [shape: f32[1,128], index: 5, kind: input, shape index: {}]
  %s6 = inlined_call_operand.vmem [shape: f32[1,128], index: 6, kind: input, shape index: {}]
  %s7 = inlined_call_operand.hbm [shape: bf16[2,16,16,128], index: 7, kind: output, shape index: {}]
  %s8 = sld [smem:[#allocation0]]
  $region61: #{bottleneck_pallas.1} parent=0
    _
  %s10 = ssub.s32 1, %s8
  %s11 = scalar_select 0, %s10, %s8
  $region1: #{bottleneck_pallas.1} parent=0
    #allocation3 [shape = 'u8[131072]{0}', space=vmem, size = 0x20000, scoped, tag = 'output window, operand 0']
    #allocation4 [shape = 's32[2]{0}', space=sflag, size = 0x8, scoped, tag = 'scoped memory for bottleneck_pallas.1']
    %12 = vsyncpa [#allocation4], 0
    %s13 = scalar_lea.sflag [#allocation4], 1
    %14 = vsyncpa %s13, 0
    loop: start=0, step=1, limit=4
    $region2: #{bottleneck_pallas.1} parent=1 // loop_pre_header
      _
    $region3: #{bottleneck_pallas.1} parent=1 // loop_header
      %s16 = sphi 0, %s20
      %p17 = scmp.ge.s32.totalorder %s16, 4
      %s26 = sphi 0, %s28
      %s29 = sphi 0, %s26
      %s30 = sphi 0, %s29
      %s46 = sphi 0, %s30
      %s50 = sphi 0, %s50
      %s52 = sphi 0, %s50
      %s53 = sphi 0, %s52
      %s67 = sphi 0, %s53
      %s71 = sphi 0, %s71
      %s73 = sphi 0, %s71
      %s74 = sphi 0, %s73
      %s88 = sphi 0, %s74
      %s92 = sphi 0, %s92
      %s94 = sphi 0, %s92
      %s95 = sphi 0, %s94
      %s109 = sphi 0, %s95
      %s113 = sphi 0, %s113
      %s115 = sphi 0, %s113
      %s116 = sphi 0, %s115
      %s130 = sphi 0, %s116
      %s134 = sphi 0, %s134
      %s136 = sphi 0, %s134
      %s137 = sphi 0, %s136
      %s151 = sphi 0, %s137
      %s155 = sphi 0, %s155
      %s157 = sphi 0, %s155
      %s158 = sphi 0, %s157
      %s172 = sphi 0, %s158
      %s178 = sphi 0, %s180
      %s181 = sphi 0, %s178
      %s182 = sphi 0, %s181
      %s198 = sphi 0, %s182
    $region4: #{bottleneck_pallas.1} parent=1 // loop_header_branch
      %19 = sbr.rel (%p17) target = $region8
    $region5: #{bottleneck_pallas.1} parent=1 // loop_body
      %s21 = ssub.s32 %s16, 1
      %s22 = ssub.s32 %s16, 2
      %s23 = sadd.s32 %s16, 1
      %s24 = ssub.s32 %s16, %s23
      %p25 = scmp.eq.s32.totalorder %s24, 0
      %s27 = sadd.s32 %s26, 1
      %s28 = scalar_select %p25, %s26, %s27
      %p31 = pneg %p25
      %p32 = scmp.eq.s32.totalorder %s16, 1
      %p33 = por %p31, %p32
      %p34 = scmp.ne.s32.totalorder %s26, %s29
      %p35 = scmp.eq.s32.totalorder %s16, 0
      %p36 = por %p34, %p35
      %p37 = scmp.ne.s32.totalorder %s26, %s29
      %p38 = scmp.eq.s32.totalorder %s21, 1
      %p39 = por %p37, %p38
      %p40 = scmp.ne.s32.totalorder %s29, %s30
      %p41 = scmp.eq.s32.totalorder %s21, 0
      %p42 = por %p40, %p41
      %p43 = scmp.ne.s32.totalorder %s29, %s30
      %p44 = scmp.eq.s32.totalorder %s22, 1
      %p45 = por %p43, %p44
      %p47 = scmp.ne.s32.totalorder %s30, %s46
      %p48 = scmp.eq.s32.totalorder %s22, 0
      %p49 = por %p47, %p48
      %s51 = sadd.s32 %s50, 1
      %p54 = scmp.eq.s32.totalorder %s16, 1
      %p55 = scmp.ne.s32.totalorder %s50, %s52
      %p56 = scmp.eq.s32.totalorder %s16, 0
      %p57 = por %p55, %p56
      %p58 = scmp.ne.s32.totalorder %s50, %s52
      %p59 = scmp.eq.s32.totalorder %s21, 1
      %p60 = por %p58, %p59
      %p61 = scmp.ne.s32.totalorder %s52, %s53
      %p62 = scmp.eq.s32.totalorder %s21, 0
      %p63 = por %p61, %p62
      %p64 = scmp.ne.s32.totalorder %s52, %s53
      %p65 = scmp.eq.s32.totalorder %s22, 1
      %p66 = por %p64, %p65
      %p68 = scmp.ne.s32.totalorder %s53, %s67
      %p69 = scmp.eq.s32.totalorder %s22, 0
      %p70 = por %p68, %p69
      %s72 = sadd.s32 %s71, 1
      %p75 = scmp.eq.s32.totalorder %s16, 1
      %p76 = scmp.ne.s32.totalorder %s71, %s73
      %p77 = scmp.eq.s32.totalorder %s16, 0
      %p78 = por %p76, %p77
      %p79 = scmp.ne.s32.totalorder %s71, %s73
      %p80 = scmp.eq.s32.totalorder %s21, 1
      %p81 = por %p79, %p80
      %p82 = scmp.ne.s32.totalorder %s73, %s74
      %p83 = scmp.eq.s32.totalorder %s21, 0
      %p84 = por %p82, %p83
      %p85 = scmp.ne.s32.totalorder %s73, %s74
      %p86 = scmp.eq.s32.totalorder %s22, 1
      %p87 = por %p85, %p86
      %p89 = scmp.ne.s32.totalorder %s74, %s88
      %p90 = scmp.eq.s32.totalorder %s22, 0
      %p91 = por %p89, %p90
      %s93 = sadd.s32 %s92, 1
      %p96 = scmp.eq.s32.totalorder %s16, 1
      %p97 = scmp.ne.s32.totalorder %s92, %s94
      %p98 = scmp.eq.s32.totalorder %s16, 0
      %p99 = por %p97, %p98
      %p100 = scmp.ne.s32.totalorder %s92, %s94
      %p101 = scmp.eq.s32.totalorder %s21, 1
      %p102 = por %p100, %p101
      %p103 = scmp.ne.s32.totalorder %s94, %s95
      %p104 = scmp.eq.s32.totalorder %s21, 0
      %p105 = por %p103, %p104
      %p106 = scmp.ne.s32.totalorder %s94, %s95
      %p107 = scmp.eq.s32.totalorder %s22, 1
      %p108 = por %p106, %p107
      %p110 = scmp.ne.s32.totalorder %s95, %s109
      %p111 = scmp.eq.s32.totalorder %s22, 0
      %p112 = por %p110, %p111
      %s114 = sadd.s32 %s113, 1
      %p117 = scmp.eq.s32.totalorder %s16, 1
      %p118 = scmp.ne.s32.totalorder %s113, %s115
      %p119 = scmp.eq.s32.totalorder %s16, 0
      %p120 = por %p118, %p119
      %p121 = scmp.ne.s32.totalorder %s113, %s115
      %p122 = scmp.eq.s32.totalorder %s21, 1
      %p123 = por %p121, %p122
      %p124 = scmp.ne.s32.totalorder %s115, %s116
      %p125 = scmp.eq.s32.totalorder %s21, 0
      %p126 = por %p124, %p125
      %p127 = scmp.ne.s32.totalorder %s115, %s116
      %p128 = scmp.eq.s32.totalorder %s22, 1
      %p129 = por %p127, %p128
      %p131 = scmp.ne.s32.totalorder %s116, %s130
      %p132 = scmp.eq.s32.totalorder %s22, 0
      %p133 = por %p131, %p132
      %s135 = sadd.s32 %s134, 1
      %p138 = scmp.eq.s32.totalorder %s16, 1
      %p139 = scmp.ne.s32.totalorder %s134, %s136
      %p140 = scmp.eq.s32.totalorder %s16, 0
      %p141 = por %p139, %p140
      %p142 = scmp.ne.s32.totalorder %s134, %s136
      %p143 = scmp.eq.s32.totalorder %s21, 1
      %p144 = por %p142, %p143
      %p145 = scmp.ne.s32.totalorder %s136, %s137
      %p146 = scmp.eq.s32.totalorder %s21, 0
      %p147 = por %p145, %p146
      %p148 = scmp.ne.s32.totalorder %s136, %s137
      %p149 = scmp.eq.s32.totalorder %s22, 1
      %p150 = por %p148, %p149
      %p152 = scmp.ne.s32.totalorder %s137, %s151
      %p153 = scmp.eq.s32.totalorder %s22, 0
      %p154 = por %p152, %p153
      %s156 = sadd.s32 %s155, 1
      %p159 = scmp.eq.s32.totalorder %s16, 1
      %p160 = scmp.ne.s32.totalorder %s155, %s157
      %p161 = scmp.eq.s32.totalorder %s16, 0
      %p162 = por %p160, %p161
      %p163 = scmp.ne.s32.totalorder %s155, %s157
      %p164 = scmp.eq.s32.totalorder %s21, 1
      %p165 = por %p163, %p164
      %p166 = scmp.ne.s32.totalorder %s157, %s158
      %p167 = scmp.eq.s32.totalorder %s21, 0
      %p168 = por %p166, %p167
      %p169 = scmp.ne.s32.totalorder %s157, %s158
      %p170 = scmp.eq.s32.totalorder %s22, 1
      %p171 = por %p169, %p170
      %p173 = scmp.ne.s32.totalorder %s158, %s172
      %p174 = scmp.eq.s32.totalorder %s22, 0
      %p175 = por %p173, %p174
      %s176 = ssub.s32 %s16, %s23
      %p177 = scmp.eq.s32.totalorder %s176, 0
      %s179 = sadd.s32 %s178, 1
      %s180 = scalar_select %p177, %s178, %s179
      %p183 = pneg %p177
      %p184 = scmp.eq.s32.totalorder %s16, 1
      %p185 = por %p183, %p184
      %p186 = scmp.ne.s32.totalorder %s178, %s181
      %p187 = scmp.eq.s32.totalorder %s16, 0
      %p188 = por %p186, %p187
      %p189 = scmp.ne.s32.totalorder %s178, %s181
      %p190 = scmp.eq.s32.totalorder %s21, 1
      %p191 = por %p189, %p190
      %p192 = scmp.ne.s32.totalorder %s181, %s182
      %p193 = scmp.eq.s32.totalorder %s21, 0
      %p194 = por %p192, %p193
      %p195 = scmp.ne.s32.totalorder %s181, %s182
      %p196 = scmp.eq.s32.totalorder %s22, 1
      %p197 = por %p195, %p196
      %p199 = scmp.ne.s32.totalorder %s182, %s198
      %p200 = scmp.eq.s32.totalorder %s22, 0
      %p201 = por %p199, %p200
      %p202 = scmp.le.s32.totalorder 1, %s16
      %p203 = scmp.lt.s32.totalorder %s16, 3
      %p204 = pnand %p202, %p203
      %p205 = pneg %p204
      // Predicated region
      $region9: #{bottleneck_pallas.1} parent=5 // pred_check
        _
      $region10: #{bottleneck_pallas.1} parent=5 // pred_check_branch
        %207 = sbr.rel (%p204) target = $region12
      $region11: #{bottleneck_pallas.1} parent=5 // pred_region
        %s208 = ssub.s32 %s16, 1
        // Predicated region
        $region13: #{bottleneck_pallas.1} parent=11 // pred_check
          %p209 = pneg %p63
        $region14: #{bottleneck_pallas.1} parent=11 // pred_check_branch
          %211 = sbr.rel (%p209) target = $region16
        $region15: #{bottleneck_pallas.1} parent=11 // pred_region
          _
        $region16: #{bottleneck_pallas.1} parent=11 // pred_fallthru
          _
        // Predicated region
        $region17: #{bottleneck_pallas.1} parent=11 // pred_check
          %p212 = pneg %p84
        $region18: #{bottleneck_pallas.1} parent=11 // pred_check_branch
          %214 = sbr.rel (%p212) target = $region20
        $region19: #{bottleneck_pallas.1} parent=11 // pred_region
          _
        $region20: #{bottleneck_pallas.1} parent=11 // pred_fallthru
          _
        // Predicated region
        $region21: #{bottleneck_pallas.1} parent=11 // pred_check
          %p215 = pneg %p105
        $region22: #{bottleneck_pallas.1} parent=11 // pred_check_branch
          %217 = sbr.rel (%p215) target = $region24
        $region23: #{bottleneck_pallas.1} parent=11 // pred_region
          _
        $region24: #{bottleneck_pallas.1} parent=11 // pred_fallthru
          _
        // Predicated region
        $region25: #{bottleneck_pallas.1} parent=11 // pred_check
          %p218 = pneg %p126
        $region26: #{bottleneck_pallas.1} parent=11 // pred_check_branch
          %220 = sbr.rel (%p218) target = $region28
        $region27: #{bottleneck_pallas.1} parent=11 // pred_region
          _
        $region28: #{bottleneck_pallas.1} parent=11 // pred_fallthru
          _
        // Predicated region
        $region29: #{bottleneck_pallas.1} parent=11 // pred_check
          %p221 = pneg %p147
        $region30: #{bottleneck_pallas.1} parent=11 // pred_check_branch
          %223 = sbr.rel (%p221) target = $region32
        $region31: #{bottleneck_pallas.1} parent=11 // pred_region
          _
        $region32: #{bottleneck_pallas.1} parent=11 // pred_fallthru
          _
        // Predicated region
        $region33: #{bottleneck_pallas.1} parent=11 // pred_check
          %p224 = pneg %p168
        $region34: #{bottleneck_pallas.1} parent=11 // pred_check_branch
          %226 = sbr.rel (%p224) target = $region36
        $region35: #{bottleneck_pallas.1} parent=11 // pred_region
          _
        $region36: #{bottleneck_pallas.1} parent=11 // pred_fallthru
          _
      $region12: #{bottleneck_pallas.1} parent=5 // pred_fallthru
        _
      %p227 = scmp.lt.s32.totalorder %s16, 2
      // Predicated region
      $region37: #{bottleneck_pallas.1} parent=5 // pred_check
        %p228 = pneg %p227
      $region38: #{bottleneck_pallas.1} parent=5 // pred_check_branch
        %230 = sbr.rel (%p228) target = $region40
      $region39: #{bottleneck_pallas.1} parent=5 // pred_region
        // Predicated region
        $region41: #{bottleneck_pallas.1} parent=39 // pred_check
          %p231 = pneg %p36
        $region42: #{bottleneck_pallas.1} parent=39 // pred_check_branch
          %233 = sbr.rel (%p231) target = $region44
        $region43: #{bottleneck_pallas.1} parent=39 // pred_region
          %p234 = scmp.lt.s32.totalorder %s16, 1
          %s235 = scalar_select %p234, %s16, 1
          %s236 = smul.addr %s235, 32
          %s237 = smul.addr %s236, 4
          %s238 = scalar_lea.vmem %s0, %s237
        $region44: #{bottleneck_pallas.1} parent=39 // pred_fallthru
          _
      $region40: #{bottleneck_pallas.1} parent=5 // pred_fallthru
        _
      %p239 = scmp.le.s32.totalorder 1, %s16
      %p240 = scmp.lt.s32.totalorder %s16, 3
      %p241 = pnand %p239, %p240
      %p242 = pneg %p241
      // Predicated region
      $region45: #{bottleneck_pallas.1} parent=5 // pred_check
        _
      $region46: #{bottleneck_pallas.1} parent=5 // pred_check_branch
        %244 = sbr.rel (%p241) target = $region48
      $region47: #{bottleneck_pallas.1} parent=5 // pred_region
        %s245 = ssub.s32 %s16, 1
        %p246 = scmp.lt.s32.totalorder %s21, 1
        %s247 = scalar_select %p246, %s21, 1
        %s248 = smul.addr %s247, 32
        %s249 = smul.addr %s248, 4
        %s250 = scalar_lea.vmem %s0, %s249
        %p251 = pneg %p42
        %p252 = pneg %p39
        %p253 = pneg %p63
        %p254 = pneg %p60
        %p255 = pneg %p84
        %p256 = pneg %p81
        %p257 = pneg %p105
        %p258 = pneg %p102
        %p259 = pneg %p126
        %p260 = pneg %p123
        %p261 = pneg %p147
        %p262 = pneg %p144
        %p263 = pneg %p168
        %p264 = pneg %p165
        %p265 = pneg %p194
        %p266 = pneg %p191
        %s267 = sand.u32 %s181, 1
        %s268 = scalar_lea.sflag [#allocation4], %s267
        %s269 = sand.u32 %s181, 1
        %s270 = smul.addr %s269, 128
        %s271 = scalar_lea.vmem [#allocation3], %s270
        %p272 = scmp.lt.s32.totalorder %s21, 1
        %s273 = scalar_select %p272, %s21, 1
        %s274 = smul.addr %s273, 32
        %s275 = smul.addr %s274, 4
        %s276 = scalar_lea.vmem %s0, %s275
        %278 = vst [vmem:[#allocation2] sm:$0xf] 0
        %279 = vst [vmem:[#allocation2 + $0x4] sm:$0xf] 0
        %280 = vst [vmem:[#allocation2 + $0x8] sm:$0x1] 0
        %281 = vst [vmem:[#allocation2 + $0x98] sm:$0xe] 0
        %282 = vst [vmem:[#allocation2 + $0x9c] sm:$0xf] 0
        %283 = vst [vmem:[#allocation2 + $0xa0] sm:$0x7] 0
        %v284 = vld [vmem:[%s276] sm:$0xf]
        %v285 = vld [vmem:[%s276 + $0x4] sm:$0xf]
        %v286 = vld [vmem:[%s276 + $0x8] sm:$0xf]
        %v287 = vld [vmem:[%s276 + $0xc] sm:$0xf]
        %v288 = vld [vmem:[%s276 + $0x10] sm:$0xf]
        %v289 = vld [vmem:[%s276 + $0x14] sm:$0xf]
        %v290 = vld [vmem:[%s276 + $0x18] sm:$0xf]
        %v291 = vld [vmem:[%s276 + $0x1c] sm:$0xf]
        %v292 = vld [vmem:[%s276 + $0x20] sm:$0xf]
        %v293 = vld [vmem:[%s276 + $0x24] sm:$0xf]
        %v294 = vld [vmem:[%s276 + $0x28] sm:$0xf]
        %v295 = vld [vmem:[%s276 + $0x2c] sm:$0xf]
        %v296 = vld [vmem:[%s276 + $0x30] sm:$0xf]
        %v297 = vld [vmem:[%s276 + $0x34] sm:$0xf]
        %v298 = vld [vmem:[%s276 + $0x38] sm:$0xf]
        %v299 = vld [vmem:[%s276 + $0x3c] sm:$0xf]
        %v300 = vld [vmem:[%s1] sm:$0xf]
        %v301 = vld [vmem:[%s1 + $0x4] sm:$0xf]
        %v302 = vld [vmem:[%s1 + $0x8] sm:$0xf]
        %v303 = vld [vmem:[%s1 + $0xc] sm:$0xf]
        %v304 = vld [vmem:[%s1 + $0x10] sm:$0xf]
        %v305 = vld [vmem:[%s1 + $0x14] sm:$0xf]
        %v306 = vld [vmem:[%s1 + $0x18] sm:$0xf]
        %v307 = vld [vmem:[%s1 + $0x1c] sm:$0xf]
        %v308 = vld [vmem:[%s1 + $0x20] sm:$0xf]
        %v309 = vld [vmem:[%s1 + $0x24] sm:$0xf]
        %v310 = vld [vmem:[%s1 + $0x28] sm:$0xf]
        %v311 = vld [vmem:[%s1 + $0x2c] sm:$0xf]
        %v312 = vld [vmem:[%s1 + $0x30] sm:$0xf]
        %v313 = vld [vmem:[%s1 + $0x34] sm:$0xf]
        %v314 = vld [vmem:[%s1 + $0x38] sm:$0xf]
        %v315 = vld [vmem:[%s1 + $0x3c] sm:$0xf]
        %v316 = vld [vmem:[%s4] sm:$0x1]
        %v318 = vlaneseq
        %v319 = vshrl.u32 %v318, 7
        %v320 = vsub.s32 0, %v319
        %v321 = vrot.slane %v316, %v320
        %v339 = vunpack.c.l.b16 %v284
        %v340 = vunpack.c.l.b16 %v285
        %v341 = vunpack.c.l.b16 %v286
        %v342 = vunpack.c.l.b16 %v287
        %v343 = vunpack.c.l.b16 %v288
        %v344 = vunpack.c.l.b16 %v289
        %v345 = vunpack.c.l.b16 %v290
        %v346 = vunpack.c.l.b16 %v291
        %v347 = vunpack.c.l.b16 %v292
        %v348 = vunpack.c.l.b16 %v293
        %v349 = vunpack.c.l.b16 %v294
        %v350 = vunpack.c.l.b16 %v295
        %v351 = vunpack.c.l.b16 %v296
        %v352 = vunpack.c.l.b16 %v297
        %v353 = vunpack.c.l.b16 %v298
        %v354 = vunpack.c.l.b16 %v299
        %v355 = vpack.c.b16 %v340, %v339
        %v356 = vpack.c.b16 %v342, %v341
        %v357 = vpack.c.b16 %v344, %v343
        %v358 = vpack.c.b16 %v346, %v345
        %v359 = vpack.c.b16 %v348, %v347
        %v360 = vpack.c.b16 %v350, %v349
        %v361 = vpack.c.b16 %v352, %v351
        %v362 = vpack.c.b16 %v354, %v353
        %v387 = vunpack.c.l.b16 %v300
        %v388 = vunpack.c.l.b16 %v301
        %v389 = vunpack.c.l.b16 %v302
        %v390 = vunpack.c.l.b16 %v303
        %v391 = vunpack.c.l.b16 %v304
        %v392 = vunpack.c.l.b16 %v305
        %v393 = vunpack.c.l.b16 %v306
        %v394 = vunpack.c.l.b16 %v307
        %v395 = vunpack.c.l.b16 %v308
        %v396 = vunpack.c.l.b16 %v309
        %v397 = vunpack.c.l.b16 %v310
        %v398 = vunpack.c.l.b16 %v311
        %v399 = vunpack.c.l.b16 %v312
        %v400 = vunpack.c.l.b16 %v313
        %v401 = vunpack.c.l.b16 %v314
        %v402 = vunpack.c.l.b16 %v315
        %v403 = vpack.c.b16 %v388, %v387
        %v404 = vpack.c.b16 %v390, %v389
        %v405 = vpack.c.b16 %v392, %v391
        %v406 = vpack.c.b16 %v394, %v393
        %v407 = vpack.c.b16 %v396, %v395
        %v408 = vpack.c.b16 %v398, %v397
        %v409 = vpack.c.b16 %v400, %v399
        %v410 = vpack.c.b16 %v402, %v401
        %419 = vmatprep.subr.bf16.mxu0 0
        %420 = vmatpush1.bf16.msra.mxu0 %v403
        %421 = vmatprep.subr.bf16.mxu0 0
        %422 = vmatpush1.bf16.msra.mxu0 %v404
        %423 = vmatprep.subr.bf16.mxu0 0
        %424 = vmatpush1.bf16.msra.mxu0 %v405
        %425 = vmatprep.subr.bf16.mxu0 0
        %426 = vmatpush1.bf16.msra.mxu0 %v406
        %427 = vmatprep.subr.bf16.mxu0 0
        %428 = vmatpush1.bf16.msra.mxu0 %v407
        %429 = vmatprep.subr.bf16.mxu0 0
        %430 = vmatpush1.bf16.msra.mxu0 %v408
        %431 = vmatprep.subr.bf16.mxu0 0
        %432 = vmatpush1.bf16.msra.mxu0 %v409
        %433 = vmatprep.subr.bf16.mxu0 0
        %434 = vmatpush1.bf16.msra.mxu0 %v410
        %435 = vmatprep.subr.bf16.mxu0 0
        %436 = vmatpush1.bf16.msra.mxu0 0
        %437 = vmatprep.subr.bf16.mxu0 0
        %438 = vmatpush1.bf16.msra.mxu0 0
        %439 = vmatprep.subr.bf16.mxu0 0
        %440 = vmatpush1.bf16.msra.mxu0 0
        %441 = vmatprep.subr.bf16.mxu0 0
        %442 = vmatpush1.bf16.msra.mxu0 0
        %443 = vmatprep.subr.bf16.mxu0 0
        %444 = vmatpush1.bf16.msra.mxu0 0
        %445 = vmatprep.subr.bf16.mxu0 0
        %446 = vmatpush1.bf16.msra.mxu0 0
        %447 = vmatprep.subr.bf16.mxu0 0
        %448 = vmatpush1.bf16.msra.mxu0 0
        %449 = vmatprep.subr.bf16.mxu0 0
        %450 = vmatpush1.bf16.msra.mxu0 0
        %451 = vmatprep.mubr.bf16.mxu0 0
        %452 = vmatmul.mubr.bf16.gmra.mrb[0].mxu0 %v355
        %v453 = vpop.f32.mrb[0].mxu0
        %v454 = vadd.f32 %v321, %v453
        %v455 = vpop.f32.mrb[0].mxu0
        %v456 = vpop.f32.mrb[0].mxu0
        %v457 = vadd.f32 %v321, %v456
        %v458 = vpop.f32.mrb[0].mxu0
        %459 = vmatprep.mubr.bf16.mxu0 0
        %460 = vmatmul.mubr.bf16.gmra.mrb[0].mxu0 %v356
        %v461 = vpop.f32.mrb[0].mxu0
        %v462 = vadd.f32 %v321, %v461
        %v463 = vpop.f32.mrb[0].mxu0
        %v464 = vpop.f32.mrb[0].mxu0
        %v465 = vadd.f32 %v321, %v464
        %v466 = vpop.f32.mrb[0].mxu0
        %467 = vmatprep.mubr.bf16.mxu0 0
        %468 = vmatmul.mubr.bf16.gmra.mrb[0].mxu0 %v357
        %v469 = vpop.f32.mrb[0].mxu0
        %v470 = vadd.f32 %v321, %v469
        %v471 = vpop.f32.mrb[0].mxu0
        %v472 = vpop.f32.mrb[0].mxu0
        %v473 = vadd.f32 %v321, %v472
        %v474 = vpop.f32.mrb[0].mxu0
        %475 = vmatprep.mubr.bf16.mxu0 0
        %476 = vmatmul.mubr.bf16.gmra.mrb[0].mxu0 %v358
        %v477 = vpop.f32.mrb[0].mxu0
        %v478 = vadd.f32 %v321, %v477
        %v479 = vpop.f32.mrb[0].mxu0
        %v480 = vpop.f32.mrb[0].mxu0
        %v481 = vadd.f32 %v321, %v480
        %v482 = vpop.f32.mrb[0].mxu0
        %483 = vmatprep.mubr.bf16.mxu0 0
        %484 = vmatmul.mubr.bf16.gmra.mrb[0].mxu0 %v359
        %v485 = vpop.f32.mrb[0].mxu0
        %v486 = vadd.f32 %v321, %v485
        %v487 = vpop.f32.mrb[0].mxu0
        %v488 = vpop.f32.mrb[0].mxu0
        %v489 = vadd.f32 %v321, %v488
        %v490 = vpop.f32.mrb[0].mxu0
        %491 = vmatprep.mubr.bf16.mxu0 0
        %492 = vmatmul.mubr.bf16.gmra.mrb[0].mxu0 %v360
        %v493 = vpop.f32.mrb[0].mxu0
        %v494 = vadd.f32 %v321, %v493
        %v495 = vpop.f32.mrb[0].mxu0
        %v496 = vpop.f32.mrb[0].mxu0
        %v497 = vadd.f32 %v321, %v496
        %v498 = vpop.f32.mrb[0].mxu0
        %499 = vmatprep.mubr.bf16.mxu0 0
        %500 = vmatmul.mubr.bf16.gmra.mrb[0].mxu0 %v361
        %v501 = vpop.f32.mrb[0].mxu0
        %v502 = vadd.f32 %v321, %v501
        %v503 = vpop.f32.mrb[0].mxu0
        %v504 = vpop.f32.mrb[0].mxu0
        %v505 = vadd.f32 %v321, %v504
        %v506 = vpop.f32.mrb[0].mxu0
        %507 = vmatprep.mubr.bf16.mxu0 0
        %508 = vmatmul.mubr.bf16.gmra.mrb[0].mxu0 %v362
        %v509 = vpop.f32.mrb[0].mxu0
        %v510 = vadd.f32 %v321, %v509
        %v511 = vpop.f32.mrb[0].mxu0
        %v512 = vpop.f32.mrb[0].mxu0
        %v513 = vadd.f32 %v321, %v512
        %v514 = vpop.f32.mrb[0].mxu0
        %515 = vdwg.mxu0
        %v516 = vmax.f32 %v454, 0.0
        %v517 = vmax.f32 %v457, 0.0
        %v518 = vmax.f32 %v462, 0.0
        %v519 = vmax.f32 %v465, 0.0
        %v520 = vmax.f32 %v470, 0.0
        %v521 = vmax.f32 %v473, 0.0
        %v522 = vmax.f32 %v478, 0.0
        %v523 = vmax.f32 %v481, 0.0
        %v524 = vmax.f32 %v486, 0.0
        %v525 = vmax.f32 %v489, 0.0
        %v526 = vmax.f32 %v494, 0.0
        %v527 = vmax.f32 %v497, 0.0
        %v528 = vmax.f32 %v502, 0.0
        %v529 = vmax.f32 %v505, 0.0
        %v530 = vmax.f32 %v510, 0.0
        %v531 = vmax.f32 %v513, 0.0
        %v532 = vpack.c.bf16 %v517, %v516
        %v533 = vpack.c.bf16 %v519, %v518
        %v534 = vpack.c.bf16 %v521, %v520
        %v535 = vpack.c.bf16 %v523, %v522
        %v536 = vpack.c.bf16 %v525, %v524
        %v537 = vpack.c.bf16 %v527, %v526
        %v538 = vpack.c.bf16 %v529, %v528
        %v539 = vpack.c.bf16 %v531, %v530
        %v541 = vshrl.u32 %v532, 16
        %v543 = vrot.slane %v541, 7
        %v544 = vshll.u32 %v532, 16
        %v546 = vor.u32 %v543, %v544
        %v548 = vshrl.u32 %v533, 16
        %v550 = vrot.slane %v548, 7
        %v551 = vshll.u32 %v533, 16
        %v553 = vor.u32 %v550, %v551
        %v555 = vshrl.u32 %v534, 16
        %v557 = vrot.slane %v555, 7
        %v558 = vshll.u32 %v534, 16
        %v560 = vor.u32 %v557, %v558
        %v562 = vshrl.u32 %v535, 16
        %v564 = vrot.slane %v562, 7
        %v565 = vshll.u32 %v535, 16
        %v567 = vor.u32 %v564, %v565
        %v569 = vshrl.u32 %v536, 16
        %v571 = vrot.slane %v569, 7
        %v572 = vshll.u32 %v536, 16
        %v574 = vor.u32 %v571, %v572
        %v576 = vshrl.u32 %v537, 16
        %v578 = vrot.slane %v576, 7
        %v579 = vshll.u32 %v537, 16
        %v581 = vor.u32 %v578, %v579
        %v583 = vshrl.u32 %v538, 16
        %v585 = vrot.slane %v583, 7
        %v586 = vshll.u32 %v538, 16
        %v588 = vor.u32 %v585, %v586
        %v590 = vshrl.u32 %v539, 16
        %v592 = vrot.slane %v590, 7
        %v593 = vshll.u32 %v539, 16
        %v595 = vor.u32 %v592, %v593
        %vm612 = vcmask 1040384
        %vm613 = vsmask.f32 256
        %vm614 = vmand %vm612, %vm613
        %v615 = vsel %vm614, 0, %v546
        %v616 = vsel %vm614, 0, %v553
        %v617 = vsel %vm614, 0, %v560
        %v618 = vsel %vm614, 0, %v567
        %v619 = vsel %vm614, 0, %v574
        %v620 = vsel %vm614, 0, %v581
        %v621 = vsel %vm614, 0, %v588
        %v622 = vsel %vm614, 0, %v595
        %v623 = vsel %vm614, %v543, 0
        %v624 = vsel %vm614, %v550, 0
        %v625 = vsel %vm614, %v557, 0
        %v626 = vsel %vm614, %v564, 0
        %v627 = vsel %vm614, %v571, 0
        %v628 = vsel %vm614, %v578, 0
        %v629 = vsel %vm614, %v585, 0
        %v630 = vsel %vm614, %v592, 0
        %v647 = vcombine.high %v615, %v615
        %v649 = vunpack.c.l.s4 1966171168
        %v650 = vunpack.c.0.s8 %v649
        %v651 = vlaneseq
        %v652 = vshrl.u32 %v651, 7
        %v653 = vsub.s32 %v650, %v652
        %v654 = vrot.slane %v615, %v653
        %v656 = vunpack.c.l.s4 1966171168
        %v657 = vunpack.c.0.s8 %v656
        %v658 = vlaneseq
        %v659 = vshrl.u32 %v658, 7
        %v660 = vsub.s32 %v657, %v659
        %v661 = vrot.slane %v647, %v660
        %v662 = vcombine.high %v654, %v654
        %v663 = vcombine.high %v661, %v661
        %v665 = vunpack.c.l.s4 1966171168
        %v666 = vunpack.c.0.s8 %v665
        %v667 = vlaneseq
        %v668 = vshrl.u32 %v667, 7
        %v669 = vsub.s32 %v666, %v668
        %v670 = vrot.slane %v654, %v669
        %v672 = vunpack.c.l.s4 1966171168
        %v673 = vunpack.c.0.s8 %v672
        %v674 = vlaneseq
        %v675 = vshrl.u32 %v674, 7
        %v676 = vsub.s32 %v673, %v675
        %v677 = vrot.slane %v661, %v676
        %v679 = vunpack.c.l.s4 1966171168
        %v680 = vunpack.c.0.s8 %v679
        %v681 = vlaneseq
        %v682 = vshrl.u32 %v681, 7
        %v683 = vsub.s32 %v680, %v682
        %v684 = vrot.slane %v662, %v683
        %v686 = vunpack.c.l.s4 1966171168
        %v687 = vunpack.c.0.s8 %v686
        %v688 = vlaneseq
        %v689 = vshrl.u32 %v688, 7
        %v690 = vsub.s32 %v687, %v689
        %v691 = vrot.slane %v663, %v690
        %v692 = vcombine.high %v670, %v670
        %v693 = vcombine.high %v677, %v677
        %v694 = vcombine.high %v684, %v684
        %v695 = vcombine.high %v691, %v691
        %v697 = vunpack.c.l.s4 1966171168
        %v698 = vunpack.c.0.s8 %v697
        %v699 = vlaneseq
        %v700 = vshrl.u32 %v699, 7
        %v701 = vsub.s32 %v698, %v700
        %v702 = vrot.slane %v623, %v701
        %v704 = vunpack.c.l.s4 1966171168
        %v705 = vunpack.c.0.s8 %v704
        %v706 = vlaneseq
        %v707 = vshrl.u32 %v706, 7
        %v708 = vsub.s32 %v705, %v707
        %v709 = vrot.slane %v702, %v708
        %v710 = vcombine.high %v616, %v616
        %v712 = vunpack.c.l.s4 1966171168
        %v713 = vunpack.c.0.s8 %v712
        %v714 = vlaneseq
        %v715 = vshrl.u32 %v714, 7
        %v716 = vsub.s32 %v713, %v715
        %v717 = vrot.slane %v616, %v716
        %v719 = vunpack.c.l.s4 1966171168
        %v720 = vunpack.c.0.s8 %v719
        %v721 = vlaneseq
        %v722 = vshrl.u32 %v721, 7
        %v723 = vsub.s32 %v720, %v722
        %v724 = vrot.slane %v710, %v723
        %v725 = vcombine.high %v717, %v717
        %v726 = vcombine.high %v724, %v724
        %v728 = vunpack.c.l.s4 1966171168
        %v729 = vunpack.c.0.s8 %v728
        %v730 = vlaneseq
        %v731 = vshrl.u32 %v730, 7
        %v732 = vsub.s32 %v729, %v731
        %v733 = vrot.slane %v717, %v732
        %v735 = vunpack.c.l.s4 1966171168
        %v736 = vunpack.c.0.s8 %v735
        %v737 = vlaneseq
        %v738 = vshrl.u32 %v737, 7
        %v739 = vsub.s32 %v736, %v738
        %v740 = vrot.slane %v724, %v739
        %v742 = vunpack.c.l.s4 1966171168
        %v743 = vunpack.c.0.s8 %v742
        %v744 = vlaneseq
        %v745 = vshrl.u32 %v744, 7
        %v746 = vsub.s32 %v743, %v745
        %v747 = vrot.slane %v725, %v746
        %v749 = vunpack.c.l.s4 1966171168
        %v750 = vunpack.c.0.s8 %v749
        %v751 = vlaneseq
        %v752 = vshrl.u32 %v751, 7
        %v753 = vsub.s32 %v750, %v752
        %v754 = vrot.slane %v726, %v753
        %v755 = vcombine.high %v733, %v733
        %v756 = vcombine.high %v740, %v740
        %v757 = vcombine.high %v747, %v747
        %v758 = vcombine.high %v754, %v754
        %v760 = vunpack.c.l.s4 1966171168
        %v761 = vunpack.c.0.s8 %v760
        %v762 = vlaneseq
        %v763 = vshrl.u32 %v762, 7
        %v764 = vsub.s32 %v761, %v763
        %v765 = vrot.slane %v624, %v764
        %v767 = vunpack.c.l.s4 1966171168
        %v768 = vunpack.c.0.s8 %v767
        %v769 = vlaneseq
        %v770 = vshrl.u32 %v769, 7
        %v771 = vsub.s32 %v768, %v770
        %v772 = vrot.slane %v765, %v771
        %v773 = vcombine.high %v617, %v617
        %v775 = vunpack.c.l.s4 1966171168
        %v776 = vunpack.c.0.s8 %v775
        %v777 = vlaneseq
        %v778 = vshrl.u32 %v777, 7
        %v779 = vsub.s32 %v776, %v778
        %v780 = vrot.slane %v617, %v779
        %v782 = vunpack.c.l.s4 1966171168
        %v783 = vunpack.c.0.s8 %v782
        %v784 = vlaneseq
        %v785 = vshrl.u32 %v784, 7
        %v786 = vsub.s32 %v783, %v785
        %v787 = vrot.slane %v773, %v786
        %v788 = vcombine.high %v780, %v780
        %v789 = vcombine.high %v787, %v787
        %v791 = vunpack.c.l.s4 1966171168
        %v792 = vunpack.c.0.s8 %v791
        %v793 = vlaneseq
        %v794 = vshrl.u32 %v793, 7
        %v795 = vsub.s32 %v792, %v794
        %v796 = vrot.slane %v780, %v795
        %v798 = vunpack.c.l.s4 1966171168
        %v799 = vunpack.c.0.s8 %v798
        %v800 = vlaneseq
        %v801 = vshrl.u32 %v800, 7
        %v802 = vsub.s32 %v799, %v801
        %v803 = vrot.slane %v787, %v802
        %v805 = vunpack.c.l.s4 1966171168
        %v806 = vunpack.c.0.s8 %v805
        %v807 = vlaneseq
        %v808 = vshrl.u32 %v807, 7
        %v809 = vsub.s32 %v806, %v808
        %v810 = vrot.slane %v788, %v809
        %v812 = vunpack.c.l.s4 1966171168
        %v813 = vunpack.c.0.s8 %v812
        %v814 = vlaneseq
        %v815 = vshrl.u32 %v814, 7
        %v816 = vsub.s32 %v813, %v815
        %v817 = vrot.slane %v789, %v816
        %v818 = vcombine.high %v796, %v796
        %v819 = vcombine.high %v803, %v803
        %v820 = vcombine.high %v810, %v810
        %v821 = vcombine.high %v817, %v817
        %v823 = vunpack.c.l.s4 1966171168
        %v824 = vunpack.c.0.s8 %v823
        %v825 = vlaneseq
        %v826 = vshrl.u32 %v825, 7
        %v827 = vsub.s32 %v824, %v826
        %v828 = vrot.slane %v625, %v827
        %v830 = vunpack.c.l.s4 1966171168
        %v831 = vunpack.c.0.s8 %v830
        %v832 = vlaneseq
        %v833 = vshrl.u32 %v832, 7
        %v834 = vsub.s32 %v831, %v833
        %v835 = vrot.slane %v828, %v834
        %v836 = vcombine.high %v618, %v618
        %v838 = vunpack.c.l.s4 1966171168
        %v839 = vunpack.c.0.s8 %v838
        %v840 = vlaneseq
        %v841 = vshrl.u32 %v840, 7
        %v842 = vsub.s32 %v839, %v841
        %v843 = vrot.slane %v618, %v842
        %v845 = vunpack.c.l.s4 1966171168
        %v846 = vunpack.c.0.s8 %v845
        %v847 = vlaneseq
        %v848 = vshrl.u32 %v847, 7
        %v849 = vsub.s32 %v846, %v848
        %v850 = vrot.slane %v836, %v849
        %v851 = vcombine.high %v843, %v843
        %v852 = vcombine.high %v850, %v850
        %v854 = vunpack.c.l.s4 1966171168
        %v855 = vunpack.c.0.s8 %v854
        %v856 = vlaneseq
        %v857 = vshrl.u32 %v856, 7
        %v858 = vsub.s32 %v855, %v857
        %v859 = vrot.slane %v843, %v858
        %v861 = vunpack.c.l.s4 1966171168
        %v862 = vunpack.c.0.s8 %v861
        %v863 = vlaneseq
        %v864 = vshrl.u32 %v863, 7
        %v865 = vsub.s32 %v862, %v864
        %v866 = vrot.slane %v850, %v865
        %v868 = vunpack.c.l.s4 1966171168
        %v869 = vunpack.c.0.s8 %v868
        %v870 = vlaneseq
        %v871 = vshrl.u32 %v870, 7
        %v872 = vsub.s32 %v869, %v871
        %v873 = vrot.slane %v851, %v872
        %v875 = vunpack.c.l.s4 1966171168
        %v876 = vunpack.c.0.s8 %v875
        %v877 = vlaneseq
        %v878 = vshrl.u32 %v877, 7
        %v879 = vsub.s32 %v876, %v878
        %v880 = vrot.slane %v852, %v879
        %v881 = vcombine.high %v859, %v859
        %v882 = vcombine.high %v866, %v866
        %v883 = vcombine.high %v873, %v873
        %v884 = vcombine.high %v880, %v880
        %v886 = vunpack.c.l.s4 1966171168
        %v887 = vunpack.c.0.s8 %v886
        %v888 = vlaneseq
        %v889 = vshrl.u32 %v888, 7
        %v890 = vsub.s32 %v887, %v889
        %v891 = vrot.slane %v626, %v890
        %v893 = vunpack.c.l.s4 1966171168
        %v894 = vunpack.c.0.s8 %v893
        %v895 = vlaneseq
        %v896 = vshrl.u32 %v895, 7
        %v897 = vsub.s32 %v894, %v896
        %v898 = vrot.slane %v891, %v897
        %v899 = vcombine.high %v619, %v619
        %v901 = vunpack.c.l.s4 1966171168
        %v902 = vunpack.c.0.s8 %v901
        %v903 = vlaneseq
        %v904 = vshrl.u32 %v903, 7
        %v905 = vsub.s32 %v902, %v904
        %v906 = vrot.slane %v619, %v905
        %v908 = vunpack.c.l.s4 1966171168
        %v909 = vunpack.c.0.s8 %v908
        %v910 = vlaneseq
        %v911 = vshrl.u32 %v910, 7
        %v912 = vsub.s32 %v909, %v911
        %v913 = vrot.slane %v899, %v912
        %v914 = vcombine.high %v906, %v906
        %v915 = vcombine.high %v913, %v913
        %v917 = vunpack.c.l.s4 1966171168
        %v918 = vunpack.c.0.s8 %v917
        %v919 = vlaneseq
        %v920 = vshrl.u32 %v919, 7
        %v921 = vsub.s32 %v918, %v920
        %v922 = vrot.slane %v906, %v921
        %v924 = vunpack.c.l.s4 1966171168
        %v925 = vunpack.c.0.s8 %v924
        %v926 = vlaneseq
        %v927 = vshrl.u32 %v926, 7
        %v928 = vsub.s32 %v925, %v927
        %v929 = vrot.slane %v913, %v928
        %v931 = vunpack.c.l.s4 1966171168
        %v932 = vunpack.c.0.s8 %v931
        %v933 = vlaneseq
        %v934 = vshrl.u32 %v933, 7
        %v935 = vsub.s32 %v932, %v934
        %v936 = vrot.slane %v914, %v935
        %v938 = vunpack.c.l.s4 1966171168
        %v939 = vunpack.c.0.s8 %v938
        %v940 = vlaneseq
        %v941 = vshrl.u32 %v940, 7
        %v942 = vsub.s32 %v939, %v941
        %v943 = vrot.slane %v915, %v942
        %v944 = vcombine.high %v922, %v922
        %v945 = vcombine.high %v929, %v929
        %v946 = vcombine.high %v936, %v936
        %v947 = vcombine.high %v943, %v943
        %v949 = vunpack.c.l.s4 1966171168
        %v950 = vunpack.c.0.s8 %v949
        %v951 = vlaneseq
        %v952 = vshrl.u32 %v951, 7
        %v953 = vsub.s32 %v950, %v952
        %v954 = vrot.slane %v627, %v953
        %v956 = vunpack.c.l.s4 1966171168
        %v957 = vunpack.c.0.s8 %v956
        %v958 = vlaneseq
        %v959 = vshrl.u32 %v958, 7
        %v960 = vsub.s32 %v957, %v959
        %v961 = vrot.slane %v954, %v960
        %v962 = vcombine.high %v620, %v620
        %v964 = vunpack.c.l.s4 1966171168
        %v965 = vunpack.c.0.s8 %v964
        %v966 = vlaneseq
        %v967 = vshrl.u32 %v966, 7
        %v968 = vsub.s32 %v965, %v967
        %v969 = vrot.slane %v620, %v968
        %v971 = vunpack.c.l.s4 1966171168
        %v972 = vunpack.c.0.s8 %v971
        %v973 = vlaneseq
        %v974 = vshrl.u32 %v973, 7
        %v975 = vsub.s32 %v972, %v974
        %v976 = vrot.slane %v962, %v975
        %v977 = vcombine.high %v969, %v969
        %v978 = vcombine.high %v976, %v976
        %v980 = vunpack.c.l.s4 1966171168
        %v981 = vunpack.c.0.s8 %v980
        %v982 = vlaneseq
        %v983 = vshrl.u32 %v982, 7
        %v984 = vsub.s32 %v981, %v983
        %v985 = vrot.slane %v969, %v984
        %v987 = vunpack.c.l.s4 1966171168
        %v988 = vunpack.c.0.s8 %v987
        %v989 = vlaneseq
        %v990 = vshrl.u32 %v989, 7
        %v991 = vsub.s32 %v988, %v990
        %v992 = vrot.slane %v976, %v991
        %v994 = vunpack.c.l.s4 1966171168
        %v995 = vunpack.c.0.s8 %v994
        %v996 = vlaneseq
        %v997 = vshrl.u32 %v996, 7
        %v998 = vsub.s32 %v995, %v997
        %v999 = vrot.slane %v977, %v998
        %v1001 = vunpack.c.l.s4 1966171168
        %v1002 = vunpack.c.0.s8 %v1001
        %v1003 = vlaneseq
        %v1004 = vshrl.u32 %v1003, 7
        %v1005 = vsub.s32 %v1002, %v1004
        %v1006 = vrot.slane %v978, %v1005
        %v1007 = vcombine.high %v985, %v985
        %v1008 = vcombine.high %v992, %v992
        %v1009 = vcombine.high %v999, %v999
        %v1010 = vcombine.high %v1006, %v1006
        %v1012 = vunpack.c.l.s4 1966171168
        %v1013 = vunpack.c.0.s8 %v1012
        %v1014 = vlaneseq
        %v1015 = vshrl.u32 %v1014, 7
        %v1016 = vsub.s32 %v1013, %v1015
        %v1017 = vrot.slane %v628, %v1016
        %v1019 = vunpack.c.l.s4 1966171168
        %v1020 = vunpack.c.0.s8 %v1019
        %v1021 = vlaneseq
        %v1022 = vshrl.u32 %v1021, 7
        %v1023 = vsub.s32 %v1020, %v1022
        %v1024 = vrot.slane %v1017, %v1023
        %v1025 = vcombine.high %v621, %v621
        %v1027 = vunpack.c.l.s4 1966171168
        %v1028 = vunpack.c.0.s8 %v1027
        %v1029 = vlaneseq
        %v1030 = vshrl.u32 %v1029, 7
        %v1031 = vsub.s32 %v1028, %v1030
        %v1032 = vrot.slane %v621, %v1031
        %v1034 = vunpack.c.l.s4 1966171168
        %v1035 = vunpack.c.0.s8 %v1034
        %v1036 = vlaneseq
        %v1037 = vshrl.u32 %v1036, 7
        %v1038 = vsub.s32 %v1035, %v1037
        %v1039 = vrot.slane %v1025, %v1038
        %v1040 = vcombine.high %v1032, %v1032
        %v1041 = vcombine.high %v1039, %v1039
        %v1043 = vunpack.c.l.s4 1966171168
        %v1044 = vunpack.c.0.s8 %v1043
        %v1045 = vlaneseq
        %v1046 = vshrl.u32 %v1045, 7
        %v1047 = vsub.s32 %v1044, %v1046
        %v1048 = vrot.slane %v1032, %v1047
        %v1050 = vunpack.c.l.s4 1966171168
        %v1051 = vunpack.c.0.s8 %v1050
        %v1052 = vlaneseq
        %v1053 = vshrl.u32 %v1052, 7
        %v1054 = vsub.s32 %v1051, %v1053
        %v1055 = vrot.slane %v1039, %v1054
        %v1057 = vunpack.c.l.s4 1966171168
        %v1058 = vunpack.c.0.s8 %v1057
        %v1059 = vlaneseq
        %v1060 = vshrl.u32 %v1059, 7
        %v1061 = vsub.s32 %v1058, %v1060
        %v1062 = vrot.slane %v1040, %v1061
        %v1064 = vunpack.c.l.s4 1966171168
        %v1065 = vunpack.c.0.s8 %v1064
        %v1066 = vlaneseq
        %v1067 = vshrl.u32 %v1066, 7
        %v1068 = vsub.s32 %v1065, %v1067
        %v1069 = vrot.slane %v1041, %v1068
        %v1070 = vcombine.high %v1048, %v1048
        %v1071 = vcombine.high %v1055, %v1055
        %v1072 = vcombine.high %v1062, %v1062
        %v1073 = vcombine.high %v1069, %v1069
        %v1075 = vunpack.c.l.s4 1966171168
        %v1076 = vunpack.c.0.s8 %v1075
        %v1077 = vlaneseq
        %v1078 = vshrl.u32 %v1077, 7
        %v1079 = vsub.s32 %v1076, %v1078
        %v1080 = vrot.slane %v629, %v1079
        %v1082 = vunpack.c.l.s4 1966171168
        %v1083 = vunpack.c.0.s8 %v1082
        %v1084 = vlaneseq
        %v1085 = vshrl.u32 %v1084, 7
        %v1086 = vsub.s32 %v1083, %v1085
        %v1087 = vrot.slane %v1080, %v1086
        %v1088 = vcombine.high %v622, %v622
        %v1090 = vunpack.c.l.s4 1966171168
        %v1091 = vunpack.c.0.s8 %v1090
        %v1092 = vlaneseq
        %v1093 = vshrl.u32 %v1092, 7
        %v1094 = vsub.s32 %v1091, %v1093
        %v1095 = vrot.slane %v622, %v1094
        %v1097 = vunpack.c.l.s4 1966171168
        %v1098 = vunpack.c.0.s8 %v1097
        %v1099 = vlaneseq
        %v1100 = vshrl.u32 %v1099, 7
        %v1101 = vsub.s32 %v1098, %v1100
        %v1102 = vrot.slane %v1088, %v1101
        %v1103 = vcombine.high %v1095, %v1095
        %v1104 = vcombine.high %v1102, %v1102
        %v1106 = vunpack.c.l.s4 1966171168
        %v1107 = vunpack.c.0.s8 %v1106
        %v1108 = vlaneseq
        %v1109 = vshrl.u32 %v1108, 7
        %v1110 = vsub.s32 %v1107, %v1109
        %v1111 = vrot.slane %v1095, %v1110
        %v1113 = vunpack.c.l.s4 1966171168
        %v1114 = vunpack.c.0.s8 %v1113
        %v1115 = vlaneseq
        %v1116 = vshrl.u32 %v1115, 7
        %v1117 = vsub.s32 %v1114, %v1116
        %v1118 = vrot.slane %v1102, %v1117
        %v1120 = vunpack.c.l.s4 1966171168
        %v1121 = vunpack.c.0.s8 %v1120
        %v1122 = vlaneseq
        %v1123 = vshrl.u32 %v1122, 7
        %v1124 = vsub.s32 %v1121, %v1123
        %v1125 = vrot.slane %v1103, %v1124
        %v1127 = vunpack.c.l.s4 1966171168
        %v1128 = vunpack.c.0.s8 %v1127
        %v1129 = vlaneseq
        %v1130 = vshrl.u32 %v1129, 7
        %v1131 = vsub.s32 %v1128, %v1130
        %v1132 = vrot.slane %v1104, %v1131
        %v1133 = vcombine.high %v1111, %v1111
        %v1134 = vcombine.high %v1118, %v1118
        %v1135 = vcombine.high %v1125, %v1125
        %v1136 = vcombine.high %v1132, %v1132
        %v1138 = vunpack.c.l.s4 1966171168
        %v1139 = vunpack.c.0.s8 %v1138
        %v1140 = vlaneseq
        %v1141 = vshrl.u32 %v1140, 7
        %v1142 = vsub.s32 %v1139, %v1141
        %v1143 = vrot.slane %v630, %v1142
        %v1145 = vunpack.c.l.s4 1966171168
        %v1146 = vunpack.c.0.s8 %v1145
        %v1147 = vlaneseq
        %v1148 = vshrl.u32 %v1147, 7
        %v1149 = vsub.s32 %v1146, %v1148
        %v1150 = vrot.slane %v1143, %v1149
        %v1151 = vcombine.low %v684, %v684
        %v1152 = vcombine.low %v670, %v692
        %v1154 = vunpack.c.l.s4 1935823168
        %v1155 = vunpack.c.0.s8 %v1154
        %v1156 = vlaneseq
        %v1157 = vshrl.u32 %v1156, 7
        %v1158 = vsub.s32 %v1155, %v1157
        %v1159 = vrot.slane %v1151, %v1158
        %v1161 = vunpack.c.l.s4 1935823168
        %v1162 = vunpack.c.0.s8 %v1161
        %v1163 = vlaneseq
        %v1164 = vshrl.u32 %v1163, 7
        %v1165 = vsub.s32 %v1162, %v1164
        %v1166 = vrot.slane %v1152, %v1165
        %v1167 = vcombine.low %v1159, %v1166
        %v1169 = vunpack.c.l.s4 1935823168
        %v1170 = vunpack.c.0.s8 %v1169
        %v1171 = vlaneseq
        %v1172 = vshrl.u32 %v1171, 7
        %v1173 = vsub.s32 %v1170, %v1172
        %v1174 = vrot.slane %v1167, %v1173
        %v1175 = vcombine.low %v694, %v691
        %v1176 = vcombine.low %v677, %v693
        %v1178 = vunpack.c.l.s4 1935823168
        %v1179 = vunpack.c.0.s8 %v1178
        %v1180 = vlaneseq
        %v1181 = vshrl.u32 %v1180, 7
        %v1182 = vsub.s32 %v1179, %v1181
        %v1183 = vrot.slane %v1175, %v1182
        %v1185 = vunpack.c.l.s4 1935823168
        %v1186 = vunpack.c.0.s8 %v1185
        %v1187 = vlaneseq
        %v1188 = vshrl.u32 %v1187, 7
        %v1189 = vsub.s32 %v1186, %v1188
        %v1190 = vrot.slane %v1176, %v1189
        %v1191 = vcombine.low %v1183, %v1190
        %v1193 = vunpack.c.l.s4 1935823168
        %v1194 = vunpack.c.0.s8 %v1193
        %v1195 = vlaneseq
        %v1196 = vshrl.u32 %v1195, 7
        %v1197 = vsub.s32 %v1194, %v1196
        %v1198 = vrot.slane %v1191, %v1197
        %v1199 = vcombine.low %v695, %v733
        %v1200 = vcombine.low %v709, %v747
        %v1202 = vunpack.c.l.s4 1935823168
        %v1203 = vunpack.c.0.s8 %v1202
        %v1204 = vlaneseq
        %v1205 = vshrl.u32 %v1204, 7
        %v1206 = vsub.s32 %v1203, %v1205
        %v1207 = vrot.slane %v1199, %v1206
        %v1209 = vunpack.c.l.s4 1935823168
        %v1210 = vunpack.c.0.s8 %v1209
        %v1211 = vlaneseq
        %v1212 = vshrl.u32 %v1211, 7
        %v1213 = vsub.s32 %v1210, %v1212
        %v1214 = vrot.slane %v1200, %v1213
        %v1215 = vcombine.low %v1207, %v1214
        %v1217 = vunpack.c.l.s4 1935823168
        %v1218 = vunpack.c.0.s8 %v1217
        %v1219 = vlaneseq
        %v1220 = vshrl.u32 %v1219, 7
        %v1221 = vsub.s32 %v1218, %v1220
        %v1222 = vrot.slane %v1215, %v1221
        %v1223 = vcombine.low %v755, %v740
        %v1224 = vcombine.low %v757, %v754
        %v1226 = vunpack.c.l.s4 1935823168
        %v1227 = vunpack.c.0.s8 %v1226
        %v1228 = vlaneseq
        %v1229 = vshrl.u32 %v1228, 7
        %v1230 = vsub.s32 %v1227, %v1229
        %v1231 = vrot.slane %v1223, %v1230
        %v1233 = vunpack.c.l.s4 1935823168
        %v1234 = vunpack.c.0.s8 %v1233
        %v1235 = vlaneseq
        %v1236 = vshrl.u32 %v1235, 7
        %v1237 = vsub.s32 %v1234, %v1236
        %v1238 = vrot.slane %v1224, %v1237
        %v1239 = vcombine.low %v1231, %v1238
        %v1241 = vunpack.c.l.s4 1935823168
        %v1242 = vunpack.c.0.s8 %v1241
        %v1243 = vlaneseq
        %v1244 = vshrl.u32 %v1243, 7
        %v1245 = vsub.s32 %v1242, %v1244
        %v1246 = vrot.slane %v1239, %v1245
        %v1247 = vcombine.low %v756, %v772
        %v1248 = vcombine.low %v758, %v796
        %v1250 = vunpack.c.l.s4 1935823168
        %v1251 = vunpack.c.0.s8 %v1250
        %v1252 = vlaneseq
        %v1253 = vshrl.u32 %v1252, 7
        %v1254 = vsub.s32 %v1251, %v1253
        %v1255 = vrot.slane %v1247, %v1254
        %v1257 = vunpack.c.l.s4 1935823168
        %v1258 = vunpack.c.0.s8 %v1257
        %v1259 = vlaneseq
        %v1260 = vshrl.u32 %v1259, 7
        %v1261 = vsub.s32 %v1258, %v1260
        %v1262 = vrot.slane %v1248, %v1261
        %v1263 = vcombine.low %v1255, %v1262
        %v1265 = vunpack.c.l.s4 1935823168
        %v1266 = vunpack.c.0.s8 %v1265
        %v1267 = vlaneseq
        %v1268 = vshrl.u32 %v1267, 7
        %v1269 = vsub.s32 %v1266, %v1268
        %v1270 = vrot.slane %v1263, %v1269
        %v1271 = vcombine.low %v810, %v820
        %v1272 = vcombine.low %v818, %v803
        %v1274 = vunpack.c.l.s4 1935823168
        %v1275 = vunpack.c.0.s8 %v1274
        %v1276 = vlaneseq
        %v1277 = vshrl.u32 %v1276, 7
        %v1278 = vsub.s32 %v1275, %v1277
        %v1279 = vrot.slane %v1271, %v1278
        %v1281 = vunpack.c.l.s4 1935823168
        %v1282 = vunpack.c.0.s8 %v1281
        %v1283 = vlaneseq
        %v1284 = vshrl.u32 %v1283, 7
        %v1285 = vsub.s32 %v1282, %v1284
        %v1286 = vrot.slane %v1272, %v1285
        %v1287 = vcombine.low %v1279, %v1286
        %v1289 = vunpack.c.l.s4 1935823168
        %v1290 = vunpack.c.0.s8 %v1289
        %v1291 = vlaneseq
        %v1292 = vshrl.u32 %v1291, 7
        %v1293 = vsub.s32 %v1290, %v1292
        %v1294 = vrot.slane %v1287, %v1293
        %v1295 = vcombine.low %v817, %v821
        %v1296 = vcombine.low %v819, %v835
        %v1298 = vunpack.c.l.s4 1935823168
        %v1299 = vunpack.c.0.s8 %v1298
        %v1300 = vlaneseq
        %v1301 = vshrl.u32 %v1300, 7
        %v1302 = vsub.s32 %v1299, %v1301
        %v1303 = vrot.slane %v1295, %v1302
        %v1305 = vunpack.c.l.s4 1935823168
        %v1306 = vunpack.c.0.s8 %v1305
        %v1307 = vlaneseq
        %v1308 = vshrl.u32 %v1307, 7
        %v1309 = vsub.s32 %v1306, %v1308
        %v1310 = vrot.slane %v1296, %v1309
        %v1311 = vcombine.low %v1303, %v1310
        %v1313 = vunpack.c.l.s4 1935823168
        %v1314 = vunpack.c.0.s8 %v1313
        %v1315 = vlaneseq
        %v1316 = vshrl.u32 %v1315, 7
        %v1317 = vsub.s32 %v1314, %v1316
        %v1318 = vrot.slane %v1311, %v1317
        %v1319 = vcombine.low %v859, %v881
        %v1320 = vcombine.low %v873, %v883
        %v1322 = vunpack.c.l.s4 1935823168
        %v1323 = vunpack.c.0.s8 %v1322
        %v1324 = vlaneseq
        %v1325 = vshrl.u32 %v1324, 7
        %v1326 = vsub.s32 %v1323, %v1325
        %v1327 = vrot.slane %v1319, %v1326
        %v1329 = vunpack.c.l.s4 1935823168
        %v1330 = vunpack.c.0.s8 %v1329
        %v1331 = vlaneseq
        %v1332 = vshrl.u32 %v1331, 7
        %v1333 = vsub.s32 %v1330, %v1332
        %v1334 = vrot.slane %v1320, %v1333
        %v1335 = vcombine.low %v1327, %v1334
        %v1337 = vunpack.c.l.s4 1935823168
        %v1338 = vunpack.c.0.s8 %v1337
        %v1339 = vlaneseq
        %v1340 = vshrl.u32 %v1339, 7
        %v1341 = vsub.s32 %v1338, %v1340
        %v1342 = vrot.slane %v1335, %v1341
        %v1343 = vcombine.low %v866, %v882
        %v1344 = vcombine.low %v880, %v884
        %v1346 = vunpack.c.l.s4 1935823168
        %v1347 = vunpack.c.0.s8 %v1346
        %v1348 = vlaneseq
        %v1349 = vshrl.u32 %v1348, 7
        %v1350 = vsub.s32 %v1347, %v1349
        %v1351 = vrot.slane %v1343, %v1350
        %v1353 = vunpack.c.l.s4 1935823168
        %v1354 = vunpack.c.0.s8 %v1353
        %v1355 = vlaneseq
        %v1356 = vshrl.u32 %v1355, 7
        %v1357 = vsub.s32 %v1354, %v1356
        %v1358 = vrot.slane %v1344, %v1357
        %v1359 = vcombine.low %v1351, %v1358
        %v1361 = vunpack.c.l.s4 1935823168
        %v1362 = vunpack.c.0.s8 %v1361
        %v1363 = vlaneseq
        %v1364 = vshrl.u32 %v1363, 7
        %v1365 = vsub.s32 %v1362, %v1364
        %v1366 = vrot.slane %v1359, %v1365
        %v1367 = vcombine.low %v898, %v936
        %v1368 = vcombine.low %v922, %v944
        %v1370 = vunpack.c.l.s4 1935823168
        %v1371 = vunpack.c.0.s8 %v1370
        %v1372 = vlaneseq
        %v1373 = vshrl.u32 %v1372, 7
        %v1374 = vsub.s32 %v1371, %v1373
        %v1375 = vrot.slane %v1367, %v1374
        %v1377 = vunpack.c.l.s4 1935823168
        %v1378 = vunpack.c.0.s8 %v1377
        %v1379 = vlaneseq
        %v1380 = vshrl.u32 %v1379, 7
        %v1381 = vsub.s32 %v1378, %v1380
        %v1382 = vrot.slane %v1368, %v1381
        %v1383 = vcombine.low %v1375, %v1382
        %v1385 = vunpack.c.l.s4 1935823168
        %v1386 = vunpack.c.0.s8 %v1385
        %v1387 = vlaneseq
        %v1388 = vshrl.u32 %v1387, 7
        %v1389 = vsub.s32 %v1386, %v1388
        %v1390 = vrot.slane %v1383, %v1389
        %v1391 = vcombine.low %v946, %v943
        %v1392 = vcombine.low %v929, %v945
        %v1394 = vunpack.c.l.s4 1935823168
        %v1395 = vunpack.c.0.s8 %v1394
        %v1396 = vlaneseq
        %v1397 = vshrl.u32 %v1396, 7
        %v1398 = vsub.s32 %v1395, %v1397
        %v1399 = vrot.slane %v1391, %v1398
        %v1401 = vunpack.c.l.s4 1935823168
        %v1402 = vunpack.c.0.s8 %v1401
        %v1403 = vlaneseq
        %v1404 = vshrl.u32 %v1403, 7
        %v1405 = vsub.s32 %v1402, %v1404
        %v1406 = vrot.slane %v1392, %v1405
        %v1407 = vcombine.low %v1399, %v1406
        %v1409 = vunpack.c.l.s4 1935823168
        %v1410 = vunpack.c.0.s8 %v1409
        %v1411 = vlaneseq
        %v1412 = vshrl.u32 %v1411, 7
        %v1413 = vsub.s32 %v1410, %v1412
        %v1414 = vrot.slane %v1407, %v1413
        %v1415 = vcombine.low %v947, %v985
        %v1416 = vcombine.low %v961, %v999
        %v1418 = vunpack.c.l.s4 1935823168
        %v1419 = vunpack.c.0.s8 %v1418
        %v1420 = vlaneseq
        %v1421 = vshrl.u32 %v1420, 7
        %v1422 = vsub.s32 %v1419, %v1421
        %v1423 = vrot.slane %v1415, %v1422
        %v1425 = vunpack.c.l.s4 1935823168
        %v1426 = vunpack.c.0.s8 %v1425
        %v1427 = vlaneseq
        %v1428 = vshrl.u32 %v1427, 7
        %v1429 = vsub.s32 %v1426, %v1428
        %v1430 = vrot.slane %v1416, %v1429
        %v1431 = vcombine.low %v1423, %v1430
        %v1433 = vunpack.c.l.s4 1935823168
        %v1434 = vunpack.c.0.s8 %v1433
        %v1435 = vlaneseq
        %v1436 = vshrl.u32 %v1435, 7
        %v1437 = vsub.s32 %v1434, %v1436
        %v1438 = vrot.slane %v1431, %v1437
        %v1439 = vcombine.low %v1007, %v992
        %v1440 = vcombine.low %v1009, %v1006
        %v1442 = vunpack.c.l.s4 1935823168
        %v1443 = vunpack.c.0.s8 %v1442
        %v1444 = vlaneseq
        %v1445 = vshrl.u32 %v1444, 7
        %v1446 = vsub.s32 %v1443, %v1445
        %v1447 = vrot.slane %v1439, %v1446
        %v1449 = vunpack.c.l.s4 1935823168
        %v1450 = vunpack.c.0.s8 %v1449
        %v1451 = vlaneseq
        %v1452 = vshrl.u32 %v1451, 7
        %v1453 = vsub.s32 %v1450, %v1452
        %v1454 = vrot.slane %v1440, %v1453
        %v1455 = vcombine.low %v1447, %v1454
        %v1457 = vunpack.c.l.s4 1935823168
        %v1458 = vunpack.c.0.s8 %v1457
        %v1459 = vlaneseq
        %v1460 = vshrl.u32 %v1459, 7
        %v1461 = vsub.s32 %v1458, %v1460
        %v1462 = vrot.slane %v1455, %v1461
        %v1463 = vcombine.low %v1008, %v1024
        %v1464 = vcombine.low %v1010, %v1048
        %v1466 = vunpack.c.l.s4 1935823168
        %v1467 = vunpack.c.0.s8 %v1466
        %v1468 = vlaneseq
        %v1469 = vshrl.u32 %v1468, 7
        %v1470 = vsub.s32 %v1467, %v1469
        %v1471 = vrot.slane %v1463, %v1470
        %v1473 = vunpack.c.l.s4 1935823168
        %v1474 = vunpack.c.0.s8 %v1473
        %v1475 = vlaneseq
        %v1476 = vshrl.u32 %v1475, 7
        %v1477 = vsub.s32 %v1474, %v1476
        %v1478 = vrot.slane %v1464, %v1477
        %v1479 = vcombine.low %v1471, %v1478
        %v1481 = vunpack.c.l.s4 1935823168
        %v1482 = vunpack.c.0.s8 %v1481
        %v1483 = vlaneseq
        %v1484 = vshrl.u32 %v1483, 7
        %v1485 = vsub.s32 %v1482, %v1484
        %v1486 = vrot.slane %v1479, %v1485
        %v1487 = vcombine.low %v1062, %v1072
        %v1488 = vcombine.low %v1070, %v1055
        %v1490 = vunpack.c.l.s4 1935823168
        %v1491 = vunpack.c.0.s8 %v1490
        %v1492 = vlaneseq
        %v1493 = vshrl.u32 %v1492, 7
        %v1494 = vsub.s32 %v1491, %v1493
        %v1495 = vrot.slane %v1487, %v1494
        %v1497 = vunpack.c.l.s4 1935823168
        %v1498 = vunpack.c.0.s8 %v1497
        %v1499 = vlaneseq
        %v1500 = vshrl.u32 %v1499, 7
        %v1501 = vsub.s32 %v1498, %v1500
        %v1502 = vrot.slane %v1488, %v1501
        %v1503 = vcombine.low %v1495, %v1502
        %v1505 = vunpack.c.l.s4 1935823168
        %v1506 = vunpack.c.0.s8 %v1505
        %v1507 = vlaneseq
        %v1508 = vshrl.u32 %v1507, 7
        %v1509 = vsub.s32 %v1506, %v1508
        %v1510 = vrot.slane %v1503, %v1509
        %v1511 = vcombine.low %v1069, %v1073
        %v1512 = vcombine.low %v1071, %v1087
        %v1514 = vunpack.c.l.s4 1935823168
        %v1515 = vunpack.c.0.s8 %v1514
        %v1516 = vlaneseq
        %v1517 = vshrl.u32 %v1516, 7
        %v1518 = vsub.s32 %v1515, %v1517
        %v1519 = vrot.slane %v1511, %v1518
        %v1521 = vunpack.c.l.s4 1935823168
        %v1522 = vunpack.c.0.s8 %v1521
        %v1523 = vlaneseq
        %v1524 = vshrl.u32 %v1523, 7
        %v1525 = vsub.s32 %v1522, %v1524
        %v1526 = vrot.slane %v1512, %v1525
        %v1527 = vcombine.low %v1519, %v1526
        %v1529 = vunpack.c.l.s4 1935823168
        %v1530 = vunpack.c.0.s8 %v1529
        %v1531 = vlaneseq
        %v1532 = vshrl.u32 %v1531, 7
        %v1533 = vsub.s32 %v1530, %v1532
        %v1534 = vrot.slane %v1527, %v1533
        %v1535 = vcombine.low %v1111, %v1133
        %v1536 = vcombine.low %v1125, %v1135
        %v1538 = vunpack.c.l.s4 1935823168
        %v1539 = vunpack.c.0.s8 %v1538
        %v1540 = vlaneseq
        %v1541 = vshrl.u32 %v1540, 7
        %v1542 = vsub.s32 %v1539, %v1541
        %v1543 = vrot.slane %v1535, %v1542
        %v1545 = vunpack.c.l.s4 1935823168
        %v1546 = vunpack.c.0.s8 %v1545
        %v1547 = vlaneseq
        %v1548 = vshrl.u32 %v1547, 7
        %v1549 = vsub.s32 %v1546, %v1548
        %v1550 = vrot.slane %v1536, %v1549
        %v1551 = vcombine.low %v1543, %v1550
        %v1553 = vunpack.c.l.s4 1935823168
        %v1554 = vunpack.c.0.s8 %v1553
        %v1555 = vlaneseq
        %v1556 = vshrl.u32 %v1555, 7
        %v1557 = vsub.s32 %v1554, %v1556
        %v1558 = vrot.slane %v1551, %v1557
        %v1559 = vcombine.low %v1118, %v1134
        %v1560 = vcombine.low %v1132, %v1136
        %v1562 = vunpack.c.l.s4 1935823168
        %v1563 = vunpack.c.0.s8 %v1562
        %v1564 = vlaneseq
        %v1565 = vshrl.u32 %v1564, 7
        %v1566 = vsub.s32 %v1563, %v1565
        %v1567 = vrot.slane %v1559, %v1566
        %v1569 = vunpack.c.l.s4 1935823168
        %v1570 = vunpack.c.0.s8 %v1569
        %v1571 = vlaneseq
        %v1572 = vshrl.u32 %v1571, 7
        %v1573 = vsub.s32 %v1570, %v1572
        %v1574 = vrot.slane %v1560, %v1573
        %v1575 = vcombine.low %v1567, %v1574
        %v1577 = vunpack.c.l.s4 1935823168
        %v1578 = vunpack.c.0.s8 %v1577
        %v1579 = vlaneseq
        %v1580 = vshrl.u32 %v1579, 7
        %v1581 = vsub.s32 %v1578, %v1580
        %v1582 = vrot.slane %v1575, %v1581
        %v1584 = vunpack.c.l.s4 1935823168
        %v1585 = vunpack.c.0.s8 %v1584
        %v1586 = vlaneseq
        %v1587 = vshrl.u32 %v1586, 7
        %v1588 = vsub.s32 %v1585, %v1587
        %v1589 = vrot.slane %v1150, %v1588
        %v1591 = vunpack.c.l.s4 1935823168
        %v1592 = vunpack.c.0.s8 %v1591
        %v1593 = vlaneseq
        %v1594 = vshrl.u32 %v1593, 7
        %v1595 = vsub.s32 %v1592, %v1594
        %v1596 = vrot.slane %v1589, %v1595
        %1616 = vst [vmem:[#allocation2 + $0x8] sm:$0xe] %v1174
        %1617 = vst [vmem:[#allocation2 + $0xc] sm:$0xf] %v1198
        %1618 = vst [vmem:[#allocation2 + $0x10] sm:$0xf] %v1222
        %1619 = vst [vmem:[#allocation2 + $0x14] sm:$0xf] %v1246
        %1620 = vst [vmem:[#allocation2 + $0x18] sm:$0xf] %v1270
        %1621 = vst [vmem:[#allocation2 + $0x1c] sm:$0xf] %v1294
        %1622 = vst [vmem:[#allocation2 + $0x20] sm:$0xf] %v1318
        %1623 = vst [vmem:[#allocation2 + $0x24] sm:$0xf] %v1342
        %1624 = vst [vmem:[#allocation2 + $0x28] sm:$0xf] %v1366
        %1625 = vst [vmem:[#allocation2 + $0x2c] sm:$0xf] %v1390
        %1626 = vst [vmem:[#allocation2 + $0x30] sm:$0xf] %v1414
        %1627 = vst [vmem:[#allocation2 + $0x34] sm:$0xf] %v1438
        %1628 = vst [vmem:[#allocation2 + $0x38] sm:$0xf] %v1462
        %1629 = vst [vmem:[#allocation2 + $0x3c] sm:$0xf] %v1486
        %1630 = vst [vmem:[#allocation2 + $0x40] sm:$0xf] %v1510
        %1631 = vst [vmem:[#allocation2 + $0x44] sm:$0xf] %v1534
        %1632 = vst [vmem:[#allocation2 + $0x48] sm:$0xf] %v1558
        %1633 = vst [vmem:[#allocation2 + $0x4c] sm:$0xf] %v1582
        %1634 = vst [vmem:[#allocation2 + $0x50] sm:$0x1] %v1596
        %s1635 = scalar_lea.vmem %s276, 64
        %v1636 = vld [vmem:[%s1635] sm:$0xf]
        %v1637 = vld [vmem:[%s1635 + $0x4] sm:$0xf]
        %v1638 = vld [vmem:[%s1635 + $0x8] sm:$0xf]
        %v1639 = vld [vmem:[%s1635 + $0xc] sm:$0xf]
        %v1640 = vld [vmem:[%s1635 + $0x10] sm:$0xf]
        %v1641 = vld [vmem:[%s1635 + $0x14] sm:$0xf]
        %v1642 = vld [vmem:[%s1635 + $0x18] sm:$0xf]
        %v1643 = vld [vmem:[%s1635 + $0x1c] sm:$0xf]
        %v1644 = vld [vmem:[%s1635 + $0x20] sm:$0xf]
        %v1645 = vld [vmem:[%s1635 + $0x24] sm:$0xf]
        %v1646 = vld [vmem:[%s1635 + $0x28] sm:$0xf]
        %v1647 = vld [vmem:[%s1635 + $0x2c] sm:$0xf]
        %v1648 = vld [vmem:[%s1635 + $0x30] sm:$0xf]
        %v1649 = vld [vmem:[%s1635 + $0x34] sm:$0xf]
        %v1650 = vld [vmem:[%s1635 + $0x38] sm:$0xf]
        %v1651 = vld [vmem:[%s1635 + $0x3c] sm:$0xf]
        %v1652 = vld [vmem:[%s1] sm:$0xf]
        %v1653 = vld [vmem:[%s1 + $0x4] sm:$0xf]
        %v1654 = vld [vmem:[%s1 + $0x8] sm:$0xf]
        %v1655 = vld [vmem:[%s1 + $0xc] sm:$0xf]
        %v1656 = vld [vmem:[%s1 + $0x10] sm:$0xf]
        %v1657 = vld [vmem:[%s1 + $0x14] sm:$0xf]
        %v1658 = vld [vmem:[%s1 + $0x18] sm:$0xf]
        %v1659 = vld [vmem:[%s1 + $0x1c] sm:$0xf]
        %v1660 = vld [vmem:[%s1 + $0x20] sm:$0xf]
        %v1661 = vld [vmem:[%s1 + $0x24] sm:$0xf]
        %v1662 = vld [vmem:[%s1 + $0x28] sm:$0xf]
        %v1663 = vld [vmem:[%s1 + $0x2c] sm:$0xf]
        %v1664 = vld [vmem:[%s1 + $0x30] sm:$0xf]
        %v1665 = vld [vmem:[%s1 + $0x34] sm:$0xf]
        %v1666 = vld [vmem:[%s1 + $0x38] sm:$0xf]
        %v1667 = vld [vmem:[%s1 + $0x3c] sm:$0xf]
        %v1668 = vld [vmem:[%s4] sm:$0x1]
        %v1670 = vlaneseq
        %v1671 = vshrl.u32 %v1670, 7
        %v1672 = vsub.s32 0, %v1671
        %v1673 = vrot.slane %v1668, %v1672
        %v1691 = vunpack.c.l.b16 %v1636
        %v1692 = vunpack.c.l.b16 %v1637
        %v1693 = vunpack.c.l.b16 %v1638
        %v1694 = vunpack.c.l.b16 %v1639
        %v1695 = vunpack.c.l.b16 %v1640
        %v1696 = vunpack.c.l.b16 %v1641
        %v1697 = vunpack.c.l.b16 %v1642
        %v1698 = vunpack.c.l.b16 %v1643
        %v1699 = vunpack.c.l.b16 %v1644
        %v1700 = vunpack.c.l.b16 %v1645
        %v1701 = vunpack.c.l.b16 %v1646
        %v1702 = vunpack.c.l.b16 %v1647
        %v1703 = vunpack.c.l.b16 %v1648
        %v1704 = vunpack.c.l.b16 %v1649
        %v1705 = vunpack.c.l.b16 %v1650
        %v1706 = vunpack.c.l.b16 %v1651
        %v1707 = vpack.c.b16 %v1692, %v1691
        %v1708 = vpack.c.b16 %v1694, %v1693
        %v1709 = vpack.c.b16 %v1696, %v1695
        %v1710 = vpack.c.b16 %v1698, %v1697
        %v1711 = vpack.c.b16 %v1700, %v1699
        %v1712 = vpack.c.b16 %v1702, %v1701
        %v1713 = vpack.c.b16 %v1704, %v1703
        %v1714 = vpack.c.b16 %v1706, %v1705
        %v1739 = vunpack.c.l.b16 %v1652
        %v1740 = vunpack.c.l.b16 %v1653
        %v1741 = vunpack.c.l.b16 %v1654
        %v1742 = vunpack.c.l.b16 %v1655
        %v1743 = vunpack.c.l.b16 %v1656
        %v1744 = vunpack.c.l.b16 %v1657
        %v1745 = vunpack.c.l.b16 %v1658
        %v1746 = vunpack.c.l.b16 %v1659
        %v1747 = vunpack.c.l.b16 %v1660
        %v1748 = vunpack.c.l.b16 %v1661
        %v1749 = vunpack.c.l.b16 %v1662
        %v1750 = vunpack.c.l.b16 %v1663
        %v1751 = vunpack.c.l.b16 %v1664
        %v1752 = vunpack.c.l.b16 %v1665
        %v1753 = vunpack.c.l.b16 %v1666
        %v1754 = vunpack.c.l.b16 %v1667
        %v1755 = vpack.c.b16 %v1740, %v1739
        %v1756 = vpack.c.b16 %v1742, %v1741
        %v1757 = vpack.c.b16 %v1744, %v1743
        %v1758 = vpack.c.b16 %v1746, %v1745
        %v1759 = vpack.c.b16 %v1748, %v1747
        %v1760 = vpack.c.b16 %v1750, %v1749
        %v1761 = vpack.c.b16 %v1752, %v1751
        %v1762 = vpack.c.b16 %v1754, %v1753
        %1771 = vmatprep.subr.bf16.mxu0 0
        %1772 = vmatpush1.bf16.msra.mxu0 %v1755
        %1773 = vmatprep.subr.bf16.mxu0 0
        %1774 = vmatpush1.bf16.msra.mxu0 %v1756
        %1775 = vmatprep.subr.bf16.mxu0 0
        %1776 = vmatpush1.bf16.msra.mxu0 %v1757
        %1777 = vmatprep.subr.bf16.mxu0 0
        %1778 = vmatpush1.bf16.msra.mxu0 %v1758
        %1779 = vmatprep.subr.bf16.mxu0 0
        %1780 = vmatpush1.bf16.msra.mxu0 %v1759
        %1781 = vmatprep.subr.bf16.mxu0 0
        %1782 = vmatpush1.bf16.msra.mxu0 %v1760
        %1783 = vmatprep.subr.bf16.mxu0 0
        %1784 = vmatpush1.bf16.msra.mxu0 %v1761
        %1785 = vmatprep.subr.bf16.mxu0 0
        %1786 = vmatpush1.bf16.msra.mxu0 %v1762
        %1787 = vmatprep.subr.bf16.mxu0 0
        %1788 = vmatpush1.bf16.msra.mxu0 0
        %1789 = vmatprep.subr.bf16.mxu0 0
        %1790 = vmatpush1.bf16.msra.mxu0 0
        %1791 = vmatprep.subr.bf16.mxu0 0
        %1792 = vmatpush1.bf16.msra.mxu0 0
        %1793 = vmatprep.subr.bf16.mxu0 0
        %1794 = vmatpush1.bf16.msra.mxu0 0
        %1795 = vmatprep.subr.bf16.mxu0 0
        %1796 = vmatpush1.bf16.msra.mxu0 0
        %1797 = vmatprep.subr.bf16.mxu0 0
        %1798 = vmatpush1.bf16.msra.mxu0 0
        %1799 = vmatprep.subr.bf16.mxu0 0
        %1800 = vmatpush1.bf16.msra.mxu0 0
        %1801 = vmatprep.subr.bf16.mxu0 0
        %1802 = vmatpush1.bf16.msra.mxu0 0
        %1803 = vmatprep.mubr.bf16.mxu0 0
        %1804 = vmatmul.mubr.bf16.gmra.mrb[0].mxu0 %v1707
        %v1805 = vpop.f32.mrb[0].mxu0
        %v1806 = vadd.f32 %v1673, %v1805
        %v1807 = vpop.f32.mrb[0].mxu0
        %v1808 = vpop.f32.mrb[0].mxu0
        %v1809 = vadd.f32 %v1673, %v1808
        %v1810 = vpop.f32.mrb[0].mxu0
        %1811 = vmatprep.mubr.bf16.mxu0 0
        %1812 = vmatmul.mubr.bf16.gmra.mrb[0].mxu0 %v1708
        %v1813 = vpop.f32.mrb[0].mxu0
        %v1814 = vadd.f32 %v1673, %v1813
        %v1815 = vpop.f32.mrb[0].mxu0
        %v1816 = vpop.f32.mrb[0].mxu0
        %v1817 = vadd.f32 %v1673, %v1816
        %v1818 = vpop.f32.mrb[0].mxu0
        %1819 = vmatprep.mubr.bf16.mxu0 0
        %1820 = vmatmul.mubr.bf16.gmra.mrb[0].mxu0 %v1709
        %v1821 = vpop.f32.mrb[0].mxu0
        %v1822 = vadd.f32 %v1673, %v1821
        %v1823 = vpop.f32.mrb[0].mxu0
        %v1824 = vpop.f32.mrb[0].mxu0
        %v1825 = vadd.f32 %v1673, %v1824
        %v1826 = vpop.f32.mrb[0].mxu0
        %1827 = vmatprep.mubr.bf16.mxu0 0
        %1828 = vmatmul.mubr.bf16.gmra.mrb[0].mxu0 %v1710
        %v1829 = vpop.f32.mrb[0].mxu0
        %v1830 = vadd.f32 %v1673, %v1829
        %v1831 = vpop.f32.mrb[0].mxu0
        %v1832 = vpop.f32.mrb[0].mxu0
        %v1833 = vadd.f32 %v1673, %v1832
        %v1834 = vpop.f32.mrb[0].mxu0
        %1835 = vmatprep.mubr.bf16.mxu0 0
        %1836 = vmatmul.mubr.bf16.gmra.mrb[0].mxu0 %v1711
        %v1837 = vpop.f32.mrb[0].mxu0
        %v1838 = vadd.f32 %v1673, %v1837
        %v1839 = vpop.f32.mrb[0].mxu0
        %v1840 = vpop.f32.mrb[0].mxu0
        %v1841 = vadd.f32 %v1673, %v1840
        %v1842 = vpop.f32.mrb[0].mxu0
        %1843 = vmatprep.mubr.bf16.mxu0 0
        %1844 = vmatmul.mubr.bf16.gmra.mrb[0].mxu0 %v1712
        %v1845 = vpop.f32.mrb[0].mxu0
        %v1846 = vadd.f32 %v1673, %v1845
        %v1847 = vpop.f32.mrb[0].mxu0
        %v1848 = vpop.f32.mrb[0].mxu0
        %v1849 = vadd.f32 %v1673, %v1848
        %v1850 = vpop.f32.mrb[0].mxu0
        %1851 = vmatprep.mubr.bf16.mxu0 0
        %1852 = vmatmul.mubr.bf16.gmra.mrb[0].mxu0 %v1713
        %v1853 = vpop.f32.mrb[0].mxu0
        %v1854 = vadd.f32 %v1673, %v1853
        %v1855 = vpop.f32.mrb[0].mxu0
        %v1856 = vpop.f32.mrb[0].mxu0
        %v1857 = vadd.f32 %v1673, %v1856
        %v1858 = vpop.f32.mrb[0].mxu0
        %1859 = vmatprep.mubr.bf16.mxu0 0
        %1860 = vmatmul.mubr.bf16.gmra.mrb[0].mxu0 %v1714
        %v1861 = vpop.f32.mrb[0].mxu0
        %v1862 = vadd.f32 %v1673, %v1861
        %v1863 = vpop.f32.mrb[0].mxu0
        %v1864 = vpop.f32.mrb[0].mxu0
        %v1865 = vadd.f32 %v1673, %v1864
        %v1866 = vpop.f32.mrb[0].mxu0
        %1867 = vdwg.mxu0
        %v1868 = vmax.f32 %v1806, 0.0
        %v1869 = vmax.f32 %v1809, 0.0
        %v1870 = vmax.f32 %v1814, 0.0
        %v1871 = vmax.f32 %v1817, 0.0
        %v1872 = vmax.f32 %v1822, 0.0
        %v1873 = vmax.f32 %v1825, 0.0
        %v1874 = vmax.f32 %v1830, 0.0
        %v1875 = vmax.f32 %v1833, 0.0
        %v1876 = vmax.f32 %v1838, 0.0
        %v1877 = vmax.f32 %v1841, 0.0
        %v1878 = vmax.f32 %v1846, 0.0
        %v1879 = vmax.f32 %v1849, 0.0
        %v1880 = vmax.f32 %v1854, 0.0
        %v1881 = vmax.f32 %v1857, 0.0
        %v1882 = vmax.f32 %v1862, 0.0
        %v1883 = vmax.f32 %v1865, 0.0
        %v1884 = vpack.c.bf16 %v1869, %v1868
        %v1885 = vpack.c.bf16 %v1871, %v1870
        %v1886 = vpack.c.bf16 %v1873, %v1872
        %v1887 = vpack.c.bf16 %v1875, %v1874
        %v1888 = vpack.c.bf16 %v1877, %v1876
        %v1889 = vpack.c.bf16 %v1879, %v1878
        %v1890 = vpack.c.bf16 %v1881, %v1880
        %v1891 = vpack.c.bf16 %v1883, %v1882
        %v1893 = vshrl.u32 %v1884, 16
        %v1895 = vrot.slane %v1893, 7
        %v1896 = vshll.u32 %v1884, 16
        %v1898 = vor.u32 %v1895, %v1896
        %v1900 = vshrl.u32 %v1885, 16
        %v1902 = vrot.slane %v1900, 7
        %v1903 = vshll.u32 %v1885, 16
        %v1905 = vor.u32 %v1902, %v1903
        %v1907 = vshrl.u32 %v1886, 16
        %v1909 = vrot.slane %v1907, 7
        %v1910 = vshll.u32 %v1886, 16
        %v1912 = vor.u32 %v1909, %v1910
        %v1914 = vshrl.u32 %v1887, 16
        %v1916 = vrot.slane %v1914, 7
        %v1917 = vshll.u32 %v1887, 16
        %v1919 = vor.u32 %v1916, %v1917
        %v1921 = vshrl.u32 %v1888, 16
        %v1923 = vrot.slane %v1921, 7
        %v1924 = vshll.u32 %v1888, 16
        %v1926 = vor.u32 %v1923, %v1924
        %v1928 = vshrl.u32 %v1889, 16
        %v1930 = vrot.slane %v1928, 7
        %v1931 = vshll.u32 %v1889, 16
        %v1933 = vor.u32 %v1930, %v1931
        %v1935 = vshrl.u32 %v1890, 16
        %v1937 = vrot.slane %v1935, 7
        %v1938 = vshll.u32 %v1890, 16
        %v1940 = vor.u32 %v1937, %v1938
        %v1942 = vshrl.u32 %v1891, 16
        %v1944 = vrot.slane %v1942, 7
        %v1945 = vshll.u32 %v1891, 16
        %v1947 = vor.u32 %v1944, %v1945
        %v1964 = vsel %vm614, 0, %v1898
        %v1965 = vsel %vm614, 0, %v1905
        %v1966 = vsel %vm614, 0, %v1912
        %v1967 = vsel %vm614, 0, %v1919
        %v1968 = vsel %vm614, 0, %v1926
        %v1969 = vsel %vm614, 0, %v1933
        %v1970 = vsel %vm614, 0, %v1940
        %v1971 = vsel %vm614, 0, %v1947
        %v1972 = vsel %vm614, %v1895, 0
        %v1973 = vsel %vm614, %v1902, 0
        %v1974 = vsel %vm614, %v1909, 0
        %v1975 = vsel %vm614, %v1916, 0
        %v1976 = vsel %vm614, %v1923, 0
        %v1977 = vsel %vm614, %v1930, 0
        %v1978 = vsel %vm614, %v1937, 0
        %v1979 = vsel %vm614, %v1944, 0
        %v1996 = vcombine.high %v1964, %v1964
        %v1998 = vunpack.c.l.s4 1966171168
        %v1999 = vunpack.c.0.s8 %v1998
        %v2000 = vlaneseq
        %v2001 = vshrl.u32 %v2000, 7
        %v2002 = vsub.s32 %v1999, %v2001
        %v2003 = vrot.slane %v1964, %v2002
        %v2005 = vunpack.c.l.s4 1966171168
        %v2006 = vunpack.c.0.s8 %v2005
        %v2007 = vlaneseq
        %v2008 = vshrl.u32 %v2007, 7
        %v2009 = vsub.s32 %v2006, %v2008
        %v2010 = vrot.slane %v1996, %v2009
        %v2011 = vcombine.high %v2003, %v2003
        %v2012 = vcombine.high %v2010, %v2010
        %v2014 = vunpack.c.l.s4 1966171168
        %v2015 = vunpack.c.0.s8 %v2014
        %v2016 = vlaneseq
        %v2017 = vshrl.u32 %v2016, 7
        %v2018 = vsub.s32 %v2015, %v2017
        %v2019 = vrot.slane %v2003, %v2018
        %v2021 = vunpack.c.l.s4 1966171168
        %v2022 = vunpack.c.0.s8 %v2021
        %v2023 = vlaneseq
        %v2024 = vshrl.u32 %v2023, 7
        %v2025 = vsub.s32 %v2022, %v2024
        %v2026 = vrot.slane %v2010, %v2025
        %v2028 = vunpack.c.l.s4 1966171168
        %v2029 = vunpack.c.0.s8 %v2028
        %v2030 = vlaneseq
        %v2031 = vshrl.u32 %v2030, 7
        %v2032 = vsub.s32 %v2029, %v2031
        %v2033 = vrot.slane %v2011, %v2032
        %v2035 = vunpack.c.l.s4 1966171168
        %v2036 = vunpack.c.0.s8 %v2035
        %v2037 = vlaneseq
        %v2038 = vshrl.u32 %v2037, 7
        %v2039 = vsub.s32 %v2036, %v2038
        %v2040 = vrot.slane %v2012, %v2039
        %v2041 = vcombine.high %v2019, %v2019
        %v2042 = vcombine.high %v2026, %v2026
        %v2043 = vcombine.high %v2033, %v2033
        %v2044 = vcombine.high %v2040, %v2040
        %v2046 = vunpack.c.l.s4 1966171168
        %v2047 = vunpack.c.0.s8 %v2046
        %v2048 = vlaneseq
        %v2049 = vshrl.u32 %v2048, 7
        %v2050 = vsub.s32 %v2047, %v2049
        %v2051 = vrot.slane %v1972, %v2050
        %v2053 = vunpack.c.l.s4 1966171168
        %v2054 = vunpack.c.0.s8 %v2053
        %v2055 = vlaneseq
        %v2056 = vshrl.u32 %v2055, 7
        %v2057 = vsub.s32 %v2054, %v2056
        %v2058 = vrot.slane %v2051, %v2057
        %v2059 = vcombine.high %v1965, %v1965
        %v2061 = vunpack.c.l.s4 1966171168
        %v2062 = vunpack.c.0.s8 %v2061
        %v2063 = vlaneseq
        %v2064 = vshrl.u32 %v2063, 7
        %v2065 = vsub.s32 %v2062, %v2064
        %v2066 = vrot.slane %v1965, %v2065
        %v2068 = vunpack.c.l.s4 1966171168
        %v2069 = vunpack.c.0.s8 %v2068
        %v2070 = vlaneseq
        %v2071 = vshrl.u32 %v2070, 7
        %v2072 = vsub.s32 %v2069, %v2071
        %v2073 = vrot.slane %v2059, %v2072
        %v2074 = vcombine.high %v2066, %v2066
        %v2075 = vcombine.high %v2073, %v2073
        %v2077 = vunpack.c.l.s4 1966171168
        %v2078 = vunpack.c.0.s8 %v2077
        %v2079 = vlaneseq
        %v2080 = vshrl.u32 %v2079, 7
        %v2081 = vsub.s32 %v2078, %v2080
        %v2082 = vrot.slane %v2066, %v2081
        %v2084 = vunpack.c.l.s4 1966171168
        %v2085 = vunpack.c.0.s8 %v2084
        %v2086 = vlaneseq
        %v2087 = vshrl.u32 %v2086, 7
        %v2088 = vsub.s32 %v2085, %v2087
        %v2089 = vrot.slane %v2073, %v2088
        %v2091 = vunpack.c.l.s4 1966171168
        %v2092 = vunpack.c.0.s8 %v2091
        %v2093 = vlaneseq
        %v2094 = vshrl.u32 %v2093, 7
        %v2095 = vsub.s32 %v2092, %v2094
        %v2096 = vrot.slane %v2074, %v2095
        %v2098 = vunpack.c.l.s4 1966171168
        %v2099 = vunpack.c.0.s8 %v2098
        %v2100 = vlaneseq
        %v2101 = vshrl.u32 %v2100, 7
        %v2102 = vsub.s32 %v2099, %v2101
        %v2103 = vrot.slane %v2075, %v2102
        %v2104 = vcombine.high %v2082, %v2082
        %v2105 = vcombine.high %v2089, %v2089
        %v2106 = vcombine.high %v2096, %v2096
        %v2107 = vcombine.high %v2103, %v2103
        %v2109 = vunpack.c.l.s4 1966171168
        %v2110 = vunpack.c.0.s8 %v2109
        %v2111 = vlaneseq
        %v2112 = vshrl.u32 %v2111, 7
        %v2113 = vsub.s32 %v2110, %v2112
        %v2114 = vrot.slane %v1973, %v2113
        %v2116 = vunpack.c.l.s4 1966171168
        %v2117 = vunpack.c.0.s8 %v2116
        %v2118 = vlaneseq
        %v2119 = vshrl.u32 %v2118, 7
        %v2120 = vsub.s32 %v2117, %v2119
        %v2121 = vrot.slane %v2114, %v2120
        %v2122 = vcombine.high %v1966, %v1966
        %v2124 = vunpack.c.l.s4 1966171168
        %v2125 = vunpack.c.0.s8 %v2124
        %v2126 = vlaneseq
        %v2127 = vshrl.u32 %v2126, 7
        %v2128 = vsub.s32 %v2125, %v2127
        %v2129 = vrot.slane %v1966, %v2128
        %v2131 = vunpack.c.l.s4 1966171168
        %v2132 = vunpack.c.0.s8 %v2131
        %v2133 = vlaneseq
        %v2134 = vshrl.u32 %v2133, 7
        %v2135 = vsub.s32 %v2132, %v2134
        %v2136 = vrot.slane %v2122, %v2135
        %v2137 = vcombine.high %v2129, %v2129
        %v2138 = vcombine.high %v2136, %v2136
        %v2140 = vunpack.c.l.s4 1966171168
        %v2141 = vunpack.c.0.s8 %v2140
        %v2142 = vlaneseq
        %v2143 = vshrl.u32 %v2142, 7
        %v2144 = vsub.s32 %v2141, %v2143
        %v2145 = vrot.slane %v2129, %v2144
        %v2147 = vunpack.c.l.s4 1966171168
        %v2148 = vunpack.c.0.s8 %v2147
        %v2149 = vlaneseq
        %v2150 = vshrl.u32 %v2149, 7
        %v2151 = vsub.s32 %v2148, %v2150
        %v2152 = vrot.slane %v2136, %v2151
        %v2154 = vunpack.c.l.s4 1966171168
        %v2155 = vunpack.c.0.s8 %v2154
        %v2156 = vlaneseq
        %v2157 = vshrl.u32 %v2156, 7
        %v2158 = vsub.s32 %v2155, %v2157
        %v2159 = vrot.slane %v2137, %v2158
        %v2161 = vunpack.c.l.s4 1966171168
        %v2162 = vunpack.c.0.s8 %v2161
        %v2163 = vlaneseq
        %v2164 = vshrl.u32 %v2163, 7
        %v2165 = vsub.s32 %v2162, %v2164
        %v2166 = vrot.slane %v2138, %v2165
        %v2167 = vcombine.high %v2145, %v2145
        %v2168 = vcombine.high %v2152, %v2152
        %v2169 = vcombine.high %v2159, %v2159
        %v2170 = vcombine.high %v2166, %v2166
        %v2172 = vunpack.c.l.s4 1966171168
        %v2173 = vunpack.c.0.s8 %v2172
        %v2174 = vlaneseq
        %v2175 = vshrl.u32 %v2174, 7
        %v2176 = vsub.s32 %v2173, %v2175
        %v2177 = vrot.slane %v1974, %v2176
        %v2179 = vunpack.c.l.s4 1966171168
        %v2180 = vunpack.c.0.s8 %v2179
        %v2181 = vlaneseq
        %v2182 = vshrl.u32 %v2181, 7
        %v2183 = vsub.s32 %v2180, %v2182
        %v2184 = vrot.slane %v2177, %v2183
        %v2185 = vcombine.high %v1967, %v1967
        %v2187 = vunpack.c.l.s4 1966171168
        %v2188 = vunpack.c.0.s8 %v2187
        %v2189 = vlaneseq
        %v2190 = vshrl.u32 %v2189, 7
        %v2191 = vsub.s32 %v2188, %v2190
        %v2192 = vrot.slane %v1967, %v2191
        %v2194 = vunpack.c.l.s4 1966171168
        %v2195 = vunpack.c.0.s8 %v2194
        %v2196 = vlaneseq
        %v2197 = vshrl.u32 %v2196, 7
        %v2198 = vsub.s32 %v2195, %v2197
        %v2199 = vrot.slane %v2185, %v2198
        %v2200 = vcombine.high %v2192, %v2192
        %v2201 = vcombine.high %v2199, %v2199
        %v2203 = vunpack.c.l.s4 1966171168
        %v2204 = vunpack.c.0.s8 %v2203
        %v2205 = vlaneseq
        %v2206 = vshrl.u32 %v2205, 7
        %v2207 = vsub.s32 %v2204, %v2206
        %v2208 = vrot.slane %v2192, %v2207
        %v2210 = vunpack.c.l.s4 1966171168
        %v2211 = vunpack.c.0.s8 %v2210
        %v2212 = vlaneseq
        %v2213 = vshrl.u32 %v2212, 7
        %v2214 = vsub.s32 %v2211, %v2213
        %v2215 = vrot.slane %v2199, %v2214
        %v2217 = vunpack.c.l.s4 1966171168
        %v2218 = vunpack.c.0.s8 %v2217
        %v2219 = vlaneseq
        %v2220 = vshrl.u32 %v2219, 7
        %v2221 = vsub.s32 %v2218, %v2220
        %v2222 = vrot.slane %v2200, %v2221
        %v2224 = vunpack.c.l.s4 1966171168
        %v2225 = vunpack.c.0.s8 %v2224
        %v2226 = vlaneseq
        %v2227 = vshrl.u32 %v2226, 7
        %v2228 = vsub.s32 %v2225, %v2227
        %v2229 = vrot.slane %v2201, %v2228
        %v2230 = vcombine.high %v2208, %v2208
        %v2231 = vcombine.high %v2215, %v2215
        %v2232 = vcombine.high %v2222, %v2222
        %v2233 = vcombine.high %v2229, %v2229
        %v2235 = vunpack.c.l.s4 1966171168
        %v2236 = vunpack.c.0.s8 %v2235
        %v2237 = vlaneseq
        %v2238 = vshrl.u32 %v2237, 7
        %v2239 = vsub.s32 %v2236, %v2238
        %v2240 = vrot.slane %v1975, %v2239
        %v2242 = vunpack.c.l.s4 1966171168
        %v2243 = vunpack.c.0.s8 %v2242
        %v2244 = vlaneseq
        %v2245 = vshrl.u32 %v2244, 7
        %v2246 = vsub.s32 %v2243, %v2245
        %v2247 = vrot.slane %v2240, %v2246
        %v2248 = vcombine.high %v1968, %v1968
        %v2250 = vunpack.c.l.s4 1966171168
        %v2251 = vunpack.c.0.s8 %v2250
        %v2252 = vlaneseq
        %v2253 = vshrl.u32 %v2252, 7
        %v2254 = vsub.s32 %v2251, %v2253
        %v2255 = vrot.slane %v1968, %v2254
        %v2257 = vunpack.c.l.s4 1966171168
        %v2258 = vunpack.c.0.s8 %v2257
        %v2259 = vlaneseq
        %v2260 = vshrl.u32 %v2259, 7
        %v2261 = vsub.s32 %v2258, %v2260
        %v2262 = vrot.slane %v2248, %v2261
        %v2263 = vcombine.high %v2255, %v2255
        %v2264 = vcombine.high %v2262, %v2262
        %v2266 = vunpack.c.l.s4 1966171168
        %v2267 = vunpack.c.0.s8 %v2266
        %v2268 = vlaneseq
        %v2269 = vshrl.u32 %v2268, 7
        %v2270 = vsub.s32 %v2267, %v2269
        %v2271 = vrot.slane %v2255, %v2270
        %v2273 = vunpack.c.l.s4 1966171168
        %v2274 = vunpack.c.0.s8 %v2273
        %v2275 = vlaneseq
        %v2276 = vshrl.u32 %v2275, 7
        %v2277 = vsub.s32 %v2274, %v2276
        %v2278 = vrot.slane %v2262, %v2277
        %v2280 = vunpack.c.l.s4 1966171168
        %v2281 = vunpack.c.0.s8 %v2280
        %v2282 = vlaneseq
        %v2283 = vshrl.u32 %v2282, 7
        %v2284 = vsub.s32 %v2281, %v2283
        %v2285 = vrot.slane %v2263, %v2284
        %v2287 = vunpack.c.l.s4 1966171168
        %v2288 = vunpack.c.0.s8 %v2287
        %v2289 = vlaneseq
        %v2290 = vshrl.u32 %v2289, 7
        %v2291 = vsub.s32 %v2288, %v2290
        %v2292 = vrot.slane %v2264, %v2291
        %v2293 = vcombine.high %v2271, %v2271
        %v2294 = vcombine.high %v2278, %v2278
        %v2295 = vcombine.high %v2285, %v2285
        %v2296 = vcombine.high %v2292, %v2292
        %v2298 = vunpack.c.l.s4 1966171168
        %v2299 = vunpack.c.0.s8 %v2298
        %v2300 = vlaneseq
        %v2301 = vshrl.u32 %v2300, 7
        %v2302 = vsub.s32 %v2299, %v2301
        %v2303 = vrot.slane %v1976, %v2302
        %v2305 = vunpack.c.l.s4 1966171168
        %v2306 = vunpack.c.0.s8 %v2305
        %v2307 = vlaneseq
        %v2308 = vshrl.u32 %v2307, 7
        %v2309 = vsub.s32 %v2306, %v2308
        %v2310 = vrot.slane %v2303, %v2309
        %v2311 = vcombine.high %v1969, %v1969
        %v2313 = vunpack.c.l.s4 1966171168
        %v2314 = vunpack.c.0.s8 %v2313
        %v2315 = vlaneseq
        %v2316 = vshrl.u32 %v2315, 7
        %v2317 = vsub.s32 %v2314, %v2316
        %v2318 = vrot.slane %v1969, %v2317
        %v2320 = vunpack.c.l.s4 1966171168
        %v2321 = vunpack.c.0.s8 %v2320
        %v2322 = vlaneseq
        %v2323 = vshrl.u32 %v2322, 7
        %v2324 = vsub.s32 %v2321, %v2323
        %v2325 = vrot.slane %v2311, %v2324
        %v2326 = vcombine.high %v2318, %v2318
        %v2327 = vcombine.high %v2325, %v2325
        %v2329 = vunpack.c.l.s4 1966171168
        %v2330 = vunpack.c.0.s8 %v2329
        %v2331 = vlaneseq
        %v2332 = vshrl.u32 %v2331, 7
        %v2333 = vsub.s32 %v2330, %v2332
        %v2334 = vrot.slane %v2318, %v2333
        %v2336 = vunpack.c.l.s4 1966171168
        %v2337 = vunpack.c.0.s8 %v2336
        %v2338 = vlaneseq
        %v2339 = vshrl.u32 %v2338, 7
        %v2340 = vsub.s32 %v2337, %v2339
        %v2341 = vrot.slane %v2325, %v2340
        %v2343 = vunpack.c.l.s4 1966171168
        %v2344 = vunpack.c.0.s8 %v2343
        %v2345 = vlaneseq
        %v2346 = vshrl.u32 %v2345, 7
        %v2347 = vsub.s32 %v2344, %v2346
        %v2348 = vrot.slane %v2326, %v2347
        %v2350 = vunpack.c.l.s4 1966171168
        %v2351 = vunpack.c.0.s8 %v2350
        %v2352 = vlaneseq
        %v2353 = vshrl.u32 %v2352, 7
        %v2354 = vsub.s32 %v2351, %v2353
        %v2355 = vrot.slane %v2327, %v2354
        %v2356 = vcombine.high %v2334, %v2334
        %v2357 = vcombine.high %v2341, %v2341
        %v2358 = vcombine.high %v2348, %v2348
        %v2359 = vcombine.high %v2355, %v2355
        %v2361 = vunpack.c.l.s4 1966171168
        %v2362 = vunpack.c.0.s8 %v2361
        %v2363 = vlaneseq
        %v2364 = vshrl.u32 %v2363, 7
        %v2365 = vsub.s32 %v2362, %v2364
        %v2366 = vrot.slane %v1977, %v2365
        %v2368 = vunpack.c.l.s4 1966171168
        %v2369 = vunpack.c.0.s8 %v2368
        %v2370 = vlaneseq
        %v2371 = vshrl.u32 %v2370, 7
        %v2372 = vsub.s32 %v2369, %v2371
        %v2373 = vrot.slane %v2366, %v2372
        %v2374 = vcombine.high %v1970, %v1970
        %v2376 = vunpack.c.l.s4 1966171168
        %v2377 = vunpack.c.0.s8 %v2376
        %v2378 = vlaneseq
        %v2379 = vshrl.u32 %v2378, 7
        %v2380 = vsub.s32 %v2377, %v2379
        %v2381 = vrot.slane %v1970, %v2380
        %v2383 = vunpack.c.l.s4 1966171168
        %v2384 = vunpack.c.0.s8 %v2383
        %v2385 = vlaneseq
        %v2386 = vshrl.u32 %v2385, 7
        %v2387 = vsub.s32 %v2384, %v2386
        %v2388 = vrot.slane %v2374, %v2387
        %v2389 = vcombine.high %v2381, %v2381
        %v2390 = vcombine.high %v2388, %v2388
        %v2392 = vunpack.c.l.s4 1966171168
        %v2393 = vunpack.c.0.s8 %v2392
        %v2394 = vlaneseq
        %v2395 = vshrl.u32 %v2394, 7
        %v2396 = vsub.s32 %v2393, %v2395
        %v2397 = vrot.slane %v2381, %v2396
        %v2399 = vunpack.c.l.s4 1966171168
        %v2400 = vunpack.c.0.s8 %v2399
        %v2401 = vlaneseq
        %v2402 = vshrl.u32 %v2401, 7
        %v2403 = vsub.s32 %v2400, %v2402
        %v2404 = vrot.slane %v2388, %v2403
        %v2406 = vunpack.c.l.s4 1966171168
        %v2407 = vunpack.c.0.s8 %v2406
        %v2408 = vlaneseq
        %v2409 = vshrl.u32 %v2408, 7
        %v2410 = vsub.s32 %v2407, %v2409
        %v2411 = vrot.slane %v2389, %v2410
        %v2413 = vunpack.c.l.s4 1966171168
        %v2414 = vunpack.c.0.s8 %v2413
        %v2415 = vlaneseq
        %v2416 = vshrl.u32 %v2415, 7
        %v2417 = vsub.s32 %v2414, %v2416
        %v2418 = vrot.slane %v2390, %v2417
        %v2419 = vcombine.high %v2397, %v2397
        %v2420 = vcombine.high %v2404, %v2404
        %v2421 = vcombine.high %v2411, %v2411
        %v2422 = vcombine.high %v2418, %v2418
        %v2424 = vunpack.c.l.s4 1966171168
        %v2425 = vunpack.c.0.s8 %v2424
        %v2426 = vlaneseq
        %v2427 = vshrl.u32 %v2426, 7
        %v2428 = vsub.s32 %v2425, %v2427
        %v2429 = vrot.slane %v1978, %v2428
        %v2431 = vunpack.c.l.s4 1966171168
        %v2432 = vunpack.c.0.s8 %v2431
        %v2433 = vlaneseq
        %v2434 = vshrl.u32 %v2433, 7
        %v2435 = vsub.s32 %v2432, %v2434
        %v2436 = vrot.slane %v2429, %v2435
        %v2437 = vcombine.high %v1971, %v1971
        %v2439 = vunpack.c.l.s4 1966171168
        %v2440 = vunpack.c.0.s8 %v2439
        %v2441 = vlaneseq
        %v2442 = vshrl.u32 %v2441, 7
        %v2443 = vsub.s32 %v2440, %v2442
        %v2444 = vrot.slane %v1971, %v2443
        %v2446 = vunpack.c.l.s4 1966171168
        %v2447 = vunpack.c.0.s8 %v2446
        %v2448 = vlaneseq
        %v2449 = vshrl.u32 %v2448, 7
        %v2450 = vsub.s32 %v2447, %v2449
        %v2451 = vrot.slane %v2437, %v2450
        %v2452 = vcombine.high %v2444, %v2444
        %v2453 = vcombine.high %v2451, %v2451
        %v2455 = vunpack.c.l.s4 1966171168
        %v2456 = vunpack.c.0.s8 %v2455
        %v2457 = vlaneseq
        %v2458 = vshrl.u32 %v2457, 7
        %v2459 = vsub.s32 %v2456, %v2458
        %v2460 = vrot.slane %v2444, %v2459
        %v2462 = vunpack.c.l.s4 1966171168
        %v2463 = vunpack.c.0.s8 %v2462
        %v2464 = vlaneseq
        %v2465 = vshrl.u32 %v2464, 7
        %v2466 = vsub.s32 %v2463, %v2465
        %v2467 = vrot.slane %v2451, %v2466
        %v2469 = vunpack.c.l.s4 1966171168
        %v2470 = vunpack.c.0.s8 %v2469
        %v2471 = vlaneseq
        %v2472 = vshrl.u32 %v2471, 7
        %v2473 = vsub.s32 %v2470, %v2472
        %v2474 = vrot.slane %v2452, %v2473
        %v2476 = vunpack.c.l.s4 1966171168
        %v2477 = vunpack.c.0.s8 %v2476
        %v2478 = vlaneseq
        %v2479 = vshrl.u32 %v2478, 7
        %v2480 = vsub.s32 %v2477, %v2479
        %v2481 = vrot.slane %v2453, %v2480
        %v2482 = vcombine.high %v2460, %v2460
        %v2483 = vcombine.high %v2467, %v2467
        %v2484 = vcombine.high %v2474, %v2474
        %v2485 = vcombine.high %v2481, %v2481
        %v2487 = vunpack.c.l.s4 1966171168
        %v2488 = vunpack.c.0.s8 %v2487
        %v2489 = vlaneseq
        %v2490 = vshrl.u32 %v2489, 7
        %v2491 = vsub.s32 %v2488, %v2490
        %v2492 = vrot.slane %v1979, %v2491
        %v2494 = vunpack.c.l.s4 1966171168
        %v2495 = vunpack.c.0.s8 %v2494
        %v2496 = vlaneseq
        %v2497 = vshrl.u32 %v2496, 7
        %v2498 = vsub.s32 %v2495, %v2497
        %v2499 = vrot.slane %v2492, %v2498
        %v2500 = vcombine.low %v2033, %v2033
        %v2501 = vcombine.low %v2019, %v2041
        %v2503 = vunpack.c.l.s4 1935823168
        %v2504 = vunpack.c.0.s8 %v2503
        %v2505 = vlaneseq
        %v2506 = vshrl.u32 %v2505, 7
        %v2507 = vsub.s32 %v2504, %v2506
        %v2508 = vrot.slane %v2500, %v2507
        %v2510 = vunpack.c.l.s4 1935823168
        %v2511 = vunpack.c.0.s8 %v2510
        %v2512 = vlaneseq
        %v2513 = vshrl.u32 %v2512, 7
        %v2514 = vsub.s32 %v2511, %v2513
        %v2515 = vrot.slane %v2501, %v2514
        %v2516 = vcombine.low %v2508, %v2515
        %v2518 = vunpack.c.l.s4 1935823168
        %v2519 = vunpack.c.0.s8 %v2518
        %v2520 = vlaneseq
        %v2521 = vshrl.u32 %v2520, 7
        %v2522 = vsub.s32 %v2519, %v2521
        %v2523 = vrot.slane %v2516, %v2522
        %v2524 = vcombine.low %v2043, %v2040
        %v2525 = vcombine.low %v2026, %v2042
        %v2527 = vunpack.c.l.s4 1935823168
        %v2528 = vunpack.c.0.s8 %v2527
        %v2529 = vlaneseq
        %v2530 = vshrl.u32 %v2529, 7
        %v2531 = vsub.s32 %v2528, %v2530
        %v2532 = vrot.slane %v2524, %v2531
        %v2534 = vunpack.c.l.s4 1935823168
        %v2535 = vunpack.c.0.s8 %v2534
        %v2536 = vlaneseq
        %v2537 = vshrl.u32 %v2536, 7
        %v2538 = vsub.s32 %v2535, %v2537
        %v2539 = vrot.slane %v2525, %v2538
        %v2540 = vcombine.low %v2532, %v2539
        %v2542 = vunpack.c.l.s4 1935823168
        %v2543 = vunpack.c.0.s8 %v2542
        %v2544 = vlaneseq
        %v2545 = vshrl.u32 %v2544, 7
        %v2546 = vsub.s32 %v2543, %v2545
        %v2547 = vrot.slane %v2540, %v2546
        %v2548 = vcombine.low %v2044, %v2082
        %v2549 = vcombine.low %v2058, %v2096
        %v2551 = vunpack.c.l.s4 1935823168
        %v2552 = vunpack.c.0.s8 %v2551
        %v2553 = vlaneseq
        %v2554 = vshrl.u32 %v2553, 7
        %v2555 = vsub.s32 %v2552, %v2554
        %v2556 = vrot.slane %v2548, %v2555
        %v2558 = vunpack.c.l.s4 1935823168
        %v2559 = vunpack.c.0.s8 %v2558
        %v2560 = vlaneseq
        %v2561 = vshrl.u32 %v2560, 7
        %v2562 = vsub.s32 %v2559, %v2561
        %v2563 = vrot.slane %v2549, %v2562
        %v2564 = vcombine.low %v2556, %v2563
        %v2566 = vunpack.c.l.s4 1935823168
        %v2567 = vunpack.c.0.s8 %v2566
        %v2568 = vlaneseq
        %v2569 = vshrl.u32 %v2568, 7
        %v2570 = vsub.s32 %v2567, %v2569
        %v2571 = vrot.slane %v2564, %v2570
        %v2572 = vcombine.low %v2104, %v2089
        %v2573 = vcombine.low %v2106, %v2103
        %v2575 = vunpack.c.l.s4 1935823168
        %v2576 = vunpack.c.0.s8 %v2575
        %v2577 = vlaneseq
        %v2578 = vshrl.u32 %v2577, 7
        %v2579 = vsub.s32 %v2576, %v2578
        %v2580 = vrot.slane %v2572, %v2579
        %v2582 = vunpack.c.l.s4 1935823168
        %v2583 = vunpack.c.0.s8 %v2582
        %v2584 = vlaneseq
        %v2585 = vshrl.u32 %v2584, 7
        %v2586 = vsub.s32 %v2583, %v2585
        %v2587 = vrot.slane %v2573, %v2586
        %v2588 = vcombine.low %v2580, %v2587
        %v2590 = vunpack.c.l.s4 1935823168
        %v2591 = vunpack.c.0.s8 %v2590
        %v2592 = vlaneseq
        %v2593 = vshrl.u32 %v2592, 7
        %v2594 = vsub.s32 %v2591, %v2593
        %v2595 = vrot.slane %v2588, %v2594
        %v2596 = vcombine.low %v2105, %v2121
        %v2597 = vcombine.low %v2107, %v2145
        %v2599 = vunpack.c.l.s4 1935823168
        %v2600 = vunpack.c.0.s8 %v2599
        %v2601 = vlaneseq
        %v2602 = vshrl.u32 %v2601, 7
        %v2603 = vsub.s32 %v2600, %v2602
        %v2604 = vrot.slane %v2596, %v2603
        %v2606 = vunpack.c.l.s4 1935823168
        %v2607 = vunpack.c.0.s8 %v2606
        %v2608 = vlaneseq
        %v2609 = vshrl.u32 %v2608, 7
        %v2610 = vsub.s32 %v2607, %v2609
        %v2611 = vrot.slane %v2597, %v2610
        %v2612 = vcombine.low %v2604, %v2611
        %v2614 = vunpack.c.l.s4 1935823168
        %v2615 = vunpack.c.0.s8 %v2614
        %v2616 = vlaneseq
        %v2617 = vshrl.u32 %v2616, 7
        %v2618 = vsub.s32 %v2615, %v2617
        %v2619 = vrot.slane %v2612, %v2618
        %v2620 = vcombine.low %v2159, %v2169
        %v2621 = vcombine.low %v2167, %v2152
        %v2623 = vunpack.c.l.s4 1935823168
        %v2624 = vunpack.c.0.s8 %v2623
        %v2625 = vlaneseq
        %v2626 = vshrl.u32 %v2625, 7
        %v2627 = vsub.s32 %v2624, %v2626
        %v2628 = vrot.slane %v2620, %v2627
        %v2630 = vunpack.c.l.s4 1935823168
        %v2631 = vunpack.c.0.s8 %v2630
        %v2632 = vlaneseq
        %v2633 = vshrl.u32 %v2632, 7
        %v2634 = vsub.s32 %v2631, %v2633
        %v2635 = vrot.slane %v2621, %v2634
        %v2636 = vcombine.low %v2628, %v2635
        %v2638 = vunpack.c.l.s4 1935823168
        %v2639 = vunpack.c.0.s8 %v2638
        %v2640 = vlaneseq
        %v2641 = vshrl.u32 %v2640, 7
        %v2642 = vsub.s32 %v2639, %v2641
        %v2643 = vrot.slane %v2636, %v2642
        %v2644 = vcombine.low %v2166, %v2170
        %v2645 = vcombine.low %v2168, %v2184
        %v2647 = vunpack.c.l.s4 1935823168
        %v2648 = vunpack.c.0.s8 %v2647
        %v2649 = vlaneseq
        %v2650 = vshrl.u32 %v2649, 7
        %v2651 = vsub.s32 %v2648, %v2650
        %v2652 = vrot.slane %v2644, %v2651
        %v2654 = vunpack.c.l.s4 1935823168
        %v2655 = vunpack.c.0.s8 %v2654
        %v2656 = vlaneseq
        %v2657 = vshrl.u32 %v2656, 7
        %v2658 = vsub.s32 %v2655, %v2657
        %v2659 = vrot.slane %v2645, %v2658
        %v2660 = vcombine.low %v2652, %v2659
        %v2662 = vunpack.c.l.s4 1935823168
        %v2663 = vunpack.c.0.s8 %v2662
        %v2664 = vlaneseq
        %v2665 = vshrl.u32 %v2664, 7
        %v2666 = vsub.s32 %v2663, %v2665
        %v2667 = vrot.slane %v2660, %v2666
        %v2668 = vcombine.low %v2208, %v2230
        %v2669 = vcombine.low %v2222, %v2232
        %v2671 = vunpack.c.l.s4 1935823168
        %v2672 = vunpack.c.0.s8 %v2671
        %v2673 = vlaneseq
        %v2674 = vshrl.u32 %v2673, 7
        %v2675 = vsub.s32 %v2672, %v2674
        %v2676 = vrot.slane %v2668, %v2675
        %v2678 = vunpack.c.l.s4 1935823168
        %v2679 = vunpack.c.0.s8 %v2678
        %v2680 = vlaneseq
        %v2681 = vshrl.u32 %v2680, 7
        %v2682 = vsub.s32 %v2679, %v2681
        %v2683 = vrot.slane %v2669, %v2682
        %v2684 = vcombine.low %v2676, %v2683
        %v2686 = vunpack.c.l.s4 1935823168
        %v2687 = vunpack.c.0.s8 %v2686
        %v2688 = vlaneseq
        %v2689 = vshrl.u32 %v2688, 7
        %v2690 = vsub.s32 %v2687, %v2689
        %v2691 = vrot.slane %v2684, %v2690
        %v2692 = vcombine.low %v2215, %v2231
        %v2693 = vcombine.low %v2229, %v2233
        %v2695 = vunpack.c.l.s4 1935823168
        %v2696 = vunpack.c.0.s8 %v2695
        %v2697 = vlaneseq
        %v2698 = vshrl.u32 %v2697, 7
        %v2699 = vsub.s32 %v2696, %v2698
        %v2700 = vrot.slane %v2692, %v2699
        %v2702 = vunpack.c.l.s4 1935823168
        %v2703 = vunpack.c.0.s8 %v2702
        %v2704 = vlaneseq
        %v2705 = vshrl.u32 %v2704, 7
        %v2706 = vsub.s32 %v2703, %v2705
        %v2707 = vrot.slane %v2693, %v2706
        %v2708 = vcombine.low %v2700, %v2707
        %v2710 = vunpack.c.l.s4 1935823168
        %v2711 = vunpack.c.0.s8 %v2710
        %v2712 = vlaneseq
        %v2713 = vshrl.u32 %v2712, 7
        %v2714 = vsub.s32 %v2711, %v2713
        %v2715 = vrot.slane %v2708, %v2714
        %v2716 = vcombine.low %v2247, %v2285
        %v2717 = vcombine.low %v2271, %v2293
        %v2719 = vunpack.c.l.s4 1935823168
        %v2720 = vunpack.c.0.s8 %v2719
        %v2721 = vlaneseq
        %v2722 = vshrl.u32 %v2721, 7
        %v2723 = vsub.s32 %v2720, %v2722
        %v2724 = vrot.slane %v2716, %v2723
        %v2726 = vunpack.c.l.s4 1935823168
        %v2727 = vunpack.c.0.s8 %v2726
        %v2728 = vlaneseq
        %v2729 = vshrl.u32 %v2728, 7
        %v2730 = vsub.s32 %v2727, %v2729
        %v2731 = vrot.slane %v2717, %v2730
        %v2732 = vcombine.low %v2724, %v2731
        %v2734 = vunpack.c.l.s4 1935823168
        %v2735 = vunpack.c.0.s8 %v2734
        %v2736 = vlaneseq
        %v2737 = vshrl.u32 %v2736, 7
        %v2738 = vsub.s32 %v2735, %v2737
        %v2739 = vrot.slane %v2732, %v2738
        %v2740 = vcombine.low %v2295, %v2292
        %v2741 = vcombine.low %v2278, %v2294
        %v2743 = vunpack.c.l.s4 1935823168
        %v2744 = vunpack.c.0.s8 %v2743
        %v2745 = vlaneseq
        %v2746 = vshrl.u32 %v2745, 7
        %v2747 = vsub.s32 %v2744, %v2746
        %v2748 = vrot.slane %v2740, %v2747
        %v2750 = vunpack.c.l.s4 1935823168
        %v2751 = vunpack.c.0.s8 %v2750
        %v2752 = vlaneseq
        %v2753 = vshrl.u32 %v2752, 7
        %v2754 = vsub.s32 %v2751, %v2753
        %v2755 = vrot.slane %v2741, %v2754
        %v2756 = vcombine.low %v2748, %v2755
        %v2758 = vunpack.c.l.s4 1935823168
        %v2759 = vunpack.c.0.s8 %v2758
        %v2760 = vlaneseq
        %v2761 = vshrl.u32 %v2760, 7
        %v2762 = vsub.s32 %v2759, %v2761
        %v2763 = vrot.slane %v2756, %v2762
        %v2764 = vcombine.low %v2296, %v2334
        %v2765 = vcombine.low %v2310, %v2348
        %v2767 = vunpack.c.l.s4 1935823168
        %v2768 = vunpack.c.0.s8 %v2767
        %v2769 = vlaneseq
        %v2770 = vshrl.u32 %v2769, 7
        %v2771 = vsub.s32 %v2768, %v2770
        %v2772 = vrot.slane %v2764, %v2771
        %v2774 = vunpack.c.l.s4 1935823168
        %v2775 = vunpack.c.0.s8 %v2774
        %v2776 = vlaneseq
        %v2777 = vshrl.u32 %v2776, 7
        %v2778 = vsub.s32 %v2775, %v2777
        %v2779 = vrot.slane %v2765, %v2778
        %v2780 = vcombine.low %v2772, %v2779
        %v2782 = vunpack.c.l.s4 1935823168
        %v2783 = vunpack.c.0.s8 %v2782
        %v2784 = vlaneseq
        %v2785 = vshrl.u32 %v2784, 7
        %v2786 = vsub.s32 %v2783, %v2785
        %v2787 = vrot.slane %v2780, %v2786
        %v2788 = vcombine.low %v2356, %v2341
        %v2789 = vcombine.low %v2358, %v2355
        %v2791 = vunpack.c.l.s4 1935823168
        %v2792 = vunpack.c.0.s8 %v2791
        %v2793 = vlaneseq
        %v2794 = vshrl.u32 %v2793, 7
        %v2795 = vsub.s32 %v2792, %v2794
        %v2796 = vrot.slane %v2788, %v2795
        %v2798 = vunpack.c.l.s4 1935823168
        %v2799 = vunpack.c.0.s8 %v2798
        %v2800 = vlaneseq
        %v2801 = vshrl.u32 %v2800, 7
        %v2802 = vsub.s32 %v2799, %v2801
        %v2803 = vrot.slane %v2789, %v2802
        %v2804 = vcombine.low %v2796, %v2803
        %v2806 = vunpack.c.l.s4 1935823168
        %v2807 = vunpack.c.0.s8 %v2806
        %v2808 = vlaneseq
        %v2809 = vshrl.u32 %v2808, 7
        %v2810 = vsub.s32 %v2807, %v2809
        %v2811 = vrot.slane %v2804, %v2810
        %v2812 = vcombine.low %v2357, %v2373
        %v2813 = vcombine.low %v2359, %v2397
        %v2815 = vunpack.c.l.s4 1935823168
        %v2816 = vunpack.c.0.s8 %v2815
        %v2817 = vlaneseq
        %v2818 = vshrl.u32 %v2817, 7
        %v2819 = vsub.s32 %v2816, %v2818
        %v2820 = vrot.slane %v2812, %v2819
        %v2822 = vunpack.c.l.s4 1935823168
        %v2823 = vunpack.c.0.s8 %v2822
        %v2824 = vlaneseq
        %v2825 = vshrl.u32 %v2824, 7
        %v2826 = vsub.s32 %v2823, %v2825
        %v2827 = vrot.slane %v2813, %v2826
        %v2828 = vcombine.low %v2820, %v2827
        %v2830 = vunpack.c.l.s4 1935823168
        %v2831 = vunpack.c.0.s8 %v2830
        %v2832 = vlaneseq
        %v2833 = vshrl.u32 %v2832, 7
        %v2834 = vsub.s32 %v2831, %v2833
        %v2835 = vrot.slane %v2828, %v2834
        %v2836 = vcombine.low %v2411, %v2421
        %v2837 = vcombine.low %v2419, %v2404
        %v2839 = vunpack.c.l.s4 1935823168
        %v2840 = vunpack.c.0.s8 %v2839
        %v2841 = vlaneseq
        %v2842 = vshrl.u32 %v2841, 7
        %v2843 = vsub.s32 %v2840, %v2842
        %v2844 = vrot.slane %v2836, %v2843
        %v2846 = vunpack.c.l.s4 1935823168
        %v2847 = vunpack.c.0.s8 %v2846
        %v2848 = vlaneseq
        %v2849 = vshrl.u32 %v2848, 7
        %v2850 = vsub.s32 %v2847, %v2849
        %v2851 = vrot.slane %v2837, %v2850
        %v2852 = vcombine.low %v2844, %v2851
        %v2854 = vunpack.c.l.s4 1935823168
        %v2855 = vunpack.c.0.s8 %v2854
        %v2856 = vlaneseq
        %v2857 = vshrl.u32 %v2856, 7
        %v2858 = vsub.s32 %v2855, %v2857
        %v2859 = vrot.slane %v2852, %v2858
        %v2860 = vcombine.low %v2418, %v2422
        %v2861 = vcombine.low %v2420, %v2436
        %v2863 = vunpack.c.l.s4 1935823168
        %v2864 = vunpack.c.0.s8 %v2863
        %v2865 = vlaneseq
        %v2866 = vshrl.u32 %v2865, 7
        %v2867 = vsub.s32 %v2864, %v2866
        %v2868 = vrot.slane %v2860, %v2867
        %v2870 = vunpack.c.l.s4 1935823168
        %v2871 = vunpack.c.0.s8 %v2870
        %v2872 = vlaneseq
        %v2873 = vshrl.u32 %v2872, 7
        %v2874 = vsub.s32 %v2871, %v2873
        %v2875 = vrot.slane %v2861, %v2874
        %v2876 = vcombine.low %v2868, %v2875
        %v2878 = vunpack.c.l.s4 1935823168
        %v2879 = vunpack.c.0.s8 %v2878
        %v2880 = vlaneseq
        %v2881 = vshrl.u32 %v2880, 7
        %v2882 = vsub.s32 %v2879, %v2881
        %v2883 = vrot.slane %v2876, %v2882
        %v2884 = vcombine.low %v2460, %v2482
        %v2885 = vcombine.low %v2474, %v2484
        %v2887 = vunpack.c.l.s4 1935823168
        %v2888 = vunpack.c.0.s8 %v2887
        %v2889 = vlaneseq
        %v2890 = vshrl.u32 %v2889, 7
        %v2891 = vsub.s32 %v2888, %v2890
        %v2892 = vrot.slane %v2884, %v2891
        %v2894 = vunpack.c.l.s4 1935823168
        %v2895 = vunpack.c.0.s8 %v2894
        %v2896 = vlaneseq
        %v2897 = vshrl.u32 %v2896, 7
        %v2898 = vsub.s32 %v2895, %v2897
        %v2899 = vrot.slane %v2885, %v2898
        %v2900 = vcombine.low %v2892, %v2899
        %v2902 = vunpack.c.l.s4 1935823168
        %v2903 = vunpack.c.0.s8 %v2902
        %v2904 = vlaneseq
        %v2905 = vshrl.u32 %v2904, 7
        %v2906 = vsub.s32 %v2903, %v2905
        %v2907 = vrot.slane %v2900, %v2906
        %v2908 = vcombine.low %v2467, %v2483
        %v2909 = vcombine.low %v2481, %v2485
        %v2911 = vunpack.c.l.s4 1935823168
        %v2912 = vunpack.c.0.s8 %v2911
        %v2913 = vlaneseq
        %v2914 = vshrl.u32 %v2913, 7
        %v2915 = vsub.s32 %v2912, %v2914
        %v2916 = vrot.slane %v2908, %v2915
        %v2918 = vunpack.c.l.s4 1935823168
        %v2919 = vunpack.c.0.s8 %v2918
        %v2920 = vlaneseq
        %v2921 = vshrl.u32 %v2920, 7
        %v2922 = vsub.s32 %v2919, %v2921
        %v2923 = vrot.slane %v2909, %v2922
        %v2924 = vcombine.low %v2916, %v2923
        %v2926 = vunpack.c.l.s4 1935823168
        %v2927 = vunpack.c.0.s8 %v2926
        %v2928 = vlaneseq
        %v2929 = vshrl.u32 %v2928, 7
        %v2930 = vsub.s32 %v2927, %v2929
        %v2931 = vrot.slane %v2924, %v2930
        %v2933 = vunpack.c.l.s4 1935823168
        %v2934 = vunpack.c.0.s8 %v2933
        %v2935 = vlaneseq
        %v2936 = vshrl.u32 %v2935, 7
        %v2937 = vsub.s32 %v2934, %v2936
        %v2938 = vrot.slane %v2499, %v2937
        %v2940 = vunpack.c.l.s4 1935823168
        %v2941 = vunpack.c.0.s8 %v2940
        %v2942 = vlaneseq
        %v2943 = vshrl.u32 %v2942, 7
        %v2944 = vsub.s32 %v2941, %v2943
        %v2945 = vrot.slane %v2938, %v2944
        %2965 = vst [vmem:[#allocation2 + $0x50] sm:$0xe] %v2523
        %2966 = vst [vmem:[#allocation2 + $0x54] sm:$0xf] %v2547
        %2967 = vst [vmem:[#allocation2 + $0x58] sm:$0xf] %v2571
        %2968 = vst [vmem:[#allocation2 + $0x5c] sm:$0xf] %v2595
        %2969 = vst [vmem:[#allocation2 + $0x60] sm:$0xf] %v2619
        %2970 = vst [vmem:[#allocation2 + $0x64] sm:$0xf] %v2643
        %2971 = vst [vmem:[#allocation2 + $0x68] sm:$0xf] %v2667
        %2972 = vst [vmem:[#allocation2 + $0x6c] sm:$0xf] %v2691
        %2973 = vst [vmem:[#allocation2 + $0x70] sm:$0xf] %v2715
        %2974 = vst [vmem:[#allocation2 + $0x74] sm:$0xf] %v2739
        %2975 = vst [vmem:[#allocation2 + $0x78] sm:$0xf] %v2763
        %2976 = vst [vmem:[#allocation2 + $0x7c] sm:$0xf] %v2787
        %2977 = vst [vmem:[#allocation2 + $0x80] sm:$0xf] %v2811
        %2978 = vst [vmem:[#allocation2 + $0x84] sm:$0xf] %v2835
        %2979 = vst [vmem:[#allocation2 + $0x88] sm:$0xf] %v2859
        %2980 = vst [vmem:[#allocation2 + $0x8c] sm:$0xf] %v2883
        %2981 = vst [vmem:[#allocation2 + $0x90] sm:$0xf] %v2907
        %2982 = vst [vmem:[#allocation2 + $0x94] sm:$0xf] %v2931
        %2983 = vst [vmem:[#allocation2 + $0x98] sm:$0x1] %v2945
        %v2984 = vld [vmem:[#allocation2] sm:$0xf]
        %v2985 = vld [vmem:[#allocation2 + $0x4] sm:$0xf]
        %v2986 = vld [vmem:[#allocation2 + $0x8] sm:$0xf]
        %v2987 = vld [vmem:[#allocation2 + $0xc] sm:$0xf]
        %v2988 = vld [vmem:[#allocation2 + $0x10] sm:$0xf]
        %v2989 = vld [vmem:[#allocation2 + $0x14] sm:$0xf]
        %v2990 = vld [vmem:[#allocation2 + $0x18] sm:$0xf]
        %v2991 = vld [vmem:[#allocation2 + $0x1c] sm:$0xf]
        %v2992 = vld [vmem:[#allocation2 + $0x20] sm:$0xf]
        %v2993 = vld [vmem:[#allocation2 + $0x24] sm:$0xf]
        %v2994 = vld [vmem:[#allocation2 + $0x28] sm:$0xf]
        %v2995 = vld [vmem:[#allocation2 + $0x2c] sm:$0xf]
        %v2996 = vld [vmem:[#allocation2 + $0x30] sm:$0xf]
        %v2997 = vld [vmem:[#allocation2 + $0x34] sm:$0xf]
        %v2998 = vld [vmem:[#allocation2 + $0x38] sm:$0xf]
        %v2999 = vld [vmem:[#allocation2 + $0x3c] sm:$0xf]
        %v3000 = vld [vmem:[#allocation2 + $0x40] sm:$0xf]
        %v3001 = vld [vmem:[#allocation2 + $0x44] sm:$0xf]
        %v3002 = vld [vmem:[%s2] sm:$0xf]
        %v3003 = vld [vmem:[%s2 + $0x4] sm:$0xf]
        %v3004 = vld [vmem:[%s2 + $0x8] sm:$0xf]
        %v3005 = vld [vmem:[%s2 + $0xc] sm:$0xf]
        %v3006 = vld [vmem:[%s2 + $0x10] sm:$0xf]
        %v3007 = vld [vmem:[%s2 + $0x14] sm:$0xf]
        %v3008 = vld [vmem:[%s2 + $0x18] sm:$0xf]
        %v3009 = vld [vmem:[%s2 + $0x1c] sm:$0xf]
        %v3010 = vld [vmem:[%s2 + $0x20] sm:$0xf]
        %v3011 = vld [vmem:[%s2 + $0x24] sm:$0xf]
        %v3012 = vld [vmem:[%s2 + $0x28] sm:$0xf]
        %v3013 = vld [vmem:[%s2 + $0x2c] sm:$0xf]
        %v3014 = vld [vmem:[%s2 + $0x30] sm:$0xf]
        %v3015 = vld [vmem:[%s2 + $0x34] sm:$0xf]
        %v3016 = vld [vmem:[%s2 + $0x38] sm:$0xf]
        %v3017 = vld [vmem:[%s2 + $0x3c] sm:$0xf]
        %v3018 = vld [vmem:[#allocation2 + $0x48] sm:$0x1]
        %s3019 = scalar_lea.vmem %s2, 64
        %v3020 = vld [vmem:[%s3019] sm:$0xf]
        %v3021 = vld [vmem:[%s3019 + $0x4] sm:$0xf]
        %v3022 = vld [vmem:[%s3019 + $0x8] sm:$0xf]
        %v3023 = vld [vmem:[%s3019 + $0xc] sm:$0xf]
        %v3024 = vld [vmem:[%s3019 + $0x10] sm:$0xf]
        %v3025 = vld [vmem:[%s3019 + $0x14] sm:$0xf]
        %v3026 = vld [vmem:[%s3019 + $0x18] sm:$0xf]
        %v3027 = vld [vmem:[%s3019 + $0x1c] sm:$0xf]
        %v3028 = vld [vmem:[%s3019 + $0x20] sm:$0xf]
        %v3029 = vld [vmem:[%s3019 + $0x24] sm:$0xf]
        %v3030 = vld [vmem:[%s3019 + $0x28] sm:$0xf]
        %v3031 = vld [vmem:[%s3019 + $0x2c] sm:$0xf]
        %v3032 = vld [vmem:[%s3019 + $0x30] sm:$0xf]
        %v3033 = vld [vmem:[%s3019 + $0x34] sm:$0xf]
        %v3034 = vld [vmem:[%s3019 + $0x38] sm:$0xf]
        %v3035 = vld [vmem:[%s3019 + $0x3c] sm:$0xf]
        %v3055 = vunpack.c.l.b16 %v2984
        %v3056 = vunpack.c.l.b16 %v2985
        %v3057 = vunpack.c.l.b16 %v2986
        %v3058 = vunpack.c.l.b16 %v2987
        %v3059 = vunpack.c.l.b16 %v2988
        %v3060 = vunpack.c.l.b16 %v2989
        %v3061 = vunpack.c.l.b16 %v2990
        %v3062 = vunpack.c.l.b16 %v2991
        %v3063 = vunpack.c.l.b16 %v2992
        %v3064 = vunpack.c.l.b16 %v2993
        %v3065 = vunpack.c.l.b16 %v2994
        %v3066 = vunpack.c.l.b16 %v2995
        %v3067 = vunpack.c.l.b16 %v2996
        %v3068 = vunpack.c.l.b16 %v2997
        %v3069 = vunpack.c.l.b16 %v2998
        %v3070 = vunpack.c.l.b16 %v2999
        %v3071 = vunpack.c.l.b16 %v3000
        %v3072 = vunpack.c.l.b16 %v3001
        %v3073 = vunpack.c.l.b16 %v3018
        %v3074 = vpack.c.b16 %v3056, %v3055
        %v3075 = vpack.c.b16 %v3058, %v3057
        %v3076 = vpack.c.b16 %v3060, %v3059
        %v3077 = vpack.c.b16 %v3062, %v3061
        %v3078 = vpack.c.b16 %v3064, %v3063
        %v3079 = vpack.c.b16 %v3066, %v3065
        %v3080 = vpack.c.b16 %v3068, %v3067
        %v3081 = vpack.c.b16 %v3070, %v3069
        %v3082 = vpack.c.b16 %v3072, %v3071
        %v3083 = vpack.c.b16 %v3073, %v3073
        %vm3084 = vsmask.f32 7424
        %v3086 = vshrl.u32 %v3074, 16
        %v3088 = vshll.u32 %v3074, 16
        %v3090 = vrot.slane %v3088, 1
        %v3091 = vor.u32 %v3086, %v3090
        %v3093 = vshll.u32 %v3075, 16
        %v3095 = vrot.slane %v3093, 1
        %v3096 = vsel %vm3084, %v3091, %v3095
        %v3097 = vshrl.u32 %v3075, 16
        %v3099 = vor.u32 %v3097, %v3095
        %v3101 = vshll.u32 %v3076, 16
        %v3103 = vrot.slane %v3101, 1
        %v3104 = vsel %vm3084, %v3099, %v3103
        %v3105 = vshrl.u32 %v3076, 16
        %v3107 = vor.u32 %v3105, %v3103
        %v3109 = vshll.u32 %v3077, 16
        %v3111 = vrot.slane %v3109, 1
        %v3112 = vsel %vm3084, %v3107, %v3111
        %v3113 = vshrl.u32 %v3077, 16
        %v3115 = vor.u32 %v3113, %v3111
        %v3117 = vshll.u32 %v3078, 16
        %v3119 = vrot.slane %v3117, 1
        %v3120 = vsel %vm3084, %v3115, %v3119
        %v3121 = vshrl.u32 %v3078, 16
        %v3123 = vor.u32 %v3121, %v3119
        %v3125 = vshll.u32 %v3079, 16
        %v3127 = vrot.slane %v3125, 1
        %v3128 = vsel %vm3084, %v3123, %v3127
        %v3129 = vshrl.u32 %v3079, 16
        %v3131 = vor.u32 %v3129, %v3127
        %v3133 = vshll.u32 %v3080, 16
        %v3135 = vrot.slane %v3133, 1
        %v3136 = vsel %vm3084, %v3131, %v3135
        %v3137 = vshrl.u32 %v3080, 16
        %v3139 = vor.u32 %v3137, %v3135
        %v3141 = vshll.u32 %v3081, 16
        %v3143 = vrot.slane %v3141, 1
        %v3144 = vsel %vm3084, %v3139, %v3143
        %v3145 = vshrl.u32 %v3081, 16
        %v3147 = vor.u32 %v3145, %v3143
        %v3149 = vshll.u32 %v3082, 16
        %v3151 = vrot.slane %v3149, 1
        %v3152 = vsel %vm3084, %v3147, %v3151
        %v3153 = vshrl.u32 %v3082, 16
        %v3155 = vor.u32 %v3153, %v3151
        %v3157 = vshll.u32 %v3083, 16
        %v3159 = vrot.slane %v3157, 1
        %v3160 = vsel %vm3084, %v3155, %v3159
        %v3186 = vunpack.c.l.b16 %v3020
        %v3187 = vunpack.c.l.b16 %v3021
        %v3188 = vunpack.c.l.b16 %v3022
        %v3189 = vunpack.c.l.b16 %v3023
        %v3190 = vunpack.c.l.b16 %v3024
        %v3191 = vunpack.c.l.b16 %v3025
        %v3192 = vunpack.c.l.b16 %v3026
        %v3193 = vunpack.c.l.b16 %v3027
        %v3194 = vunpack.c.l.b16 %v3028
        %v3195 = vunpack.c.l.b16 %v3029
        %v3196 = vunpack.c.l.b16 %v3030
        %v3197 = vunpack.c.l.b16 %v3031
        %v3198 = vunpack.c.l.b16 %v3032
        %v3199 = vunpack.c.l.b16 %v3033
        %v3200 = vunpack.c.l.b16 %v3034
        %v3201 = vunpack.c.l.b16 %v3035
        %v3202 = vpack.c.b16 %v3187, %v3186
        %v3203 = vpack.c.b16 %v3189, %v3188
        %v3204 = vpack.c.b16 %v3191, %v3190
        %v3205 = vpack.c.b16 %v3193, %v3192
        %v3206 = vpack.c.b16 %v3195, %v3194
        %v3207 = vpack.c.b16 %v3197, %v3196
        %v3208 = vpack.c.b16 %v3199, %v3198
        %v3209 = vpack.c.b16 %v3201, %v3200
        %3218 = vmatprep.subr.bf16.mxu0 0
        %3219 = vmatpush1.bf16.msra.mxu0 %v3202
        %3220 = vmatprep.subr.bf16.mxu0 0
        %3221 = vmatpush1.bf16.msra.mxu0 %v3203
        %3222 = vmatprep.subr.bf16.mxu0 0
        %3223 = vmatpush1.bf16.msra.mxu0 %v3204
        %3224 = vmatprep.subr.bf16.mxu0 0
        %3225 = vmatpush1.bf16.msra.mxu0 %v3205
        %3226 = vmatprep.subr.bf16.mxu0 0
        %3227 = vmatpush1.bf16.msra.mxu0 %v3206
        %3228 = vmatprep.subr.bf16.mxu0 0
        %3229 = vmatpush1.bf16.msra.mxu0 %v3207
        %3230 = vmatprep.subr.bf16.mxu0 0
        %3231 = vmatpush1.bf16.msra.mxu0 %v3208
        %3232 = vmatprep.subr.bf16.mxu0 0
        %3233 = vmatpush1.bf16.msra.mxu0 %v3209
        %3234 = vmatprep.subr.bf16.mxu0 0
        %3235 = vmatpush1.bf16.msra.mxu0 0
        %3236 = vmatprep.subr.bf16.mxu0 0
        %3237 = vmatpush1.bf16.msra.mxu0 0
        %3238 = vmatprep.subr.bf16.mxu0 0
        %3239 = vmatpush1.bf16.msra.mxu0 0
        %3240 = vmatprep.subr.bf16.mxu0 0
        %3241 = vmatpush1.bf16.msra.mxu0 0
        %3242 = vmatprep.subr.bf16.mxu0 0
        %3243 = vmatpush1.bf16.msra.mxu0 0
        %3244 = vmatprep.subr.bf16.mxu0 0
        %3245 = vmatpush1.bf16.msra.mxu0 0
        %3246 = vmatprep.subr.bf16.mxu0 0
        %3247 = vmatpush1.bf16.msra.mxu0 0
        %3248 = vmatprep.subr.bf16.mxu0 0
        %3249 = vmatpush1.bf16.msra.mxu0 0
        %3250 = vmatprep.mubr.bf16.mxu0 0
        %3251 = vmatmul.mubr.bf16.gmra.mrb[0].mxu0 %v3096
        %v3252 = vpop.f32.mrb[0].mxu0
        %v3253 = vadd.f32 0.0, %v3252
        %v3254 = vpop.f32.mrb[0].mxu0
        %v3255 = vpop.f32.mrb[0].mxu0
        %v3256 = vadd.f32 0.0, %v3255
        %v3257 = vpop.f32.mrb[0].mxu0
        %3258 = vmatprep.mubr.bf16.mxu0 0
        %3259 = vmatmul.mubr.bf16.gmra.mrb[0].mxu0 %v3104
        %v3260 = vpop.f32.mrb[0].mxu0
        %v3261 = vadd.f32 0.0, %v3260
        %v3262 = vpop.f32.mrb[0].mxu0
        %v3263 = vpop.f32.mrb[0].mxu0
        %v3264 = vadd.f32 0.0, %v3263
        %v3265 = vpop.f32.mrb[0].mxu0
        %3266 = vmatprep.mubr.bf16.mxu0 0
        %3267 = vmatmul.mubr.bf16.gmra.mrb[0].mxu0 %v3112
        %v3268 = vpop.f32.mrb[0].mxu0
        %v3269 = vadd.f32 0.0, %v3268
        %v3270 = vpop.f32.mrb[0].mxu0
        %v3271 = vpop.f32.mrb[0].mxu0
        %v3272 = vadd.f32 0.0, %v3271
        %v3273 = vpop.f32.mrb[0].mxu0
        %3274 = vmatprep.mubr.bf16.mxu0 0
        %3275 = vmatmul.mubr.bf16.gmra.mrb[0].mxu0 %v3120
        %v3276 = vpop.f32.mrb[0].mxu0
        %v3277 = vadd.f32 0.0, %v3276
        %v3278 = vpop.f32.mrb[0].mxu0
        %v3279 = vpop.f32.mrb[0].mxu0
        %v3280 = vadd.f32 0.0, %v3279
        %v3281 = vpop.f32.mrb[0].mxu0
        %3282 = vmatprep.mubr.bf16.mxu0 0
        %3283 = vmatmul.mubr.bf16.gmra.mrb[0].mxu0 %v3128
        %v3284 = vpop.f32.mrb[0].mxu0
        %v3285 = vadd.f32 0.0, %v3284
        %v3286 = vpop.f32.mrb[0].mxu0
        %v3287 = vpop.f32.mrb[0].mxu0
        %v3288 = vadd.f32 0.0, %v3287
        %v3289 = vpop.f32.mrb[0].mxu0
        %3290 = vmatprep.mubr.bf16.mxu0 0
        %3291 = vmatmul.mubr.bf16.gmra.mrb[0].mxu0 %v3136
        %v3292 = vpop.f32.mrb[0].mxu0
        %v3293 = vadd.f32 0.0, %v3292
        %v3294 = vpop.f32.mrb[0].mxu0
        %v3295 = vpop.f32.mrb[0].mxu0
        %v3296 = vadd.f32 0.0, %v3295
        %v3297 = vpop.f32.mrb[0].mxu0
        %3298 = vmatprep.mubr.bf16.mxu0 0
        %3299 = vmatmul.mubr.bf16.gmra.mrb[0].mxu0 %v3144
        %v3300 = vpop.f32.mrb[0].mxu0
        %v3301 = vadd.f32 0.0, %v3300
        %v3302 = vpop.f32.mrb[0].mxu0
        %v3303 = vpop.f32.mrb[0].mxu0
        %v3304 = vadd.f32 0.0, %v3303
        %v3305 = vpop.f32.mrb[0].mxu0
        %3306 = vmatprep.mubr.bf16.mxu0 0
        %3307 = vmatmul.mubr.bf16.gmra.mrb[0].mxu0 %v3152
        %v3308 = vpop.f32.mrb[0].mxu0
        %v3309 = vadd.f32 0.0, %v3308
        %v3310 = vpop.f32.mrb[0].mxu0
        %v3311 = vpop.f32.mrb[0].mxu0
        %v3312 = vadd.f32 0.0, %v3311
        %v3313 = vpop.f32.mrb[0].mxu0
        %3314 = vmatprep.mubr.bf16.mxu0 0
        %3315 = vmatmul.mubr.bf16.gmra.mrb[0].mxu0 %v3160
        %v3316 = vpop.f32.mrb[0].mxu0
        %v3317 = vadd.f32 0.0, %v3316
        %v3318 = vpop.f32.mrb[0].mxu0
        %v3319 = vpop.f32.mrb[0].mxu0
        %v3320 = vadd.f32 0.0, %v3319
        %v3321 = vpop.f32.mrb[0].mxu0
        %3322 = vdwg.mxu0
        %v3348 = vunpack.c.l.b16 %v3002
        %v3349 = vunpack.c.l.b16 %v3003
        %v3350 = vunpack.c.l.b16 %v3004
        %v3351 = vunpack.c.l.b16 %v3005
        %v3352 = vunpack.c.l.b16 %v3006
        %v3353 = vunpack.c.l.b16 %v3007
        %v3354 = vunpack.c.l.b16 %v3008
        %v3355 = vunpack.c.l.b16 %v3009
        %v3356 = vunpack.c.l.b16 %v3010
        %v3357 = vunpack.c.l.b16 %v3011
        %v3358 = vunpack.c.l.b16 %v3012
        %v3359 = vunpack.c.l.b16 %v3013
        %v3360 = vunpack.c.l.b16 %v3014
        %v3361 = vunpack.c.l.b16 %v3015
        %v3362 = vunpack.c.l.b16 %v3016
        %v3363 = vunpack.c.l.b16 %v3017
        %v3364 = vpack.c.b16 %v3349, %v3348
        %v3365 = vpack.c.b16 %v3351, %v3350
        %v3366 = vpack.c.b16 %v3353, %v3352
        %v3367 = vpack.c.b16 %v3355, %v3354
        %v3368 = vpack.c.b16 %v3357, %v3356
        %v3369 = vpack.c.b16 %v3359, %v3358
        %v3370 = vpack.c.b16 %v3361, %v3360
        %v3371 = vpack.c.b16 %v3363, %v3362
        %3380 = vmatprep.subr.bf16.mxu0 0
        %3381 = vmatpush1.bf16.msra.mxu0 %v3364
        %3382 = vmatprep.subr.bf16.mxu0 0
        %3383 = vmatpush1.bf16.msra.mxu0 %v3365
        %3384 = vmatprep.subr.bf16.mxu0 0
        %3385 = vmatpush1.bf16.msra.mxu0 %v3366
        %3386 = vmatprep.subr.bf16.mxu0 0
        %3387 = vmatpush1.bf16.msra.mxu0 %v3367
        %3388 = vmatprep.subr.bf16.mxu0 0
        %3389 = vmatpush1.bf16.msra.mxu0 %v3368
        %3390 = vmatprep.subr.bf16.mxu0 0
        %3391 = vmatpush1.bf16.msra.mxu0 %v3369
        %3392 = vmatprep.subr.bf16.mxu0 0
        %3393 = vmatpush1.bf16.msra.mxu0 %v3370
        %3394 = vmatprep.subr.bf16.mxu0 0
        %3395 = vmatpush1.bf16.msra.mxu0 %v3371
        %3396 = vmatprep.subr.bf16.mxu0 0
        %3397 = vmatpush1.bf16.msra.mxu0 0
        %3398 = vmatprep.subr.bf16.mxu0 0
        %3399 = vmatpush1.bf16.msra.mxu0 0
        %3400 = vmatprep.subr.bf16.mxu0 0
        %3401 = vmatpush1.bf16.msra.mxu0 0
        %3402 = vmatprep.subr.bf16.mxu0 0
        %3403 = vmatpush1.bf16.msra.mxu0 0
        %3404 = vmatprep.subr.bf16.mxu0 0
        %3405 = vmatpush1.bf16.msra.mxu0 0
        %3406 = vmatprep.subr.bf16.mxu0 0
        %3407 = vmatpush1.bf16.msra.mxu0 0
        %3408 = vmatprep.subr.bf16.mxu0 0
        %3409 = vmatpush1.bf16.msra.mxu0 0
        %3410 = vmatprep.subr.bf16.mxu0 0
        %3411 = vmatpush1.bf16.msra.mxu0 0
        %3412 = vmatprep.mubr.bf16.mxu0 0
        %3413 = vmatmul.mubr.bf16.gmra.mrb[0].mxu0 %v3074
        %v3414 = vpop.f32.mrb[0].mxu0
        %v3415 = vadd.f32 %v3253, %v3414
        %v3416 = vpop.f32.mrb[0].mxu0
        %v3417 = vpop.f32.mrb[0].mxu0
        %v3418 = vadd.f32 %v3256, %v3417
        %v3419 = vpop.f32.mrb[0].mxu0
        %3420 = vmatprep.mubr.bf16.mxu0 0
        %3421 = vmatmul.mubr.bf16.gmra.mrb[0].mxu0 %v3075
        %v3422 = vpop.f32.mrb[0].mxu0
        %v3423 = vadd.f32 %v3261, %v3422
        %v3424 = vpop.f32.mrb[0].mxu0
        %v3425 = vpop.f32.mrb[0].mxu0
        %v3426 = vadd.f32 %v3264, %v3425
        %v3427 = vpop.f32.mrb[0].mxu0
        %3428 = vmatprep.mubr.bf16.mxu0 0
        %3429 = vmatmul.mubr.bf16.gmra.mrb[0].mxu0 %v3076
        %v3430 = vpop.f32.mrb[0].mxu0
        %v3431 = vadd.f32 %v3269, %v3430
        %v3432 = vpop.f32.mrb[0].mxu0
        %v3433 = vpop.f32.mrb[0].mxu0
        %v3434 = vadd.f32 %v3272, %v3433
        %v3435 = vpop.f32.mrb[0].mxu0
        %3436 = vmatprep.mubr.bf16.mxu0 0
        %3437 = vmatmul.mubr.bf16.gmra.mrb[0].mxu0 %v3077
        %v3438 = vpop.f32.mrb[0].mxu0
        %v3439 = vadd.f32 %v3277, %v3438
        %v3440 = vpop.f32.mrb[0].mxu0
        %v3441 = vpop.f32.mrb[0].mxu0
        %v3442 = vadd.f32 %v3280, %v3441
        %v3443 = vpop.f32.mrb[0].mxu0
        %3444 = vmatprep.mubr.bf16.mxu0 0
        %3445 = vmatmul.mubr.bf16.gmra.mrb[0].mxu0 %v3078
        %v3446 = vpop.f32.mrb[0].mxu0
        %v3447 = vadd.f32 %v3285, %v3446
        %v3448 = vpop.f32.mrb[0].mxu0
        %v3449 = vpop.f32.mrb[0].mxu0
        %v3450 = vadd.f32 %v3288, %v3449
        %v3451 = vpop.f32.mrb[0].mxu0
        %3452 = vmatprep.mubr.bf16.mxu0 0
        %3453 = vmatmul.mubr.bf16.gmra.mrb[0].mxu0 %v3079
        %v3454 = vpop.f32.mrb[0].mxu0
        %v3455 = vadd.f32 %v3293, %v3454
        %v3456 = vpop.f32.mrb[0].mxu0
        %v3457 = vpop.f32.mrb[0].mxu0
        %v3458 = vadd.f32 %v3296, %v3457
        %v3459 = vpop.f32.mrb[0].mxu0
        %3460 = vmatprep.mubr.bf16.mxu0 0
        %3461 = vmatmul.mubr.bf16.gmra.mrb[0].mxu0 %v3080
        %v3462 = vpop.f32.mrb[0].mxu0
        %v3463 = vadd.f32 %v3301, %v3462
        %v3464 = vpop.f32.mrb[0].mxu0
        %v3465 = vpop.f32.mrb[0].mxu0
        %v3466 = vadd.f32 %v3304, %v3465
        %v3467 = vpop.f32.mrb[0].mxu0
        %3468 = vmatprep.mubr.bf16.mxu0 0
        %3469 = vmatmul.mubr.bf16.gmra.mrb[0].mxu0 %v3081
        %v3470 = vpop.f32.mrb[0].mxu0
        %v3471 = vadd.f32 %v3309, %v3470
        %v3472 = vpop.f32.mrb[0].mxu0
        %v3473 = vpop.f32.mrb[0].mxu0
        %v3474 = vadd.f32 %v3312, %v3473
        %v3475 = vpop.f32.mrb[0].mxu0
        %3476 = vmatprep.mubr.bf16.mxu0 0
        %3477 = vmatmul.mubr.bf16.gmra.mrb[0].mxu0 %v3082
        %v3478 = vpop.f32.mrb[0].mxu0
        %v3479 = vadd.f32 %v3317, %v3478
        %v3480 = vpop.f32.mrb[0].mxu0
        %v3481 = vpop.f32.mrb[0].mxu0
        %v3482 = vadd.f32 %v3320, %v3481
        %v3483 = vpop.f32.mrb[0].mxu0
        %3484 = vdwg.mxu0
        %v3485 = vld [vmem:[#allocation2] sm:$0xe]
        %s3486 = scalar_lea.vmem %s2, 128
        %v3487 = vld [vmem:[%s3486] sm:$0xf]
        %v3488 = vld [vmem:[%s3486 + $0x4] sm:$0xf]
        %v3489 = vld [vmem:[%s3486 + $0x8] sm:$0xf]
        %v3490 = vld [vmem:[%s3486 + $0xc] sm:$0xf]
        %v3491 = vld [vmem:[%s3486 + $0x10] sm:$0xf]
        %v3492 = vld [vmem:[%s3486 + $0x14] sm:$0xf]
        %v3493 = vld [vmem:[%s3486 + $0x18] sm:$0xf]
        %v3494 = vld [vmem:[%s3486 + $0x1c] sm:$0xf]
        %v3495 = vld [vmem:[%s3486 + $0x20] sm:$0xf]
        %v3496 = vld [vmem:[%s3486 + $0x24] sm:$0xf]
        %v3497 = vld [vmem:[%s3486 + $0x28] sm:$0xf]
        %v3498 = vld [vmem:[%s3486 + $0x2c] sm:$0xf]
        %v3499 = vld [vmem:[%s3486 + $0x30] sm:$0xf]
        %v3500 = vld [vmem:[%s3486 + $0x34] sm:$0xf]
        %v3501 = vld [vmem:[%s3486 + $0x38] sm:$0xf]
        %v3502 = vld [vmem:[%s3486 + $0x3c] sm:$0xf]
        %v3504 = vunpack.c.l.b16 %v3485
        %v3505 = vpack.c.b16 %v3056, %v3504
        %vm3506 = vcmask 1046528
        %v3507 = vrot.slane %v3505, 1
        %v3508 = vrot.slane %v3075, 1
        %v3509 = vsel %vm3506, %v3507, %v3508
        %v3510 = vrot.slane %v3076, 1
        %v3511 = vsel %vm3506, %v3508, %v3510
        %v3512 = vrot.slane %v3077, 1
        %v3513 = vsel %vm3506, %v3510, %v3512
        %v3514 = vrot.slane %v3078, 1
        %v3515 = vsel %vm3506, %v3512, %v3514
        %v3516 = vrot.slane %v3079, 1
        %v3517 = vsel %vm3506, %v3514, %v3516
        %v3518 = vrot.slane %v3080, 1
        %v3519 = vsel %vm3506, %v3516, %v3518
        %v3520 = vrot.slane %v3081, 1
        %v3521 = vsel %vm3506, %v3518, %v3520
        %v3522 = vrot.slane %v3082, 1
        %v3523 = vsel %vm3506, %v3520, %v3522
        %v3524 = vrot.slane %v3083, 1
        %v3525 = vsel %vm3506, %v3522, %v3524
        %v3551 = vunpack.c.l.b16 %v3487
        %v3552 = vunpack.c.l.b16 %v3488
        %v3553 = vunpack.c.l.b16 %v3489
        %v3554 = vunpack.c.l.b16 %v3490
        %v3555 = vunpack.c.l.b16 %v3491
        %v3556 = vunpack.c.l.b16 %v3492
        %v3557 = vunpack.c.l.b16 %v3493
        %v3558 = vunpack.c.l.b16 %v3494
        %v3559 = vunpack.c.l.b16 %v3495
        %v3560 = vunpack.c.l.b16 %v3496
        %v3561 = vunpack.c.l.b16 %v3497
        %v3562 = vunpack.c.l.b16 %v3498
        %v3563 = vunpack.c.l.b16 %v3499
        %v3564 = vunpack.c.l.b16 %v3500
        %v3565 = vunpack.c.l.b16 %v3501
        %v3566 = vunpack.c.l.b16 %v3502
        %v3567 = vpack.c.b16 %v3552, %v3551
        %v3568 = vpack.c.b16 %v3554, %v3553
        %v3569 = vpack.c.b16 %v3556, %v3555
        %v3570 = vpack.c.b16 %v3558, %v3557
        %v3571 = vpack.c.b16 %v3560, %v3559
        %v3572 = vpack.c.b16 %v3562, %v3561
        %v3573 = vpack.c.b16 %v3564, %v3563
        %v3574 = vpack.c.b16 %v3566, %v3565
        %3583 = vmatprep.subr.bf16.mxu0 0
        %3584 = vmatpush1.bf16.msra.mxu0 %v3567
        %3585 = vmatprep.subr.bf16.mxu0 0
        %3586 = vmatpush1.bf16.msra.mxu0 %v3568
        %3587 = vmatprep.subr.bf16.mxu0 0
        %3588 = vmatpush1.bf16.msra.mxu0 %v3569
        %3589 = vmatprep.subr.bf16.mxu0 0
        %3590 = vmatpush1.bf16.msra.mxu0 %v3570
        %3591 = vmatprep.subr.bf16.mxu0 0
        %3592 = vmatpush1.bf16.msra.mxu0 %v3571
        %3593 = vmatprep.subr.bf16.mxu0 0
        %3594 = vmatpush1.bf16.msra.mxu0 %v3572
        %3595 = vmatprep.subr.bf16.mxu0 0
        %3596 = vmatpush1.bf16.msra.mxu0 %v3573
        %3597 = vmatprep.subr.bf16.mxu0 0
        %3598 = vmatpush1.bf16.msra.mxu0 %v3574
        %3599 = vmatprep.subr.bf16.mxu0 0
        %3600 = vmatpush1.bf16.msra.mxu0 0
        %3601 = vmatprep.subr.bf16.mxu0 0
        %3602 = vmatpush1.bf16.msra.mxu0 0
        %3603 = vmatprep.subr.bf16.mxu0 0
        %3604 = vmatpush1.bf16.msra.mxu0 0
        %3605 = vmatprep.subr.bf16.mxu0 0
        %3606 = vmatpush1.bf16.msra.mxu0 0
        %3607 = vmatprep.subr.bf16.mxu0 0
        %3608 = vmatpush1.bf16.msra.mxu0 0
        %3609 = vmatprep.subr.bf16.mxu0 0
        %3610 = vmatpush1.bf16.msra.mxu0 0
        %3611 = vmatprep.subr.bf16.mxu0 0
        %3612 = vmatpush1.bf16.msra.mxu0 0
        %3613 = vmatprep.subr.bf16.mxu0 0
        %3614 = vmatpush1.bf16.msra.mxu0 0
        %3615 = vmatprep.mubr.bf16.mxu0 0
        %3616 = vmatmul.mubr.bf16.gmra.mrb[0].mxu0 %v3509
        %v3617 = vpop.f32.mrb[0].mxu0
        %v3618 = vadd.f32 0.0, %v3617
        %v3619 = vpop.f32.mrb[0].mxu0
        %v3620 = vpop.f32.mrb[0].mxu0
        %v3621 = vadd.f32 0.0, %v3620
        %v3622 = vpop.f32.mrb[0].mxu0
        %3623 = vmatprep.mubr.bf16.mxu0 0
        %3624 = vmatmul.mubr.bf16.gmra.mrb[0].mxu0 %v3511
        %v3625 = vpop.f32.mrb[0].mxu0
        %v3626 = vadd.f32 0.0, %v3625
        %v3627 = vpop.f32.mrb[0].mxu0
        %v3628 = vpop.f32.mrb[0].mxu0
        %v3629 = vadd.f32 0.0, %v3628
        %v3630 = vpop.f32.mrb[0].mxu0
        %3631 = vmatprep.mubr.bf16.mxu0 0
        %3632 = vmatmul.mubr.bf16.gmra.mrb[0].mxu0 %v3513
        %v3633 = vpop.f32.mrb[0].mxu0
        %v3634 = vadd.f32 0.0, %v3633
        %v3635 = vpop.f32.mrb[0].mxu0
        %v3636 = vpop.f32.mrb[0].mxu0
        %v3637 = vadd.f32 0.0, %v3636
        %v3638 = vpop.f32.mrb[0].mxu0
        %3639 = vmatprep.mubr.bf16.mxu0 0
        %3640 = vmatmul.mubr.bf16.gmra.mrb[0].mxu0 %v3515
        %v3641 = vpop.f32.mrb[0].mxu0
        %v3642 = vadd.f32 0.0, %v3641
        %v3643 = vpop.f32.mrb[0].mxu0
        %v3644 = vpop.f32.mrb[0].mxu0
        %v3645 = vadd.f32 0.0, %v3644
        %v3646 = vpop.f32.mrb[0].mxu0
        %3647 = vmatprep.mubr.bf16.mxu0 0
        %3648 = vmatmul.mubr.bf16.gmra.mrb[0].mxu0 %v3517
        %v3649 = vpop.f32.mrb[0].mxu0
        %v3650 = vadd.f32 0.0, %v3649
        %v3651 = vpop.f32.mrb[0].mxu0
        %v3652 = vpop.f32.mrb[0].mxu0
        %v3653 = vadd.f32 0.0, %v3652
        %v3654 = vpop.f32.mrb[0].mxu0
        %3655 = vmatprep.mubr.bf16.mxu0 0
        %3656 = vmatmul.mubr.bf16.gmra.mrb[0].mxu0 %v3519
        %v3657 = vpop.f32.mrb[0].mxu0
        %v3658 = vadd.f32 0.0, %v3657
        %v3659 = vpop.f32.mrb[0].mxu0
        %v3660 = vpop.f32.mrb[0].mxu0
        %v3661 = vadd.f32 0.0, %v3660
        %v3662 = vpop.f32.mrb[0].mxu0
        %3663 = vmatprep.mubr.bf16.mxu0 0
        %3664 = vmatmul.mubr.bf16.gmra.mrb[0].mxu0 %v3521
        %v3665 = vpop.f32.mrb[0].mxu0
        %v3666 = vadd.f32 0.0, %v3665
        %v3667 = vpop.f32.mrb[0].mxu0
        %v3668 = vpop.f32.mrb[0].mxu0
        %v3669 = vadd.f32 0.0, %v3668
        %v3670 = vpop.f32.mrb[0].mxu0
        %3671 = vmatprep.mubr.bf16.mxu0 0
        %3672 = vmatmul.mubr.bf16.gmra.mrb[0].mxu0 %v3523
        %v3673 = vpop.f32.mrb[0].mxu0
        %v3674 = vadd.f32 0.0, %v3673
        %v3675 = vpop.f32.mrb[0].mxu0
        %v3676 = vpop.f32.mrb[0].mxu0
        %v3677 = vadd.f32 0.0, %v3676
        %v3678 = vpop.f32.mrb[0].mxu0
        %3679 = vmatprep.mubr.bf16.mxu0 0
        %3680 = vmatmul.mubr.bf16.gmra.mrb[0].mxu0 %v3525
        %v3681 = vpop.f32.mrb[0].mxu0
        %v3682 = vadd.f32 0.0, %v3681
        %v3683 = vpop.f32.mrb[0].mxu0
        %v3684 = vpop.f32.mrb[0].mxu0
        %v3685 = vadd.f32 0.0, %v3684
        %v3686 = vpop.f32.mrb[0].mxu0
        %3687 = vdwg.mxu0
        %v3688 = vadd.f32 %v3415, %v3618
        %v3689 = vadd.f32 %v3418, %v3621
        %v3690 = vadd.f32 %v3423, %v3626
        %v3691 = vadd.f32 %v3426, %v3629
        %v3692 = vadd.f32 %v3431, %v3634
        %v3693 = vadd.f32 %v3434, %v3637
        %v3694 = vadd.f32 %v3439, %v3642
        %v3695 = vadd.f32 %v3442, %v3645
        %v3696 = vadd.f32 %v3447, %v3650
        %v3697 = vadd.f32 %v3450, %v3653
        %v3698 = vadd.f32 %v3455, %v3658
        %v3699 = vadd.f32 %v3458, %v3661
        %v3700 = vadd.f32 %v3463, %v3666
        %v3701 = vadd.f32 %v3466, %v3669
        %v3702 = vadd.f32 %v3471, %v3674
        %v3703 = vadd.f32 %v3474, %v3677
        %v3704 = vadd.f32 %v3479, %v3682
        %v3705 = vadd.f32 %v3482, %v3685
        %v3706 = vld [vmem:[#allocation2 + $0x8] sm:$0xe]
        %v3707 = vld [vmem:[#allocation2 + $0xc] sm:$0xf]
        %v3708 = vld [vmem:[#allocation2 + $0x10] sm:$0xf]
        %v3709 = vld [vmem:[#allocation2 + $0x14] sm:$0xf]
        %v3710 = vld [vmem:[#allocation2 + $0x18] sm:$0xf]
        %v3711 = vld [vmem:[#allocation2 + $0x1c] sm:$0xf]
        %v3712 = vld [vmem:[#allocation2 + $0x20] sm:$0xf]
        %v3713 = vld [vmem:[#allocation2 + $0x24] sm:$0xf]
        %v3714 = vld [vmem:[#allocation2 + $0x28] sm:$0xf]
        %v3715 = vld [vmem:[#allocation2 + $0x2c] sm:$0xf]
        %v3716 = vld [vmem:[#allocation2 + $0x30] sm:$0xf]
        %v3717 = vld [vmem:[#allocation2 + $0x34] sm:$0xf]
        %v3718 = vld [vmem:[#allocation2 + $0x38] sm:$0xf]
        %v3719 = vld [vmem:[#allocation2 + $0x3c] sm:$0xf]
        %v3720 = vld [vmem:[#allocation2 + $0x40] sm:$0xf]
        %v3721 = vld [vmem:[#allocation2 + $0x44] sm:$0xf]
        %v3722 = vld [vmem:[#allocation2 + $0x48] sm:$0xf]
        %v3723 = vld [vmem:[#allocation2 + $0x4c] sm:$0xf]
        %v3724 = vld [vmem:[#allocation2 + $0x50] sm:$0x1]
        %s3725 = scalar_lea.vmem %s2, 192
        %v3726 = vld [vmem:[%s3725] sm:$0xf]
        %v3727 = vld [vmem:[%s3725 + $0x4] sm:$0xf]
        %v3728 = vld [vmem:[%s3725 + $0x8] sm:$0xf]
        %v3729 = vld [vmem:[%s3725 + $0xc] sm:$0xf]
        %v3730 = vld [vmem:[%s3725 + $0x10] sm:$0xf]
        %v3731 = vld [vmem:[%s3725 + $0x14] sm:$0xf]
        %v3732 = vld [vmem:[%s3725 + $0x18] sm:$0xf]
        %v3733 = vld [vmem:[%s3725 + $0x1c] sm:$0xf]
        %v3734 = vld [vmem:[%s3725 + $0x20] sm:$0xf]
        %v3735 = vld [vmem:[%s3725 + $0x24] sm:$0xf]
        %v3736 = vld [vmem:[%s3725 + $0x28] sm:$0xf]
        %v3737 = vld [vmem:[%s3725 + $0x2c] sm:$0xf]
        %v3738 = vld [vmem:[%s3725 + $0x30] sm:$0xf]
        %v3739 = vld [vmem:[%s3725 + $0x34] sm:$0xf]
        %v3740 = vld [vmem:[%s3725 + $0x38] sm:$0xf]
        %v3741 = vld [vmem:[%s3725 + $0x3c] sm:$0xf]
        %v3761 = vunpack.c.l.b16 %v3706
        %v3762 = vunpack.c.l.b16 %v3707
        %v3763 = vunpack.c.l.b16 %v3708
        %v3764 = vunpack.c.l.b16 %v3709
        %v3765 = vunpack.c.l.b16 %v3710
        %v3766 = vunpack.c.l.b16 %v3711
        %v3767 = vunpack.c.l.b16 %v3712
        %v3768 = vunpack.c.l.b16 %v3713
        %v3769 = vunpack.c.l.b16 %v3714
        %v3770 = vunpack.c.l.b16 %v3715
        %v3771 = vunpack.c.l.b16 %v3716
        %v3772 = vunpack.c.l.b16 %v3717
        %v3773 = vunpack.c.l.b16 %v3718
        %v3774 = vunpack.c.l.b16 %v3719
        %v3775 = vunpack.c.l.b16 %v3720
        %v3776 = vunpack.c.l.b16 %v3721
        %v3777 = vunpack.c.l.b16 %v3722
        %v3778 = vunpack.c.l.b16 %v3723
        %v3779 = vunpack.c.l.b16 %v3724
        %v3780 = vpack.c.b16 %v3762, %v3761
        %v3781 = vpack.c.b16 %v3764, %v3763
        %v3782 = vpack.c.b16 %v3766, %v3765
        %v3783 = vpack.c.b16 %v3768, %v3767
        %v3784 = vpack.c.b16 %v3770, %v3769
        %v3785 = vpack.c.b16 %v3772, %v3771
        %v3786 = vpack.c.b16 %v3774, %v3773
        %v3787 = vpack.c.b16 %v3776, %v3775
        %v3788 = vpack.c.b16 %v3778, %v3777
        %v3789 = vpack.c.b16 %v3779, %v3779
        %v3790 = vrot.slane %v3780, 1
        %v3791 = vrot.slane %v3781, 1
        %v3792 = vsel %vm3506, %v3790, %v3791
        %v3793 = vrot.slane %v3782, 1
        %v3794 = vsel %vm3506, %v3791, %v3793
        %v3795 = vrot.slane %v3783, 1
        %v3796 = vsel %vm3506, %v3793, %v3795
        %v3797 = vrot.slane %v3784, 1
        %v3798 = vsel %vm3506, %v3795, %v3797
        %v3799 = vrot.slane %v3785, 1
        %v3800 = vsel %vm3506, %v3797, %v3799
        %v3801 = vrot.slane %v3786, 1
        %v3802 = vsel %vm3506, %v3799, %v3801
        %v3803 = vrot.slane %v3787, 1
        %v3804 = vsel %vm3506, %v3801, %v3803
        %v3805 = vrot.slane %v3788, 1
        %v3806 = vsel %vm3506, %v3803, %v3805
        %v3807 = vrot.slane %v3789, 1
        %v3808 = vsel %vm3506, %v3805, %v3807
        %v3834 = vunpack.c.l.b16 %v3726
        %v3835 = vunpack.c.l.b16 %v3727
        %v3836 = vunpack.c.l.b16 %v3728
        %v3837 = vunpack.c.l.b16 %v3729
        %v3838 = vunpack.c.l.b16 %v3730
        %v3839 = vunpack.c.l.b16 %v3731
        %v3840 = vunpack.c.l.b16 %v3732
        %v3841 = vunpack.c.l.b16 %v3733
        %v3842 = vunpack.c.l.b16 %v3734
        %v3843 = vunpack.c.l.b16 %v3735
        %v3844 = vunpack.c.l.b16 %v3736
        %v3845 = vunpack.c.l.b16 %v3737
        %v3846 = vunpack.c.l.b16 %v3738
        %v3847 = vunpack.c.l.b16 %v3739
        %v3848 = vunpack.c.l.b16 %v3740
        %v3849 = vunpack.c.l.b16 %v3741
        %v3850 = vpack.c.b16 %v3835, %v3834
        %v3851 = vpack.c.b16 %v3837, %v3836
        %v3852 = vpack.c.b16 %v3839, %v3838
        %v3853 = vpack.c.b16 %v3841, %v3840
        %v3854 = vpack.c.b16 %v3843, %v3842
        %v3855 = vpack.c.b16 %v3845, %v3844
        %v3856 = vpack.c.b16 %v3847, %v3846
        %v3857 = vpack.c.b16 %v3849, %v3848
        %3866 = vmatprep.subr.bf16.mxu0 0
        %3867 = vmatpush1.bf16.msra.mxu0 %v3850
        %3868 = vmatprep.subr.bf16.mxu0 0
        %3869 = vmatpush1.bf16.msra.mxu0 %v3851
        %3870 = vmatprep.subr.bf16.mxu0 0
        %3871 = vmatpush1.bf16.msra.mxu0 %v3852
        %3872 = vmatprep.subr.bf16.mxu0 0
        %3873 = vmatpush1.bf16.msra.mxu0 %v3853
        %3874 = vmatprep.subr.bf16.mxu0 0
        %3875 = vmatpush1.bf16.msra.mxu0 %v3854
        %3876 = vmatprep.subr.bf16.mxu0 0
        %3877 = vmatpush1.bf16.msra.mxu0 %v3855
        %3878 = vmatprep.subr.bf16.mxu0 0
        %3879 = vmatpush1.bf16.msra.mxu0 %v3856
        %3880 = vmatprep.subr.bf16.mxu0 0
        %3881 = vmatpush1.bf16.msra.mxu0 %v3857
        %3882 = vmatprep.subr.bf16.mxu0 0
        %3883 = vmatpush1.bf16.msra.mxu0 0
        %3884 = vmatprep.subr.bf16.mxu0 0
        %3885 = vmatpush1.bf16.msra.mxu0 0
        %3886 = vmatprep.subr.bf16.mxu0 0
        %3887 = vmatpush1.bf16.msra.mxu0 0
        %3888 = vmatprep.subr.bf16.mxu0 0
        %3889 = vmatpush1.bf16.msra.mxu0 0
        %3890 = vmatprep.subr.bf16.mxu0 0
        %3891 = vmatpush1.bf16.msra.mxu0 0
        %3892 = vmatprep.subr.bf16.mxu0 0
        %3893 = vmatpush1.bf16.msra.mxu0 0
        %3894 = vmatprep.subr.bf16.mxu0 0
        %3895 = vmatpush1.bf16.msra.mxu0 0
        %3896 = vmatprep.subr.bf16.mxu0 0
        %3897 = vmatpush1.bf16.msra.mxu0 0
        %3898 = vmatprep.mubr.bf16.mxu0 0
        %3899 = vmatmul.mubr.bf16.gmra.mrb[0].mxu0 %v3792
        %v3900 = vpop.f32.mrb[0].mxu0
        %v3901 = vadd.f32 0.0, %v3900
        %v3902 = vpop.f32.mrb[0].mxu0
        %v3903 = vpop.f32.mrb[0].mxu0
        %v3904 = vadd.f32 0.0, %v3903
        %v3905 = vpop.f32.mrb[0].mxu0
        %3906 = vmatprep.mubr.bf16.mxu0 0
        %3907 = vmatmul.mubr.bf16.gmra.mrb[0].mxu0 %v3794
        %v3908 = vpop.f32.mrb[0].mxu0
        %v3909 = vadd.f32 0.0, %v3908
        %v3910 = vpop.f32.mrb[0].mxu0
        %v3911 = vpop.f32.mrb[0].mxu0
        %v3912 = vadd.f32 0.0, %v3911
        %v3913 = vpop.f32.mrb[0].mxu0
        %3914 = vmatprep.mubr.bf16.mxu0 0
        %3915 = vmatmul.mubr.bf16.gmra.mrb[0].mxu0 %v3796
        %v3916 = vpop.f32.mrb[0].mxu0
        %v3917 = vadd.f32 0.0, %v3916
        %v3918 = vpop.f32.mrb[0].mxu0
        %v3919 = vpop.f32.mrb[0].mxu0
        %v3920 = vadd.f32 0.0, %v3919
        %v3921 = vpop.f32.mrb[0].mxu0
        %3922 = vmatprep.mubr.bf16.mxu0 0
        %3923 = vmatmul.mubr.bf16.gmra.mrb[0].mxu0 %v3798
        %v3924 = vpop.f32.mrb[0].mxu0
        %v3925 = vadd.f32 0.0, %v3924
        %v3926 = vpop.f32.mrb[0].mxu0
        %v3927 = vpop.f32.mrb[0].mxu0
        %v3928 = vadd.f32 0.0, %v3927
        %v3929 = vpop.f32.mrb[0].mxu0
        %3930 = vmatprep.mubr.bf16.mxu0 0
        %3931 = vmatmul.mubr.bf16.gmra.mrb[0].mxu0 %v3800
        %v3932 = vpop.f32.mrb[0].mxu0
        %v3933 = vadd.f32 0.0, %v3932
        %v3934 = vpop.f32.mrb[0].mxu0
        %v3935 = vpop.f32.mrb[0].mxu0
        %v3936 = vadd.f32 0.0, %v3935
        %v3937 = vpop.f32.mrb[0].mxu0
        %3938 = vmatprep.mubr.bf16.mxu0 0
        %3939 = vmatmul.mubr.bf16.gmra.mrb[0].mxu0 %v3802
        %v3940 = vpop.f32.mrb[0].mxu0
        %v3941 = vadd.f32 0.0, %v3940
        %v3942 = vpop.f32.mrb[0].mxu0
        %v3943 = vpop.f32.mrb[0].mxu0
        %v3944 = vadd.f32 0.0, %v3943
        %v3945 = vpop.f32.mrb[0].mxu0
        %3946 = vmatprep.mubr.bf16.mxu0 0
        %3947 = vmatmul.mubr.bf16.gmra.mrb[0].mxu0 %v3804
        %v3948 = vpop.f32.mrb[0].mxu0
        %v3949 = vadd.f32 0.0, %v3948
        %v3950 = vpop.f32.mrb[0].mxu0
        %v3951 = vpop.f32.mrb[0].mxu0
        %v3952 = vadd.f32 0.0, %v3951
        %v3953 = vpop.f32.mrb[0].mxu0
        %3954 = vmatprep.mubr.bf16.mxu0 0
        %3955 = vmatmul.mubr.bf16.gmra.mrb[0].mxu0 %v3806
        %v3956 = vpop.f32.mrb[0].mxu0
        %v3957 = vadd.f32 0.0, %v3956
        %v3958 = vpop.f32.mrb[0].mxu0
        %v3959 = vpop.f32.mrb[0].mxu0
        %v3960 = vadd.f32 0.0, %v3959
        %v3961 = vpop.f32.mrb[0].mxu0
        %3962 = vmatprep.mubr.bf16.mxu0 0
        %3963 = vmatmul.mubr.bf16.gmra.mrb[0].mxu0 %v3808
        %v3964 = vpop.f32.mrb[0].mxu0
        %v3965 = vadd.f32 0.0, %v3964
        %v3966 = vpop.f32.mrb[0].mxu0
        %v3967 = vpop.f32.mrb[0].mxu0
        %v3968 = vadd.f32 0.0, %v3967
        %v3969 = vpop.f32.mrb[0].mxu0
        %3970 = vdwg.mxu0
        %v3971 = vadd.f32 %v3688, %v3901
        %v3972 = vadd.f32 %v3689, %v3904
        %v3973 = vadd.f32 %v3690, %v3909
        %v3974 = vadd.f32 %v3691, %v3912
        %v3975 = vadd.f32 %v3692, %v3917
        %v3976 = vadd.f32 %v3693, %v3920
        %v3977 = vadd.f32 %v3694, %v3925
        %v3978 = vadd.f32 %v3695, %v3928
        %v3979 = vadd.f32 %v3696, %v3933
        %v3980 = vadd.f32 %v3697, %v3936
        %v3981 = vadd.f32 %v3698, %v3941
        %v3982 = vadd.f32 %v3699, %v3944
        %v3983 = vadd.f32 %v3700, %v3949
        %v3984 = vadd.f32 %v3701, %v3952
        %v3985 = vadd.f32 %v3702, %v3957
        %v3986 = vadd.f32 %v3703, %v3960
        %v3987 = vadd.f32 %v3704, %v3965
        %v3988 = vadd.f32 %v3705, %v3968
        %v3989 = vld [vmem:[#allocation2 + $0x50] sm:$0x3]
        %s3990 = scalar_lea.vmem %s2, 256
        %v3991 = vld [vmem:[%s3990] sm:$0xf]
        %v3992 = vld [vmem:[%s3990 + $0x4] sm:$0xf]
        %v3993 = vld [vmem:[%s3990 + $0x8] sm:$0xf]
        %v3994 = vld [vmem:[%s3990 + $0xc] sm:$0xf]
        %v3995 = vld [vmem:[%s3990 + $0x10] sm:$0xf]
        %v3996 = vld [vmem:[%s3990 + $0x14] sm:$0xf]
        %v3997 = vld [vmem:[%s3990 + $0x18] sm:$0xf]
        %v3998 = vld [vmem:[%s3990 + $0x1c] sm:$0xf]
        %v3999 = vld [vmem:[%s3990 + $0x20] sm:$0xf]
        %v4000 = vld [vmem:[%s3990 + $0x24] sm:$0xf]
        %v4001 = vld [vmem:[%s3990 + $0x28] sm:$0xf]
        %v4002 = vld [vmem:[%s3990 + $0x2c] sm:$0xf]
        %v4003 = vld [vmem:[%s3990 + $0x30] sm:$0xf]
        %v4004 = vld [vmem:[%s3990 + $0x34] sm:$0xf]
        %v4005 = vld [vmem:[%s3990 + $0x38] sm:$0xf]
        %v4006 = vld [vmem:[%s3990 + $0x3c] sm:$0xf]
        %v4008 = vunpack.c.l.b16 %v3989
        %v4009 = vpack.c.b16 %v4008, %v4008
        %vm4010 = vsmask.f32 6400
        %v4012 = vshrl.u32 %v3780, 16
        %v4014 = vrot.slane %v4012, 1
        %v4015 = vshll.u32 %v3780, 16
        %v4017 = vrot.slane %v4015, 2
        %v4018 = vor.u32 %v4014, %v4017
        %v4020 = vshrl.u32 %v3781, 16
        %v4022 = vrot.slane %v4020, 1
        %v4023 = vshll.u32 %v3781, 16
        %v4025 = vrot.slane %v4023, 2
        %v4026 = vor.u32 %v4022, %v4025
        %v4027 = vsel %vm4010, %v4018, %v4026
        %v4029 = vshrl.u32 %v3782, 16
        %v4031 = vrot.slane %v4029, 1
        %v4032 = vshll.u32 %v3782, 16
        %v4034 = vrot.slane %v4032, 2
        %v4035 = vor.u32 %v4031, %v4034
        %v4036 = vsel %vm4010, %v4026, %v4035
        %v4038 = vshrl.u32 %v3783, 16
        %v4040 = vrot.slane %v4038, 1
        %v4041 = vshll.u32 %v3783, 16
        %v4043 = vrot.slane %v4041, 2
        %v4044 = vor.u32 %v4040, %v4043
        %v4045 = vsel %vm4010, %v4035, %v4044
        %v4047 = vshrl.u32 %v3784, 16
        %v4049 = vrot.slane %v4047, 1
        %v4050 = vshll.u32 %v3784, 16
        %v4052 = vrot.slane %v4050, 2
        %v4053 = vor.u32 %v4049, %v4052
        %v4054 = vsel %vm4010, %v4044, %v4053
        %v4056 = vshrl.u32 %v3785, 16
        %v4058 = vrot.slane %v4056, 1
        %v4059 = vshll.u32 %v3785, 16
        %v4061 = vrot.slane %v4059, 2
        %v4062 = vor.u32 %v4058, %v4061
        %v4063 = vsel %vm4010, %v4053, %v4062
        %v4065 = vshrl.u32 %v3786, 16
        %v4067 = vrot.slane %v4065, 1
        %v4068 = vshll.u32 %v3786, 16
        %v4070 = vrot.slane %v4068, 2
        %v4071 = vor.u32 %v4067, %v4070
        %v4072 = vsel %vm4010, %v4062, %v4071
        %v4074 = vshrl.u32 %v3787, 16
        %v4076 = vrot.slane %v4074, 1
        %v4077 = vshll.u32 %v3787, 16
        %v4079 = vrot.slane %v4077, 2
        %v4080 = vor.u32 %v4076, %v4079
        %v4081 = vsel %vm4010, %v4071, %v4080
        %v4083 = vshrl.u32 %v3788, 16
        %v4085 = vrot.slane %v4083, 1
        %v4086 = vshll.u32 %v3788, 16
        %v4088 = vrot.slane %v4086, 2
        %v4089 = vor.u32 %v4085, %v4088
        %v4090 = vsel %vm4010, %v4080, %v4089
        %v4092 = vshrl.u32 %v4009, 16
        %v4094 = vrot.slane %v4092, 1
        %v4095 = vshll.u32 %v4009, 16
        %v4097 = vrot.slane %v4095, 2
        %v4098 = vor.u32 %v4094, %v4097
        %v4099 = vsel %vm4010, %v4089, %v4098
        %v4125 = vunpack.c.l.b16 %v3991
        %v4126 = vunpack.c.l.b16 %v3992
        %v4127 = vunpack.c.l.b16 %v3993
        %v4128 = vunpack.c.l.b16 %v3994
        %v4129 = vunpack.c.l.b16 %v3995
        %v4130 = vunpack.c.l.b16 %v3996
        %v4131 = vunpack.c.l.b16 %v3997
        %v4132 = vunpack.c.l.b16 %v3998
        %v4133 = vunpack.c.l.b16 %v3999
        %v4134 = vunpack.c.l.b16 %v4000
        %v4135 = vunpack.c.l.b16 %v4001
        %v4136 = vunpack.c.l.b16 %v4002
        %v4137 = vunpack.c.l.b16 %v4003
        %v4138 = vunpack.c.l.b16 %v4004
        %v4139 = vunpack.c.l.b16 %v4005
        %v4140 = vunpack.c.l.b16 %v4006
        %v4141 = vpack.c.b16 %v4126, %v4125
        %v4142 = vpack.c.b16 %v4128, %v4127
        %v4143 = vpack.c.b16 %v4130, %v4129
        %v4144 = vpack.c.b16 %v4132, %v4131
        %v4145 = vpack.c.b16 %v4134, %v4133
        %v4146 = vpack.c.b16 %v4136, %v4135
        %v4147 = vpack.c.b16 %v4138, %v4137
        %v4148 = vpack.c.b16 %v4140, %v4139
        %4157 = vmatprep.subr.bf16.mxu0 0
        %4158 = vmatpush1.bf16.msra.mxu0 %v4141
        %4159 = vmatprep.subr.bf16.mxu0 0
        %4160 = vmatpush1.bf16.msra.mxu0 %v4142
        %4161 = vmatprep.subr.bf16.mxu0 0
        %4162 = vmatpush1.bf16.msra.mxu0 %v4143
        %4163 = vmatprep.subr.bf16.mxu0 0
        %4164 = vmatpush1.bf16.msra.mxu0 %v4144
        %4165 = vmatprep.subr.bf16.mxu0 0
        %4166 = vmatpush1.bf16.msra.mxu0 %v4145
        %4167 = vmatprep.subr.bf16.mxu0 0
        %4168 = vmatpush1.bf16.msra.mxu0 %v4146
        %4169 = vmatprep.subr.bf16.mxu0 0
        %4170 = vmatpush1.bf16.msra.mxu0 %v4147
        %4171 = vmatprep.subr.bf16.mxu0 0
        %4172 = vmatpush1.bf16.msra.mxu0 %v4148
        %4173 = vmatprep.subr.bf16.mxu0 0
        %4174 = vmatpush1.bf16.msra.mxu0 0
        %4175 = vmatprep.subr.bf16.mxu0 0
        %4176 = vmatpush1.bf16.msra.mxu0 0
        %4177 = vmatprep.subr.bf16.mxu0 0
        %4178 = vmatpush1.bf16.msra.mxu0 0
        %4179 = vmatprep.subr.bf16.mxu0 0
        %4180 = vmatpush1.bf16.msra.mxu0 0
        %4181 = vmatprep.subr.bf16.mxu0 0
        %4182 = vmatpush1.bf16.msra.mxu0 0
        %4183 = vmatprep.subr.bf16.mxu0 0
        %4184 = vmatpush1.bf16.msra.mxu0 0
        %4185 = vmatprep.subr.bf16.mxu0 0
        %4186 = vmatpush1.bf16.msra.mxu0 0
        %4187 = vmatprep.subr.bf16.mxu0 0
        %4188 = vmatpush1.bf16.msra.mxu0 0
        %4189 = vmatprep.mubr.bf16.mxu0 0
        %4190 = vmatmul.mubr.bf16.gmra.mrb[0].mxu0 %v4027
        %v4191 = vpop.f32.mrb[0].mxu0
        %v4192 = vadd.f32 0.0, %v4191
        %v4193 = vpop.f32.mrb[0].mxu0
        %v4194 = vpop.f32.mrb[0].mxu0
        %v4195 = vadd.f32 0.0, %v4194
        %v4196 = vpop.f32.mrb[0].mxu0
        %4197 = vmatprep.mubr.bf16.mxu0 0
        %4198 = vmatmul.mubr.bf16.gmra.mrb[0].mxu0 %v4036
        %v4199 = vpop.f32.mrb[0].mxu0
        %v4200 = vadd.f32 0.0, %v4199
        %v4201 = vpop.f32.mrb[0].mxu0
        %v4202 = vpop.f32.mrb[0].mxu0
        %v4203 = vadd.f32 0.0, %v4202
        %v4204 = vpop.f32.mrb[0].mxu0
        %4205 = vmatprep.mubr.bf16.mxu0 0
        %4206 = vmatmul.mubr.bf16.gmra.mrb[0].mxu0 %v4045
        %v4207 = vpop.f32.mrb[0].mxu0
        %v4208 = vadd.f32 0.0, %v4207
        %v4209 = vpop.f32.mrb[0].mxu0
        %v4210 = vpop.f32.mrb[0].mxu0
        %v4211 = vadd.f32 0.0, %v4210
        %v4212 = vpop.f32.mrb[0].mxu0
        %4213 = vmatprep.mubr.bf16.mxu0 0
        %4214 = vmatmul.mubr.bf16.gmra.mrb[0].mxu0 %v4054
        %v4215 = vpop.f32.mrb[0].mxu0
        %v4216 = vadd.f32 0.0, %v4215
        %v4217 = vpop.f32.mrb[0].mxu0
        %v4218 = vpop.f32.mrb[0].mxu0
        %v4219 = vadd.f32 0.0, %v4218
        %v4220 = vpop.f32.mrb[0].mxu0
        %4221 = vmatprep.mubr.bf16.mxu0 0
        %4222 = vmatmul.mubr.bf16.gmra.mrb[0].mxu0 %v4063
        %v4223 = vpop.f32.mrb[0].mxu0
        %v4224 = vadd.f32 0.0, %v4223
        %v4225 = vpop.f32.mrb[0].mxu0
        %v4226 = vpop.f32.mrb[0].mxu0
        %v4227 = vadd.f32 0.0, %v4226
        %v4228 = vpop.f32.mrb[0].mxu0
        %4229 = vmatprep.mubr.bf16.mxu0 0
        %4230 = vmatmul.mubr.bf16.gmra.mrb[0].mxu0 %v4072
        %v4231 = vpop.f32.mrb[0].mxu0
        %v4232 = vadd.f32 0.0, %v4231
        %v4233 = vpop.f32.mrb[0].mxu0
        %v4234 = vpop.f32.mrb[0].mxu0
        %v4235 = vadd.f32 0.0, %v4234
        %v4236 = vpop.f32.mrb[0].mxu0
        %4237 = vmatprep.mubr.bf16.mxu0 0
        %4238 = vmatmul.mubr.bf16.gmra.mrb[0].mxu0 %v4081
        %v4239 = vpop.f32.mrb[0].mxu0
        %v4240 = vadd.f32 0.0, %v4239
        %v4241 = vpop.f32.mrb[0].mxu0
        %v4242 = vpop.f32.mrb[0].mxu0
        %v4243 = vadd.f32 0.0, %v4242
        %v4244 = vpop.f32.mrb[0].mxu0
        %4245 = vmatprep.mubr.bf16.mxu0 0
        %4246 = vmatmul.mubr.bf16.gmra.mrb[0].mxu0 %v4090
        %v4247 = vpop.f32.mrb[0].mxu0
        %v4248 = vadd.f32 0.0, %v4247
        %v4249 = vpop.f32.mrb[0].mxu0
        %v4250 = vpop.f32.mrb[0].mxu0
        %v4251 = vadd.f32 0.0, %v4250
        %v4252 = vpop.f32.mrb[0].mxu0
        %4253 = vmatprep.mubr.bf16.mxu0 0
        %4254 = vmatmul.mubr.bf16.gmra.mrb[0].mxu0 %v4099
        %v4255 = vpop.f32.mrb[0].mxu0
        %v4256 = vadd.f32 0.0, %v4255
        %v4257 = vpop.f32.mrb[0].mxu0
        %v4258 = vpop.f32.mrb[0].mxu0
        %v4259 = vadd.f32 0.0, %v4258
        %v4260 = vpop.f32.mrb[0].mxu0
        %4261 = vdwg.mxu0
        %v4262 = vadd.f32 %v3971, %v4192
        %v4263 = vadd.f32 %v3972, %v4195
        %v4264 = vadd.f32 %v3973, %v4200
        %v4265 = vadd.f32 %v3974, %v4203
        %v4266 = vadd.f32 %v3975, %v4208
        %v4267 = vadd.f32 %v3976, %v4211
        %v4268 = vadd.f32 %v3977, %v4216
        %v4269 = vadd.f32 %v3978, %v4219
        %v4270 = vadd.f32 %v3979, %v4224
        %v4271 = vadd.f32 %v3980, %v4227
        %v4272 = vadd.f32 %v3981, %v4232
        %v4273 = vadd.f32 %v3982, %v4235
        %v4274 = vadd.f32 %v3983, %v4240
        %v4275 = vadd.f32 %v3984, %v4243
        %v4276 = vadd.f32 %v3985, %v4248
        %v4277 = vadd.f32 %v3986, %v4251
        %v4278 = vadd.f32 %v3987, %v4256
        %v4279 = vadd.f32 %v3988, %v4259
        %v4280 = vld [vmem:[#allocation2 + $0x8] sm:$0xc]
        %s4281 = scalar_lea.vmem %s2, 320
        %v4282 = vld [vmem:[%s4281] sm:$0xf]
        %v4283 = vld [vmem:[%s4281 + $0x4] sm:$0xf]
        %v4284 = vld [vmem:[%s4281 + $0x8] sm:$0xf]
        %v4285 = vld [vmem:[%s4281 + $0xc] sm:$0xf]
        %v4286 = vld [vmem:[%s4281 + $0x10] sm:$0xf]
        %v4287 = vld [vmem:[%s4281 + $0x14] sm:$0xf]
        %v4288 = vld [vmem:[%s4281 + $0x18] sm:$0xf]
        %v4289 = vld [vmem:[%s4281 + $0x1c] sm:$0xf]
        %v4290 = vld [vmem:[%s4281 + $0x20] sm:$0xf]
        %v4291 = vld [vmem:[%s4281 + $0x24] sm:$0xf]
        %v4292 = vld [vmem:[%s4281 + $0x28] sm:$0xf]
        %v4293 = vld [vmem:[%s4281 + $0x2c] sm:$0xf]
        %v4294 = vld [vmem:[%s4281 + $0x30] sm:$0xf]
        %v4295 = vld [vmem:[%s4281 + $0x34] sm:$0xf]
        %v4296 = vld [vmem:[%s4281 + $0x38] sm:$0xf]
        %v4297 = vld [vmem:[%s4281 + $0x3c] sm:$0xf]
        %v4299 = vunpack.c.l.b16 %v4280
        %v4300 = vpack.c.b16 %v3762, %v4299
        %vm4301 = vcmask 1045504
        %v4302 = vrot.slane %v4300, 2
        %v4303 = vrot.slane %v3781, 2
        %v4304 = vsel %vm4301, %v4302, %v4303
        %v4305 = vrot.slane %v3782, 2
        %v4306 = vsel %vm4301, %v4303, %v4305
        %v4307 = vrot.slane %v3783, 2
        %v4308 = vsel %vm4301, %v4305, %v4307
        %v4309 = vrot.slane %v3784, 2
        %v4310 = vsel %vm4301, %v4307, %v4309
        %v4311 = vrot.slane %v3785, 2
        %v4312 = vsel %vm4301, %v4309, %v4311
        %v4313 = vrot.slane %v3786, 2
        %v4314 = vsel %vm4301, %v4311, %v4313
        %v4315 = vrot.slane %v3787, 2
        %v4316 = vsel %vm4301, %v4313, %v4315
        %v4317 = vrot.slane %v3788, 2
        %v4318 = vsel %vm4301, %v4315, %v4317
        %v4319 = vrot.slane %v4009, 2
        %v4320 = vsel %vm4301, %v4317, %v4319
        %v4346 = vunpack.c.l.b16 %v4282
        %v4347 = vunpack.c.l.b16 %v4283
        %v4348 = vunpack.c.l.b16 %v4284
        %v4349 = vunpack.c.l.b16 %v4285
        %v4350 = vunpack.c.l.b16 %v4286
        %v4351 = vunpack.c.l.b16 %v4287
        %v4352 = vunpack.c.l.b16 %v4288
        %v4353 = vunpack.c.l.b16 %v4289
        %v4354 = vunpack.c.l.b16 %v4290
        %v4355 = vunpack.c.l.b16 %v4291
        %v4356 = vunpack.c.l.b16 %v4292
        %v4357 = vunpack.c.l.b16 %v4293
        %v4358 = vunpack.c.l.b16 %v4294
        %v4359 = vunpack.c.l.b16 %v4295
        %v4360 = vunpack.c.l.b16 %v4296
        %v4361 = vunpack.c.l.b16 %v4297
        %v4362 = vpack.c.b16 %v4347, %v4346
        %v4363 = vpack.c.b16 %v4349, %v4348
        %v4364 = vpack.c.b16 %v4351, %v4350
        %v4365 = vpack.c.b16 %v4353, %v4352
        %v4366 = vpack.c.b16 %v4355, %v4354
        %v4367 = vpack.c.b16 %v4357, %v4356
        %v4368 = vpack.c.b16 %v4359, %v4358
        %v4369 = vpack.c.b16 %v4361, %v4360
        %4378 = vmatprep.subr.bf16.mxu0 0
        %4379 = vmatpush1.bf16.msra.mxu0 %v4362
        %4380 = vmatprep.subr.bf16.mxu0 0
        %4381 = vmatpush1.bf16.msra.mxu0 %v4363
        %4382 = vmatprep.subr.bf16.mxu0 0
        %4383 = vmatpush1.bf16.msra.mxu0 %v4364
        %4384 = vmatprep.subr.bf16.mxu0 0
        %4385 = vmatpush1.bf16.msra.mxu0 %v4365
        %4386 = vmatprep.subr.bf16.mxu0 0
        %4387 = vmatpush1.bf16.msra.mxu0 %v4366
        %4388 = vmatprep.subr.bf16.mxu0 0
        %4389 = vmatpush1.bf16.msra.mxu0 %v4367
        %4390 = vmatprep.subr.bf16.mxu0 0
        %4391 = vmatpush1.bf16.msra.mxu0 %v4368
        %4392 = vmatprep.subr.bf16.mxu0 0
        %4393 = vmatpush1.bf16.msra.mxu0 %v4369
        %4394 = vmatprep.subr.bf16.mxu0 0
        %4395 = vmatpush1.bf16.msra.mxu0 0
        %4396 = vmatprep.subr.bf16.mxu0 0
        %4397 = vmatpush1.bf16.msra.mxu0 0
        %4398 = vmatprep.subr.bf16.mxu0 0
        %4399 = vmatpush1.bf16.msra.mxu0 0
        %4400 = vmatprep.subr.bf16.mxu0 0
        %4401 = vmatpush1.bf16.msra.mxu0 0
        %4402 = vmatprep.subr.bf16.mxu0 0
        %4403 = vmatpush1.bf16.msra.mxu0 0
        %4404 = vmatprep.subr.bf16.mxu0 0
        %4405 = vmatpush1.bf16.msra.mxu0 0
        %4406 = vmatprep.subr.bf16.mxu0 0
        %4407 = vmatpush1.bf16.msra.mxu0 0
        %4408 = vmatprep.subr.bf16.mxu0 0
        %4409 = vmatpush1.bf16.msra.mxu0 0
        %4410 = vmatprep.mubr.bf16.mxu0 0
        %4411 = vmatmul.mubr.bf16.gmra.mrb[0].mxu0 %v4304
        %v4412 = vpop.f32.mrb[0].mxu0
        %v4413 = vadd.f32 0.0, %v4412
        %v4414 = vpop.f32.mrb[0].mxu0
        %v4415 = vpop.f32.mrb[0].mxu0
        %v4416 = vadd.f32 0.0, %v4415
        %v4417 = vpop.f32.mrb[0].mxu0
        %4418 = vmatprep.mubr.bf16.mxu0 0
        %4419 = vmatmul.mubr.bf16.gmra.mrb[0].mxu0 %v4306
        %v4420 = vpop.f32.mrb[0].mxu0
        %v4421 = vadd.f32 0.0, %v4420
        %v4422 = vpop.f32.mrb[0].mxu0
        %v4423 = vpop.f32.mrb[0].mxu0
        %v4424 = vadd.f32 0.0, %v4423
        %v4425 = vpop.f32.mrb[0].mxu0
        %4426 = vmatprep.mubr.bf16.mxu0 0
        %4427 = vmatmul.mubr.bf16.gmra.mrb[0].mxu0 %v4308
        %v4428 = vpop.f32.mrb[0].mxu0
        %v4429 = vadd.f32 0.0, %v4428
        %v4430 = vpop.f32.mrb[0].mxu0
        %v4431 = vpop.f32.mrb[0].mxu0
        %v4432 = vadd.f32 0.0, %v4431
        %v4433 = vpop.f32.mrb[0].mxu0
        %4434 = vmatprep.mubr.bf16.mxu0 0
        %4435 = vmatmul.mubr.bf16.gmra.mrb[0].mxu0 %v4310
        %v4436 = vpop.f32.mrb[0].mxu0
        %v4437 = vadd.f32 0.0, %v4436
        %v4438 = vpop.f32.mrb[0].mxu0
        %v4439 = vpop.f32.mrb[0].mxu0
        %v4440 = vadd.f32 0.0, %v4439
        %v4441 = vpop.f32.mrb[0].mxu0
        %4442 = vmatprep.mubr.bf16.mxu0 0
        %4443 = vmatmul.mubr.bf16.gmra.mrb[0].mxu0 %v4312
        %v4444 = vpop.f32.mrb[0].mxu0
        %v4445 = vadd.f32 0.0, %v4444
        %v4446 = vpop.f32.mrb[0].mxu0
        %v4447 = vpop.f32.mrb[0].mxu0
        %v4448 = vadd.f32 0.0, %v4447
        %v4449 = vpop.f32.mrb[0].mxu0
        %4450 = vmatprep.mubr.bf16.mxu0 0
        %4451 = vmatmul.mubr.bf16.gmra.mrb[0].mxu0 %v4314
        %v4452 = vpop.f32.mrb[0].mxu0
        %v4453 = vadd.f32 0.0, %v4452
        %v4454 = vpop.f32.mrb[0].mxu0
        %v4455 = vpop.f32.mrb[0].mxu0
        %v4456 = vadd.f32 0.0, %v4455
        %v4457 = vpop.f32.mrb[0].mxu0
        %4458 = vmatprep.mubr.bf16.mxu0 0
        %4459 = vmatmul.mubr.bf16.gmra.mrb[0].mxu0 %v4316
        %v4460 = vpop.f32.mrb[0].mxu0
        %v4461 = vadd.f32 0.0, %v4460
        %v4462 = vpop.f32.mrb[0].mxu0
        %v4463 = vpop.f32.mrb[0].mxu0
        %v4464 = vadd.f32 0.0, %v4463
        %v4465 = vpop.f32.mrb[0].mxu0
        %4466 = vmatprep.mubr.bf16.mxu0 0
        %4467 = vmatmul.mubr.bf16.gmra.mrb[0].mxu0 %v4318
        %v4468 = vpop.f32.mrb[0].mxu0
        %v4469 = vadd.f32 0.0, %v4468
        %v4470 = vpop.f32.mrb[0].mxu0
        %v4471 = vpop.f32.mrb[0].mxu0
        %v4472 = vadd.f32 0.0, %v4471
        %v4473 = vpop.f32.mrb[0].mxu0
        %4474 = vmatprep.mubr.bf16.mxu0 0
        %4475 = vmatmul.mubr.bf16.gmra.mrb[0].mxu0 %v4320
        %v4476 = vpop.f32.mrb[0].mxu0
        %v4477 = vadd.f32 0.0, %v4476
        %v4478 = vpop.f32.mrb[0].mxu0
        %v4479 = vpop.f32.mrb[0].mxu0
        %v4480 = vadd.f32 0.0, %v4479
        %v4481 = vpop.f32.mrb[0].mxu0
        %4482 = vdwg.mxu0
        %v4483 = vadd.f32 %v4262, %v4413
        %v4484 = vadd.f32 %v4263, %v4416
        %v4485 = vadd.f32 %v4264, %v4421
        %v4486 = vadd.f32 %v4265, %v4424
        %v4487 = vadd.f32 %v4266, %v4429
        %v4488 = vadd.f32 %v4267, %v4432
        %v4489 = vadd.f32 %v4268, %v4437
        %v4490 = vadd.f32 %v4269, %v4440
        %v4491 = vadd.f32 %v4270, %v4445
        %v4492 = vadd.f32 %v4271, %v4448
        %v4493 = vadd.f32 %v4272, %v4453
        %v4494 = vadd.f32 %v4273, %v4456
        %v4495 = vadd.f32 %v4274, %v4461
        %v4496 = vadd.f32 %v4275, %v4464
        %v4497 = vadd.f32 %v4276, %v4469
        %v4498 = vadd.f32 %v4277, %v4472
        %v4499 = vadd.f32 %v4278, %v4477
        %v4500 = vadd.f32 %v4279, %v4480
        %v4501 = vld [vmem:[#allocation2 + $0x10] sm:$0xc]
        %v4502 = vld [vmem:[#allocation2 + $0x14] sm:$0xf]
        %v4503 = vld [vmem:[#allocation2 + $0x18] sm:$0xf]
        %v4504 = vld [vmem:[#allocation2 + $0x1c] sm:$0xf]
        %v4505 = vld [vmem:[#allocation2 + $0x20] sm:$0xf]
        %v4506 = vld [vmem:[#allocation2 + $0x24] sm:$0xf]
        %v4507 = vld [vmem:[#allocation2 + $0x28] sm:$0xf]
        %v4508 = vld [vmem:[#allocation2 + $0x2c] sm:$0xf]
        %v4509 = vld [vmem:[#allocation2 + $0x30] sm:$0xf]
        %v4510 = vld [vmem:[#allocation2 + $0x34] sm:$0xf]
        %v4511 = vld [vmem:[#allocation2 + $0x38] sm:$0xf]
        %v4512 = vld [vmem:[#allocation2 + $0x3c] sm:$0xf]
        %v4513 = vld [vmem:[#allocation2 + $0x40] sm:$0xf]
        %v4514 = vld [vmem:[#allocation2 + $0x44] sm:$0xf]
        %v4515 = vld [vmem:[#allocation2 + $0x48] sm:$0xf]
        %v4516 = vld [vmem:[#allocation2 + $0x4c] sm:$0xf]
        %v4517 = vld [vmem:[#allocation2 + $0x50] sm:$0xf]
        %v4518 = vld [vmem:[#allocation2 + $0x54] sm:$0xf]
        %v4519 = vld [vmem:[#allocation2 + $0x58] sm:$0x3]
        %s4520 = scalar_lea.vmem %s2, 384
        %v4521 = vld [vmem:[%s4520] sm:$0xf]
        %v4522 = vld [vmem:[%s4520 + $0x4] sm:$0xf]
        %v4523 = vld [vmem:[%s4520 + $0x8] sm:$0xf]
        %v4524 = vld [vmem:[%s4520 + $0xc] sm:$0xf]
        %v4525 = vld [vmem:[%s4520 + $0x10] sm:$0xf]
        %v4526 = vld [vmem:[%s4520 + $0x14] sm:$0xf]
        %v4527 = vld [vmem:[%s4520 + $0x18] sm:$0xf]
        %v4528 = vld [vmem:[%s4520 + $0x1c] sm:$0xf]
        %v4529 = vld [vmem:[%s4520 + $0x20] sm:$0xf]
        %v4530 = vld [vmem:[%s4520 + $0x24] sm:$0xf]
        %v4531 = vld [vmem:[%s4520 + $0x28] sm:$0xf]
        %v4532 = vld [vmem:[%s4520 + $0x2c] sm:$0xf]
        %v4533 = vld [vmem:[%s4520 + $0x30] sm:$0xf]
        %v4534 = vld [vmem:[%s4520 + $0x34] sm:$0xf]
        %v4535 = vld [vmem:[%s4520 + $0x38] sm:$0xf]
        %v4536 = vld [vmem:[%s4520 + $0x3c] sm:$0xf]
        %v4556 = vunpack.c.l.b16 %v4501
        %v4557 = vunpack.c.l.b16 %v4502
        %v4558 = vunpack.c.l.b16 %v4503
        %v4559 = vunpack.c.l.b16 %v4504
        %v4560 = vunpack.c.l.b16 %v4505
        %v4561 = vunpack.c.l.b16 %v4506
        %v4562 = vunpack.c.l.b16 %v4507
        %v4563 = vunpack.c.l.b16 %v4508
        %v4564 = vunpack.c.l.b16 %v4509
        %v4565 = vunpack.c.l.b16 %v4510
        %v4566 = vunpack.c.l.b16 %v4511
        %v4567 = vunpack.c.l.b16 %v4512
        %v4568 = vunpack.c.l.b16 %v4513
        %v4569 = vunpack.c.l.b16 %v4514
        %v4570 = vunpack.c.l.b16 %v4515
        %v4571 = vunpack.c.l.b16 %v4516
        %v4572 = vunpack.c.l.b16 %v4517
        %v4573 = vunpack.c.l.b16 %v4518
        %v4574 = vunpack.c.l.b16 %v4519
        %v4575 = vpack.c.b16 %v4557, %v4556
        %v4576 = vpack.c.b16 %v4559, %v4558
        %v4577 = vpack.c.b16 %v4561, %v4560
        %v4578 = vpack.c.b16 %v4563, %v4562
        %v4579 = vpack.c.b16 %v4565, %v4564
        %v4580 = vpack.c.b16 %v4567, %v4566
        %v4581 = vpack.c.b16 %v4569, %v4568
        %v4582 = vpack.c.b16 %v4571, %v4570
        %v4583 = vpack.c.b16 %v4573, %v4572
        %v4584 = vpack.c.b16 %v4574, %v4574
        %v4585 = vrot.slane %v4575, 2
        %v4586 = vrot.slane %v4576, 2
        %v4587 = vsel %vm4301, %v4585, %v4586
        %v4588 = vrot.slane %v4577, 2
        %v4589 = vsel %vm4301, %v4586, %v4588
        %v4590 = vrot.slane %v4578, 2
        %v4591 = vsel %vm4301, %v4588, %v4590
        %v4592 = vrot.slane %v4579, 2
        %v4593 = vsel %vm4301, %v4590, %v4592
        %v4594 = vrot.slane %v4580, 2
        %v4595 = vsel %vm4301, %v4592, %v4594
        %v4596 = vrot.slane %v4581, 2
        %v4597 = vsel %vm4301, %v4594, %v4596
        %v4598 = vrot.slane %v4582, 2
        %v4599 = vsel %vm4301, %v4596, %v4598
        %v4600 = vrot.slane %v4583, 2
        %v4601 = vsel %vm4301, %v4598, %v4600
        %v4602 = vrot.slane %v4584, 2
        %v4603 = vsel %vm4301, %v4600, %v4602
        %v4629 = vunpack.c.l.b16 %v4521
        %v4630 = vunpack.c.l.b16 %v4522
        %v4631 = vunpack.c.l.b16 %v4523
        %v4632 = vunpack.c.l.b16 %v4524
        %v4633 = vunpack.c.l.b16 %v4525
        %v4634 = vunpack.c.l.b16 %v4526
        %v4635 = vunpack.c.l.b16 %v4527
        %v4636 = vunpack.c.l.b16 %v4528
        %v4637 = vunpack.c.l.b16 %v4529
        %v4638 = vunpack.c.l.b16 %v4530
        %v4639 = vunpack.c.l.b16 %v4531
        %v4640 = vunpack.c.l.b16 %v4532
        %v4641 = vunpack.c.l.b16 %v4533
        %v4642 = vunpack.c.l.b16 %v4534
        %v4643 = vunpack.c.l.b16 %v4535
        %v4644 = vunpack.c.l.b16 %v4536
        %v4645 = vpack.c.b16 %v4630, %v4629
        %v4646 = vpack.c.b16 %v4632, %v4631
        %v4647 = vpack.c.b16 %v4634, %v4633
        %v4648 = vpack.c.b16 %v4636, %v4635
        %v4649 = vpack.c.b16 %v4638, %v4637
        %v4650 = vpack.c.b16 %v4640, %v4639
        %v4651 = vpack.c.b16 %v4642, %v4641
        %v4652 = vpack.c.b16 %v4644, %v4643
        %4661 = vmatprep.subr.bf16.mxu0 0
        %4662 = vmatpush1.bf16.msra.mxu0 %v4645
        %4663 = vmatprep.subr.bf16.mxu0 0
        %4664 = vmatpush1.bf16.msra.mxu0 %v4646
        %4665 = vmatprep.subr.bf16.mxu0 0
        %4666 = vmatpush1.bf16.msra.mxu0 %v4647
        %4667 = vmatprep.subr.bf16.mxu0 0
        %4668 = vmatpush1.bf16.msra.mxu0 %v4648
        %4669 = vmatprep.subr.bf16.mxu0 0
        %4670 = vmatpush1.bf16.msra.mxu0 %v4649
        %4671 = vmatprep.subr.bf16.mxu0 0
        %4672 = vmatpush1.bf16.msra.mxu0 %v4650
        %4673 = vmatprep.subr.bf16.mxu0 0
        %4674 = vmatpush1.bf16.msra.mxu0 %v4651
        %4675 = vmatprep.subr.bf16.mxu0 0
        %4676 = vmatpush1.bf16.msra.mxu0 %v4652
        %4677 = vmatprep.subr.bf16.mxu0 0
        %4678 = vmatpush1.bf16.msra.mxu0 0
        %4679 = vmatprep.subr.bf16.mxu0 0
        %4680 = vmatpush1.bf16.msra.mxu0 0
        %4681 = vmatprep.subr.bf16.mxu0 0
        %4682 = vmatpush1.bf16.msra.mxu0 0
        %4683 = vmatprep.subr.bf16.mxu0 0
        %4684 = vmatpush1.bf16.msra.mxu0 0
        %4685 = vmatprep.subr.bf16.mxu0 0
        %4686 = vmatpush1.bf16.msra.mxu0 0
        %4687 = vmatprep.subr.bf16.mxu0 0
        %4688 = vmatpush1.bf16.msra.mxu0 0
        %4689 = vmatprep.subr.bf16.mxu0 0
        %4690 = vmatpush1.bf16.msra.mxu0 0
        %4691 = vmatprep.subr.bf16.mxu0 0
        %4692 = vmatpush1.bf16.msra.mxu0 0
        %4693 = vmatprep.mubr.bf16.mxu0 0
        %4694 = vmatmul.mubr.bf16.gmra.mrb[0].mxu0 %v4587
        %v4695 = vpop.f32.mrb[0].mxu0
        %v4696 = vadd.f32 0.0, %v4695
        %v4697 = vpop.f32.mrb[0].mxu0
        %v4698 = vpop.f32.mrb[0].mxu0
        %v4699 = vadd.f32 0.0, %v4698
        %v4700 = vpop.f32.mrb[0].mxu0
        %4701 = vmatprep.mubr.bf16.mxu0 0
        %4702 = vmatmul.mubr.bf16.gmra.mrb[0].mxu0 %v4589
        %v4703 = vpop.f32.mrb[0].mxu0
        %v4704 = vadd.f32 0.0, %v4703
        %v4705 = vpop.f32.mrb[0].mxu0
        %v4706 = vpop.f32.mrb[0].mxu0
        %v4707 = vadd.f32 0.0, %v4706
        %v4708 = vpop.f32.mrb[0].mxu0
        %4709 = vmatprep.mubr.bf16.mxu0 0
        %4710 = vmatmul.mubr.bf16.gmra.mrb[0].mxu0 %v4591
        %v4711 = vpop.f32.mrb[0].mxu0
        %v4712 = vadd.f32 0.0, %v4711
        %v4713 = vpop.f32.mrb[0].mxu0
        %v4714 = vpop.f32.mrb[0].mxu0
        %v4715 = vadd.f32 0.0, %v4714
        %v4716 = vpop.f32.mrb[0].mxu0
        %4717 = vmatprep.mubr.bf16.mxu0 0
        %4718 = vmatmul.mubr.bf16.gmra.mrb[0].mxu0 %v4593
        %v4719 = vpop.f32.mrb[0].mxu0
        %v4720 = vadd.f32 0.0, %v4719
        %v4721 = vpop.f32.mrb[0].mxu0
        %v4722 = vpop.f32.mrb[0].mxu0
        %v4723 = vadd.f32 0.0, %v4722
        %v4724 = vpop.f32.mrb[0].mxu0
        %4725 = vmatprep.mubr.bf16.mxu0 0
        %4726 = vmatmul.mubr.bf16.gmra.mrb[0].mxu0 %v4595
        %v4727 = vpop.f32.mrb[0].mxu0
        %v4728 = vadd.f32 0.0, %v4727
        %v4729 = vpop.f32.mrb[0].mxu0
        %v4730 = vpop.f32.mrb[0].mxu0
        %v4731 = vadd.f32 0.0, %v4730
        %v4732 = vpop.f32.mrb[0].mxu0
        %4733 = vmatprep.mubr.bf16.mxu0 0
        %4734 = vmatmul.mubr.bf16.gmra.mrb[0].mxu0 %v4597
        %v4735 = vpop.f32.mrb[0].mxu0
        %v4736 = vadd.f32 0.0, %v4735
        %v4737 = vpop.f32.mrb[0].mxu0
        %v4738 = vpop.f32.mrb[0].mxu0
        %v4739 = vadd.f32 0.0, %v4738
        %v4740 = vpop.f32.mrb[0].mxu0
        %4741 = vmatprep.mubr.bf16.mxu0 0
        %4742 = vmatmul.mubr.bf16.gmra.mrb[0].mxu0 %v4599
        %v4743 = vpop.f32.mrb[0].mxu0
        %v4744 = vadd.f32 0.0, %v4743
        %v4745 = vpop.f32.mrb[0].mxu0
        %v4746 = vpop.f32.mrb[0].mxu0
        %v4747 = vadd.f32 0.0, %v4746
        %v4748 = vpop.f32.mrb[0].mxu0
        %4749 = vmatprep.mubr.bf16.mxu0 0
        %4750 = vmatmul.mubr.bf16.gmra.mrb[0].mxu0 %v4601
        %v4751 = vpop.f32.mrb[0].mxu0
        %v4752 = vadd.f32 0.0, %v4751
        %v4753 = vpop.f32.mrb[0].mxu0
        %v4754 = vpop.f32.mrb[0].mxu0
        %v4755 = vadd.f32 0.0, %v4754
        %v4756 = vpop.f32.mrb[0].mxu0
        %4757 = vmatprep.mubr.bf16.mxu0 0
        %4758 = vmatmul.mubr.bf16.gmra.mrb[0].mxu0 %v4603
        %v4759 = vpop.f32.mrb[0].mxu0
        %v4760 = vadd.f32 0.0, %v4759
        %v4761 = vpop.f32.mrb[0].mxu0
        %v4762 = vpop.f32.mrb[0].mxu0
        %v4763 = vadd.f32 0.0, %v4762
        %v4764 = vpop.f32.mrb[0].mxu0
        %4765 = vdwg.mxu0
        %v4766 = vadd.f32 %v4483, %v4696
        %v4767 = vadd.f32 %v4484, %v4699
        %v4768 = vadd.f32 %v4485, %v4704
        %v4769 = vadd.f32 %v4486, %v4707
        %v4770 = vadd.f32 %v4487, %v4712
        %v4771 = vadd.f32 %v4488, %v4715
        %v4772 = vadd.f32 %v4489, %v4720
        %v4773 = vadd.f32 %v4490, %v4723
        %v4774 = vadd.f32 %v4491, %v4728
        %v4775 = vadd.f32 %v4492, %v4731
        %v4776 = vadd.f32 %v4493, %v4736
        %v4777 = vadd.f32 %v4494, %v4739
        %v4778 = vadd.f32 %v4495, %v4744
        %v4779 = vadd.f32 %v4496, %v4747
        %v4780 = vadd.f32 %v4497, %v4752
        %v4781 = vadd.f32 %v4498, %v4755
        %v4782 = vadd.f32 %v4499, %v4760
        %v4783 = vadd.f32 %v4500, %v4763
        %v4784 = vld [vmem:[#allocation2 + $0x58] sm:$0x7]
        %s4785 = scalar_lea.vmem %s2, 448
        %v4786 = vld [vmem:[%s4785] sm:$0xf]
        %v4787 = vld [vmem:[%s4785 + $0x4] sm:$0xf]
        %v4788 = vld [vmem:[%s4785 + $0x8] sm:$0xf]
        %v4789 = vld [vmem:[%s4785 + $0xc] sm:$0xf]
        %v4790 = vld [vmem:[%s4785 + $0x10] sm:$0xf]
        %v4791 = vld [vmem:[%s4785 + $0x14] sm:$0xf]
        %v4792 = vld [vmem:[%s4785 + $0x18] sm:$0xf]
        %v4793 = vld [vmem:[%s4785 + $0x1c] sm:$0xf]
        %v4794 = vld [vmem:[%s4785 + $0x20] sm:$0xf]
        %v4795 = vld [vmem:[%s4785 + $0x24] sm:$0xf]
        %v4796 = vld [vmem:[%s4785 + $0x28] sm:$0xf]
        %v4797 = vld [vmem:[%s4785 + $0x2c] sm:$0xf]
        %v4798 = vld [vmem:[%s4785 + $0x30] sm:$0xf]
        %v4799 = vld [vmem:[%s4785 + $0x34] sm:$0xf]
        %v4800 = vld [vmem:[%s4785 + $0x38] sm:$0xf]
        %v4801 = vld [vmem:[%s4785 + $0x3c] sm:$0xf]
        %v4803 = vunpack.c.l.b16 %v4784
        %v4804 = vpack.c.b16 %v4803, %v4803
        %vm4805 = vsmask.f32 5376
        %v4807 = vshrl.u32 %v4575, 16
        %v4809 = vrot.slane %v4807, 2
        %v4810 = vshll.u32 %v4575, 16
        %v4812 = vrot.slane %v4810, 3
        %v4813 = vor.u32 %v4809, %v4812
        %v4815 = vshrl.u32 %v4576, 16
        %v4817 = vrot.slane %v4815, 2
        %v4818 = vshll.u32 %v4576, 16
        %v4820 = vrot.slane %v4818, 3
        %v4821 = vor.u32 %v4817, %v4820
        %v4822 = vsel %vm4805, %v4813, %v4821
        %v4824 = vshrl.u32 %v4577, 16
        %v4826 = vrot.slane %v4824, 2
        %v4827 = vshll.u32 %v4577, 16
        %v4829 = vrot.slane %v4827, 3
        %v4830 = vor.u32 %v4826, %v4829
        %v4831 = vsel %vm4805, %v4821, %v4830
        %v4833 = vshrl.u32 %v4578, 16
        %v4835 = vrot.slane %v4833, 2
        %v4836 = vshll.u32 %v4578, 16
        %v4838 = vrot.slane %v4836, 3
        %v4839 = vor.u32 %v4835, %v4838
        %v4840 = vsel %vm4805, %v4830, %v4839
        %v4842 = vshrl.u32 %v4579, 16
        %v4844 = vrot.slane %v4842, 2
        %v4845 = vshll.u32 %v4579, 16
        %v4847 = vrot.slane %v4845, 3
        %v4848 = vor.u32 %v4844, %v4847
        %v4849 = vsel %vm4805, %v4839, %v4848
        %v4851 = vshrl.u32 %v4580, 16
        %v4853 = vrot.slane %v4851, 2
        %v4854 = vshll.u32 %v4580, 16
        %v4856 = vrot.slane %v4854, 3
        %v4857 = vor.u32 %v4853, %v4856
        %v4858 = vsel %vm4805, %v4848, %v4857
        %v4860 = vshrl.u32 %v4581, 16
        %v4862 = vrot.slane %v4860, 2
        %v4863 = vshll.u32 %v4581, 16
        %v4865 = vrot.slane %v4863, 3
        %v4866 = vor.u32 %v4862, %v4865
        %v4867 = vsel %vm4805, %v4857, %v4866
        %v4869 = vshrl.u32 %v4582, 16
        %v4871 = vrot.slane %v4869, 2
        %v4872 = vshll.u32 %v4582, 16
        %v4874 = vrot.slane %v4872, 3
        %v4875 = vor.u32 %v4871, %v4874
        %v4876 = vsel %vm4805, %v4866, %v4875
        %v4878 = vshrl.u32 %v4583, 16
        %v4880 = vrot.slane %v4878, 2
        %v4881 = vshll.u32 %v4583, 16
        %v4883 = vrot.slane %v4881, 3
        %v4884 = vor.u32 %v4880, %v4883
        %v4885 = vsel %vm4805, %v4875, %v4884
        %v4887 = vshrl.u32 %v4804, 16
        %v4889 = vrot.slane %v4887, 2
        %v4890 = vshll.u32 %v4804, 16
        %v4892 = vrot.slane %v4890, 3
        %v4893 = vor.u32 %v4889, %v4892
        %v4894 = vsel %vm4805, %v4884, %v4893
        %v4920 = vunpack.c.l.b16 %v4786
        %v4921 = vunpack.c.l.b16 %v4787
        %v4922 = vunpack.c.l.b16 %v4788
        %v4923 = vunpack.c.l.b16 %v4789
        %v4924 = vunpack.c.l.b16 %v4790
        %v4925 = vunpack.c.l.b16 %v4791
        %v4926 = vunpack.c.l.b16 %v4792
        %v4927 = vunpack.c.l.b16 %v4793
        %v4928 = vunpack.c.l.b16 %v4794
        %v4929 = vunpack.c.l.b16 %v4795
        %v4930 = vunpack.c.l.b16 %v4796
        %v4931 = vunpack.c.l.b16 %v4797
        %v4932 = vunpack.c.l.b16 %v4798
        %v4933 = vunpack.c.l.b16 %v4799
        %v4934 = vunpack.c.l.b16 %v4800
        %v4935 = vunpack.c.l.b16 %v4801
        %v4936 = vpack.c.b16 %v4921, %v4920
        %v4937 = vpack.c.b16 %v4923, %v4922
        %v4938 = vpack.c.b16 %v4925, %v4924
        %v4939 = vpack.c.b16 %v4927, %v4926
        %v4940 = vpack.c.b16 %v4929, %v4928
        %v4941 = vpack.c.b16 %v4931, %v4930
        %v4942 = vpack.c.b16 %v4933, %v4932
        %v4943 = vpack.c.b16 %v4935, %v4934
        %4952 = vmatprep.subr.bf16.mxu0 0
        %4953 = vmatpush1.bf16.msra.mxu0 %v4936
        %4954 = vmatprep.subr.bf16.mxu0 0
        %4955 = vmatpush1.bf16.msra.mxu0 %v4937
        %4956 = vmatprep.subr.bf16.mxu0 0
        %4957 = vmatpush1.bf16.msra.mxu0 %v4938
        %4958 = vmatprep.subr.bf16.mxu0 0
        %4959 = vmatpush1.bf16.msra.mxu0 %v4939
        %4960 = vmatprep.subr.bf16.mxu0 0
        %4961 = vmatpush1.bf16.msra.mxu0 %v4940
        %4962 = vmatprep.subr.bf16.mxu0 0
        %4963 = vmatpush1.bf16.msra.mxu0 %v4941
        %4964 = vmatprep.subr.bf16.mxu0 0
        %4965 = vmatpush1.bf16.msra.mxu0 %v4942
        %4966 = vmatprep.subr.bf16.mxu0 0
        %4967 = vmatpush1.bf16.msra.mxu0 %v4943
        %4968 = vmatprep.subr.bf16.mxu0 0
        %4969 = vmatpush1.bf16.msra.mxu0 0
        %4970 = vmatprep.subr.bf16.mxu0 0
        %4971 = vmatpush1.bf16.msra.mxu0 0
        %4972 = vmatprep.subr.bf16.mxu0 0
        %4973 = vmatpush1.bf16.msra.mxu0 0
        %4974 = vmatprep.subr.bf16.mxu0 0
        %4975 = vmatpush1.bf16.msra.mxu0 0
        %4976 = vmatprep.subr.bf16.mxu0 0
        %4977 = vmatpush1.bf16.msra.mxu0 0
        %4978 = vmatprep.subr.bf16.mxu0 0
        %4979 = vmatpush1.bf16.msra.mxu0 0
        %4980 = vmatprep.subr.bf16.mxu0 0
        %4981 = vmatpush1.bf16.msra.mxu0 0
        %4982 = vmatprep.subr.bf16.mxu0 0
        %4983 = vmatpush1.bf16.msra.mxu0 0
        %4984 = vmatprep.mubr.bf16.mxu0 0
        %4985 = vmatmul.mubr.bf16.gmra.mrb[0].mxu0 %v4822
        %v4986 = vpop.f32.mrb[0].mxu0
        %v4987 = vadd.f32 0.0, %v4986
        %v4988 = vpop.f32.mrb[0].mxu0
        %v4989 = vpop.f32.mrb[0].mxu0
        %v4990 = vadd.f32 0.0, %v4989
        %v4991 = vpop.f32.mrb[0].mxu0
        %4992 = vmatprep.mubr.bf16.mxu0 0
        %4993 = vmatmul.mubr.bf16.gmra.mrb[0].mxu0 %v4831
        %v4994 = vpop.f32.mrb[0].mxu0
        %v4995 = vadd.f32 0.0, %v4994
        %v4996 = vpop.f32.mrb[0].mxu0
        %v4997 = vpop.f32.mrb[0].mxu0
        %v4998 = vadd.f32 0.0, %v4997
        %v4999 = vpop.f32.mrb[0].mxu0
        %5000 = vmatprep.mubr.bf16.mxu0 0
        %5001 = vmatmul.mubr.bf16.gmra.mrb[0].mxu0 %v4840
        %v5002 = vpop.f32.mrb[0].mxu0
        %v5003 = vadd.f32 0.0, %v5002
        %v5004 = vpop.f32.mrb[0].mxu0
        %v5005 = vpop.f32.mrb[0].mxu0
        %v5006 = vadd.f32 0.0, %v5005
        %v5007 = vpop.f32.mrb[0].mxu0
        %5008 = vmatprep.mubr.bf16.mxu0 0
        %5009 = vmatmul.mubr.bf16.gmra.mrb[0].mxu0 %v4849
        %v5010 = vpop.f32.mrb[0].mxu0
        %v5011 = vadd.f32 0.0, %v5010
        %v5012 = vpop.f32.mrb[0].mxu0
        %v5013 = vpop.f32.mrb[0].mxu0
        %v5014 = vadd.f32 0.0, %v5013
        %v5015 = vpop.f32.mrb[0].mxu0
        %5016 = vmatprep.mubr.bf16.mxu0 0
        %5017 = vmatmul.mubr.bf16.gmra.mrb[0].mxu0 %v4858
        %v5018 = vpop.f32.mrb[0].mxu0
        %v5019 = vadd.f32 0.0, %v5018
        %v5020 = vpop.f32.mrb[0].mxu0
        %v5021 = vpop.f32.mrb[0].mxu0
        %v5022 = vadd.f32 0.0, %v5021
        %v5023 = vpop.f32.mrb[0].mxu0
        %5024 = vmatprep.mubr.bf16.mxu0 0
        %5025 = vmatmul.mubr.bf16.gmra.mrb[0].mxu0 %v4867
        %v5026 = vpop.f32.mrb[0].mxu0
        %v5027 = vadd.f32 0.0, %v5026
        %v5028 = vpop.f32.mrb[0].mxu0
        %v5029 = vpop.f32.mrb[0].mxu0
        %v5030 = vadd.f32 0.0, %v5029
        %v5031 = vpop.f32.mrb[0].mxu0
        %5032 = vmatprep.mubr.bf16.mxu0 0
        %5033 = vmatmul.mubr.bf16.gmra.mrb[0].mxu0 %v4876
        %v5034 = vpop.f32.mrb[0].mxu0
        %v5035 = vadd.f32 0.0, %v5034
        %v5036 = vpop.f32.mrb[0].mxu0
        %v5037 = vpop.f32.mrb[0].mxu0
        %v5038 = vadd.f32 0.0, %v5037
        %v5039 = vpop.f32.mrb[0].mxu0
        %5040 = vmatprep.mubr.bf16.mxu0 0
        %5041 = vmatmul.mubr.bf16.gmra.mrb[0].mxu0 %v4885
        %v5042 = vpop.f32.mrb[0].mxu0
        %v5043 = vadd.f32 0.0, %v5042
        %v5044 = vpop.f32.mrb[0].mxu0
        %v5045 = vpop.f32.mrb[0].mxu0
        %v5046 = vadd.f32 0.0, %v5045
        %v5047 = vpop.f32.mrb[0].mxu0
        %5048 = vmatprep.mubr.bf16.mxu0 0
        %5049 = vmatmul.mubr.bf16.gmra.mrb[0].mxu0 %v4894
        %v5050 = vpop.f32.mrb[0].mxu0
        %v5051 = vadd.f32 0.0, %v5050
        %v5052 = vpop.f32.mrb[0].mxu0
        %v5053 = vpop.f32.mrb[0].mxu0
        %v5054 = vadd.f32 0.0, %v5053
        %v5055 = vpop.f32.mrb[0].mxu0
        %5056 = vdwg.mxu0
        %v5057 = vadd.f32 %v4766, %v4987
        %v5058 = vadd.f32 %v4767, %v4990
        %v5059 = vadd.f32 %v4768, %v4995
        %v5060 = vadd.f32 %v4769, %v4998
        %v5061 = vadd.f32 %v4770, %v5003
        %v5062 = vadd.f32 %v4771, %v5006
        %v5063 = vadd.f32 %v4772, %v5011
        %v5064 = vadd.f32 %v4773, %v5014
        %v5065 = vadd.f32 %v4774, %v5019
        %v5066 = vadd.f32 %v4775, %v5022
        %v5067 = vadd.f32 %v4776, %v5027
        %v5068 = vadd.f32 %v4777, %v5030
        %v5069 = vadd.f32 %v4778, %v5035
        %v5070 = vadd.f32 %v4779, %v5038
        %v5071 = vadd.f32 %v4780, %v5043
        %v5072 = vadd.f32 %v4781, %v5046
        %v5073 = vadd.f32 %v4782, %v5051
        %v5074 = vadd.f32 %v4783, %v5054
        %v5075 = vld [vmem:[#allocation2 + $0x10] sm:$0x8]
        %s5076 = scalar_lea.vmem %s2, 512
        %v5077 = vld [vmem:[%s5076] sm:$0xf]
        %v5078 = vld [vmem:[%s5076 + $0x4] sm:$0xf]
        %v5079 = vld [vmem:[%s5076 + $0x8] sm:$0xf]
        %v5080 = vld [vmem:[%s5076 + $0xc] sm:$0xf]
        %v5081 = vld [vmem:[%s5076 + $0x10] sm:$0xf]
        %v5082 = vld [vmem:[%s5076 + $0x14] sm:$0xf]
        %v5083 = vld [vmem:[%s5076 + $0x18] sm:$0xf]
        %v5084 = vld [vmem:[%s5076 + $0x1c] sm:$0xf]
        %v5085 = vld [vmem:[%s5076 + $0x20] sm:$0xf]
        %v5086 = vld [vmem:[%s5076 + $0x24] sm:$0xf]
        %v5087 = vld [vmem:[%s5076 + $0x28] sm:$0xf]
        %v5088 = vld [vmem:[%s5076 + $0x2c] sm:$0xf]
        %v5089 = vld [vmem:[%s5076 + $0x30] sm:$0xf]
        %v5090 = vld [vmem:[%s5076 + $0x34] sm:$0xf]
        %v5091 = vld [vmem:[%s5076 + $0x38] sm:$0xf]
        %v5092 = vld [vmem:[%s5076 + $0x3c] sm:$0xf]
        %v5094 = vunpack.c.l.b16 %v5075
        %v5095 = vpack.c.b16 %v4557, %v5094
        %vm5096 = vcmask 1044480
        %v5097 = vrot.slane %v5095, 3
        %v5098 = vrot.slane %v4576, 3
        %v5099 = vsel %vm5096, %v5097, %v5098
        %v5100 = vrot.slane %v4577, 3
        %v5101 = vsel %vm5096, %v5098, %v5100
        %v5102 = vrot.slane %v4578, 3
        %v5103 = vsel %vm5096, %v5100, %v5102
        %v5104 = vrot.slane %v4579, 3
        %v5105 = vsel %vm5096, %v5102, %v5104
        %v5106 = vrot.slane %v4580, 3
        %v5107 = vsel %vm5096, %v5104, %v5106
        %v5108 = vrot.slane %v4581, 3
        %v5109 = vsel %vm5096, %v5106, %v5108
        %v5110 = vrot.slane %v4582, 3
        %v5111 = vsel %vm5096, %v5108, %v5110
        %v5112 = vrot.slane %v4583, 3
        %v5113 = vsel %vm5096, %v5110, %v5112
        %v5114 = vrot.slane %v4804, 3
        %v5115 = vsel %vm5096, %v5112, %v5114
        %v5141 = vunpack.c.l.b16 %v5077
        %v5142 = vunpack.c.l.b16 %v5078
        %v5143 = vunpack.c.l.b16 %v5079
        %v5144 = vunpack.c.l.b16 %v5080
        %v5145 = vunpack.c.l.b16 %v5081
        %v5146 = vunpack.c.l.b16 %v5082
        %v5147 = vunpack.c.l.b16 %v5083
        %v5148 = vunpack.c.l.b16 %v5084
        %v5149 = vunpack.c.l.b16 %v5085
        %v5150 = vunpack.c.l.b16 %v5086
        %v5151 = vunpack.c.l.b16 %v5087
        %v5152 = vunpack.c.l.b16 %v5088
        %v5153 = vunpack.c.l.b16 %v5089
        %v5154 = vunpack.c.l.b16 %v5090
        %v5155 = vunpack.c.l.b16 %v5091
        %v5156 = vunpack.c.l.b16 %v5092
        %v5157 = vpack.c.b16 %v5142, %v5141
        %v5158 = vpack.c.b16 %v5144, %v5143
        %v5159 = vpack.c.b16 %v5146, %v5145
        %v5160 = vpack.c.b16 %v5148, %v5147
        %v5161 = vpack.c.b16 %v5150, %v5149
        %v5162 = vpack.c.b16 %v5152, %v5151
        %v5163 = vpack.c.b16 %v5154, %v5153
        %v5164 = vpack.c.b16 %v5156, %v5155
        %5173 = vmatprep.subr.bf16.mxu0 0
        %5174 = vmatpush1.bf16.msra.mxu0 %v5157
        %5175 = vmatprep.subr.bf16.mxu0 0
        %5176 = vmatpush1.bf16.msra.mxu0 %v5158
        %5177 = vmatprep.subr.bf16.mxu0 0
        %5178 = vmatpush1.bf16.msra.mxu0 %v5159
        %5179 = vmatprep.subr.bf16.mxu0 0
        %5180 = vmatpush1.bf16.msra.mxu0 %v5160
        %5181 = vmatprep.subr.bf16.mxu0 0
        %5182 = vmatpush1.bf16.msra.mxu0 %v5161
        %5183 = vmatprep.subr.bf16.mxu0 0
        %5184 = vmatpush1.bf16.msra.mxu0 %v5162
        %5185 = vmatprep.subr.bf16.mxu0 0
        %5186 = vmatpush1.bf16.msra.mxu0 %v5163
        %5187 = vmatprep.subr.bf16.mxu0 0
        %5188 = vmatpush1.bf16.msra.mxu0 %v5164
        %5189 = vmatprep.subr.bf16.mxu0 0
        %5190 = vmatpush1.bf16.msra.mxu0 0
        %5191 = vmatprep.subr.bf16.mxu0 0
        %5192 = vmatpush1.bf16.msra.mxu0 0
        %5193 = vmatprep.subr.bf16.mxu0 0
        %5194 = vmatpush1.bf16.msra.mxu0 0
        %5195 = vmatprep.subr.bf16.mxu0 0
        %5196 = vmatpush1.bf16.msra.mxu0 0
        %5197 = vmatprep.subr.bf16.mxu0 0
        %5198 = vmatpush1.bf16.msra.mxu0 0
        %5199 = vmatprep.subr.bf16.mxu0 0
        %5200 = vmatpush1.bf16.msra.mxu0 0
        %5201 = vmatprep.subr.bf16.mxu0 0
        %5202 = vmatpush1.bf16.msra.mxu0 0
        %5203 = vmatprep.subr.bf16.mxu0 0
        %5204 = vmatpush1.bf16.msra.mxu0 0
        %5205 = vmatprep.mubr.bf16.mxu0 0
        %5206 = vmatmul.mubr.bf16.gmra.mrb[0].mxu0 %v5099
        %v5207 = vpop.f32.mrb[0].mxu0
        %v5208 = vadd.f32 0.0, %v5207
        %v5209 = vpop.f32.mrb[0].mxu0
        %v5210 = vpop.f32.mrb[0].mxu0
        %v5211 = vadd.f32 0.0, %v5210
        %v5212 = vpop.f32.mrb[0].mxu0
        %5213 = vmatprep.mubr.bf16.mxu0 0
        %5214 = vmatmul.mubr.bf16.gmra.mrb[0].mxu0 %v5101
        %v5215 = vpop.f32.mrb[0].mxu0
        %v5216 = vadd.f32 0.0, %v5215
        %v5217 = vpop.f32.mrb[0].mxu0
        %v5218 = vpop.f32.mrb[0].mxu0
        %v5219 = vadd.f32 0.0, %v5218
        %v5220 = vpop.f32.mrb[0].mxu0
        %5221 = vmatprep.mubr.bf16.mxu0 0
        %5222 = vmatmul.mubr.bf16.gmra.mrb[0].mxu0 %v5103
        %v5223 = vpop.f32.mrb[0].mxu0
        %v5224 = vadd.f32 0.0, %v5223
        %v5225 = vpop.f32.mrb[0].mxu0
        %v5226 = vpop.f32.mrb[0].mxu0
        %v5227 = vadd.f32 0.0, %v5226
        %v5228 = vpop.f32.mrb[0].mxu0
        %5229 = vmatprep.mubr.bf16.mxu0 0
        %5230 = vmatmul.mubr.bf16.gmra.mrb[0].mxu0 %v5105
        %v5231 = vpop.f32.mrb[0].mxu0
        %v5232 = vadd.f32 0.0, %v5231
        %v5233 = vpop.f32.mrb[0].mxu0
        %v5234 = vpop.f32.mrb[0].mxu0
        %v5235 = vadd.f32 0.0, %v5234
        %v5236 = vpop.f32.mrb[0].mxu0
        %5237 = vmatprep.mubr.bf16.mxu0 0
        %5238 = vmatmul.mubr.bf16.gmra.mrb[0].mxu0 %v5107
        %v5239 = vpop.f32.mrb[0].mxu0
        %v5240 = vadd.f32 0.0, %v5239
        %v5241 = vpop.f32.mrb[0].mxu0
        %v5242 = vpop.f32.mrb[0].mxu0
        %v5243 = vadd.f32 0.0, %v5242
        %v5244 = vpop.f32.mrb[0].mxu0
        %5245 = vmatprep.mubr.bf16.mxu0 0
        %5246 = vmatmul.mubr.bf16.gmra.mrb[0].mxu0 %v5109
        %v5247 = vpop.f32.mrb[0].mxu0
        %v5248 = vadd.f32 0.0, %v5247
        %v5249 = vpop.f32.mrb[0].mxu0
        %v5250 = vpop.f32.mrb[0].mxu0
        %v5251 = vadd.f32 0.0, %v5250
        %v5252 = vpop.f32.mrb[0].mxu0
        %5253 = vmatprep.mubr.bf16.mxu0 0
        %5254 = vmatmul.mubr.bf16.gmra.mrb[0].mxu0 %v5111
        %v5255 = vpop.f32.mrb[0].mxu0
        %v5256 = vadd.f32 0.0, %v5255
        %v5257 = vpop.f32.mrb[0].mxu0
        %v5258 = vpop.f32.mrb[0].mxu0
        %v5259 = vadd.f32 0.0, %v5258
        %v5260 = vpop.f32.mrb[0].mxu0
        %5261 = vmatprep.mubr.bf16.mxu0 0
        %5262 = vmatmul.mubr.bf16.gmra.mrb[0].mxu0 %v5113
        %v5263 = vpop.f32.mrb[0].mxu0
        %v5264 = vadd.f32 0.0, %v5263
        %v5265 = vpop.f32.mrb[0].mxu0
        %v5266 = vpop.f32.mrb[0].mxu0
        %v5267 = vadd.f32 0.0, %v5266
        %v5268 = vpop.f32.mrb[0].mxu0
        %5269 = vmatprep.mubr.bf16.mxu0 0
        %5270 = vmatmul.mubr.bf16.gmra.mrb[0].mxu0 %v5115
        %v5271 = vpop.f32.mrb[0].mxu0
        %v5272 = vadd.f32 0.0, %v5271
        %v5273 = vpop.f32.mrb[0].mxu0
        %v5274 = vpop.f32.mrb[0].mxu0
        %v5275 = vadd.f32 0.0, %v5274
        %v5276 = vpop.f32.mrb[0].mxu0
        %5277 = vdwg.mxu0
        %v5278 = vadd.f32 %v5057, %v5208
        %v5279 = vadd.f32 %v5058, %v5211
        %v5280 = vadd.f32 %v5059, %v5216
        %v5281 = vadd.f32 %v5060, %v5219
        %v5282 = vadd.f32 %v5061, %v5224
        %v5283 = vadd.f32 %v5062, %v5227
        %v5284 = vadd.f32 %v5063, %v5232
        %v5285 = vadd.f32 %v5064, %v5235
        %v5286 = vadd.f32 %v5065, %v5240
        %v5287 = vadd.f32 %v5066, %v5243
        %v5288 = vadd.f32 %v5067, %v5248
        %v5289 = vadd.f32 %v5068, %v5251
        %v5290 = vadd.f32 %v5069, %v5256
        %v5291 = vadd.f32 %v5070, %v5259
        %v5292 = vadd.f32 %v5071, %v5264
        %v5293 = vadd.f32 %v5072, %v5267
        %v5294 = vadd.f32 %v5073, %v5272
        %v5295 = vadd.f32 %v5074, %v5275
        %v5314 = vcombine.high %v5278, %v5278
        %v5316 = vunpack.c.l.s4 1983009808
        %v5317 = vunpack.c.0.s8 %v5316
        %v5318 = vlaneseq
        %v5319 = vshrl.u32 %v5318, 7
        %v5320 = vsub.s32 %v5317, %v5319
        %v5321 = vrot.slane %v5278, %v5320
        %v5323 = vunpack.c.l.s4 1983009808
        %v5324 = vunpack.c.0.s8 %v5323
        %v5325 = vlaneseq
        %v5326 = vshrl.u32 %v5325, 7
        %v5327 = vsub.s32 %v5324, %v5326
        %v5328 = vrot.slane %v5314, %v5327
        %v5329 = vcombine.high %v5321, %v5321
        %v5330 = vcombine.high %v5328, %v5328
        %v5331 = vcombine.high %v5279, %v5279
        %v5333 = vunpack.c.l.s4 1983009808
        %v5334 = vunpack.c.0.s8 %v5333
        %v5335 = vlaneseq
        %v5336 = vshrl.u32 %v5335, 7
        %v5337 = vsub.s32 %v5334, %v5336
        %v5338 = vrot.slane %v5279, %v5337
        %v5340 = vunpack.c.l.s4 1983009808
        %v5341 = vunpack.c.0.s8 %v5340
        %v5342 = vlaneseq
        %v5343 = vshrl.u32 %v5342, 7
        %v5344 = vsub.s32 %v5341, %v5343
        %v5345 = vrot.slane %v5331, %v5344
        %v5346 = vcombine.high %v5338, %v5338
        %v5347 = vcombine.high %v5345, %v5345
        %v5348 = vcombine.high %v5280, %v5280
        %v5350 = vunpack.c.l.s4 1983009808
        %v5351 = vunpack.c.0.s8 %v5350
        %v5352 = vlaneseq
        %v5353 = vshrl.u32 %v5352, 7
        %v5354 = vsub.s32 %v5351, %v5353
        %v5355 = vrot.slane %v5280, %v5354
        %v5357 = vunpack.c.l.s4 1983009808
        %v5358 = vunpack.c.0.s8 %v5357
        %v5359 = vlaneseq
        %v5360 = vshrl.u32 %v5359, 7
        %v5361 = vsub.s32 %v5358, %v5360
        %v5362 = vrot.slane %v5348, %v5361
        %v5363 = vcombine.high %v5355, %v5355
        %v5364 = vcombine.high %v5362, %v5362
        %v5365 = vcombine.high %v5281, %v5281
        %v5367 = vunpack.c.l.s4 1983009808
        %v5368 = vunpack.c.0.s8 %v5367
        %v5369 = vlaneseq
        %v5370 = vshrl.u32 %v5369, 7
        %v5371 = vsub.s32 %v5368, %v5370
        %v5372 = vrot.slane %v5281, %v5371
        %v5374 = vunpack.c.l.s4 1983009808
        %v5375 = vunpack.c.0.s8 %v5374
        %v5376 = vlaneseq
        %v5377 = vshrl.u32 %v5376, 7
        %v5378 = vsub.s32 %v5375, %v5377
        %v5379 = vrot.slane %v5365, %v5378
        %v5380 = vcombine.high %v5372, %v5372
        %v5381 = vcombine.high %v5379, %v5379
        %v5382 = vcombine.high %v5282, %v5282
        %v5384 = vunpack.c.l.s4 1983009808
        %v5385 = vunpack.c.0.s8 %v5384
        %v5386 = vlaneseq
        %v5387 = vshrl.u32 %v5386, 7
        %v5388 = vsub.s32 %v5385, %v5387
        %v5389 = vrot.slane %v5282, %v5388
        %v5391 = vunpack.c.l.s4 1983009808
        %v5392 = vunpack.c.0.s8 %v5391
        %v5393 = vlaneseq
        %v5394 = vshrl.u32 %v5393, 7
        %v5395 = vsub.s32 %v5392, %v5394
        %v5396 = vrot.slane %v5382, %v5395
        %v5397 = vcombine.high %v5396, %v5396
        %v5398 = vcombine.high %v5283, %v5283
        %v5400 = vunpack.c.l.s4 1983009808
        %v5401 = vunpack.c.0.s8 %v5400
        %v5402 = vlaneseq
        %v5403 = vshrl.u32 %v5402, 7
        %v5404 = vsub.s32 %v5401, %v5403
        %v5405 = vrot.slane %v5283, %v5404
        %v5407 = vunpack.c.l.s4 1983009808
        %v5408 = vunpack.c.0.s8 %v5407
        %v5409 = vlaneseq
        %v5410 = vshrl.u32 %v5409, 7
        %v5411 = vsub.s32 %v5408, %v5410
        %v5412 = vrot.slane %v5398, %v5411
        %v5413 = vcombine.high %v5405, %v5405
        %v5414 = vcombine.high %v5412, %v5412
        %v5415 = vcombine.high %v5284, %v5284
        %v5417 = vunpack.c.l.s4 1983009808
        %v5418 = vunpack.c.0.s8 %v5417
        %v5419 = vlaneseq
        %v5420 = vshrl.u32 %v5419, 7
        %v5421 = vsub.s32 %v5418, %v5420
        %v5422 = vrot.slane %v5284, %v5421
        %v5424 = vunpack.c.l.s4 1983009808
        %v5425 = vunpack.c.0.s8 %v5424
        %v5426 = vlaneseq
        %v5427 = vshrl.u32 %v5426, 7
        %v5428 = vsub.s32 %v5425, %v5427
        %v5429 = vrot.slane %v5415, %v5428
        %v5430 = vcombine.high %v5422, %v5422
        %v5431 = vcombine.high %v5429, %v5429
        %v5432 = vcombine.high %v5285, %v5285
        %v5434 = vunpack.c.l.s4 1983009808
        %v5435 = vunpack.c.0.s8 %v5434
        %v5436 = vlaneseq
        %v5437 = vshrl.u32 %v5436, 7
        %v5438 = vsub.s32 %v5435, %v5437
        %v5439 = vrot.slane %v5285, %v5438
        %v5441 = vunpack.c.l.s4 1983009808
        %v5442 = vunpack.c.0.s8 %v5441
        %v5443 = vlaneseq
        %v5444 = vshrl.u32 %v5443, 7
        %v5445 = vsub.s32 %v5442, %v5444
        %v5446 = vrot.slane %v5432, %v5445
        %v5447 = vcombine.high %v5439, %v5439
        %v5448 = vcombine.high %v5446, %v5446
        %v5449 = vcombine.high %v5286, %v5286
        %v5451 = vunpack.c.l.s4 1983009808
        %v5452 = vunpack.c.0.s8 %v5451
        %v5453 = vlaneseq
        %v5454 = vshrl.u32 %v5453, 7
        %v5455 = vsub.s32 %v5452, %v5454
        %v5456 = vrot.slane %v5286, %v5455
        %v5458 = vunpack.c.l.s4 1983009808
        %v5459 = vunpack.c.0.s8 %v5458
        %v5460 = vlaneseq
        %v5461 = vshrl.u32 %v5460, 7
        %v5462 = vsub.s32 %v5459, %v5461
        %v5463 = vrot.slane %v5449, %v5462
        %v5464 = vcombine.high %v5456, %v5456
        %v5465 = vcombine.high %v5287, %v5287
        %v5467 = vunpack.c.l.s4 1983009808
        %v5468 = vunpack.c.0.s8 %v5467
        %v5469 = vlaneseq
        %v5470 = vshrl.u32 %v5469, 7
        %v5471 = vsub.s32 %v5468, %v5470
        %v5472 = vrot.slane %v5287, %v5471
        %v5474 = vunpack.c.l.s4 1983009808
        %v5475 = vunpack.c.0.s8 %v5474
        %v5476 = vlaneseq
        %v5477 = vshrl.u32 %v5476, 7
        %v5478 = vsub.s32 %v5475, %v5477
        %v5479 = vrot.slane %v5465, %v5478
        %v5480 = vcombine.high %v5472, %v5472
        %v5481 = vcombine.high %v5479, %v5479
        %v5482 = vcombine.high %v5288, %v5288
        %v5484 = vunpack.c.l.s4 1983009808
        %v5485 = vunpack.c.0.s8 %v5484
        %v5486 = vlaneseq
        %v5487 = vshrl.u32 %v5486, 7
        %v5488 = vsub.s32 %v5485, %v5487
        %v5489 = vrot.slane %v5288, %v5488
        %v5491 = vunpack.c.l.s4 1983009808
        %v5492 = vunpack.c.0.s8 %v5491
        %v5493 = vlaneseq
        %v5494 = vshrl.u32 %v5493, 7
        %v5495 = vsub.s32 %v5492, %v5494
        %v5496 = vrot.slane %v5482, %v5495
        %v5497 = vcombine.high %v5489, %v5489
        %v5498 = vcombine.high %v5496, %v5496
        %v5499 = vcombine.high %v5289, %v5289
        %v5501 = vunpack.c.l.s4 1983009808
        %v5502 = vunpack.c.0.s8 %v5501
        %v5503 = vlaneseq
        %v5504 = vshrl.u32 %v5503, 7
        %v5505 = vsub.s32 %v5502, %v5504
        %v5506 = vrot.slane %v5289, %v5505
        %v5508 = vunpack.c.l.s4 1983009808
        %v5509 = vunpack.c.0.s8 %v5508
        %v5510 = vlaneseq
        %v5511 = vshrl.u32 %v5510, 7
        %v5512 = vsub.s32 %v5509, %v5511
        %v5513 = vrot.slane %v5499, %v5512
        %v5514 = vcombine.high %v5506, %v5506
        %v5515 = vcombine.high %v5513, %v5513
        %v5516 = vcombine.high %v5290, %v5290
        %v5518 = vunpack.c.l.s4 1983009808
        %v5519 = vunpack.c.0.s8 %v5518
        %v5520 = vlaneseq
        %v5521 = vshrl.u32 %v5520, 7
        %v5522 = vsub.s32 %v5519, %v5521
        %v5523 = vrot.slane %v5290, %v5522
        %v5525 = vunpack.c.l.s4 1983009808
        %v5526 = vunpack.c.0.s8 %v5525
        %v5527 = vlaneseq
        %v5528 = vshrl.u32 %v5527, 7
        %v5529 = vsub.s32 %v5526, %v5528
        %v5530 = vrot.slane %v5516, %v5529
        %v5531 = vcombine.high %v5523, %v5523
        %v5532 = vcombine.high %v5530, %v5530
        %v5533 = vcombine.high %v5291, %v5291
        %v5535 = vunpack.c.l.s4 1983009808
        %v5536 = vunpack.c.0.s8 %v5535
        %v5537 = vlaneseq
        %v5538 = vshrl.u32 %v5537, 7
        %v5539 = vsub.s32 %v5536, %v5538
        %v5540 = vrot.slane %v5291, %v5539
        %v5542 = vunpack.c.l.s4 1983009808
        %v5543 = vunpack.c.0.s8 %v5542
        %v5544 = vlaneseq
        %v5545 = vshrl.u32 %v5544, 7
        %v5546 = vsub.s32 %v5543, %v5545
        %v5547 = vrot.slane %v5533, %v5546
        %v5548 = vcombine.high %v5547, %v5547
        %v5549 = vcombine.high %v5292, %v5292
        %v5551 = vunpack.c.l.s4 1983009808
        %v5552 = vunpack.c.0.s8 %v5551
        %v5553 = vlaneseq
        %v5554 = vshrl.u32 %v5553, 7
        %v5555 = vsub.s32 %v5552, %v5554
        %v5556 = vrot.slane %v5292, %v5555
        %v5558 = vunpack.c.l.s4 1983009808
        %v5559 = vunpack.c.0.s8 %v5558
        %v5560 = vlaneseq
        %v5561 = vshrl.u32 %v5560, 7
        %v5562 = vsub.s32 %v5559, %v5561
        %v5563 = vrot.slane %v5549, %v5562
        %v5564 = vcombine.high %v5556, %v5556
        %v5565 = vcombine.high %v5563, %v5563
        %v5566 = vcombine.high %v5293, %v5293
        %v5568 = vunpack.c.l.s4 1983009808
        %v5569 = vunpack.c.0.s8 %v5568
        %v5570 = vlaneseq
        %v5571 = vshrl.u32 %v5570, 7
        %v5572 = vsub.s32 %v5569, %v5571
        %v5573 = vrot.slane %v5293, %v5572
        %v5575 = vunpack.c.l.s4 1983009808
        %v5576 = vunpack.c.0.s8 %v5575
        %v5577 = vlaneseq
        %v5578 = vshrl.u32 %v5577, 7
        %v5579 = vsub.s32 %v5576, %v5578
        %v5580 = vrot.slane %v5566, %v5579
        %v5581 = vcombine.high %v5573, %v5573
        %v5582 = vcombine.high %v5580, %v5580
        %v5583 = vcombine.high %v5294, %v5294
        %v5585 = vunpack.c.l.s4 1983009808
        %v5586 = vunpack.c.0.s8 %v5585
        %v5587 = vlaneseq
        %v5588 = vshrl.u32 %v5587, 7
        %v5589 = vsub.s32 %v5586, %v5588
        %v5590 = vrot.slane %v5294, %v5589
        %v5592 = vunpack.c.l.s4 1983009808
        %v5593 = vunpack.c.0.s8 %v5592
        %v5594 = vlaneseq
        %v5595 = vshrl.u32 %v5594, 7
        %v5596 = vsub.s32 %v5593, %v5595
        %v5597 = vrot.slane %v5583, %v5596
        %v5598 = vcombine.high %v5590, %v5590
        %v5599 = vcombine.high %v5597, %v5597
        %v5600 = vcombine.high %v5295, %v5295
        %v5602 = vunpack.c.l.s4 1983009808
        %v5603 = vunpack.c.0.s8 %v5602
        %v5604 = vlaneseq
        %v5605 = vshrl.u32 %v5604, 7
        %v5606 = vsub.s32 %v5603, %v5605
        %v5607 = vrot.slane %v5295, %v5606
        %v5609 = vunpack.c.l.s4 1983009808
        %v5610 = vunpack.c.0.s8 %v5609
        %v5611 = vlaneseq
        %v5612 = vshrl.u32 %v5611, 7
        %v5613 = vsub.s32 %v5610, %v5612
        %v5614 = vrot.slane %v5600, %v5613
        %v5615 = vcombine.high %v5607, %v5607
        %v5680 = vld [vmem:[%s5] sm:$0x1]
        %v5682 = vlaneseq
        %v5683 = vshrl.u32 %v5682, 7
        %v5684 = vsub.s32 0, %v5683
        %v5685 = vrot.slane %v5680, %v5684
        %v5686 = vcombine.high %v5685, %v5685
        %v5688 = vunpack.c.l.s4 1983009808
        %v5689 = vunpack.c.0.s8 %v5688
        %v5690 = vlaneseq
        %v5691 = vshrl.u32 %v5690, 7
        %v5692 = vsub.s32 %v5689, %v5691
        %v5693 = vrot.slane %v5685, %v5692
        %v5695 = vunpack.c.l.s4 1983009808
        %v5696 = vunpack.c.0.s8 %v5695
        %v5697 = vlaneseq
        %v5698 = vshrl.u32 %v5697, 7
        %v5699 = vsub.s32 %v5696, %v5698
        %v5700 = vrot.slane %v5686, %v5699
        %v5701 = vcombine.high %v5693, %v5693
        %v5702 = vcombine.high %v5700, %v5700
        %v5707 = vadd.f32 %v5321, %v5693
        %v5708 = vadd.f32 %v5329, %v5701
        %v5709 = vadd.f32 %v5328, %v5700
        %v5710 = vadd.f32 %v5330, %v5702
        %v5711 = vadd.f32 %v5338, %v5693
        %v5712 = vadd.f32 %v5346, %v5701
        %v5713 = vadd.f32 %v5345, %v5700
        %v5714 = vadd.f32 %v5347, %v5702
        %v5715 = vadd.f32 %v5363, %v5693
        %v5716 = vadd.f32 %v5362, %v5701
        %v5717 = vadd.f32 %v5364, %v5700
        %v5718 = vadd.f32 %v5372, %v5702
        %v5719 = vadd.f32 %v5380, %v5693
        %v5720 = vadd.f32 %v5379, %v5701
        %v5721 = vadd.f32 %v5381, %v5700
        %v5722 = vadd.f32 %v5389, %v5702
        %v5723 = vadd.f32 %v5396, %v5693
        %v5724 = vadd.f32 %v5397, %v5701
        %v5725 = vadd.f32 %v5405, %v5700
        %v5726 = vadd.f32 %v5413, %v5702
        %v5727 = vadd.f32 %v5412, %v5693
        %v5728 = vadd.f32 %v5414, %v5701
        %v5729 = vadd.f32 %v5422, %v5700
        %v5730 = vadd.f32 %v5430, %v5702
        %v5731 = vadd.f32 %v5431, %v5693
        %v5732 = vadd.f32 %v5439, %v5701
        %v5733 = vadd.f32 %v5447, %v5700
        %v5734 = vadd.f32 %v5446, %v5702
        %v5735 = vadd.f32 %v5448, %v5693
        %v5736 = vadd.f32 %v5456, %v5701
        %v5737 = vadd.f32 %v5464, %v5700
        %v5738 = vadd.f32 %v5463, %v5702
        %v5739 = vadd.f32 %v5472, %v5693
        %v5740 = vadd.f32 %v5480, %v5701
        %v5741 = vadd.f32 %v5479, %v5700
        %v5742 = vadd.f32 %v5481, %v5702
        %v5743 = vadd.f32 %v5489, %v5693
        %v5744 = vadd.f32 %v5497, %v5701
        %v5745 = vadd.f32 %v5496, %v5700
        %v5746 = vadd.f32 %v5498, %v5702
        %v5747 = vadd.f32 %v5514, %v5693
        %v5748 = vadd.f32 %v5513, %v5701
        %v5749 = vadd.f32 %v5515, %v5700
        %v5750 = vadd.f32 %v5523, %v5702
        %v5751 = vadd.f32 %v5531, %v5693
        %v5752 = vadd.f32 %v5530, %v5701
        %v5753 = vadd.f32 %v5532, %v5700
        %v5754 = vadd.f32 %v5540, %v5702
        %v5755 = vadd.f32 %v5547, %v5693
        %v5756 = vadd.f32 %v5548, %v5701
        %v5757 = vadd.f32 %v5556, %v5700
        %v5758 = vadd.f32 %v5564, %v5702
        %v5759 = vadd.f32 %v5563, %v5693
        %v5760 = vadd.f32 %v5565, %v5701
        %v5761 = vadd.f32 %v5573, %v5700
        %v5762 = vadd.f32 %v5581, %v5702
        %v5763 = vadd.f32 %v5582, %v5693
        %v5764 = vadd.f32 %v5590, %v5701
        %v5765 = vadd.f32 %v5598, %v5700
        %v5766 = vadd.f32 %v5597, %v5702
        %v5767 = vadd.f32 %v5599, %v5693
        %v5768 = vadd.f32 %v5607, %v5701
        %v5769 = vadd.f32 %v5615, %v5700
        %v5770 = vadd.f32 %v5614, %v5702
        %v5771 = vmax.f32 %v5707, 0.0
        %v5772 = vmax.f32 %v5708, 0.0
        %v5773 = vmax.f32 %v5709, 0.0
        %v5774 = vmax.f32 %v5710, 0.0
        %v5775 = vmax.f32 %v5711, 0.0
        %v5776 = vmax.f32 %v5712, 0.0
        %v5777 = vmax.f32 %v5713, 0.0
        %v5778 = vmax.f32 %v5714, 0.0
        %v5779 = vmax.f32 %v5715, 0.0
        %v5780 = vmax.f32 %v5716, 0.0
        %v5781 = vmax.f32 %v5717, 0.0
        %v5782 = vmax.f32 %v5718, 0.0
        %v5783 = vmax.f32 %v5719, 0.0
        %v5784 = vmax.f32 %v5720, 0.0
        %v5785 = vmax.f32 %v5721, 0.0
        %v5786 = vmax.f32 %v5722, 0.0
        %v5787 = vmax.f32 %v5723, 0.0
        %v5788 = vmax.f32 %v5724, 0.0
        %v5789 = vmax.f32 %v5725, 0.0
        %v5790 = vmax.f32 %v5726, 0.0
        %v5791 = vmax.f32 %v5727, 0.0
        %v5792 = vmax.f32 %v5728, 0.0
        %v5793 = vmax.f32 %v5729, 0.0
        %v5794 = vmax.f32 %v5730, 0.0
        %v5795 = vmax.f32 %v5731, 0.0
        %v5796 = vmax.f32 %v5732, 0.0
        %v5797 = vmax.f32 %v5733, 0.0
        %v5798 = vmax.f32 %v5734, 0.0
        %v5799 = vmax.f32 %v5735, 0.0
        %v5800 = vmax.f32 %v5736, 0.0
        %v5801 = vmax.f32 %v5737, 0.0
        %v5802 = vmax.f32 %v5738, 0.0
        %v5803 = vmax.f32 %v5739, 0.0
        %v5804 = vmax.f32 %v5740, 0.0
        %v5805 = vmax.f32 %v5741, 0.0
        %v5806 = vmax.f32 %v5742, 0.0
        %v5807 = vmax.f32 %v5743, 0.0
        %v5808 = vmax.f32 %v5744, 0.0
        %v5809 = vmax.f32 %v5745, 0.0
        %v5810 = vmax.f32 %v5746, 0.0
        %v5811 = vmax.f32 %v5747, 0.0
        %v5812 = vmax.f32 %v5748, 0.0
        %v5813 = vmax.f32 %v5749, 0.0
        %v5814 = vmax.f32 %v5750, 0.0
        %v5815 = vmax.f32 %v5751, 0.0
        %v5816 = vmax.f32 %v5752, 0.0
        %v5817 = vmax.f32 %v5753, 0.0
        %v5818 = vmax.f32 %v5754, 0.0
        %v5819 = vmax.f32 %v5755, 0.0
        %v5820 = vmax.f32 %v5756, 0.0
        %v5821 = vmax.f32 %v5757, 0.0
        %v5822 = vmax.f32 %v5758, 0.0
        %v5823 = vmax.f32 %v5759, 0.0
        %v5824 = vmax.f32 %v5760, 0.0
        %v5825 = vmax.f32 %v5761, 0.0
        %v5826 = vmax.f32 %v5762, 0.0
        %v5827 = vmax.f32 %v5763, 0.0
        %v5828 = vmax.f32 %v5764, 0.0
        %v5829 = vmax.f32 %v5765, 0.0
        %v5830 = vmax.f32 %v5766, 0.0
        %v5831 = vmax.f32 %v5767, 0.0
        %v5832 = vmax.f32 %v5768, 0.0
        %v5833 = vmax.f32 %v5769, 0.0
        %v5834 = vmax.f32 %v5770, 0.0
        %v5899 = vcombine.low %v5771, %v5772
        %v5900 = vcombine.low %v5773, %v5774
        %v5902 = vunpack.c.l.s4 1983009808
        %v5903 = vunpack.c.0.s8 %v5902
        %v5904 = vlaneseq
        %v5905 = vshrl.u32 %v5904, 7
        %v5906 = vsub.s32 %v5903, %v5905
        %v5907 = vrot.slane %v5899, %v5906
        %v5909 = vunpack.c.l.s4 1983009808
        %v5910 = vunpack.c.0.s8 %v5909
        %v5911 = vlaneseq
        %v5912 = vshrl.u32 %v5911, 7
        %v5913 = vsub.s32 %v5910, %v5912
        %v5914 = vrot.slane %v5900, %v5913
        %v5915 = vcombine.low %v5907, %v5914
        %v5916 = vcombine.low %v5775, %v5776
        %v5917 = vcombine.low %v5777, %v5778
        %v5919 = vunpack.c.l.s4 1983009808
        %v5920 = vunpack.c.0.s8 %v5919
        %v5921 = vlaneseq
        %v5922 = vshrl.u32 %v5921, 7
        %v5923 = vsub.s32 %v5920, %v5922
        %v5924 = vrot.slane %v5916, %v5923
        %v5926 = vunpack.c.l.s4 1983009808
        %v5927 = vunpack.c.0.s8 %v5926
        %v5928 = vlaneseq
        %v5929 = vshrl.u32 %v5928, 7
        %v5930 = vsub.s32 %v5927, %v5929
        %v5931 = vrot.slane %v5917, %v5930
        %v5932 = vcombine.low %v5924, %v5931
        %v5933 = vcombine.low %v5779, %v5780
        %v5934 = vcombine.low %v5781, %v5782
        %v5936 = vunpack.c.l.s4 1983009808
        %v5937 = vunpack.c.0.s8 %v5936
        %v5938 = vlaneseq
        %v5939 = vshrl.u32 %v5938, 7
        %v5940 = vsub.s32 %v5937, %v5939
        %v5941 = vrot.slane %v5933, %v5940
        %v5943 = vunpack.c.l.s4 1983009808
        %v5944 = vunpack.c.0.s8 %v5943
        %v5945 = vlaneseq
        %v5946 = vshrl.u32 %v5945, 7
        %v5947 = vsub.s32 %v5944, %v5946
        %v5948 = vrot.slane %v5934, %v5947
        %v5949 = vcombine.low %v5941, %v5948
        %v5950 = vcombine.low %v5783, %v5784
        %v5951 = vcombine.low %v5785, %v5786
        %v5953 = vunpack.c.l.s4 1983009808
        %v5954 = vunpack.c.0.s8 %v5953
        %v5955 = vlaneseq
        %v5956 = vshrl.u32 %v5955, 7
        %v5957 = vsub.s32 %v5954, %v5956
        %v5958 = vrot.slane %v5950, %v5957
        %v5960 = vunpack.c.l.s4 1983009808
        %v5961 = vunpack.c.0.s8 %v5960
        %v5962 = vlaneseq
        %v5963 = vshrl.u32 %v5962, 7
        %v5964 = vsub.s32 %v5961, %v5963
        %v5965 = vrot.slane %v5951, %v5964
        %v5966 = vcombine.low %v5958, %v5965
        %v5967 = vcombine.low %v5787, %v5788
        %v5968 = vcombine.low %v5789, %v5790
        %v5970 = vunpack.c.l.s4 1983009808
        %v5971 = vunpack.c.0.s8 %v5970
        %v5972 = vlaneseq
        %v5973 = vshrl.u32 %v5972, 7
        %v5974 = vsub.s32 %v5971, %v5973
        %v5975 = vrot.slane %v5967, %v5974
        %v5977 = vunpack.c.l.s4 1983009808
        %v5978 = vunpack.c.0.s8 %v5977
        %v5979 = vlaneseq
        %v5980 = vshrl.u32 %v5979, 7
        %v5981 = vsub.s32 %v5978, %v5980
        %v5982 = vrot.slane %v5968, %v5981
        %v5983 = vcombine.low %v5975, %v5982
        %v5984 = vcombine.low %v5791, %v5792
        %v5985 = vcombine.low %v5793, %v5794
        %v5987 = vunpack.c.l.s4 1983009808
        %v5988 = vunpack.c.0.s8 %v5987
        %v5989 = vlaneseq
        %v5990 = vshrl.u32 %v5989, 7
        %v5991 = vsub.s32 %v5988, %v5990
        %v5992 = vrot.slane %v5984, %v5991
        %v5994 = vunpack.c.l.s4 1983009808
        %v5995 = vunpack.c.0.s8 %v5994
        %v5996 = vlaneseq
        %v5997 = vshrl.u32 %v5996, 7
        %v5998 = vsub.s32 %v5995, %v5997
        %v5999 = vrot.slane %v5985, %v5998
        %v6000 = vcombine.low %v5992, %v5999
        %v6001 = vcombine.low %v5795, %v5796
        %v6002 = vcombine.low %v5797, %v5798
        %v6004 = vunpack.c.l.s4 1983009808
        %v6005 = vunpack.c.0.s8 %v6004
        %v6006 = vlaneseq
        %v6007 = vshrl.u32 %v6006, 7
        %v6008 = vsub.s32 %v6005, %v6007
        %v6009 = vrot.slane %v6001, %v6008
        %v6011 = vunpack.c.l.s4 1983009808
        %v6012 = vunpack.c.0.s8 %v6011
        %v6013 = vlaneseq
        %v6014 = vshrl.u32 %v6013, 7
        %v6015 = vsub.s32 %v6012, %v6014
        %v6016 = vrot.slane %v6002, %v6015
        %v6017 = vcombine.low %v6009, %v6016
        %v6018 = vcombine.low %v5799, %v5800
        %v6019 = vcombine.low %v5801, %v5802
        %v6021 = vunpack.c.l.s4 1983009808
        %v6022 = vunpack.c.0.s8 %v6021
        %v6023 = vlaneseq
        %v6024 = vshrl.u32 %v6023, 7
        %v6025 = vsub.s32 %v6022, %v6024
        %v6026 = vrot.slane %v6018, %v6025
        %v6028 = vunpack.c.l.s4 1983009808
        %v6029 = vunpack.c.0.s8 %v6028
        %v6030 = vlaneseq
        %v6031 = vshrl.u32 %v6030, 7
        %v6032 = vsub.s32 %v6029, %v6031
        %v6033 = vrot.slane %v6019, %v6032
        %v6034 = vcombine.low %v6026, %v6033
        %v6035 = vcombine.low %v5803, %v5804
        %v6036 = vcombine.low %v5805, %v5806
        %v6038 = vunpack.c.l.s4 1983009808
        %v6039 = vunpack.c.0.s8 %v6038
        %v6040 = vlaneseq
        %v6041 = vshrl.u32 %v6040, 7
        %v6042 = vsub.s32 %v6039, %v6041
        %v6043 = vrot.slane %v6035, %v6042
        %v6045 = vunpack.c.l.s4 1983009808
        %v6046 = vunpack.c.0.s8 %v6045
        %v6047 = vlaneseq
        %v6048 = vshrl.u32 %v6047, 7
        %v6049 = vsub.s32 %v6046, %v6048
        %v6050 = vrot.slane %v6036, %v6049
        %v6051 = vcombine.low %v6043, %v6050
        %v6052 = vcombine.low %v5807, %v5808
        %v6053 = vcombine.low %v5809, %v5810
        %v6055 = vunpack.c.l.s4 1983009808
        %v6056 = vunpack.c.0.s8 %v6055
        %v6057 = vlaneseq
        %v6058 = vshrl.u32 %v6057, 7
        %v6059 = vsub.s32 %v6056, %v6058
        %v6060 = vrot.slane %v6052, %v6059
        %v6062 = vunpack.c.l.s4 1983009808
        %v6063 = vunpack.c.0.s8 %v6062
        %v6064 = vlaneseq
        %v6065 = vshrl.u32 %v6064, 7
        %v6066 = vsub.s32 %v6063, %v6065
        %v6067 = vrot.slane %v6053, %v6066
        %v6068 = vcombine.low %v6060, %v6067
        %v6069 = vcombine.low %v5811, %v5812
        %v6070 = vcombine.low %v5813, %v5814
        %v6072 = vunpack.c.l.s4 1983009808
        %v6073 = vunpack.c.0.s8 %v6072
        %v6074 = vlaneseq
        %v6075 = vshrl.u32 %v6074, 7
        %v6076 = vsub.s32 %v6073, %v6075
        %v6077 = vrot.slane %v6069, %v6076
        %v6079 = vunpack.c.l.s4 1983009808
        %v6080 = vunpack.c.0.s8 %v6079
        %v6081 = vlaneseq
        %v6082 = vshrl.u32 %v6081, 7
        %v6083 = vsub.s32 %v6080, %v6082
        %v6084 = vrot.slane %v6070, %v6083
        %v6085 = vcombine.low %v6077, %v6084
        %v6086 = vcombine.low %v5815, %v5816
        %v6087 = vcombine.low %v5817, %v5818
        %v6089 = vunpack.c.l.s4 1983009808
        %v6090 = vunpack.c.0.s8 %v6089
        %v6091 = vlaneseq
        %v6092 = vshrl.u32 %v6091, 7
        %v6093 = vsub.s32 %v6090, %v6092
        %v6094 = vrot.slane %v6086, %v6093
        %v6096 = vunpack.c.l.s4 1983009808
        %v6097 = vunpack.c.0.s8 %v6096
        %v6098 = vlaneseq
        %v6099 = vshrl.u32 %v6098, 7
        %v6100 = vsub.s32 %v6097, %v6099
        %v6101 = vrot.slane %v6087, %v6100
        %v6102 = vcombine.low %v6094, %v6101
        %v6103 = vcombine.low %v5819, %v5820
        %v6104 = vcombine.low %v5821, %v5822
        %v6106 = vunpack.c.l.s4 1983009808
        %v6107 = vunpack.c.0.s8 %v6106
        %v6108 = vlaneseq
        %v6109 = vshrl.u32 %v6108, 7
        %v6110 = vsub.s32 %v6107, %v6109
        %v6111 = vrot.slane %v6103, %v6110
        %v6113 = vunpack.c.l.s4 1983009808
        %v6114 = vunpack.c.0.s8 %v6113
        %v6115 = vlaneseq
        %v6116 = vshrl.u32 %v6115, 7
        %v6117 = vsub.s32 %v6114, %v6116
        %v6118 = vrot.slane %v6104, %v6117
        %v6119 = vcombine.low %v6111, %v6118
        %v6120 = vcombine.low %v5823, %v5824
        %v6121 = vcombine.low %v5825, %v5826
        %v6123 = vunpack.c.l.s4 1983009808
        %v6124 = vunpack.c.0.s8 %v6123
        %v6125 = vlaneseq
        %v6126 = vshrl.u32 %v6125, 7
        %v6127 = vsub.s32 %v6124, %v6126
        %v6128 = vrot.slane %v6120, %v6127
        %v6130 = vunpack.c.l.s4 1983009808
        %v6131 = vunpack.c.0.s8 %v6130
        %v6132 = vlaneseq
        %v6133 = vshrl.u32 %v6132, 7
        %v6134 = vsub.s32 %v6131, %v6133
        %v6135 = vrot.slane %v6121, %v6134
        %v6136 = vcombine.low %v6128, %v6135
        %v6137 = vcombine.low %v5827, %v5828
        %v6138 = vcombine.low %v5829, %v5830
        %v6140 = vunpack.c.l.s4 1983009808
        %v6141 = vunpack.c.0.s8 %v6140
        %v6142 = vlaneseq
        %v6143 = vshrl.u32 %v6142, 7
        %v6144 = vsub.s32 %v6141, %v6143
        %v6145 = vrot.slane %v6137, %v6144
        %v6147 = vunpack.c.l.s4 1983009808
        %v6148 = vunpack.c.0.s8 %v6147
        %v6149 = vlaneseq
        %v6150 = vshrl.u32 %v6149, 7
        %v6151 = vsub.s32 %v6148, %v6150
        %v6152 = vrot.slane %v6138, %v6151
        %v6153 = vcombine.low %v6145, %v6152
        %v6154 = vcombine.low %v5831, %v5832
        %v6155 = vcombine.low %v5833, %v5834
        %v6157 = vunpack.c.l.s4 1983009808
        %v6158 = vunpack.c.0.s8 %v6157
        %v6159 = vlaneseq
        %v6160 = vshrl.u32 %v6159, 7
        %v6161 = vsub.s32 %v6158, %v6160
        %v6162 = vrot.slane %v6154, %v6161
        %v6164 = vunpack.c.l.s4 1983009808
        %v6165 = vunpack.c.0.s8 %v6164
        %v6166 = vlaneseq
        %v6167 = vshrl.u32 %v6166, 7
        %v6168 = vsub.s32 %v6165, %v6167
        %v6169 = vrot.slane %v6155, %v6168
        %v6170 = vcombine.low %v6162, %v6169
        %v6187 = vpack.c.bf16 %v5932, %v5915
        %v6188 = vpack.c.bf16 %v5966, %v5949
        %v6189 = vpack.c.bf16 %v6000, %v5983
        %v6190 = vpack.c.bf16 %v6034, %v6017
        %v6191 = vpack.c.bf16 %v6068, %v6051
        %v6192 = vpack.c.bf16 %v6102, %v6085
        %v6193 = vpack.c.bf16 %v6136, %v6119
        %v6194 = vpack.c.bf16 %v6170, %v6153
        %v6195 = vld [vmem:[%s3] sm:$0xf]
        %v6196 = vld [vmem:[%s3 + $0x4] sm:$0xf]
        %v6197 = vld [vmem:[%s3 + $0x8] sm:$0xf]
        %v6198 = vld [vmem:[%s3 + $0xc] sm:$0xf]
        %v6199 = vld [vmem:[%s3 + $0x10] sm:$0xf]
        %v6200 = vld [vmem:[%s3 + $0x14] sm:$0xf]
        %v6201 = vld [vmem:[%s3 + $0x18] sm:$0xf]
        %v6202 = vld [vmem:[%s3 + $0x1c] sm:$0xf]
        %v6203 = vld [vmem:[%s3 + $0x20] sm:$0xf]
        %v6204 = vld [vmem:[%s3 + $0x24] sm:$0xf]
        %v6205 = vld [vmem:[%s3 + $0x28] sm:$0xf]
        %v6206 = vld [vmem:[%s3 + $0x2c] sm:$0xf]
        %v6207 = vld [vmem:[%s3 + $0x30] sm:$0xf]
        %v6208 = vld [vmem:[%s3 + $0x34] sm:$0xf]
        %v6209 = vld [vmem:[%s3 + $0x38] sm:$0xf]
        %v6210 = vld [vmem:[%s3 + $0x3c] sm:$0xf]
        %v6211 = vld [vmem:[%s276] sm:$0xf]
        %v6212 = vld [vmem:[%s276 + $0x4] sm:$0xf]
        %v6213 = vld [vmem:[%s276 + $0x8] sm:$0xf]
        %v6214 = vld [vmem:[%s276 + $0xc] sm:$0xf]
        %v6215 = vld [vmem:[%s276 + $0x10] sm:$0xf]
        %v6216 = vld [vmem:[%s276 + $0x14] sm:$0xf]
        %v6217 = vld [vmem:[%s276 + $0x18] sm:$0xf]
        %v6218 = vld [vmem:[%s276 + $0x1c] sm:$0xf]
        %v6219 = vld [vmem:[%s276 + $0x20] sm:$0xf]
        %v6220 = vld [vmem:[%s276 + $0x24] sm:$0xf]
        %v6221 = vld [vmem:[%s276 + $0x28] sm:$0xf]
        %v6222 = vld [vmem:[%s276 + $0x2c] sm:$0xf]
        %v6223 = vld [vmem:[%s276 + $0x30] sm:$0xf]
        %v6224 = vld [vmem:[%s276 + $0x34] sm:$0xf]
        %v6225 = vld [vmem:[%s276 + $0x38] sm:$0xf]
        %v6226 = vld [vmem:[%s276 + $0x3c] sm:$0xf]
        %v6227 = vunpack.c.l.bf16 %v6211
        %v6228 = vunpack.c.l.bf16 %v6212
        %v6229 = vunpack.c.l.bf16 %v6213
        %v6230 = vunpack.c.l.bf16 %v6214
        %v6231 = vunpack.c.l.bf16 %v6215
        %v6232 = vunpack.c.l.bf16 %v6216
        %v6233 = vunpack.c.l.bf16 %v6217
        %v6234 = vunpack.c.l.bf16 %v6218
        %v6235 = vunpack.c.l.bf16 %v6219
        %v6236 = vunpack.c.l.bf16 %v6220
        %v6237 = vunpack.c.l.bf16 %v6221
        %v6238 = vunpack.c.l.bf16 %v6222
        %v6239 = vunpack.c.l.bf16 %v6223
        %v6240 = vunpack.c.l.bf16 %v6224
        %v6241 = vunpack.c.l.bf16 %v6225
        %v6242 = vunpack.c.l.bf16 %v6226
        %v6243 = vld [vmem:[%s6] sm:$0x1]
        %v6245 = vlaneseq
        %v6246 = vshrl.u32 %v6245, 7
        %v6247 = vsub.s32 0, %v6246
        %v6248 = vrot.slane %v6243, %v6247
        %v6266 = vunpack.c.l.b16 %v6195
        %v6267 = vunpack.c.l.b16 %v6196
        %v6268 = vunpack.c.l.b16 %v6197
        %v6269 = vunpack.c.l.b16 %v6198
        %v6270 = vunpack.c.l.b16 %v6199
        %v6271 = vunpack.c.l.b16 %v6200
        %v6272 = vunpack.c.l.b16 %v6201
        %v6273 = vunpack.c.l.b16 %v6202
        %v6274 = vunpack.c.l.b16 %v6203
        %v6275 = vunpack.c.l.b16 %v6204
        %v6276 = vunpack.c.l.b16 %v6205
        %v6277 = vunpack.c.l.b16 %v6206
        %v6278 = vunpack.c.l.b16 %v6207
        %v6279 = vunpack.c.l.b16 %v6208
        %v6280 = vunpack.c.l.b16 %v6209
        %v6281 = vunpack.c.l.b16 %v6210
        %v6282 = vpack.c.b16 %v6267, %v6266
        %v6283 = vpack.c.b16 %v6269, %v6268
        %v6284 = vpack.c.b16 %v6271, %v6270
        %v6285 = vpack.c.b16 %v6273, %v6272
        %v6286 = vpack.c.b16 %v6275, %v6274
        %v6287 = vpack.c.b16 %v6277, %v6276
        %v6288 = vpack.c.b16 %v6279, %v6278
        %v6289 = vpack.c.b16 %v6281, %v6280
        %6298 = vmatprep.subr.bf16.mxu0 0
        %6299 = vmatpush1.bf16.msra.mxu0 %v6282
        %6300 = vmatprep.subr.bf16.mxu0 0
        %6301 = vmatpush1.bf16.msra.mxu0 %v6283
        %6302 = vmatprep.subr.bf16.mxu0 0
        %6303 = vmatpush1.bf16.msra.mxu0 %v6284
        %6304 = vmatprep.subr.bf16.mxu0 0
        %6305 = vmatpush1.bf16.msra.mxu0 %v6285
        %6306 = vmatprep.subr.bf16.mxu0 0
        %6307 = vmatpush1.bf16.msra.mxu0 %v6286
        %6308 = vmatprep.subr.bf16.mxu0 0
        %6309 = vmatpush1.bf16.msra.mxu0 %v6287
        %6310 = vmatprep.subr.bf16.mxu0 0
        %6311 = vmatpush1.bf16.msra.mxu0 %v6288
        %6312 = vmatprep.subr.bf16.mxu0 0
        %6313 = vmatpush1.bf16.msra.mxu0 %v6289
        %6314 = vmatprep.subr.bf16.mxu0 0
        %6315 = vmatpush1.bf16.msra.mxu0 0
        %6316 = vmatprep.subr.bf16.mxu0 0
        %6317 = vmatpush1.bf16.msra.mxu0 0
        %6318 = vmatprep.subr.bf16.mxu0 0
        %6319 = vmatpush1.bf16.msra.mxu0 0
        %6320 = vmatprep.subr.bf16.mxu0 0
        %6321 = vmatpush1.bf16.msra.mxu0 0
        %6322 = vmatprep.subr.bf16.mxu0 0
        %6323 = vmatpush1.bf16.msra.mxu0 0
        %6324 = vmatprep.subr.bf16.mxu0 0
        %6325 = vmatpush1.bf16.msra.mxu0 0
        %6326 = vmatprep.subr.bf16.mxu0 0
        %6327 = vmatpush1.bf16.msra.mxu0 0
        %6328 = vmatprep.subr.bf16.mxu0 0
        %6329 = vmatpush1.bf16.msra.mxu0 0
        %6330 = vmatprep.mubr.bf16.mxu0 0
        %6331 = vmatmul.mubr.bf16.gmra.mrb[0].mxu0 %v6187
        %v6332 = vpop.f32.mrb[0].mxu0
        %v6333 = vadd.f32 %v6248, %v6332
        %v6334 = vpop.f32.mrb[0].mxu0
        %v6335 = vpop.f32.mrb[0].mxu0
        %v6336 = vadd.f32 %v6248, %v6335
        %v6337 = vpop.f32.mrb[0].mxu0
        %6338 = vmatprep.mubr.bf16.mxu0 0
        %6339 = vmatmul.mubr.bf16.gmra.mrb[0].mxu0 %v6188
        %v6340 = vpop.f32.mrb[0].mxu0
        %v6341 = vadd.f32 %v6248, %v6340
        %v6342 = vpop.f32.mrb[0].mxu0
        %v6343 = vpop.f32.mrb[0].mxu0
        %v6344 = vadd.f32 %v6248, %v6343
        %v6345 = vpop.f32.mrb[0].mxu0
        %6346 = vmatprep.mubr.bf16.mxu0 0
        %6347 = vmatmul.mubr.bf16.gmra.mrb[0].mxu0 %v6189
        %v6348 = vpop.f32.mrb[0].mxu0
        %v6349 = vadd.f32 %v6248, %v6348
        %v6350 = vpop.f32.mrb[0].mxu0
        %v6351 = vpop.f32.mrb[0].mxu0
        %v6352 = vadd.f32 %v6248, %v6351
        %v6353 = vpop.f32.mrb[0].mxu0
        %6354 = vmatprep.mubr.bf16.mxu0 0
        %6355 = vmatmul.mubr.bf16.gmra.mrb[0].mxu0 %v6190
        %v6356 = vpop.f32.mrb[0].mxu0
        %v6357 = vadd.f32 %v6248, %v6356
        %v6358 = vpop.f32.mrb[0].mxu0
        %v6359 = vpop.f32.mrb[0].mxu0
        %v6360 = vadd.f32 %v6248, %v6359
        %v6361 = vpop.f32.mrb[0].mxu0
        %6362 = vmatprep.mubr.bf16.mxu0 0
        %6363 = vmatmul.mubr.bf16.gmra.mrb[0].mxu0 %v6191
        %v6364 = vpop.f32.mrb[0].mxu0
        %v6365 = vadd.f32 %v6248, %v6364
        %v6366 = vpop.f32.mrb[0].mxu0
        %v6367 = vpop.f32.mrb[0].mxu0
        %v6368 = vadd.f32 %v6248, %v6367
        %v6369 = vpop.f32.mrb[0].mxu0
        %6370 = vmatprep.mubr.bf16.mxu0 0
        %6371 = vmatmul.mubr.bf16.gmra.mrb[0].mxu0 %v6192
        %v6372 = vpop.f32.mrb[0].mxu0
        %v6373 = vadd.f32 %v6248, %v6372
        %v6374 = vpop.f32.mrb[0].mxu0
        %v6375 = vpop.f32.mrb[0].mxu0
        %v6376 = vadd.f32 %v6248, %v6375
        %v6377 = vpop.f32.mrb[0].mxu0
        %6378 = vmatprep.mubr.bf16.mxu0 0
        %6379 = vmatmul.mubr.bf16.gmra.mrb[0].mxu0 %v6193
        %v6380 = vpop.f32.mrb[0].mxu0
        %v6381 = vadd.f32 %v6248, %v6380
        %v6382 = vpop.f32.mrb[0].mxu0
        %v6383 = vpop.f32.mrb[0].mxu0
        %v6384 = vadd.f32 %v6248, %v6383
        %v6385 = vpop.f32.mrb[0].mxu0
        %6386 = vmatprep.mubr.bf16.mxu0 0
        %6387 = vmatmul.mubr.bf16.gmra.mrb[0].mxu0 %v6194
        %v6388 = vpop.f32.mrb[0].mxu0
        %v6389 = vadd.f32 %v6248, %v6388
        %v6390 = vpop.f32.mrb[0].mxu0
        %v6391 = vpop.f32.mrb[0].mxu0
        %v6392 = vadd.f32 %v6248, %v6391
        %v6393 = vpop.f32.mrb[0].mxu0
        %6394 = vdwg.mxu0
        %v6395 = vadd.f32 %v6333, %v6227
        %v6396 = vadd.f32 %v6336, %v6228
        %v6397 = vadd.f32 %v6341, %v6229
        %v6398 = vadd.f32 %v6344, %v6230
        %v6399 = vadd.f32 %v6349, %v6231
        %v6400 = vadd.f32 %v6352, %v6232
        %v6401 = vadd.f32 %v6357, %v6233
        %v6402 = vadd.f32 %v6360, %v6234
        %v6403 = vadd.f32 %v6365, %v6235
        %v6404 = vadd.f32 %v6368, %v6236
        %v6405 = vadd.f32 %v6373, %v6237
        %v6406 = vadd.f32 %v6376, %v6238
        %v6407 = vadd.f32 %v6381, %v6239
        %v6408 = vadd.f32 %v6384, %v6240
        %v6409 = vadd.f32 %v6389, %v6241
        %v6410 = vadd.f32 %v6392, %v6242
        %v6411 = vmax.f32 %v6395, 0.0
        %v6412 = vmax.f32 %v6396, 0.0
        %v6413 = vmax.f32 %v6397, 0.0
        %v6414 = vmax.f32 %v6398, 0.0
        %v6415 = vmax.f32 %v6399, 0.0
        %v6416 = vmax.f32 %v6400, 0.0
        %v6417 = vmax.f32 %v6401, 0.0
        %v6418 = vmax.f32 %v6402, 0.0
        %v6419 = vmax.f32 %v6403, 0.0
        %v6420 = vmax.f32 %v6404, 0.0
        %v6421 = vmax.f32 %v6405, 0.0
        %v6422 = vmax.f32 %v6406, 0.0
        %v6423 = vmax.f32 %v6407, 0.0
        %v6424 = vmax.f32 %v6408, 0.0
        %v6425 = vmax.f32 %v6409, 0.0
        %v6426 = vmax.f32 %v6410, 0.0
        %v6427 = vpack.c.bf16 %v6412, %v6411
        %v6428 = vpack.c.bf16 %v6414, %v6413
        %v6429 = vpack.c.bf16 %v6416, %v6415
        %v6430 = vpack.c.bf16 %v6418, %v6417
        %v6431 = vpack.c.bf16 %v6420, %v6419
        %v6432 = vpack.c.bf16 %v6422, %v6421
        %v6433 = vpack.c.bf16 %v6424, %v6423
        %v6434 = vpack.c.bf16 %v6426, %v6425
        %v6443 = vunpack.c.l.b16 %v6427
        %v6444 = vunpack.c.h.b16 %v6427
        %v6445 = vunpack.c.l.b16 %v6428
        %v6446 = vunpack.c.h.b16 %v6428
        %v6447 = vunpack.c.l.b16 %v6429
        %v6448 = vunpack.c.h.b16 %v6429
        %v6449 = vunpack.c.l.b16 %v6430
        %v6450 = vunpack.c.h.b16 %v6430
        %v6451 = vunpack.c.l.b16 %v6431
        %v6452 = vunpack.c.h.b16 %v6431
        %v6453 = vunpack.c.l.b16 %v6432
        %v6454 = vunpack.c.h.b16 %v6432
        %v6455 = vunpack.c.l.b16 %v6433
        %v6456 = vunpack.c.h.b16 %v6433
        %v6457 = vunpack.c.l.b16 %v6434
        %v6458 = vunpack.c.h.b16 %v6434
        %v6459 = vpack.c.b16 %v6443, %v6443
        %v6460 = vpack.c.b16 %v6444, %v6444
        %v6461 = vpack.c.b16 %v6445, %v6445
        %v6462 = vpack.c.b16 %v6446, %v6446
        %v6463 = vpack.c.b16 %v6447, %v6447
        %v6464 = vpack.c.b16 %v6448, %v6448
        %v6465 = vpack.c.b16 %v6449, %v6449
        %v6466 = vpack.c.b16 %v6450, %v6450
        %v6467 = vpack.c.b16 %v6451, %v6451
        %v6468 = vpack.c.b16 %v6452, %v6452
        %v6469 = vpack.c.b16 %v6453, %v6453
        %v6470 = vpack.c.b16 %v6454, %v6454
        %v6471 = vpack.c.b16 %v6455, %v6455
        %v6472 = vpack.c.b16 %v6456, %v6456
        %v6473 = vpack.c.b16 %v6457, %v6457
        %v6474 = vpack.c.b16 %v6458, %v6458
        %6491 = vst [vmem:[%s271] sm:$0xf] %v6459
        %6492 = vst [vmem:[%s271 + $0x4] sm:$0xf] %v6460
        %6493 = vst [vmem:[%s271 + $0x8] sm:$0xf] %v6461
        %6494 = vst [vmem:[%s271 + $0xc] sm:$0xf] %v6462
        %6495 = vst [vmem:[%s271 + $0x10] sm:$0xf] %v6463
        %6496 = vst [vmem:[%s271 + $0x14] sm:$0xf] %v6464
        %6497 = vst [vmem:[%s271 + $0x18] sm:$0xf] %v6465
        %6498 = vst [vmem:[%s271 + $0x1c] sm:$0xf] %v6466
        %6499 = vst [vmem:[%s271 + $0x20] sm:$0xf] %v6467
        %6500 = vst [vmem:[%s271 + $0x24] sm:$0xf] %v6468
        %6501 = vst [vmem:[%s271 + $0x28] sm:$0xf] %v6469
        %6502 = vst [vmem:[%s271 + $0x2c] sm:$0xf] %v6470
        %6503 = vst [vmem:[%s271 + $0x30] sm:$0xf] %v6471
        %6504 = vst [vmem:[%s271 + $0x34] sm:$0xf] %v6472
        %6505 = vst [vmem:[%s271 + $0x38] sm:$0xf] %v6473
        %6506 = vst [vmem:[%s271 + $0x3c] sm:$0xf] %v6474
        %v6507 = vld [vmem:[#allocation2 + $0x48] sm:$0xf]
        %v6508 = vld [vmem:[#allocation2 + $0x4c] sm:$0xf]
        %v6509 = vld [vmem:[#allocation2 + $0x50] sm:$0xf]
        %v6510 = vld [vmem:[#allocation2 + $0x54] sm:$0xf]
        %v6511 = vld [vmem:[#allocation2 + $0x58] sm:$0xf]
        %v6512 = vld [vmem:[#allocation2 + $0x5c] sm:$0xf]
        %v6513 = vld [vmem:[#allocation2 + $0x60] sm:$0xf]
        %v6514 = vld [vmem:[#allocation2 + $0x64] sm:$0xf]
        %v6515 = vld [vmem:[#allocation2 + $0x68] sm:$0xf]
        %v6516 = vld [vmem:[#allocation2 + $0x6c] sm:$0xf]
        %v6517 = vld [vmem:[#allocation2 + $0x70] sm:$0xf]
        %v6518 = vld [vmem:[#allocation2 + $0x74] sm:$0xf]
        %v6519 = vld [vmem:[#allocation2 + $0x78] sm:$0xf]
        %v6520 = vld [vmem:[#allocation2 + $0x7c] sm:$0xf]
        %v6521 = vld [vmem:[#allocation2 + $0x80] sm:$0xf]
        %v6522 = vld [vmem:[#allocation2 + $0x84] sm:$0xf]
        %v6523 = vld [vmem:[#allocation2 + $0x88] sm:$0xf]
        %v6524 = vld [vmem:[#allocation2 + $0x8c] sm:$0xf]
        %v6525 = vld [vmem:[%s2] sm:$0xf]
        %v6526 = vld [vmem:[%s2 + $0x4] sm:$0xf]
        %v6527 = vld [vmem:[%s2 + $0x8] sm:$0xf]
        %v6528 = vld [vmem:[%s2 + $0xc] sm:$0xf]
        %v6529 = vld [vmem:[%s2 + $0x10] sm:$0xf]
        %v6530 = vld [vmem:[%s2 + $0x14] sm:$0xf]
        %v6531 = vld [vmem:[%s2 + $0x18] sm:$0xf]
        %v6532 = vld [vmem:[%s2 + $0x1c] sm:$0xf]
        %v6533 = vld [vmem:[%s2 + $0x20] sm:$0xf]
        %v6534 = vld [vmem:[%s2 + $0x24] sm:$0xf]
        %v6535 = vld [vmem:[%s2 + $0x28] sm:$0xf]
        %v6536 = vld [vmem:[%s2 + $0x2c] sm:$0xf]
        %v6537 = vld [vmem:[%s2 + $0x30] sm:$0xf]
        %v6538 = vld [vmem:[%s2 + $0x34] sm:$0xf]
        %v6539 = vld [vmem:[%s2 + $0x38] sm:$0xf]
        %v6540 = vld [vmem:[%s2 + $0x3c] sm:$0xf]
        %v6541 = vld [vmem:[#allocation2 + $0x90] sm:$0x1]
        %v6542 = vld [vmem:[%s3019] sm:$0xf]
        %v6543 = vld [vmem:[%s3019 + $0x4] sm:$0xf]
        %v6544 = vld [vmem:[%s3019 + $0x8] sm:$0xf]
        %v6545 = vld [vmem:[%s3019 + $0xc] sm:$0xf]
        %v6546 = vld [vmem:[%s3019 + $0x10] sm:$0xf]
        %v6547 = vld [vmem:[%s3019 + $0x14] sm:$0xf]
        %v6548 = vld [vmem:[%s3019 + $0x18] sm:$0xf]
        %v6549 = vld [vmem:[%s3019 + $0x1c] sm:$0xf]
        %v6550 = vld [vmem:[%s3019 + $0x20] sm:$0xf]
        %v6551 = vld [vmem:[%s3019 + $0x24] sm:$0xf]
        %v6552 = vld [vmem:[%s3019 + $0x28] sm:$0xf]
        %v6553 = vld [vmem:[%s3019 + $0x2c] sm:$0xf]
        %v6554 = vld [vmem:[%s3019 + $0x30] sm:$0xf]
        %v6555 = vld [vmem:[%s3019 + $0x34] sm:$0xf]
        %v6556 = vld [vmem:[%s3019 + $0x38] sm:$0xf]
        %v6557 = vld [vmem:[%s3019 + $0x3c] sm:$0xf]
        %v6577 = vunpack.c.l.b16 %v6507
        %v6578 = vunpack.c.l.b16 %v6508
        %v6579 = vunpack.c.l.b16 %v6509
        %v6580 = vunpack.c.l.b16 %v6510
        %v6581 = vunpack.c.l.b16 %v6511
        %v6582 = vunpack.c.l.b16 %v6512
        %v6583 = vunpack.c.l.b16 %v6513
        %v6584 = vunpack.c.l.b16 %v6514
        %v6585 = vunpack.c.l.b16 %v6515
        %v6586 = vunpack.c.l.b16 %v6516
        %v6587 = vunpack.c.l.b16 %v6517
        %v6588 = vunpack.c.l.b16 %v6518
        %v6589 = vunpack.c.l.b16 %v6519
        %v6590 = vunpack.c.l.b16 %v6520
        %v6591 = vunpack.c.l.b16 %v6521
        %v6592 = vunpack.c.l.b16 %v6522
        %v6593 = vunpack.c.l.b16 %v6523
        %v6594 = vunpack.c.l.b16 %v6524
        %v6595 = vunpack.c.l.b16 %v6541
        %v6596 = vpack.c.b16 %v6578, %v6577
        %v6597 = vpack.c.b16 %v6580, %v6579
        %v6598 = vpack.c.b16 %v6582, %v6581
        %v6599 = vpack.c.b16 %v6584, %v6583
        %v6600 = vpack.c.b16 %v6586, %v6585
        %v6601 = vpack.c.b16 %v6588, %v6587
        %v6602 = vpack.c.b16 %v6590, %v6589
        %v6603 = vpack.c.b16 %v6592, %v6591
        %v6604 = vpack.c.b16 %v6594, %v6593
        %v6605 = vpack.c.b16 %v6595, %v6595
        %v6607 = vshrl.u32 %v6596, 16
        %v6609 = vshll.u32 %v6596, 16
        %v6611 = vrot.slane %v6609, 1
        %v6612 = vor.u32 %v6607, %v6611
        %v6614 = vshll.u32 %v6597, 16
        %v6616 = vrot.slane %v6614, 1
        %v6617 = vsel %vm3084, %v6612, %v6616
        %v6618 = vshrl.u32 %v6597, 16
        %v6620 = vor.u32 %v6618, %v6616
        %v6622 = vshll.u32 %v6598, 16
        %v6624 = vrot.slane %v6622, 1
        %v6625 = vsel %vm3084, %v6620, %v6624
        %v6626 = vshrl.u32 %v6598, 16
        %v6628 = vor.u32 %v6626, %v6624
        %v6630 = vshll.u32 %v6599, 16
        %v6632 = vrot.slane %v6630, 1
        %v6633 = vsel %vm3084, %v6628, %v6632
        %v6634 = vshrl.u32 %v6599, 16
        %v6636 = vor.u32 %v6634, %v6632
        %v6638 = vshll.u32 %v6600, 16
        %v6640 = vrot.slane %v6638, 1
        %v6641 = vsel %vm3084, %v6636, %v6640
        %v6642 = vshrl.u32 %v6600, 16
        %v6644 = vor.u32 %v6642, %v6640
        %v6646 = vshll.u32 %v6601, 16
        %v6648 = vrot.slane %v6646, 1
        %v6649 = vsel %vm3084, %v6644, %v6648
        %v6650 = vshrl.u32 %v6601, 16
        %v6652 = vor.u32 %v6650, %v6648
        %v6654 = vshll.u32 %v6602, 16
        %v6656 = vrot.slane %v6654, 1
        %v6657 = vsel %vm3084, %v6652, %v6656
        %v6658 = vshrl.u32 %v6602, 16
        %v6660 = vor.u32 %v6658, %v6656
        %v6662 = vshll.u32 %v6603, 16
        %v6664 = vrot.slane %v6662, 1
        %v6665 = vsel %vm3084, %v6660, %v6664
        %v6666 = vshrl.u32 %v6603, 16
        %v6668 = vor.u32 %v6666, %v6664
        %v6670 = vshll.u32 %v6604, 16
        %v6672 = vrot.slane %v6670, 1
        %v6673 = vsel %vm3084, %v6668, %v6672
        %v6674 = vshrl.u32 %v6604, 16
        %v6676 = vor.u32 %v6674, %v6672
        %v6678 = vshll.u32 %v6605, 16
        %v6680 = vrot.slane %v6678, 1
        %v6681 = vsel %vm3084, %v6676, %v6680
        %v6707 = vunpack.c.l.b16 %v6542
        %v6708 = vunpack.c.l.b16 %v6543
        %v6709 = vunpack.c.l.b16 %v6544
        %v6710 = vunpack.c.l.b16 %v6545
        %v6711 = vunpack.c.l.b16 %v6546
        %v6712 = vunpack.c.l.b16 %v6547
        %v6713 = vunpack.c.l.b16 %v6548
        %v6714 = vunpack.c.l.b16 %v6549
        %v6715 = vunpack.c.l.b16 %v6550
        %v6716 = vunpack.c.l.b16 %v6551
        %v6717 = vunpack.c.l.b16 %v6552
        %v6718 = vunpack.c.l.b16 %v6553
        %v6719 = vunpack.c.l.b16 %v6554
        %v6720 = vunpack.c.l.b16 %v6555
        %v6721 = vunpack.c.l.b16 %v6556
        %v6722 = vunpack.c.l.b16 %v6557
        %v6723 = vpack.c.b16 %v6708, %v6707
        %v6724 = vpack.c.b16 %v6710, %v6709
        %v6725 = vpack.c.b16 %v6712, %v6711
        %v6726 = vpack.c.b16 %v6714, %v6713
        %v6727 = vpack.c.b16 %v6716, %v6715
        %v6728 = vpack.c.b16 %v6718, %v6717
        %v6729 = vpack.c.b16 %v6720, %v6719
        %v6730 = vpack.c.b16 %v6722, %v6721
        %6739 = vmatprep.subr.bf16.mxu0 0
        %6740 = vmatpush1.bf16.msra.mxu0 %v6723
        %6741 = vmatprep.subr.bf16.mxu0 0
        %6742 = vmatpush1.bf16.msra.mxu0 %v6724
        %6743 = vmatprep.subr.bf16.mxu0 0
        %6744 = vmatpush1.bf16.msra.mxu0 %v6725
        %6745 = vmatprep.subr.bf16.mxu0 0
        %6746 = vmatpush1.bf16.msra.mxu0 %v6726
        %6747 = vmatprep.subr.bf16.mxu0 0
        %6748 = vmatpush1.bf16.msra.mxu0 %v6727
        %6749 = vmatprep.subr.bf16.mxu0 0
        %6750 = vmatpush1.bf16.msra.mxu0 %v6728
        %6751 = vmatprep.subr.bf16.mxu0 0
        %6752 = vmatpush1.bf16.msra.mxu0 %v6729
        %6753 = vmatprep.subr.bf16.mxu0 0
        %6754 = vmatpush1.bf16.msra.mxu0 %v6730
        %6755 = vmatprep.subr.bf16.mxu0 0
        %6756 = vmatpush1.bf16.msra.mxu0 0
        %6757 = vmatprep.subr.bf16.mxu0 0
        %6758 = vmatpush1.bf16.msra.mxu0 0
        %6759 = vmatprep.subr.bf16.mxu0 0
        %6760 = vmatpush1.bf16.msra.mxu0 0
        %6761 = vmatprep.subr.bf16.mxu0 0
        %6762 = vmatpush1.bf16.msra.mxu0 0
        %6763 = vmatprep.subr.bf16.mxu0 0
        %6764 = vmatpush1.bf16.msra.mxu0 0
        %6765 = vmatprep.subr.bf16.mxu0 0
        %6766 = vmatpush1.bf16.msra.mxu0 0
        %6767 = vmatprep.subr.bf16.mxu0 0
        %6768 = vmatpush1.bf16.msra.mxu0 0
        %6769 = vmatprep.subr.bf16.mxu0 0
        %6770 = vmatpush1.bf16.msra.mxu0 0
        %6771 = vmatprep.mubr.bf16.mxu0 0
        %6772 = vmatmul.mubr.bf16.gmra.mrb[0].mxu0 %v6617
        %v6773 = vpop.f32.mrb[0].mxu0
        %v6774 = vadd.f32 0.0, %v6773
        %v6775 = vpop.f32.mrb[0].mxu0
        %v6776 = vpop.f32.mrb[0].mxu0
        %v6777 = vadd.f32 0.0, %v6776
        %v6778 = vpop.f32.mrb[0].mxu0
        %6779 = vmatprep.mubr.bf16.mxu0 0
        %6780 = vmatmul.mubr.bf16.gmra.mrb[0].mxu0 %v6625
        %v6781 = vpop.f32.mrb[0].mxu0
        %v6782 = vadd.f32 0.0, %v6781
        %v6783 = vpop.f32.mrb[0].mxu0
        %v6784 = vpop.f32.mrb[0].mxu0
        %v6785 = vadd.f32 0.0, %v6784
        %v6786 = vpop.f32.mrb[0].mxu0
        %6787 = vmatprep.mubr.bf16.mxu0 0
        %6788 = vmatmul.mubr.bf16.gmra.mrb[0].mxu0 %v6633
        %v6789 = vpop.f32.mrb[0].mxu0
        %v6790 = vadd.f32 0.0, %v6789
        %v6791 = vpop.f32.mrb[0].mxu0
        %v6792 = vpop.f32.mrb[0].mxu0
        %v6793 = vadd.f32 0.0, %v6792
        %v6794 = vpop.f32.mrb[0].mxu0
        %6795 = vmatprep.mubr.bf16.mxu0 0
        %6796 = vmatmul.mubr.bf16.gmra.mrb[0].mxu0 %v6641
        %v6797 = vpop.f32.mrb[0].mxu0
        %v6798 = vadd.f32 0.0, %v6797
        %v6799 = vpop.f32.mrb[0].mxu0
        %v6800 = vpop.f32.mrb[0].mxu0
        %v6801 = vadd.f32 0.0, %v6800
        %v6802 = vpop.f32.mrb[0].mxu0
        %6803 = vmatprep.mubr.bf16.mxu0 0
        %6804 = vmatmul.mubr.bf16.gmra.mrb[0].mxu0 %v6649
        %v6805 = vpop.f32.mrb[0].mxu0
        %v6806 = vadd.f32 0.0, %v6805
        %v6807 = vpop.f32.mrb[0].mxu0
        %v6808 = vpop.f32.mrb[0].mxu0
        %v6809 = vadd.f32 0.0, %v6808
        %v6810 = vpop.f32.mrb[0].mxu0
        %6811 = vmatprep.mubr.bf16.mxu0 0
        %6812 = vmatmul.mubr.bf16.gmra.mrb[0].mxu0 %v6657
        %v6813 = vpop.f32.mrb[0].mxu0
        %v6814 = vadd.f32 0.0, %v6813
        %v6815 = vpop.f32.mrb[0].mxu0
        %v6816 = vpop.f32.mrb[0].mxu0
        %v6817 = vadd.f32 0.0, %v6816
        %v6818 = vpop.f32.mrb[0].mxu0
        %6819 = vmatprep.mubr.bf16.mxu0 0
        %6820 = vmatmul.mubr.bf16.gmra.mrb[0].mxu0 %v6665
        %v6821 = vpop.f32.mrb[0].mxu0
        %v6822 = vadd.f32 0.0, %v6821
        %v6823 = vpop.f32.mrb[0].mxu0
        %v6824 = vpop.f32.mrb[0].mxu0
        %v6825 = vadd.f32 0.0, %v6824
        %v6826 = vpop.f32.mrb[0].mxu0
        %6827 = vmatprep.mubr.bf16.mxu0 0
        %6828 = vmatmul.mubr.bf16.gmra.mrb[0].mxu0 %v6673
        %v6829 = vpop.f32.mrb[0].mxu0
        %v6830 = vadd.f32 0.0, %v6829
        %v6831 = vpop.f32.mrb[0].mxu0
        %v6832 = vpop.f32.mrb[0].mxu0
        %v6833 = vadd.f32 0.0, %v6832
        %v6834 = vpop.f32.mrb[0].mxu0
        %6835 = vmatprep.mubr.bf16.mxu0 0
        %6836 = vmatmul.mubr.bf16.gmra.mrb[0].mxu0 %v6681
        %v6837 = vpop.f32.mrb[0].mxu0
        %v6838 = vadd.f32 0.0, %v6837
        %v6839 = vpop.f32.mrb[0].mxu0
        %v6840 = vpop.f32.mrb[0].mxu0
        %v6841 = vadd.f32 0.0, %v6840
        %v6842 = vpop.f32.mrb[0].mxu0
        %6843 = vdwg.mxu0
        %v6869 = vunpack.c.l.b16 %v6525
        %v6870 = vunpack.c.l.b16 %v6526
        %v6871 = vunpack.c.l.b16 %v6527
        %v6872 = vunpack.c.l.b16 %v6528
        %v6873 = vunpack.c.l.b16 %v6529
        %v6874 = vunpack.c.l.b16 %v6530
        %v6875 = vunpack.c.l.b16 %v6531
        %v6876 = vunpack.c.l.b16 %v6532
        %v6877 = vunpack.c.l.b16 %v6533
        %v6878 = vunpack.c.l.b16 %v6534
        %v6879 = vunpack.c.l.b16 %v6535
        %v6880 = vunpack.c.l.b16 %v6536
        %v6881 = vunpack.c.l.b16 %v6537
        %v6882 = vunpack.c.l.b16 %v6538
        %v6883 = vunpack.c.l.b16 %v6539
        %v6884 = vunpack.c.l.b16 %v6540
        %v6885 = vpack.c.b16 %v6870, %v6869
        %v6886 = vpack.c.b16 %v6872, %v6871
        %v6887 = vpack.c.b16 %v6874, %v6873
        %v6888 = vpack.c.b16 %v6876, %v6875
        %v6889 = vpack.c.b16 %v6878, %v6877
        %v6890 = vpack.c.b16 %v6880, %v6879
        %v6891 = vpack.c.b16 %v6882, %v6881
        %v6892 = vpack.c.b16 %v6884, %v6883
        %6901 = vmatprep.subr.bf16.mxu0 0
        %6902 = vmatpush1.bf16.msra.mxu0 %v6885
        %6903 = vmatprep.subr.bf16.mxu0 0
        %6904 = vmatpush1.bf16.msra.mxu0 %v6886
        %6905 = vmatprep.subr.bf16.mxu0 0
        %6906 = vmatpush1.bf16.msra.mxu0 %v6887
        %6907 = vmatprep.subr.bf16.mxu0 0
        %6908 = vmatpush1.bf16.msra.mxu0 %v6888
        %6909 = vmatprep.subr.bf16.mxu0 0
        %6910 = vmatpush1.bf16.msra.mxu0 %v6889
        %6911 = vmatprep.subr.bf16.mxu0 0
        %6912 = vmatpush1.bf16.msra.mxu0 %v6890
        %6913 = vmatprep.subr.bf16.mxu0 0
        %6914 = vmatpush1.bf16.msra.mxu0 %v6891
        %6915 = vmatprep.subr.bf16.mxu0 0
        %6916 = vmatpush1.bf16.msra.mxu0 %v6892
        %6917 = vmatprep.subr.bf16.mxu0 0
        %6918 = vmatpush1.bf16.msra.mxu0 0
        %6919 = vmatprep.subr.bf16.mxu0 0
        %6920 = vmatpush1.bf16.msra.mxu0 0
        %6921 = vmatprep.subr.bf16.mxu0 0
        %6922 = vmatpush1.bf16.msra.mxu0 0
        %6923 = vmatprep.subr.bf16.mxu0 0
        %6924 = vmatpush1.bf16.msra.mxu0 0
        %6925 = vmatprep.subr.bf16.mxu0 0
        %6926 = vmatpush1.bf16.msra.mxu0 0
        %6927 = vmatprep.subr.bf16.mxu0 0
        %6928 = vmatpush1.bf16.msra.mxu0 0
        %6929 = vmatprep.subr.bf16.mxu0 0
        %6930 = vmatpush1.bf16.msra.mxu0 0
        %6931 = vmatprep.subr.bf16.mxu0 0
        %6932 = vmatpush1.bf16.msra.mxu0 0
        %6933 = vmatprep.mubr.bf16.mxu0 0
        %6934 = vmatmul.mubr.bf16.gmra.mrb[0].mxu0 %v6596
        %v6935 = vpop.f32.mrb[0].mxu0
        %v6936 = vadd.f32 %v6774, %v6935
        %v6937 = vpop.f32.mrb[0].mxu0
        %v6938 = vpop.f32.mrb[0].mxu0
        %v6939 = vadd.f32 %v6777, %v6938
        %v6940 = vpop.f32.mrb[0].mxu0
        %6941 = vmatprep.mubr.bf16.mxu0 0
        %6942 = vmatmul.mubr.bf16.gmra.mrb[0].mxu0 %v6597
        %v6943 = vpop.f32.mrb[0].mxu0
        %v6944 = vadd.f32 %v6782, %v6943
        %v6945 = vpop.f32.mrb[0].mxu0
        %v6946 = vpop.f32.mrb[0].mxu0
        %v6947 = vadd.f32 %v6785, %v6946
        %v6948 = vpop.f32.mrb[0].mxu0
        %6949 = vmatprep.mubr.bf16.mxu0 0
        %6950 = vmatmul.mubr.bf16.gmra.mrb[0].mxu0 %v6598
        %v6951 = vpop.f32.mrb[0].mxu0
        %v6952 = vadd.f32 %v6790, %v6951
        %v6953 = vpop.f32.mrb[0].mxu0
        %v6954 = vpop.f32.mrb[0].mxu0
        %v6955 = vadd.f32 %v6793, %v6954
        %v6956 = vpop.f32.mrb[0].mxu0
        %6957 = vmatprep.mubr.bf16.mxu0 0
        %6958 = vmatmul.mubr.bf16.gmra.mrb[0].mxu0 %v6599
        %v6959 = vpop.f32.mrb[0].mxu0
        %v6960 = vadd.f32 %v6798, %v6959
        %v6961 = vpop.f32.mrb[0].mxu0
        %v6962 = vpop.f32.mrb[0].mxu0
        %v6963 = vadd.f32 %v6801, %v6962
        %v6964 = vpop.f32.mrb[0].mxu0
        %6965 = vmatprep.mubr.bf16.mxu0 0
        %6966 = vmatmul.mubr.bf16.gmra.mrb[0].mxu0 %v6600
        %v6967 = vpop.f32.mrb[0].mxu0
        %v6968 = vadd.f32 %v6806, %v6967
        %v6969 = vpop.f32.mrb[0].mxu0
        %v6970 = vpop.f32.mrb[0].mxu0
        %v6971 = vadd.f32 %v6809, %v6970
        %v6972 = vpop.f32.mrb[0].mxu0
        %6973 = vmatprep.mubr.bf16.mxu0 0
        %6974 = vmatmul.mubr.bf16.gmra.mrb[0].mxu0 %v6601
        %v6975 = vpop.f32.mrb[0].mxu0
        %v6976 = vadd.f32 %v6814, %v6975
        %v6977 = vpop.f32.mrb[0].mxu0
        %v6978 = vpop.f32.mrb[0].mxu0
        %v6979 = vadd.f32 %v6817, %v6978
        %v6980 = vpop.f32.mrb[0].mxu0
        %6981 = vmatprep.mubr.bf16.mxu0 0
        %6982 = vmatmul.mubr.bf16.gmra.mrb[0].mxu0 %v6602
        %v6983 = vpop.f32.mrb[0].mxu0
        %v6984 = vadd.f32 %v6822, %v6983
        %v6985 = vpop.f32.mrb[0].mxu0
        %v6986 = vpop.f32.mrb[0].mxu0
        %v6987 = vadd.f32 %v6825, %v6986
        %v6988 = vpop.f32.mrb[0].mxu0
        %6989 = vmatprep.mubr.bf16.mxu0 0
        %6990 = vmatmul.mubr.bf16.gmra.mrb[0].mxu0 %v6603
        %v6991 = vpop.f32.mrb[0].mxu0
        %v6992 = vadd.f32 %v6830, %v6991
        %v6993 = vpop.f32.mrb[0].mxu0
        %v6994 = vpop.f32.mrb[0].mxu0
        %v6995 = vadd.f32 %v6833, %v6994
        %v6996 = vpop.f32.mrb[0].mxu0
        %6997 = vmatprep.mubr.bf16.mxu0 0
        %6998 = vmatmul.mubr.bf16.gmra.mrb[0].mxu0 %v6604
        %v6999 = vpop.f32.mrb[0].mxu0
        %v7000 = vadd.f32 %v6838, %v6999
        %v7001 = vpop.f32.mrb[0].mxu0
        %v7002 = vpop.f32.mrb[0].mxu0
        %v7003 = vadd.f32 %v6841, %v7002
        %v7004 = vpop.f32.mrb[0].mxu0
        %7005 = vdwg.mxu0
        %v7006 = vld [vmem:[#allocation2 + $0x48] sm:$0xe]
        %v7007 = vld [vmem:[%s3486] sm:$0xf]
        %v7008 = vld [vmem:[%s3486 + $0x4] sm:$0xf]
        %v7009 = vld [vmem:[%s3486 + $0x8] sm:$0xf]
        %v7010 = vld [vmem:[%s3486 + $0xc] sm:$0xf]
        %v7011 = vld [vmem:[%s3486 + $0x10] sm:$0xf]
        %v7012 = vld [vmem:[%s3486 + $0x14] sm:$0xf]
        %v7013 = vld [vmem:[%s3486 + $0x18] sm:$0xf]
        %v7014 = vld [vmem:[%s3486 + $0x1c] sm:$0xf]
        %v7015 = vld [vmem:[%s3486 + $0x20] sm:$0xf]
        %v7016 = vld [vmem:[%s3486 + $0x24] sm:$0xf]
        %v7017 = vld [vmem:[%s3486 + $0x28] sm:$0xf]
        %v7018 = vld [vmem:[%s3486 + $0x2c] sm:$0xf]
        %v7019 = vld [vmem:[%s3486 + $0x30] sm:$0xf]
        %v7020 = vld [vmem:[%s3486 + $0x34] sm:$0xf]
        %v7021 = vld [vmem:[%s3486 + $0x38] sm:$0xf]
        %v7022 = vld [vmem:[%s3486 + $0x3c] sm:$0xf]
        %v7024 = vunpack.c.l.b16 %v7006
        %v7025 = vpack.c.b16 %v6578, %v7024
        %v7026 = vrot.slane %v7025, 1
        %v7027 = vrot.slane %v6597, 1
        %v7028 = vsel %vm3506, %v7026, %v7027
        %v7029 = vrot.slane %v6598, 1
        %v7030 = vsel %vm3506, %v7027, %v7029
        %v7031 = vrot.slane %v6599, 1
        %v7032 = vsel %vm3506, %v7029, %v7031
        %v7033 = vrot.slane %v6600, 1
        %v7034 = vsel %vm3506, %v7031, %v7033
        %v7035 = vrot.slane %v6601, 1
        %v7036 = vsel %vm3506, %v7033, %v7035
        %v7037 = vrot.slane %v6602, 1
        %v7038 = vsel %vm3506, %v7035, %v7037
        %v7039 = vrot.slane %v6603, 1
        %v7040 = vsel %vm3506, %v7037, %v7039
        %v7041 = vrot.slane %v6604, 1
        %v7042 = vsel %vm3506, %v7039, %v7041
        %v7043 = vrot.slane %v6605, 1
        %v7044 = vsel %vm3506, %v7041, %v7043
        %v7070 = vunpack.c.l.b16 %v7007
        %v7071 = vunpack.c.l.b16 %v7008
        %v7072 = vunpack.c.l.b16 %v7009
        %v7073 = vunpack.c.l.b16 %v7010
        %v7074 = vunpack.c.l.b16 %v7011
        %v7075 = vunpack.c.l.b16 %v7012
        %v7076 = vunpack.c.l.b16 %v7013
        %v7077 = vunpack.c.l.b16 %v7014
        %v7078 = vunpack.c.l.b16 %v7015
        %v7079 = vunpack.c.l.b16 %v7016
        %v7080 = vunpack.c.l.b16 %v7017
        %v7081 = vunpack.c.l.b16 %v7018
        %v7082 = vunpack.c.l.b16 %v7019
        %v7083 = vunpack.c.l.b16 %v7020
        %v7084 = vunpack.c.l.b16 %v7021
        %v7085 = vunpack.c.l.b16 %v7022
        %v7086 = vpack.c.b16 %v7071, %v7070
        %v7087 = vpack.c.b16 %v7073, %v7072
        %v7088 = vpack.c.b16 %v7075, %v7074
        %v7089 = vpack.c.b16 %v7077, %v7076
        %v7090 = vpack.c.b16 %v7079, %v7078
        %v7091 = vpack.c.b16 %v7081, %v7080
        %v7092 = vpack.c.b16 %v7083, %v7082
        %v7093 = vpack.c.b16 %v7085, %v7084
        %7102 = vmatprep.subr.bf16.mxu0 0
        %7103 = vmatpush1.bf16.msra.mxu0 %v7086
        %7104 = vmatprep.subr.bf16.mxu0 0
        %7105 = vmatpush1.bf16.msra.mxu0 %v7087
        %7106 = vmatprep.subr.bf16.mxu0 0
        %7107 = vmatpush1.bf16.msra.mxu0 %v7088
        %7108 = vmatprep.subr.bf16.mxu0 0
        %7109 = vmatpush1.bf16.msra.mxu0 %v7089
        %7110 = vmatprep.subr.bf16.mxu0 0
        %7111 = vmatpush1.bf16.msra.mxu0 %v7090
        %7112 = vmatprep.subr.bf16.mxu0 0
        %7113 = vmatpush1.bf16.msra.mxu0 %v7091
        %7114 = vmatprep.subr.bf16.mxu0 0
        %7115 = vmatpush1.bf16.msra.mxu0 %v7092
        %7116 = vmatprep.subr.bf16.mxu0 0
        %7117 = vmatpush1.bf16.msra.mxu0 %v7093
        %7118 = vmatprep.subr.bf16.mxu0 0
        %7119 = vmatpush1.bf16.msra.mxu0 0
        %7120 = vmatprep.subr.bf16.mxu0 0
        %7121 = vmatpush1.bf16.msra.mxu0 0
        %7122 = vmatprep.subr.bf16.mxu0 0
        %7123 = vmatpush1.bf16.msra.mxu0 0
        %7124 = vmatprep.subr.bf16.mxu0 0
        %7125 = vmatpush1.bf16.msra.mxu0 0
        %7126 = vmatprep.subr.bf16.mxu0 0
        %7127 = vmatpush1.bf16.msra.mxu0 0
        %7128 = vmatprep.subr.bf16.mxu0 0
        %7129 = vmatpush1.bf16.msra.mxu0 0
        %7130 = vmatprep.subr.bf16.mxu0 0
        %7131 = vmatpush1.bf16.msra.mxu0 0
        %7132 = vmatprep.subr.bf16.mxu0 0
        %7133 = vmatpush1.bf16.msra.mxu0 0
        %7134 = vmatprep.mubr.bf16.mxu0 0
        %7135 = vmatmul.mubr.bf16.gmra.mrb[0].mxu0 %v7028
        %v7136 = vpop.f32.mrb[0].mxu0
        %v7137 = vadd.f32 0.0, %v7136
        %v7138 = vpop.f32.mrb[0].mxu0
        %v7139 = vpop.f32.mrb[0].mxu0
        %v7140 = vadd.f32 0.0, %v7139
        %v7141 = vpop.f32.mrb[0].mxu0
        %7142 = vmatprep.mubr.bf16.mxu0 0
        %7143 = vmatmul.mubr.bf16.gmra.mrb[0].mxu0 %v7030
        %v7144 = vpop.f32.mrb[0].mxu0
        %v7145 = vadd.f32 0.0, %v7144
        %v7146 = vpop.f32.mrb[0].mxu0
        %v7147 = vpop.f32.mrb[0].mxu0
        %v7148 = vadd.f32 0.0, %v7147
        %v7149 = vpop.f32.mrb[0].mxu0
        %7150 = vmatprep.mubr.bf16.mxu0 0
        %7151 = vmatmul.mubr.bf16.gmra.mrb[0].mxu0 %v7032
        %v7152 = vpop.f32.mrb[0].mxu0
        %v7153 = vadd.f32 0.0, %v7152
        %v7154 = vpop.f32.mrb[0].mxu0
        %v7155 = vpop.f32.mrb[0].mxu0
        %v7156 = vadd.f32 0.0, %v7155
        %v7157 = vpop.f32.mrb[0].mxu0
        %7158 = vmatprep.mubr.bf16.mxu0 0
        %7159 = vmatmul.mubr.bf16.gmra.mrb[0].mxu0 %v7034
        %v7160 = vpop.f32.mrb[0].mxu0
        %v7161 = vadd.f32 0.0, %v7160
        %v7162 = vpop.f32.mrb[0].mxu0
        %v7163 = vpop.f32.mrb[0].mxu0
        %v7164 = vadd.f32 0.0, %v7163
        %v7165 = vpop.f32.mrb[0].mxu0
        %7166 = vmatprep.mubr.bf16.mxu0 0
        %7167 = vmatmul.mubr.bf16.gmra.mrb[0].mxu0 %v7036
        %v7168 = vpop.f32.mrb[0].mxu0
        %v7169 = vadd.f32 0.0, %v7168
        %v7170 = vpop.f32.mrb[0].mxu0
        %v7171 = vpop.f32.mrb[0].mxu0
        %v7172 = vadd.f32 0.0, %v7171
        %v7173 = vpop.f32.mrb[0].mxu0
        %7174 = vmatprep.mubr.bf16.mxu0 0
        %7175 = vmatmul.mubr.bf16.gmra.mrb[0].mxu0 %v7038
        %v7176 = vpop.f32.mrb[0].mxu0
        %v7177 = vadd.f32 0.0, %v7176
        %v7178 = vpop.f32.mrb[0].mxu0
        %v7179 = vpop.f32.mrb[0].mxu0
        %v7180 = vadd.f32 0.0, %v7179
        %v7181 = vpop.f32.mrb[0].mxu0
        %7182 = vmatprep.mubr.bf16.mxu0 0
        %7183 = vmatmul.mubr.bf16.gmra.mrb[0].mxu0 %v7040
        %v7184 = vpop.f32.mrb[0].mxu0
        %v7185 = vadd.f32 0.0, %v7184
        %v7186 = vpop.f32.mrb[0].mxu0
        %v7187 = vpop.f32.mrb[0].mxu0
        %v7188 = vadd.f32 0.0, %v7187
        %v7189 = vpop.f32.mrb[0].mxu0
        %7190 = vmatprep.mubr.bf16.mxu0 0
        %7191 = vmatmul.mubr.bf16.gmra.mrb[0].mxu0 %v7042
        %v7192 = vpop.f32.mrb[0].mxu0
        %v7193 = vadd.f32 0.0, %v7192
        %v7194 = vpop.f32.mrb[0].mxu0
        %v7195 = vpop.f32.mrb[0].mxu0
        %v7196 = vadd.f32 0.0, %v7195
        %v7197 = vpop.f32.mrb[0].mxu0
        %7198 = vmatprep.mubr.bf16.mxu0 0
        %7199 = vmatmul.mubr.bf16.gmra.mrb[0].mxu0 %v7044
        %v7200 = vpop.f32.mrb[0].mxu0
        %v7201 = vadd.f32 0.0, %v7200
        %v7202 = vpop.f32.mrb[0].mxu0
        %v7203 = vpop.f32.mrb[0].mxu0
        %v7204 = vadd.f32 0.0, %v7203
        %v7205 = vpop.f32.mrb[0].mxu0
        %7206 = vdwg.mxu0
        %v7207 = vadd.f32 %v6936, %v7137
        %v7208 = vadd.f32 %v6939, %v7140
        %v7209 = vadd.f32 %v6944, %v7145
        %v7210 = vadd.f32 %v6947, %v7148
        %v7211 = vadd.f32 %v6952, %v7153
        %v7212 = vadd.f32 %v6955, %v7156
        %v7213 = vadd.f32 %v6960, %v7161
        %v7214 = vadd.f32 %v6963, %v7164
        %v7215 = vadd.f32 %v6968, %v7169
        %v7216 = vadd.f32 %v6971, %v7172
        %v7217 = vadd.f32 %v6976, %v7177
        %v7218 = vadd.f32 %v6979, %v7180
        %v7219 = vadd.f32 %v6984, %v7185
        %v7220 = vadd.f32 %v6987, %v7188
        %v7221 = vadd.f32 %v6992, %v7193
        %v7222 = vadd.f32 %v6995, %v7196
        %v7223 = vadd.f32 %v7000, %v7201
        %v7224 = vadd.f32 %v7003, %v7204
        %v7225 = vld [vmem:[#allocation2 + $0x50] sm:$0xe]
        %v7226 = vld [vmem:[#allocation2 + $0x54] sm:$0xf]
        %v7227 = vld [vmem:[#allocation2 + $0x58] sm:$0xf]
        %v7228 = vld [vmem:[#allocation2 + $0x5c] sm:$0xf]
        %v7229 = vld [vmem:[#allocation2 + $0x60] sm:$0xf]
        %v7230 = vld [vmem:[#allocation2 + $0x64] sm:$0xf]
        %v7231 = vld [vmem:[#allocation2 + $0x68] sm:$0xf]
        %v7232 = vld [vmem:[#allocation2 + $0x6c] sm:$0xf]
        %v7233 = vld [vmem:[#allocation2 + $0x70] sm:$0xf]
        %v7234 = vld [vmem:[#allocation2 + $0x74] sm:$0xf]
        %v7235 = vld [vmem:[#allocation2 + $0x78] sm:$0xf]
        %v7236 = vld [vmem:[#allocation2 + $0x7c] sm:$0xf]
        %v7237 = vld [vmem:[#allocation2 + $0x80] sm:$0xf]
        %v7238 = vld [vmem:[#allocation2 + $0x84] sm:$0xf]
        %v7239 = vld [vmem:[#allocation2 + $0x88] sm:$0xf]
        %v7240 = vld [vmem:[#allocation2 + $0x8c] sm:$0xf]
        %v7241 = vld [vmem:[#allocation2 + $0x90] sm:$0xf]
        %v7242 = vld [vmem:[#allocation2 + $0x94] sm:$0xf]
        %v7243 = vld [vmem:[#allocation2 + $0x98] sm:$0x1]
        %v7244 = vld [vmem:[%s3725] sm:$0xf]
        %v7245 = vld [vmem:[%s3725 + $0x4] sm:$0xf]
        %v7246 = vld [vmem:[%s3725 + $0x8] sm:$0xf]
        %v7247 = vld [vmem:[%s3725 + $0xc] sm:$0xf]
        %v7248 = vld [vmem:[%s3725 + $0x10] sm:$0xf]
        %v7249 = vld [vmem:[%s3725 + $0x14] sm:$0xf]
        %v7250 = vld [vmem:[%s3725 + $0x18] sm:$0xf]
        %v7251 = vld [vmem:[%s3725 + $0x1c] sm:$0xf]
        %v7252 = vld [vmem:[%s3725 + $0x20] sm:$0xf]
        %v7253 = vld [vmem:[%s3725 + $0x24] sm:$0xf]
        %v7254 = vld [vmem:[%s3725 + $0x28] sm:$0xf]
        %v7255 = vld [vmem:[%s3725 + $0x2c] sm:$0xf]
        %v7256 = vld [vmem:[%s3725 + $0x30] sm:$0xf]
        %v7257 = vld [vmem:[%s3725 + $0x34] sm:$0xf]
        %v7258 = vld [vmem:[%s3725 + $0x38] sm:$0xf]
        %v7259 = vld [vmem:[%s3725 + $0x3c] sm:$0xf]
        %v7279 = vunpack.c.l.b16 %v7225
        %v7280 = vunpack.c.l.b16 %v7226
        %v7281 = vunpack.c.l.b16 %v7227
        %v7282 = vunpack.c.l.b16 %v7228
        %v7283 = vunpack.c.l.b16 %v7229
        %v7284 = vunpack.c.l.b16 %v7230
        %v7285 = vunpack.c.l.b16 %v7231
        %v7286 = vunpack.c.l.b16 %v7232
        %v7287 = vunpack.c.l.b16 %v7233
        %v7288 = vunpack.c.l.b16 %v7234
        %v7289 = vunpack.c.l.b16 %v7235
        %v7290 = vunpack.c.l.b16 %v7236
        %v7291 = vunpack.c.l.b16 %v7237
        %v7292 = vunpack.c.l.b16 %v7238
        %v7293 = vunpack.c.l.b16 %v7239
        %v7294 = vunpack.c.l.b16 %v7240
        %v7295 = vunpack.c.l.b16 %v7241
        %v7296 = vunpack.c.l.b16 %v7242
        %v7297 = vunpack.c.l.b16 %v7243
        %v7298 = vpack.c.b16 %v7280, %v7279
        %v7299 = vpack.c.b16 %v7282, %v7281
        %v7300 = vpack.c.b16 %v7284, %v7283
        %v7301 = vpack.c.b16 %v7286, %v7285
        %v7302 = vpack.c.b16 %v7288, %v7287
        %v7303 = vpack.c.b16 %v7290, %v7289
        %v7304 = vpack.c.b16 %v7292, %v7291
        %v7305 = vpack.c.b16 %v7294, %v7293
        %v7306 = vpack.c.b16 %v7296, %v7295
        %v7307 = vpack.c.b16 %v7297, %v7297
        %v7308 = vrot.slane %v7298, 1
        %v7309 = vrot.slane %v7299, 1
        %v7310 = vsel %vm3506, %v7308, %v7309
        %v7311 = vrot.slane %v7300, 1
        %v7312 = vsel %vm3506, %v7309, %v7311
        %v7313 = vrot.slane %v7301, 1
        %v7314 = vsel %vm3506, %v7311, %v7313
        %v7315 = vrot.slane %v7302, 1
        %v7316 = vsel %vm3506, %v7313, %v7315
        %v7317 = vrot.slane %v7303, 1
        %v7318 = vsel %vm3506, %v7315, %v7317
        %v7319 = vrot.slane %v7304, 1
        %v7320 = vsel %vm3506, %v7317, %v7319
        %v7321 = vrot.slane %v7305, 1
        %v7322 = vsel %vm3506, %v7319, %v7321
        %v7323 = vrot.slane %v7306, 1
        %v7324 = vsel %vm3506, %v7321, %v7323
        %v7325 = vrot.slane %v7307, 1
        %v7326 = vsel %vm3506, %v7323, %v7325
        %v7352 = vunpack.c.l.b16 %v7244
        %v7353 = vunpack.c.l.b16 %v7245
        %v7354 = vunpack.c.l.b16 %v7246
        %v7355 = vunpack.c.l.b16 %v7247
        %v7356 = vunpack.c.l.b16 %v7248
        %v7357 = vunpack.c.l.b16 %v7249
        %v7358 = vunpack.c.l.b16 %v7250
        %v7359 = vunpack.c.l.b16 %v7251
        %v7360 = vunpack.c.l.b16 %v7252
        %v7361 = vunpack.c.l.b16 %v7253
        %v7362 = vunpack.c.l.b16 %v7254
        %v7363 = vunpack.c.l.b16 %v7255
        %v7364 = vunpack.c.l.b16 %v7256
        %v7365 = vunpack.c.l.b16 %v7257
        %v7366 = vunpack.c.l.b16 %v7258
        %v7367 = vunpack.c.l.b16 %v7259
        %v7368 = vpack.c.b16 %v7353, %v7352
        %v7369 = vpack.c.b16 %v7355, %v7354
        %v7370 = vpack.c.b16 %v7357, %v7356
        %v7371 = vpack.c.b16 %v7359, %v7358
        %v7372 = vpack.c.b16 %v7361, %v7360
        %v7373 = vpack.c.b16 %v7363, %v7362
        %v7374 = vpack.c.b16 %v7365, %v7364
        %v7375 = vpack.c.b16 %v7367, %v7366
        %7384 = vmatprep.subr.bf16.mxu0 0
        %7385 = vmatpush1.bf16.msra.mxu0 %v7368
        %7386 = vmatprep.subr.bf16.mxu0 0
        %7387 = vmatpush1.bf16.msra.mxu0 %v7369
        %7388 = vmatprep.subr.bf16.mxu0 0
        %7389 = vmatpush1.bf16.msra.mxu0 %v7370
        %7390 = vmatprep.subr.bf16.mxu0 0
        %7391 = vmatpush1.bf16.msra.mxu0 %v7371
        %7392 = vmatprep.subr.bf16.mxu0 0
        %7393 = vmatpush1.bf16.msra.mxu0 %v7372
        %7394 = vmatprep.subr.bf16.mxu0 0
        %7395 = vmatpush1.bf16.msra.mxu0 %v7373
        %7396 = vmatprep.subr.bf16.mxu0 0
        %7397 = vmatpush1.bf16.msra.mxu0 %v7374
        %7398 = vmatprep.subr.bf16.mxu0 0
        %7399 = vmatpush1.bf16.msra.mxu0 %v7375
        %7400 = vmatprep.subr.bf16.mxu0 0
        %7401 = vmatpush1.bf16.msra.mxu0 0
        %7402 = vmatprep.subr.bf16.mxu0 0
        %7403 = vmatpush1.bf16.msra.mxu0 0
        %7404 = vmatprep.subr.bf16.mxu0 0
        %7405 = vmatpush1.bf16.msra.mxu0 0
        %7406 = vmatprep.subr.bf16.mxu0 0
        %7407 = vmatpush1.bf16.msra.mxu0 0
        %7408 = vmatprep.subr.bf16.mxu0 0
        %7409 = vmatpush1.bf16.msra.mxu0 0
        %7410 = vmatprep.subr.bf16.mxu0 0
        %7411 = vmatpush1.bf16.msra.mxu0 0
        %7412 = vmatprep.subr.bf16.mxu0 0
        %7413 = vmatpush1.bf16.msra.mxu0 0
        %7414 = vmatprep.subr.bf16.mxu0 0
        %7415 = vmatpush1.bf16.msra.mxu0 0
        %7416 = vmatprep.mubr.bf16.mxu0 0
        %7417 = vmatmul.mubr.bf16.gmra.mrb[0].mxu0 %v7310
        %v7418 = vpop.f32.mrb[0].mxu0
        %v7419 = vadd.f32 0.0, %v7418
        %v7420 = vpop.f32.mrb[0].mxu0
        %v7421 = vpop.f32.mrb[0].mxu0
        %v7422 = vadd.f32 0.0, %v7421
        %v7423 = vpop.f32.mrb[0].mxu0
        %7424 = vmatprep.mubr.bf16.mxu0 0
        %7425 = vmatmul.mubr.bf16.gmra.mrb[0].mxu0 %v7312
        %v7426 = vpop.f32.mrb[0].mxu0
        %v7427 = vadd.f32 0.0, %v7426
        %v7428 = vpop.f32.mrb[0].mxu0
        %v7429 = vpop.f32.mrb[0].mxu0
        %v7430 = vadd.f32 0.0, %v7429
        %v7431 = vpop.f32.mrb[0].mxu0
        %7432 = vmatprep.mubr.bf16.mxu0 0
        %7433 = vmatmul.mubr.bf16.gmra.mrb[0].mxu0 %v7314
        %v7434 = vpop.f32.mrb[0].mxu0
        %v7435 = vadd.f32 0.0, %v7434
        %v7436 = vpop.f32.mrb[0].mxu0
        %v7437 = vpop.f32.mrb[0].mxu0
        %v7438 = vadd.f32 0.0, %v7437
        %v7439 = vpop.f32.mrb[0].mxu0
        %7440 = vmatprep.mubr.bf16.mxu0 0
        %7441 = vmatmul.mubr.bf16.gmra.mrb[0].mxu0 %v7316
        %v7442 = vpop.f32.mrb[0].mxu0
        %v7443 = vadd.f32 0.0, %v7442
        %v7444 = vpop.f32.mrb[0].mxu0
        %v7445 = vpop.f32.mrb[0].mxu0
        %v7446 = vadd.f32 0.0, %v7445
        %v7447 = vpop.f32.mrb[0].mxu0
        %7448 = vmatprep.mubr.bf16.mxu0 0
        %7449 = vmatmul.mubr.bf16.gmra.mrb[0].mxu0 %v7318
        %v7450 = vpop.f32.mrb[0].mxu0
        %v7451 = vadd.f32 0.0, %v7450
        %v7452 = vpop.f32.mrb[0].mxu0
        %v7453 = vpop.f32.mrb[0].mxu0
        %v7454 = vadd.f32 0.0, %v7453
        %v7455 = vpop.f32.mrb[0].mxu0
        %7456 = vmatprep.mubr.bf16.mxu0 0
        %7457 = vmatmul.mubr.bf16.gmra.mrb[0].mxu0 %v7320
        %v7458 = vpop.f32.mrb[0].mxu0
        %v7459 = vadd.f32 0.0, %v7458
        %v7460 = vpop.f32.mrb[0].mxu0
        %v7461 = vpop.f32.mrb[0].mxu0
        %v7462 = vadd.f32 0.0, %v7461
        %v7463 = vpop.f32.mrb[0].mxu0
        %7464 = vmatprep.mubr.bf16.mxu0 0
        %7465 = vmatmul.mubr.bf16.gmra.mrb[0].mxu0 %v7322
        %v7466 = vpop.f32.mrb[0].mxu0
        %v7467 = vadd.f32 0.0, %v7466
        %v7468 = vpop.f32.mrb[0].mxu0
        %v7469 = vpop.f32.mrb[0].mxu0
        %v7470 = vadd.f32 0.0, %v7469
        %v7471 = vpop.f32.mrb[0].mxu0
        %7472 = vmatprep.mubr.bf16.mxu0 0
        %7473 = vmatmul.mubr.bf16.gmra.mrb[0].mxu0 %v7324
        %v7474 = vpop.f32.mrb[0].mxu0
        %v7475 = vadd.f32 0.0, %v7474
        %v7476 = vpop.f32.mrb[0].mxu0
        %v7477 = vpop.f32.mrb[0].mxu0
        %v7478 = vadd.f32 0.0, %v7477
        %v7479 = vpop.f32.mrb[0].mxu0
        %7480 = vmatprep.mubr.bf16.mxu0 0
        %7481 = vmatmul.mubr.bf16.gmra.mrb[0].mxu0 %v7326
        %v7482 = vpop.f32.mrb[0].mxu0
        %v7483 = vadd.f32 0.0, %v7482
        %v7484 = vpop.f32.mrb[0].mxu0
        %v7485 = vpop.f32.mrb[0].mxu0
        %v7486 = vadd.f32 0.0, %v7485
        %v7487 = vpop.f32.mrb[0].mxu0
        %7488 = vdwg.mxu0
        %v7489 = vadd.f32 %v7207, %v7419
        %v7490 = vadd.f32 %v7208, %v7422
        %v7491 = vadd.f32 %v7209, %v7427
        %v7492 = vadd.f32 %v7210, %v7430
        %v7493 = vadd.f32 %v7211, %v7435
        %v7494 = vadd.f32 %v7212, %v7438
        %v7495 = vadd.f32 %v7213, %v7443
        %v7496 = vadd.f32 %v7214, %v7446
        %v7497 = vadd.f32 %v7215, %v7451
        %v7498 = vadd.f32 %v7216, %v7454
        %v7499 = vadd.f32 %v7217, %v7459
        %v7500 = vadd.f32 %v7218, %v7462
        %v7501 = vadd.f32 %v7219, %v7467
        %v7502 = vadd.f32 %v7220, %v7470
        %v7503 = vadd.f32 %v7221, %v7475
        %v7504 = vadd.f32 %v7222, %v7478
        %v7505 = vadd.f32 %v7223, %v7483
        %v7506 = vadd.f32 %v7224, %v7486
        %v7507 = vld [vmem:[#allocation2 + $0x98] sm:$0x3]
        %v7508 = vld [vmem:[%s3990] sm:$0xf]
        %v7509 = vld [vmem:[%s3990 + $0x4] sm:$0xf]
        %v7510 = vld [vmem:[%s3990 + $0x8] sm:$0xf]
        %v7511 = vld [vmem:[%s3990 + $0xc] sm:$0xf]
        %v7512 = vld [vmem:[%s3990 + $0x10] sm:$0xf]
        %v7513 = vld [vmem:[%s3990 + $0x14] sm:$0xf]
        %v7514 = vld [vmem:[%s3990 + $0x18] sm:$0xf]
        %v7515 = vld [vmem:[%s3990 + $0x1c] sm:$0xf]
        %v7516 = vld [vmem:[%s3990 + $0x20] sm:$0xf]
        %v7517 = vld [vmem:[%s3990 + $0x24] sm:$0xf]
        %v7518 = vld [vmem:[%s3990 + $0x28] sm:$0xf]
        %v7519 = vld [vmem:[%s3990 + $0x2c] sm:$0xf]
        %v7520 = vld [vmem:[%s3990 + $0x30] sm:$0xf]
        %v7521 = vld [vmem:[%s3990 + $0x34] sm:$0xf]
        %v7522 = vld [vmem:[%s3990 + $0x38] sm:$0xf]
        %v7523 = vld [vmem:[%s3990 + $0x3c] sm:$0xf]
        %v7525 = vunpack.c.l.b16 %v7507
        %v7526 = vpack.c.b16 %v7525, %v7525
        %v7528 = vshrl.u32 %v7298, 16
        %v7530 = vrot.slane %v7528, 1
        %v7531 = vshll.u32 %v7298, 16
        %v7533 = vrot.slane %v7531, 2
        %v7534 = vor.u32 %v7530, %v7533
        %v7536 = vshrl.u32 %v7299, 16
        %v7538 = vrot.slane %v7536, 1
        %v7539 = vshll.u32 %v7299, 16
        %v7541 = vrot.slane %v7539, 2
        %v7542 = vor.u32 %v7538, %v7541
        %v7543 = vsel %vm4010, %v7534, %v7542
        %v7545 = vshrl.u32 %v7300, 16
        %v7547 = vrot.slane %v7545, 1
        %v7548 = vshll.u32 %v7300, 16
        %v7550 = vrot.slane %v7548, 2
        %v7551 = vor.u32 %v7547, %v7550
        %v7552 = vsel %vm4010, %v7542, %v7551
        %v7554 = vshrl.u32 %v7301, 16
        %v7556 = vrot.slane %v7554, 1
        %v7557 = vshll.u32 %v7301, 16
        %v7559 = vrot.slane %v7557, 2
        %v7560 = vor.u32 %v7556, %v7559
        %v7561 = vsel %vm4010, %v7551, %v7560
        %v7563 = vshrl.u32 %v7302, 16
        %v7565 = vrot.slane %v7563, 1
        %v7566 = vshll.u32 %v7302, 16
        %v7568 = vrot.slane %v7566, 2
        %v7569 = vor.u32 %v7565, %v7568
        %v7570 = vsel %vm4010, %v7560, %v7569
        %v7572 = vshrl.u32 %v7303, 16
        %v7574 = vrot.slane %v7572, 1
        %v7575 = vshll.u32 %v7303, 16
        %v7577 = vrot.slane %v7575, 2
        %v7578 = vor.u32 %v7574, %v7577
        %v7579 = vsel %vm4010, %v7569, %v7578
        %v7581 = vshrl.u32 %v7304, 16
        %v7583 = vrot.slane %v7581, 1
        %v7584 = vshll.u32 %v7304, 16
        %v7586 = vrot.slane %v7584, 2
        %v7587 = vor.u32 %v7583, %v7586
        %v7588 = vsel %vm4010, %v7578, %v7587
        %v7590 = vshrl.u32 %v7305, 16
        %v7592 = vrot.slane %v7590, 1
        %v7593 = vshll.u32 %v7305, 16
        %v7595 = vrot.slane %v7593, 2
        %v7596 = vor.u32 %v7592, %v7595
        %v7597 = vsel %vm4010, %v7587, %v7596
        %v7599 = vshrl.u32 %v7306, 16
        %v7601 = vrot.slane %v7599, 1
        %v7602 = vshll.u32 %v7306, 16
        %v7604 = vrot.slane %v7602, 2
        %v7605 = vor.u32 %v7601, %v7604
        %v7606 = vsel %vm4010, %v7596, %v7605
        %v7608 = vshrl.u32 %v7526, 16
        %v7610 = vrot.slane %v7608, 1
        %v7611 = vshll.u32 %v7526, 16
        %v7613 = vrot.slane %v7611, 2
        %v7614 = vor.u32 %v7610, %v7613
        %v7615 = vsel %vm4010, %v7605, %v7614
        %v7641 = vunpack.c.l.b16 %v7508
        %v7642 = vunpack.c.l.b16 %v7509
        %v7643 = vunpack.c.l.b16 %v7510
        %v7644 = vunpack.c.l.b16 %v7511
        %v7645 = vunpack.c.l.b16 %v7512
        %v7646 = vunpack.c.l.b16 %v7513
        %v7647 = vunpack.c.l.b16 %v7514
        %v7648 = vunpack.c.l.b16 %v7515
        %v7649 = vunpack.c.l.b16 %v7516
        %v7650 = vunpack.c.l.b16 %v7517
        %v7651 = vunpack.c.l.b16 %v7518
        %v7652 = vunpack.c.l.b16 %v7519
        %v7653 = vunpack.c.l.b16 %v7520
        %v7654 = vunpack.c.l.b16 %v7521
        %v7655 = vunpack.c.l.b16 %v7522
        %v7656 = vunpack.c.l.b16 %v7523
        %v7657 = vpack.c.b16 %v7642, %v7641
        %v7658 = vpack.c.b16 %v7644, %v7643
        %v7659 = vpack.c.b16 %v7646, %v7645
        %v7660 = vpack.c.b16 %v7648, %v7647
        %v7661 = vpack.c.b16 %v7650, %v7649
        %v7662 = vpack.c.b16 %v7652, %v7651
        %v7663 = vpack.c.b16 %v7654, %v7653
        %v7664 = vpack.c.b16 %v7656, %v7655
        %7673 = vmatprep.subr.bf16.mxu0 0
        %7674 = vmatpush1.bf16.msra.mxu0 %v7657
        %7675 = vmatprep.subr.bf16.mxu0 0
        %7676 = vmatpush1.bf16.msra.mxu0 %v7658
        %7677 = vmatprep.subr.bf16.mxu0 0
        %7678 = vmatpush1.bf16.msra.mxu0 %v7659
        %7679 = vmatprep.subr.bf16.mxu0 0
        %7680 = vmatpush1.bf16.msra.mxu0 %v7660
        %7681 = vmatprep.subr.bf16.mxu0 0
        %7682 = vmatpush1.bf16.msra.mxu0 %v7661
        %7683 = vmatprep.subr.bf16.mxu0 0
        %7684 = vmatpush1.bf16.msra.mxu0 %v7662
        %7685 = vmatprep.subr.bf16.mxu0 0
        %7686 = vmatpush1.bf16.msra.mxu0 %v7663
        %7687 = vmatprep.subr.bf16.mxu0 0
        %7688 = vmatpush1.bf16.msra.mxu0 %v7664
        %7689 = vmatprep.subr.bf16.mxu0 0
        %7690 = vmatpush1.bf16.msra.mxu0 0
        %7691 = vmatprep.subr.bf16.mxu0 0
        %7692 = vmatpush1.bf16.msra.mxu0 0
        %7693 = vmatprep.subr.bf16.mxu0 0
        %7694 = vmatpush1.bf16.msra.mxu0 0
        %7695 = vmatprep.subr.bf16.mxu0 0
        %7696 = vmatpush1.bf16.msra.mxu0 0
        %7697 = vmatprep.subr.bf16.mxu0 0
        %7698 = vmatpush1.bf16.msra.mxu0 0
        %7699 = vmatprep.subr.bf16.mxu0 0
        %7700 = vmatpush1.bf16.msra.mxu0 0
        %7701 = vmatprep.subr.bf16.mxu0 0
        %7702 = vmatpush1.bf16.msra.mxu0 0
        %7703 = vmatprep.subr.bf16.mxu0 0
        %7704 = vmatpush1.bf16.msra.mxu0 0
        %7705 = vmatprep.mubr.bf16.mxu0 0
        %7706 = vmatmul.mubr.bf16.gmra.mrb[0].mxu0 %v7543
        %v7707 = vpop.f32.mrb[0].mxu0
        %v7708 = vadd.f32 0.0, %v7707
        %v7709 = vpop.f32.mrb[0].mxu0
        %v7710 = vpop.f32.mrb[0].mxu0
        %v7711 = vadd.f32 0.0, %v7710
        %v7712 = vpop.f32.mrb[0].mxu0
        %7713 = vmatprep.mubr.bf16.mxu0 0
        %7714 = vmatmul.mubr.bf16.gmra.mrb[0].mxu0 %v7552
        %v7715 = vpop.f32.mrb[0].mxu0
        %v7716 = vadd.f32 0.0, %v7715
        %v7717 = vpop.f32.mrb[0].mxu0
        %v7718 = vpop.f32.mrb[0].mxu0
        %v7719 = vadd.f32 0.0, %v7718
        %v7720 = vpop.f32.mrb[0].mxu0
        %7721 = vmatprep.mubr.bf16.mxu0 0
        %7722 = vmatmul.mubr.bf16.gmra.mrb[0].mxu0 %v7561
        %v7723 = vpop.f32.mrb[0].mxu0
        %v7724 = vadd.f32 0.0, %v7723
        %v7725 = vpop.f32.mrb[0].mxu0
        %v7726 = vpop.f32.mrb[0].mxu0
        %v7727 = vadd.f32 0.0, %v7726
        %v7728 = vpop.f32.mrb[0].mxu0
        %7729 = vmatprep.mubr.bf16.mxu0 0
        %7730 = vmatmul.mubr.bf16.gmra.mrb[0].mxu0 %v7570
        %v7731 = vpop.f32.mrb[0].mxu0
        %v7732 = vadd.f32 0.0, %v7731
        %v7733 = vpop.f32.mrb[0].mxu0
        %v7734 = vpop.f32.mrb[0].mxu0
        %v7735 = vadd.f32 0.0, %v7734
        %v7736 = vpop.f32.mrb[0].mxu0
        %7737 = vmatprep.mubr.bf16.mxu0 0
        %7738 = vmatmul.mubr.bf16.gmra.mrb[0].mxu0 %v7579
        %v7739 = vpop.f32.mrb[0].mxu0
        %v7740 = vadd.f32 0.0, %v7739
        %v7741 = vpop.f32.mrb[0].mxu0
        %v7742 = vpop.f32.mrb[0].mxu0
        %v7743 = vadd.f32 0.0, %v7742
        %v7744 = vpop.f32.mrb[0].mxu0
        %7745 = vmatprep.mubr.bf16.mxu0 0
        %7746 = vmatmul.mubr.bf16.gmra.mrb[0].mxu0 %v7588
        %v7747 = vpop.f32.mrb[0].mxu0
        %v7748 = vadd.f32 0.0, %v7747
        %v7749 = vpop.f32.mrb[0].mxu0
        %v7750 = vpop.f32.mrb[0].mxu0
        %v7751 = vadd.f32 0.0, %v7750
        %v7752 = vpop.f32.mrb[0].mxu0
        %7753 = vmatprep.mubr.bf16.mxu0 0
        %7754 = vmatmul.mubr.bf16.gmra.mrb[0].mxu0 %v7597
        %v7755 = vpop.f32.mrb[0].mxu0
        %v7756 = vadd.f32 0.0, %v7755
        %v7757 = vpop.f32.mrb[0].mxu0
        %v7758 = vpop.f32.mrb[0].mxu0
        %v7759 = vadd.f32 0.0, %v7758
        %v7760 = vpop.f32.mrb[0].mxu0
        %7761 = vmatprep.mubr.bf16.mxu0 0
        %7762 = vmatmul.mubr.bf16.gmra.mrb[0].mxu0 %v7606
        %v7763 = vpop.f32.mrb[0].mxu0
        %v7764 = vadd.f32 0.0, %v7763
        %v7765 = vpop.f32.mrb[0].mxu0
        %v7766 = vpop.f32.mrb[0].mxu0
        %v7767 = vadd.f32 0.0, %v7766
        %v7768 = vpop.f32.mrb[0].mxu0
        %7769 = vmatprep.mubr.bf16.mxu0 0
        %7770 = vmatmul.mubr.bf16.gmra.mrb[0].mxu0 %v7615
        %v7771 = vpop.f32.mrb[0].mxu0
        %v7772 = vadd.f32 0.0, %v7771
        %v7773 = vpop.f32.mrb[0].mxu0
        %v7774 = vpop.f32.mrb[0].mxu0
        %v7775 = vadd.f32 0.0, %v7774
        %v7776 = vpop.f32.mrb[0].mxu0
        %7777 = vdwg.mxu0
        %v7778 = vadd.f32 %v7489, %v7708
        %v7779 = vadd.f32 %v7490, %v7711
        %v7780 = vadd.f32 %v7491, %v7716
        %v7781 = vadd.f32 %v7492, %v7719
        %v7782 = vadd.f32 %v7493, %v7724
        %v7783 = vadd.f32 %v7494, %v7727
        %v7784 = vadd.f32 %v7495, %v7732
        %v7785 = vadd.f32 %v7496, %v7735
        %v7786 = vadd.f32 %v7497, %v7740
        %v7787 = vadd.f32 %v7498, %v7743
        %v7788 = vadd.f32 %v7499, %v7748
        %v7789 = vadd.f32 %v7500, %v7751
        %v7790 = vadd.f32 %v7501, %v7756
        %v7791 = vadd.f32 %v7502, %v7759
        %v7792 = vadd.f32 %v7503, %v7764
        %v7793 = vadd.f32 %v7504, %v7767
        %v7794 = vadd.f32 %v7505, %v7772
        %v7795 = vadd.f32 %v7506, %v7775
        %v7796 = vld [vmem:[#allocation2 + $0x50] sm:$0xc]
        %v7797 = vld [vmem:[%s4281] sm:$0xf]
        %v7798 = vld [vmem:[%s4281 + $0x4] sm:$0xf]
        %v7799 = vld [vmem:[%s4281 + $0x8] sm:$0xf]
        %v7800 = vld [vmem:[%s4281 + $0xc] sm:$0xf]
        %v7801 = vld [vmem:[%s4281 + $0x10] sm:$0xf]
        %v7802 = vld [vmem:[%s4281 + $0x14] sm:$0xf]
        %v7803 = vld [vmem:[%s4281 + $0x18] sm:$0xf]
        %v7804 = vld [vmem:[%s4281 + $0x1c] sm:$0xf]
        %v7805 = vld [vmem:[%s4281 + $0x20] sm:$0xf]
        %v7806 = vld [vmem:[%s4281 + $0x24] sm:$0xf]
        %v7807 = vld [vmem:[%s4281 + $0x28] sm:$0xf]
        %v7808 = vld [vmem:[%s4281 + $0x2c] sm:$0xf]
        %v7809 = vld [vmem:[%s4281 + $0x30] sm:$0xf]
        %v7810 = vld [vmem:[%s4281 + $0x34] sm:$0xf]
        %v7811 = vld [vmem:[%s4281 + $0x38] sm:$0xf]
        %v7812 = vld [vmem:[%s4281 + $0x3c] sm:$0xf]
        %v7814 = vunpack.c.l.b16 %v7796
        %v7815 = vpack.c.b16 %v7280, %v7814
        %v7816 = vrot.slane %v7815, 2
        %v7817 = vrot.slane %v7299, 2
        %v7818 = vsel %vm4301, %v7816, %v7817
        %v7819 = vrot.slane %v7300, 2
        %v7820 = vsel %vm4301, %v7817, %v7819
        %v7821 = vrot.slane %v7301, 2
        %v7822 = vsel %vm4301, %v7819, %v7821
        %v7823 = vrot.slane %v7302, 2
        %v7824 = vsel %vm4301, %v7821, %v7823
        %v7825 = vrot.slane %v7303, 2
        %v7826 = vsel %vm4301, %v7823, %v7825
        %v7827 = vrot.slane %v7304, 2
        %v7828 = vsel %vm4301, %v7825, %v7827
        %v7829 = vrot.slane %v7305, 2
        %v7830 = vsel %vm4301, %v7827, %v7829
        %v7831 = vrot.slane %v7306, 2
        %v7832 = vsel %vm4301, %v7829, %v7831
        %v7833 = vrot.slane %v7526, 2
        %v7834 = vsel %vm4301, %v7831, %v7833
        %v7860 = vunpack.c.l.b16 %v7797
        %v7861 = vunpack.c.l.b16 %v7798
        %v7862 = vunpack.c.l.b16 %v7799
        %v7863 = vunpack.c.l.b16 %v7800
        %v7864 = vunpack.c.l.b16 %v7801
        %v7865 = vunpack.c.l.b16 %v7802
        %v7866 = vunpack.c.l.b16 %v7803
        %v7867 = vunpack.c.l.b16 %v7804
        %v7868 = vunpack.c.l.b16 %v7805
        %v7869 = vunpack.c.l.b16 %v7806
        %v7870 = vunpack.c.l.b16 %v7807
        %v7871 = vunpack.c.l.b16 %v7808
        %v7872 = vunpack.c.l.b16 %v7809
        %v7873 = vunpack.c.l.b16 %v7810
        %v7874 = vunpack.c.l.b16 %v7811
        %v7875 = vunpack.c.l.b16 %v7812
        %v7876 = vpack.c.b16 %v7861, %v7860
        %v7877 = vpack.c.b16 %v7863, %v7862
        %v7878 = vpack.c.b16 %v7865, %v7864
        %v7879 = vpack.c.b16 %v7867, %v7866
        %v7880 = vpack.c.b16 %v7869, %v7868
        %v7881 = vpack.c.b16 %v7871, %v7870
        %v7882 = vpack.c.b16 %v7873, %v7872
        %v7883 = vpack.c.b16 %v7875, %v7874
        %7892 = vmatprep.subr.bf16.mxu0 0
        %7893 = vmatpush1.bf16.msra.mxu0 %v7876
        %7894 = vmatprep.subr.bf16.mxu0 0
        %7895 = vmatpush1.bf16.msra.mxu0 %v7877
        %7896 = vmatprep.subr.bf16.mxu0 0
        %7897 = vmatpush1.bf16.msra.mxu0 %v7878
        %7898 = vmatprep.subr.bf16.mxu0 0
        %7899 = vmatpush1.bf16.msra.mxu0 %v7879
        %7900 = vmatprep.subr.bf16.mxu0 0
        %7901 = vmatpush1.bf16.msra.mxu0 %v7880
        %7902 = vmatprep.subr.bf16.mxu0 0
        %7903 = vmatpush1.bf16.msra.mxu0 %v7881
        %7904 = vmatprep.subr.bf16.mxu0 0
        %7905 = vmatpush1.bf16.msra.mxu0 %v7882
        %7906 = vmatprep.subr.bf16.mxu0 0
        %7907 = vmatpush1.bf16.msra.mxu0 %v7883
        %7908 = vmatprep.subr.bf16.mxu0 0
        %7909 = vmatpush1.bf16.msra.mxu0 0
        %7910 = vmatprep.subr.bf16.mxu0 0
        %7911 = vmatpush1.bf16.msra.mxu0 0
        %7912 = vmatprep.subr.bf16.mxu0 0
        %7913 = vmatpush1.bf16.msra.mxu0 0
        %7914 = vmatprep.subr.bf16.mxu0 0
        %7915 = vmatpush1.bf16.msra.mxu0 0
        %7916 = vmatprep.subr.bf16.mxu0 0
        %7917 = vmatpush1.bf16.msra.mxu0 0
        %7918 = vmatprep.subr.bf16.mxu0 0
        %7919 = vmatpush1.bf16.msra.mxu0 0
        %7920 = vmatprep.subr.bf16.mxu0 0
        %7921 = vmatpush1.bf16.msra.mxu0 0
        %7922 = vmatprep.subr.bf16.mxu0 0
        %7923 = vmatpush1.bf16.msra.mxu0 0
        %7924 = vmatprep.mubr.bf16.mxu0 0
        %7925 = vmatmul.mubr.bf16.gmra.mrb[0].mxu0 %v7818
        %v7926 = vpop.f32.mrb[0].mxu0
        %v7927 = vadd.f32 0.0, %v7926
        %v7928 = vpop.f32.mrb[0].mxu0
        %v7929 = vpop.f32.mrb[0].mxu0
        %v7930 = vadd.f32 0.0, %v7929
        %v7931 = vpop.f32.mrb[0].mxu0
        %7932 = vmatprep.mubr.bf16.mxu0 0
        %7933 = vmatmul.mubr.bf16.gmra.mrb[0].mxu0 %v7820
        %v7934 = vpop.f32.mrb[0].mxu0
        %v7935 = vadd.f32 0.0, %v7934
        %v7936 = vpop.f32.mrb[0].mxu0
        %v7937 = vpop.f32.mrb[0].mxu0
        %v7938 = vadd.f32 0.0, %v7937
        %v7939 = vpop.f32.mrb[0].mxu0
        %7940 = vmatprep.mubr.bf16.mxu0 0
        %7941 = vmatmul.mubr.bf16.gmra.mrb[0].mxu0 %v7822
        %v7942 = vpop.f32.mrb[0].mxu0
        %v7943 = vadd.f32 0.0, %v7942
        %v7944 = vpop.f32.mrb[0].mxu0
        %v7945 = vpop.f32.mrb[0].mxu0
        %v7946 = vadd.f32 0.0, %v7945
        %v7947 = vpop.f32.mrb[0].mxu0
        %7948 = vmatprep.mubr.bf16.mxu0 0
        %7949 = vmatmul.mubr.bf16.gmra.mrb[0].mxu0 %v7824
        %v7950 = vpop.f32.mrb[0].mxu0
        %v7951 = vadd.f32 0.0, %v7950
        %v7952 = vpop.f32.mrb[0].mxu0
        %v7953 = vpop.f32.mrb[0].mxu0
        %v7954 = vadd.f32 0.0, %v7953
        %v7955 = vpop.f32.mrb[0].mxu0
        %7956 = vmatprep.mubr.bf16.mxu0 0
        %7957 = vmatmul.mubr.bf16.gmra.mrb[0].mxu0 %v7826
        %v7958 = vpop.f32.mrb[0].mxu0
        %v7959 = vadd.f32 0.0, %v7958
        %v7960 = vpop.f32.mrb[0].mxu0
        %v7961 = vpop.f32.mrb[0].mxu0
        %v7962 = vadd.f32 0.0, %v7961
        %v7963 = vpop.f32.mrb[0].mxu0
        %7964 = vmatprep.mubr.bf16.mxu0 0
        %7965 = vmatmul.mubr.bf16.gmra.mrb[0].mxu0 %v7828
        %v7966 = vpop.f32.mrb[0].mxu0
        %v7967 = vadd.f32 0.0, %v7966
        %v7968 = vpop.f32.mrb[0].mxu0
        %v7969 = vpop.f32.mrb[0].mxu0
        %v7970 = vadd.f32 0.0, %v7969
        %v7971 = vpop.f32.mrb[0].mxu0
        %7972 = vmatprep.mubr.bf16.mxu0 0
        %7973 = vmatmul.mubr.bf16.gmra.mrb[0].mxu0 %v7830
        %v7974 = vpop.f32.mrb[0].mxu0
        %v7975 = vadd.f32 0.0, %v7974
        %v7976 = vpop.f32.mrb[0].mxu0
        %v7977 = vpop.f32.mrb[0].mxu0
        %v7978 = vadd.f32 0.0, %v7977
        %v7979 = vpop.f32.mrb[0].mxu0
        %7980 = vmatprep.mubr.bf16.mxu0 0
        %7981 = vmatmul.mubr.bf16.gmra.mrb[0].mxu0 %v7832
        %v7982 = vpop.f32.mrb[0].mxu0
        %v7983 = vadd.f32 0.0, %v7982
        %v7984 = vpop.f32.mrb[0].mxu0
        %v7985 = vpop.f32.mrb[0].mxu0
        %v7986 = vadd.f32 0.0, %v7985
        %v7987 = vpop.f32.mrb[0].mxu0
        %7988 = vmatprep.mubr.bf16.mxu0 0
        %7989 = vmatmul.mubr.bf16.gmra.mrb[0].mxu0 %v7834
        %v7990 = vpop.f32.mrb[0].mxu0
        %v7991 = vadd.f32 0.0, %v7990
        %v7992 = vpop.f32.mrb[0].mxu0
        %v7993 = vpop.f32.mrb[0].mxu0
        %v7994 = vadd.f32 0.0, %v7993
        %v7995 = vpop.f32.mrb[0].mxu0
        %7996 = vdwg.mxu0
        %v7997 = vadd.f32 %v7778, %v7927
        %v7998 = vadd.f32 %v7779, %v7930
        %v7999 = vadd.f32 %v7780, %v7935
        %v8000 = vadd.f32 %v7781, %v7938
        %v8001 = vadd.f32 %v7782, %v7943
        %v8002 = vadd.f32 %v7783, %v7946
        %v8003 = vadd.f32 %v7784, %v7951
        %v8004 = vadd.f32 %v7785, %v7954
        %v8005 = vadd.f32 %v7786, %v7959
        %v8006 = vadd.f32 %v7787, %v7962
        %v8007 = vadd.f32 %v7788, %v7967
        %v8008 = vadd.f32 %v7789, %v7970
        %v8009 = vadd.f32 %v7790, %v7975
        %v8010 = vadd.f32 %v7791, %v7978
        %v8011 = vadd.f32 %v7792, %v7983
        %v8012 = vadd.f32 %v7793, %v7986
        %v8013 = vadd.f32 %v7794, %v7991
        %v8014 = vadd.f32 %v7795, %v7994
        %v8015 = vld [vmem:[#allocation2 + $0x58] sm:$0xc]
        %v8016 = vld [vmem:[#allocation2 + $0x5c] sm:$0xf]
        %v8017 = vld [vmem:[#allocation2 + $0x60] sm:$0xf]
        %v8018 = vld [vmem:[#allocation2 + $0x64] sm:$0xf]
        %v8019 = vld [vmem:[#allocation2 + $0x68] sm:$0xf]
        %v8020 = vld [vmem:[#allocation2 + $0x6c] sm:$0xf]
        %v8021 = vld [vmem:[#allocation2 + $0x70] sm:$0xf]
        %v8022 = vld [vmem:[#allocation2 + $0x74] sm:$0xf]
        %v8023 = vld [vmem:[#allocation2 + $0x78] sm:$0xf]
        %v8024 = vld [vmem:[#allocation2 + $0x7c] sm:$0xf]
        %v8025 = vld [vmem:[#allocation2 + $0x80] sm:$0xf]
        %v8026 = vld [vmem:[#allocation2 + $0x84] sm:$0xf]
        %v8027 = vld [vmem:[#allocation2 + $0x88] sm:$0xf]
        %v8028 = vld [vmem:[#allocation2 + $0x8c] sm:$0xf]
        %v8029 = vld [vmem:[#allocation2 + $0x90] sm:$0xf]
        %v8030 = vld [vmem:[#allocation2 + $0x94] sm:$0xf]
        %v8031 = vld [vmem:[#allocation2 + $0x98] sm:$0xf]
        %v8032 = vld [vmem:[#allocation2 + $0x9c] sm:$0xf]
        %v8033 = vld [vmem:[#allocation2 + $0xa0] sm:$0x3]
        %v8034 = vld [vmem:[%s4520] sm:$0xf]
        %v8035 = vld [vmem:[%s4520 + $0x4] sm:$0xf]
        %v8036 = vld [vmem:[%s4520 + $0x8] sm:$0xf]
        %v8037 = vld [vmem:[%s4520 + $0xc] sm:$0xf]
        %v8038 = vld [vmem:[%s4520 + $0x10] sm:$0xf]
        %v8039 = vld [vmem:[%s4520 + $0x14] sm:$0xf]
        %v8040 = vld [vmem:[%s4520 + $0x18] sm:$0xf]
        %v8041 = vld [vmem:[%s4520 + $0x1c] sm:$0xf]
        %v8042 = vld [vmem:[%s4520 + $0x20] sm:$0xf]
        %v8043 = vld [vmem:[%s4520 + $0x24] sm:$0xf]
        %v8044 = vld [vmem:[%s4520 + $0x28] sm:$0xf]
        %v8045 = vld [vmem:[%s4520 + $0x2c] sm:$0xf]
        %v8046 = vld [vmem:[%s4520 + $0x30] sm:$0xf]
        %v8047 = vld [vmem:[%s4520 + $0x34] sm:$0xf]
        %v8048 = vld [vmem:[%s4520 + $0x38] sm:$0xf]
        %v8049 = vld [vmem:[%s4520 + $0x3c] sm:$0xf]
        %v8069 = vunpack.c.l.b16 %v8015
        %v8070 = vunpack.c.l.b16 %v8016
        %v8071 = vunpack.c.l.b16 %v8017
        %v8072 = vunpack.c.l.b16 %v8018
        %v8073 = vunpack.c.l.b16 %v8019
        %v8074 = vunpack.c.l.b16 %v8020
        %v8075 = vunpack.c.l.b16 %v8021
        %v8076 = vunpack.c.l.b16 %v8022
        %v8077 = vunpack.c.l.b16 %v8023
        %v8078 = vunpack.c.l.b16 %v8024
        %v8079 = vunpack.c.l.b16 %v8025
        %v8080 = vunpack.c.l.b16 %v8026
        %v8081 = vunpack.c.l.b16 %v8027
        %v8082 = vunpack.c.l.b16 %v8028
        %v8083 = vunpack.c.l.b16 %v8029
        %v8084 = vunpack.c.l.b16 %v8030
        %v8085 = vunpack.c.l.b16 %v8031
        %v8086 = vunpack.c.l.b16 %v8032
        %v8087 = vunpack.c.l.b16 %v8033
        %v8088 = vpack.c.b16 %v8070, %v8069
        %v8089 = vpack.c.b16 %v8072, %v8071
        %v8090 = vpack.c.b16 %v8074, %v8073
        %v8091 = vpack.c.b16 %v8076, %v8075
        %v8092 = vpack.c.b16 %v8078, %v8077
        %v8093 = vpack.c.b16 %v8080, %v8079
        %v8094 = vpack.c.b16 %v8082, %v8081
        %v8095 = vpack.c.b16 %v8084, %v8083
        %v8096 = vpack.c.b16 %v8086, %v8085
        %v8097 = vpack.c.b16 %v8087, %v8087
        %v8098 = vrot.slane %v8088, 2
        %v8099 = vrot.slane %v8089, 2
        %v8100 = vsel %vm4301, %v8098, %v8099
        %v8101 = vrot.slane %v8090, 2
        %v8102 = vsel %vm4301, %v8099, %v8101
        %v8103 = vrot.slane %v8091, 2
        %v8104 = vsel %vm4301, %v8101, %v8103
        %v8105 = vrot.slane %v8092, 2
        %v8106 = vsel %vm4301, %v8103, %v8105
        %v8107 = vrot.slane %v8093, 2
        %v8108 = vsel %vm4301, %v8105, %v8107
        %v8109 = vrot.slane %v8094, 2
        %v8110 = vsel %vm4301, %v8107, %v8109
        %v8111 = vrot.slane %v8095, 2
        %v8112 = vsel %vm4301, %v8109, %v8111
        %v8113 = vrot.slane %v8096, 2
        %v8114 = vsel %vm4301, %v8111, %v8113
        %v8115 = vrot.slane %v8097, 2
        %v8116 = vsel %vm4301, %v8113, %v8115
        %v8142 = vunpack.c.l.b16 %v8034
        %v8143 = vunpack.c.l.b16 %v8035
        %v8144 = vunpack.c.l.b16 %v8036
        %v8145 = vunpack.c.l.b16 %v8037
        %v8146 = vunpack.c.l.b16 %v8038
        %v8147 = vunpack.c.l.b16 %v8039
        %v8148 = vunpack.c.l.b16 %v8040
        %v8149 = vunpack.c.l.b16 %v8041
        %v8150 = vunpack.c.l.b16 %v8042
        %v8151 = vunpack.c.l.b16 %v8043
        %v8152 = vunpack.c.l.b16 %v8044
        %v8153 = vunpack.c.l.b16 %v8045
        %v8154 = vunpack.c.l.b16 %v8046
        %v8155 = vunpack.c.l.b16 %v8047
        %v8156 = vunpack.c.l.b16 %v8048
        %v8157 = vunpack.c.l.b16 %v8049
        %v8158 = vpack.c.b16 %v8143, %v8142
        %v8159 = vpack.c.b16 %v8145, %v8144
        %v8160 = vpack.c.b16 %v8147, %v8146
        %v8161 = vpack.c.b16 %v8149, %v8148
        %v8162 = vpack.c.b16 %v8151, %v8150
        %v8163 = vpack.c.b16 %v8153, %v8152
        %v8164 = vpack.c.b16 %v8155, %v8154
        %v8165 = vpack.c.b16 %v8157, %v8156
        %8174 = vmatprep.subr.bf16.mxu0 0
        %8175 = vmatpush1.bf16.msra.mxu0 %v8158
        %8176 = vmatprep.subr.bf16.mxu0 0
        %8177 = vmatpush1.bf16.msra.mxu0 %v8159
        %8178 = vmatprep.subr.bf16.mxu0 0
        %8179 = vmatpush1.bf16.msra.mxu0 %v8160
        %8180 = vmatprep.subr.bf16.mxu0 0
        %8181 = vmatpush1.bf16.msra.mxu0 %v8161
        %8182 = vmatprep.subr.bf16.mxu0 0
        %8183 = vmatpush1.bf16.msra.mxu0 %v8162
        %8184 = vmatprep.subr.bf16.mxu0 0
        %8185 = vmatpush1.bf16.msra.mxu0 %v8163
        %8186 = vmatprep.subr.bf16.mxu0 0
        %8187 = vmatpush1.bf16.msra.mxu0 %v8164
        %8188 = vmatprep.subr.bf16.mxu0 0
        %8189 = vmatpush1.bf16.msra.mxu0 %v8165
        %8190 = vmatprep.subr.bf16.mxu0 0
        %8191 = vmatpush1.bf16.msra.mxu0 0
        %8192 = vmatprep.subr.bf16.mxu0 0
        %8193 = vmatpush1.bf16.msra.mxu0 0
        %8194 = vmatprep.subr.bf16.mxu0 0
        %8195 = vmatpush1.bf16.msra.mxu0 0
        %8196 = vmatprep.subr.bf16.mxu0 0
        %8197 = vmatpush1.bf16.msra.mxu0 0
        %8198 = vmatprep.subr.bf16.mxu0 0
        %8199 = vmatpush1.bf16.msra.mxu0 0
        %8200 = vmatprep.subr.bf16.mxu0 0
        %8201 = vmatpush1.bf16.msra.mxu0 0
        %8202 = vmatprep.subr.bf16.mxu0 0
        %8203 = vmatpush1.bf16.msra.mxu0 0
        %8204 = vmatprep.subr.bf16.mxu0 0
        %8205 = vmatpush1.bf16.msra.mxu0 0
        %8206 = vmatprep.mubr.bf16.mxu0 0
        %8207 = vmatmul.mubr.bf16.gmra.mrb[0].mxu0 %v8100
        %v8208 = vpop.f32.mrb[0].mxu0
        %v8209 = vadd.f32 0.0, %v8208
        %v8210 = vpop.f32.mrb[0].mxu0
        %v8211 = vpop.f32.mrb[0].mxu0
        %v8212 = vadd.f32 0.0, %v8211
        %v8213 = vpop.f32.mrb[0].mxu0
        %8214 = vmatprep.mubr.bf16.mxu0 0
        %8215 = vmatmul.mubr.bf16.gmra.mrb[0].mxu0 %v8102
        %v8216 = vpop.f32.mrb[0].mxu0
        %v8217 = vadd.f32 0.0, %v8216
        %v8218 = vpop.f32.mrb[0].mxu0
        %v8219 = vpop.f32.mrb[0].mxu0
        %v8220 = vadd.f32 0.0, %v8219
        %v8221 = vpop.f32.mrb[0].mxu0
        %8222 = vmatprep.mubr.bf16.mxu0 0
        %8223 = vmatmul.mubr.bf16.gmra.mrb[0].mxu0 %v8104
        %v8224 = vpop.f32.mrb[0].mxu0
        %v8225 = vadd.f32 0.0, %v8224
        %v8226 = vpop.f32.mrb[0].mxu0
        %v8227 = vpop.f32.mrb[0].mxu0
        %v8228 = vadd.f32 0.0, %v8227
        %v8229 = vpop.f32.mrb[0].mxu0
        %8230 = vmatprep.mubr.bf16.mxu0 0
        %8231 = vmatmul.mubr.bf16.gmra.mrb[0].mxu0 %v8106
        %v8232 = vpop.f32.mrb[0].mxu0
        %v8233 = vadd.f32 0.0, %v8232
        %v8234 = vpop.f32.mrb[0].mxu0
        %v8235 = vpop.f32.mrb[0].mxu0
        %v8236 = vadd.f32 0.0, %v8235
        %v8237 = vpop.f32.mrb[0].mxu0
        %8238 = vmatprep.mubr.bf16.mxu0 0
        %8239 = vmatmul.mubr.bf16.gmra.mrb[0].mxu0 %v8108
        %v8240 = vpop.f32.mrb[0].mxu0
        %v8241 = vadd.f32 0.0, %v8240
        %v8242 = vpop.f32.mrb[0].mxu0
        %v8243 = vpop.f32.mrb[0].mxu0
        %v8244 = vadd.f32 0.0, %v8243
        %v8245 = vpop.f32.mrb[0].mxu0
        %8246 = vmatprep.mubr.bf16.mxu0 0
        %8247 = vmatmul.mubr.bf16.gmra.mrb[0].mxu0 %v8110
        %v8248 = vpop.f32.mrb[0].mxu0
        %v8249 = vadd.f32 0.0, %v8248
        %v8250 = vpop.f32.mrb[0].mxu0
        %v8251 = vpop.f32.mrb[0].mxu0
        %v8252 = vadd.f32 0.0, %v8251
        %v8253 = vpop.f32.mrb[0].mxu0
        %8254 = vmatprep.mubr.bf16.mxu0 0
        %8255 = vmatmul.mubr.bf16.gmra.mrb[0].mxu0 %v8112
        %v8256 = vpop.f32.mrb[0].mxu0
        %v8257 = vadd.f32 0.0, %v8256
        %v8258 = vpop.f32.mrb[0].mxu0
        %v8259 = vpop.f32.mrb[0].mxu0
        %v8260 = vadd.f32 0.0, %v8259
        %v8261 = vpop.f32.mrb[0].mxu0
        %8262 = vmatprep.mubr.bf16.mxu0 0
        %8263 = vmatmul.mubr.bf16.gmra.mrb[0].mxu0 %v8114
        %v8264 = vpop.f32.mrb[0].mxu0
        %v8265 = vadd.f32 0.0, %v8264
        %v8266 = vpop.f32.mrb[0].mxu0
        %v8267 = vpop.f32.mrb[0].mxu0
        %v8268 = vadd.f32 0.0, %v8267
        %v8269 = vpop.f32.mrb[0].mxu0
        %8270 = vmatprep.mubr.bf16.mxu0 0
        %8271 = vmatmul.mubr.bf16.gmra.mrb[0].mxu0 %v8116
        %v8272 = vpop.f32.mrb[0].mxu0
        %v8273 = vadd.f32 0.0, %v8272
        %v8274 = vpop.f32.mrb[0].mxu0
        %v8275 = vpop.f32.mrb[0].mxu0
        %v8276 = vadd.f32 0.0, %v8275
        %v8277 = vpop.f32.mrb[0].mxu0
        %8278 = vdwg.mxu0
        %v8279 = vadd.f32 %v7997, %v8209
        %v8280 = vadd.f32 %v7998, %v8212
        %v8281 = vadd.f32 %v7999, %v8217
        %v8282 = vadd.f32 %v8000, %v8220
        %v8283 = vadd.f32 %v8001, %v8225
        %v8284 = vadd.f32 %v8002, %v8228
        %v8285 = vadd.f32 %v8003, %v8233
        %v8286 = vadd.f32 %v8004, %v8236
        %v8287 = vadd.f32 %v8005, %v8241
        %v8288 = vadd.f32 %v8006, %v8244
        %v8289 = vadd.f32 %v8007, %v8249
        %v8290 = vadd.f32 %v8008, %v8252
        %v8291 = vadd.f32 %v8009, %v8257
        %v8292 = vadd.f32 %v8010, %v8260
        %v8293 = vadd.f32 %v8011, %v8265
        %v8294 = vadd.f32 %v8012, %v8268
        %v8295 = vadd.f32 %v8013, %v8273
        %v8296 = vadd.f32 %v8014, %v8276
        %v8297 = vld [vmem:[#allocation2 + $0xa0] sm:$0x7]
        %v8298 = vld [vmem:[%s4785] sm:$0xf]
        %v8299 = vld [vmem:[%s4785 + $0x4] sm:$0xf]
        %v8300 = vld [vmem:[%s4785 + $0x8] sm:$0xf]
        %v8301 = vld [vmem:[%s4785 + $0xc] sm:$0xf]
        %v8302 = vld [vmem:[%s4785 + $0x10] sm:$0xf]
        %v8303 = vld [vmem:[%s4785 + $0x14] sm:$0xf]
        %v8304 = vld [vmem:[%s4785 + $0x18] sm:$0xf]
        %v8305 = vld [vmem:[%s4785 + $0x1c] sm:$0xf]
        %v8306 = vld [vmem:[%s4785 + $0x20] sm:$0xf]
        %v8307 = vld [vmem:[%s4785 + $0x24] sm:$0xf]
        %v8308 = vld [vmem:[%s4785 + $0x28] sm:$0xf]
        %v8309 = vld [vmem:[%s4785 + $0x2c] sm:$0xf]
        %v8310 = vld [vmem:[%s4785 + $0x30] sm:$0xf]
        %v8311 = vld [vmem:[%s4785 + $0x34] sm:$0xf]
        %v8312 = vld [vmem:[%s4785 + $0x38] sm:$0xf]
        %v8313 = vld [vmem:[%s4785 + $0x3c] sm:$0xf]
        %v8315 = vunpack.c.l.b16 %v8297
        %v8316 = vpack.c.b16 %v8315, %v8315
        %v8318 = vshrl.u32 %v8088, 16
        %v8320 = vrot.slane %v8318, 2
        %v8321 = vshll.u32 %v8088, 16
        %v8323 = vrot.slane %v8321, 3
        %v8324 = vor.u32 %v8320, %v8323
        %v8326 = vshrl.u32 %v8089, 16
        %v8328 = vrot.slane %v8326, 2
        %v8329 = vshll.u32 %v8089, 16
        %v8331 = vrot.slane %v8329, 3
        %v8332 = vor.u32 %v8328, %v8331
        %v8333 = vsel %vm4805, %v8324, %v8332
        %v8335 = vshrl.u32 %v8090, 16
        %v8337 = vrot.slane %v8335, 2
        %v8338 = vshll.u32 %v8090, 16
        %v8340 = vrot.slane %v8338, 3
        %v8341 = vor.u32 %v8337, %v8340
        %v8342 = vsel %vm4805, %v8332, %v8341
        %v8344 = vshrl.u32 %v8091, 16
        %v8346 = vrot.slane %v8344, 2
        %v8347 = vshll.u32 %v8091, 16
        %v8349 = vrot.slane %v8347, 3
        %v8350 = vor.u32 %v8346, %v8349
        %v8351 = vsel %vm4805, %v8341, %v8350
        %v8353 = vshrl.u32 %v8092, 16
        %v8355 = vrot.slane %v8353, 2
        %v8356 = vshll.u32 %v8092, 16
        %v8358 = vrot.slane %v8356, 3
        %v8359 = vor.u32 %v8355, %v8358
        %v8360 = vsel %vm4805, %v8350, %v8359
        %v8362 = vshrl.u32 %v8093, 16
        %v8364 = vrot.slane %v8362, 2
        %v8365 = vshll.u32 %v8093, 16
        %v8367 = vrot.slane %v8365, 3
        %v8368 = vor.u32 %v8364, %v8367
        %v8369 = vsel %vm4805, %v8359, %v8368
        %v8371 = vshrl.u32 %v8094, 16
        %v8373 = vrot.slane %v8371, 2
        %v8374 = vshll.u32 %v8094, 16
        %v8376 = vrot.slane %v8374, 3
        %v8377 = vor.u32 %v8373, %v8376
        %v8378 = vsel %vm4805, %v8368, %v8377
        %v8380 = vshrl.u32 %v8095, 16
        %v8382 = vrot.slane %v8380, 2
        %v8383 = vshll.u32 %v8095, 16
        %v8385 = vrot.slane %v8383, 3
        %v8386 = vor.u32 %v8382, %v8385
        %v8387 = vsel %vm4805, %v8377, %v8386
        %v8389 = vshrl.u32 %v8096, 16
        %v8391 = vrot.slane %v8389, 2
        %v8392 = vshll.u32 %v8096, 16
        %v8394 = vrot.slane %v8392, 3
        %v8395 = vor.u32 %v8391, %v8394
        %v8396 = vsel %vm4805, %v8386, %v8395
        %v8398 = vshrl.u32 %v8316, 16
        %v8400 = vrot.slane %v8398, 2
        %v8401 = vshll.u32 %v8316, 16
        %v8403 = vrot.slane %v8401, 3
        %v8404 = vor.u32 %v8400, %v8403
        %v8405 = vsel %vm4805, %v8395, %v8404
        %v8431 = vunpack.c.l.b16 %v8298
        %v8432 = vunpack.c.l.b16 %v8299
        %v8433 = vunpack.c.l.b16 %v8300
        %v8434 = vunpack.c.l.b16 %v8301
        %v8435 = vunpack.c.l.b16 %v8302
        %v8436 = vunpack.c.l.b16 %v8303
        %v8437 = vunpack.c.l.b16 %v8304
        %v8438 = vunpack.c.l.b16 %v8305
        %v8439 = vunpack.c.l.b16 %v8306
        %v8440 = vunpack.c.l.b16 %v8307
        %v8441 = vunpack.c.l.b16 %v8308
        %v8442 = vunpack.c.l.b16 %v8309
        %v8443 = vunpack.c.l.b16 %v8310
        %v8444 = vunpack.c.l.b16 %v8311
        %v8445 = vunpack.c.l.b16 %v8312
        %v8446 = vunpack.c.l.b16 %v8313
        %v8447 = vpack.c.b16 %v8432, %v8431
        %v8448 = vpack.c.b16 %v8434, %v8433
        %v8449 = vpack.c.b16 %v8436, %v8435
        %v8450 = vpack.c.b16 %v8438, %v8437
        %v8451 = vpack.c.b16 %v8440, %v8439
        %v8452 = vpack.c.b16 %v8442, %v8441
        %v8453 = vpack.c.b16 %v8444, %v8443
        %v8454 = vpack.c.b16 %v8446, %v8445
        %8463 = vmatprep.subr.bf16.mxu0 0
        %8464 = vmatpush1.bf16.msra.mxu0 %v8447
        %8465 = vmatprep.subr.bf16.mxu0 0
        %8466 = vmatpush1.bf16.msra.mxu0 %v8448
        %8467 = vmatprep.subr.bf16.mxu0 0
        %8468 = vmatpush1.bf16.msra.mxu0 %v8449
        %8469 = vmatprep.subr.bf16.mxu0 0
        %8470 = vmatpush1.bf16.msra.mxu0 %v8450
        %8471 = vmatprep.subr.bf16.mxu0 0
        %8472 = vmatpush1.bf16.msra.mxu0 %v8451
        %8473 = vmatprep.subr.bf16.mxu0 0
        %8474 = vmatpush1.bf16.msra.mxu0 %v8452
        %8475 = vmatprep.subr.bf16.mxu0 0
        %8476 = vmatpush1.bf16.msra.mxu0 %v8453
        %8477 = vmatprep.subr.bf16.mxu0 0
        %8478 = vmatpush1.bf16.msra.mxu0 %v8454
        %8479 = vmatprep.subr.bf16.mxu0 0
        %8480 = vmatpush1.bf16.msra.mxu0 0
        %8481 = vmatprep.subr.bf16.mxu0 0
        %8482 = vmatpush1.bf16.msra.mxu0 0
        %8483 = vmatprep.subr.bf16.mxu0 0
        %8484 = vmatpush1.bf16.msra.mxu0 0
        %8485 = vmatprep.subr.bf16.mxu0 0
        %8486 = vmatpush1.bf16.msra.mxu0 0
        %8487 = vmatprep.subr.bf16.mxu0 0
        %8488 = vmatpush1.bf16.msra.mxu0 0
        %8489 = vmatprep.subr.bf16.mxu0 0
        %8490 = vmatpush1.bf16.msra.mxu0 0
        %8491 = vmatprep.subr.bf16.mxu0 0
        %8492 = vmatpush1.bf16.msra.mxu0 0
        %8493 = vmatprep.subr.bf16.mxu0 0
        %8494 = vmatpush1.bf16.msra.mxu0 0
        %8495 = vmatprep.mubr.bf16.mxu0 0
        %8496 = vmatmul.mubr.bf16.gmra.mrb[0].mxu0 %v8333
        %v8497 = vpop.f32.mrb[0].mxu0
        %v8498 = vadd.f32 0.0, %v8497
        %v8499 = vpop.f32.mrb[0].mxu0
        %v8500 = vpop.f32.mrb[0].mxu0
        %v8501 = vadd.f32 0.0, %v8500
        %v8502 = vpop.f32.mrb[0].mxu0
        %8503 = vmatprep.mubr.bf16.mxu0 0
        %8504 = vmatmul.mubr.bf16.gmra.mrb[0].mxu0 %v8342
        %v8505 = vpop.f32.mrb[0].mxu0
        %v8506 = vadd.f32 0.0, %v8505
        %v8507 = vpop.f32.mrb[0].mxu0
        %v8508 = vpop.f32.mrb[0].mxu0
        %v8509 = vadd.f32 0.0, %v8508
        %v8510 = vpop.f32.mrb[0].mxu0
        %8511 = vmatprep.mubr.bf16.mxu0 0
        %8512 = vmatmul.mubr.bf16.gmra.mrb[0].mxu0 %v8351
        %v8513 = vpop.f32.mrb[0].mxu0
        %v8514 = vadd.f32 0.0, %v8513
        %v8515 = vpop.f32.mrb[0].mxu0
        %v8516 = vpop.f32.mrb[0].mxu0
        %v8517 = vadd.f32 0.0, %v8516
        %v8518 = vpop.f32.mrb[0].mxu0
        %8519 = vmatprep.mubr.bf16.mxu0 0
        %8520 = vmatmul.mubr.bf16.gmra.mrb[0].mxu0 %v8360
        %v8521 = vpop.f32.mrb[0].mxu0
        %v8522 = vadd.f32 0.0, %v8521
        %v8523 = vpop.f32.mrb[0].mxu0
        %v8524 = vpop.f32.mrb[0].mxu0
        %v8525 = vadd.f32 0.0, %v8524
        %v8526 = vpop.f32.mrb[0].mxu0
        %8527 = vmatprep.mubr.bf16.mxu0 0
        %8528 = vmatmul.mubr.bf16.gmra.mrb[0].mxu0 %v8369
        %v8529 = vpop.f32.mrb[0].mxu0
        %v8530 = vadd.f32 0.0, %v8529
        %v8531 = vpop.f32.mrb[0].mxu0
        %v8532 = vpop.f32.mrb[0].mxu0
        %v8533 = vadd.f32 0.0, %v8532
        %v8534 = vpop.f32.mrb[0].mxu0
        %8535 = vmatprep.mubr.bf16.mxu0 0
        %8536 = vmatmul.mubr.bf16.gmra.mrb[0].mxu0 %v8378
        %v8537 = vpop.f32.mrb[0].mxu0
        %v8538 = vadd.f32 0.0, %v8537
        %v8539 = vpop.f32.mrb[0].mxu0
        %v8540 = vpop.f32.mrb[0].mxu0
        %v8541 = vadd.f32 0.0, %v8540
        %v8542 = vpop.f32.mrb[0].mxu0
        %8543 = vmatprep.mubr.bf16.mxu0 0
        %8544 = vmatmul.mubr.bf16.gmra.mrb[0].mxu0 %v8387
        %v8545 = vpop.f32.mrb[0].mxu0
        %v8546 = vadd.f32 0.0, %v8545
        %v8547 = vpop.f32.mrb[0].mxu0
        %v8548 = vpop.f32.mrb[0].mxu0
        %v8549 = vadd.f32 0.0, %v8548
        %v8550 = vpop.f32.mrb[0].mxu0
        %8551 = vmatprep.mubr.bf16.mxu0 0
        %8552 = vmatmul.mubr.bf16.gmra.mrb[0].mxu0 %v8396
        %v8553 = vpop.f32.mrb[0].mxu0
        %v8554 = vadd.f32 0.0, %v8553
        %v8555 = vpop.f32.mrb[0].mxu0
        %v8556 = vpop.f32.mrb[0].mxu0
        %v8557 = vadd.f32 0.0, %v8556
        %v8558 = vpop.f32.mrb[0].mxu0
        %8559 = vmatprep.mubr.bf16.mxu0 0
        %8560 = vmatmul.mubr.bf16.gmra.mrb[0].mxu0 %v8405
        %v8561 = vpop.f32.mrb[0].mxu0
        %v8562 = vadd.f32 0.0, %v8561
        %v8563 = vpop.f32.mrb[0].mxu0
        %v8564 = vpop.f32.mrb[0].mxu0
        %v8565 = vadd.f32 0.0, %v8564
        %v8566 = vpop.f32.mrb[0].mxu0
        %8567 = vdwg.mxu0
        %v8568 = vadd.f32 %v8279, %v8498
        %v8569 = vadd.f32 %v8280, %v8501
        %v8570 = vadd.f32 %v8281, %v8506
        %v8571 = vadd.f32 %v8282, %v8509
        %v8572 = vadd.f32 %v8283, %v8514
        %v8573 = vadd.f32 %v8284, %v8517
        %v8574 = vadd.f32 %v8285, %v8522
        %v8575 = vadd.f32 %v8286, %v8525
        %v8576 = vadd.f32 %v8287, %v8530
        %v8577 = vadd.f32 %v8288, %v8533
        %v8578 = vadd.f32 %v8289, %v8538
        %v8579 = vadd.f32 %v8290, %v8541
        %v8580 = vadd.f32 %v8291, %v8546
        %v8581 = vadd.f32 %v8292, %v8549
        %v8582 = vadd.f32 %v8293, %v8554
        %v8583 = vadd.f32 %v8294, %v8557
        %v8584 = vadd.f32 %v8295, %v8562
        %v8585 = vadd.f32 %v8296, %v8565
        %v8586 = vld [vmem:[#allocation2 + $0x58] sm:$0x8]
        %v8587 = vld [vmem:[%s5076] sm:$0xf]
        %v8588 = vld [vmem:[%s5076 + $0x4] sm:$0xf]
        %v8589 = vld [vmem:[%s5076 + $0x8] sm:$0xf]
        %v8590 = vld [vmem:[%s5076 + $0xc] sm:$0xf]
        %v8591 = vld [vmem:[%s5076 + $0x10] sm:$0xf]
        %v8592 = vld [vmem:[%s5076 + $0x14] sm:$0xf]
        %v8593 = vld [vmem:[%s5076 + $0x18] sm:$0xf]
        %v8594 = vld [vmem:[%s5076 + $0x1c] sm:$0xf]
        %v8595 = vld [vmem:[%s5076 + $0x20] sm:$0xf]
        %v8596 = vld [vmem:[%s5076 + $0x24] sm:$0xf]
        %v8597 = vld [vmem:[%s5076 + $0x28] sm:$0xf]
        %v8598 = vld [vmem:[%s5076 + $0x2c] sm:$0xf]
        %v8599 = vld [vmem:[%s5076 + $0x30] sm:$0xf]
        %v8600 = vld [vmem:[%s5076 + $0x34] sm:$0xf]
        %v8601 = vld [vmem:[%s5076 + $0x38] sm:$0xf]
        %v8602 = vld [vmem:[%s5076 + $0x3c] sm:$0xf]
        %v8604 = vunpack.c.l.b16 %v8586
        %v8605 = vpack.c.b16 %v8070, %v8604
        %v8606 = vrot.slane %v8605, 3
        %v8607 = vrot.slane %v8089, 3
        %v8608 = vsel %vm5096, %v8606, %v8607
        %v8609 = vrot.slane %v8090, 3
        %v8610 = vsel %vm5096, %v8607, %v8609
        %v8611 = vrot.slane %v8091, 3
        %v8612 = vsel %vm5096, %v8609, %v8611
        %v8613 = vrot.slane %v8092, 3
        %v8614 = vsel %vm5096, %v8611, %v8613
        %v8615 = vrot.slane %v8093, 3
        %v8616 = vsel %vm5096, %v8613, %v8615
        %v8617 = vrot.slane %v8094, 3
        %v8618 = vsel %vm5096, %v8615, %v8617
        %v8619 = vrot.slane %v8095, 3
        %v8620 = vsel %vm5096, %v8617, %v8619
        %v8621 = vrot.slane %v8096, 3
        %v8622 = vsel %vm5096, %v8619, %v8621
        %v8623 = vrot.slane %v8316, 3
        %v8624 = vsel %vm5096, %v8621, %v8623
        %v8650 = vunpack.c.l.b16 %v8587
        %v8651 = vunpack.c.l.b16 %v8588
        %v8652 = vunpack.c.l.b16 %v8589
        %v8653 = vunpack.c.l.b16 %v8590
        %v8654 = vunpack.c.l.b16 %v8591
        %v8655 = vunpack.c.l.b16 %v8592
        %v8656 = vunpack.c.l.b16 %v8593
        %v8657 = vunpack.c.l.b16 %v8594
        %v8658 = vunpack.c.l.b16 %v8595
        %v8659 = vunpack.c.l.b16 %v8596
        %v8660 = vunpack.c.l.b16 %v8597
        %v8661 = vunpack.c.l.b16 %v8598
        %v8662 = vunpack.c.l.b16 %v8599
        %v8663 = vunpack.c.l.b16 %v8600
        %v8664 = vunpack.c.l.b16 %v8601
        %v8665 = vunpack.c.l.b16 %v8602
        %v8666 = vpack.c.b16 %v8651, %v8650
        %v8667 = vpack.c.b16 %v8653, %v8652
        %v8668 = vpack.c.b16 %v8655, %v8654
        %v8669 = vpack.c.b16 %v8657, %v8656
        %v8670 = vpack.c.b16 %v8659, %v8658
        %v8671 = vpack.c.b16 %v8661, %v8660
        %v8672 = vpack.c.b16 %v8663, %v8662
        %v8673 = vpack.c.b16 %v8665, %v8664
        %8682 = vmatprep.subr.bf16.mxu0 0
        %8683 = vmatpush1.bf16.msra.mxu0 %v8666
        %8684 = vmatprep.subr.bf16.mxu0 0
        %8685 = vmatpush1.bf16.msra.mxu0 %v8667
        %8686 = vmatprep.subr.bf16.mxu0 0
        %8687 = vmatpush1.bf16.msra.mxu0 %v8668
        %8688 = vmatprep.subr.bf16.mxu0 0
        %8689 = vmatpush1.bf16.msra.mxu0 %v8669
        %8690 = vmatprep.subr.bf16.mxu0 0
        %8691 = vmatpush1.bf16.msra.mxu0 %v8670
        %8692 = vmatprep.subr.bf16.mxu0 0
        %8693 = vmatpush1.bf16.msra.mxu0 %v8671
        %8694 = vmatprep.subr.bf16.mxu0 0
        %8695 = vmatpush1.bf16.msra.mxu0 %v8672
        %8696 = vmatprep.subr.bf16.mxu0 0
        %8697 = vmatpush1.bf16.msra.mxu0 %v8673
        %8698 = vmatprep.subr.bf16.mxu0 0
        %8699 = vmatpush1.bf16.msra.mxu0 0
        %8700 = vmatprep.subr.bf16.mxu0 0
        %8701 = vmatpush1.bf16.msra.mxu0 0
        %8702 = vmatprep.subr.bf16.mxu0 0
        %8703 = vmatpush1.bf16.msra.mxu0 0
        %8704 = vmatprep.subr.bf16.mxu0 0
        %8705 = vmatpush1.bf16.msra.mxu0 0
        %8706 = vmatprep.subr.bf16.mxu0 0
        %8707 = vmatpush1.bf16.msra.mxu0 0
        %8708 = vmatprep.subr.bf16.mxu0 0
        %8709 = vmatpush1.bf16.msra.mxu0 0
        %8710 = vmatprep.subr.bf16.mxu0 0
        %8711 = vmatpush1.bf16.msra.mxu0 0
        %8712 = vmatprep.subr.bf16.mxu0 0
        %8713 = vmatpush1.bf16.msra.mxu0 0
        %8714 = vmatprep.mubr.bf16.mxu0 0
        %8715 = vmatmul.mubr.bf16.gmra.mrb[0].mxu0 %v8608
        %v8716 = vpop.f32.mrb[0].mxu0
        %v8717 = vadd.f32 0.0, %v8716
        %v8718 = vpop.f32.mrb[0].mxu0
        %v8719 = vpop.f32.mrb[0].mxu0
        %v8720 = vadd.f32 0.0, %v8719
        %v8721 = vpop.f32.mrb[0].mxu0
        %8722 = vmatprep.mubr.bf16.mxu0 0
        %8723 = vmatmul.mubr.bf16.gmra.mrb[0].mxu0 %v8610
        %v8724 = vpop.f32.mrb[0].mxu0
        %v8725 = vadd.f32 0.0, %v8724
        %v8726 = vpop.f32.mrb[0].mxu0
        %v8727 = vpop.f32.mrb[0].mxu0
        %v8728 = vadd.f32 0.0, %v8727
        %v8729 = vpop.f32.mrb[0].mxu0
        %8730 = vmatprep.mubr.bf16.mxu0 0
        %8731 = vmatmul.mubr.bf16.gmra.mrb[0].mxu0 %v8612
        %v8732 = vpop.f32.mrb[0].mxu0
        %v8733 = vadd.f32 0.0, %v8732
        %v8734 = vpop.f32.mrb[0].mxu0
        %v8735 = vpop.f32.mrb[0].mxu0
        %v8736 = vadd.f32 0.0, %v8735
        %v8737 = vpop.f32.mrb[0].mxu0
        %8738 = vmatprep.mubr.bf16.mxu0 0
        %8739 = vmatmul.mubr.bf16.gmra.mrb[0].mxu0 %v8614
        %v8740 = vpop.f32.mrb[0].mxu0
        %v8741 = vadd.f32 0.0, %v8740
        %v8742 = vpop.f32.mrb[0].mxu0
        %v8743 = vpop.f32.mrb[0].mxu0
        %v8744 = vadd.f32 0.0, %v8743
        %v8745 = vpop.f32.mrb[0].mxu0
        %8746 = vmatprep.mubr.bf16.mxu0 0
        %8747 = vmatmul.mubr.bf16.gmra.mrb[0].mxu0 %v8616
        %v8748 = vpop.f32.mrb[0].mxu0
        %v8749 = vadd.f32 0.0, %v8748
        %v8750 = vpop.f32.mrb[0].mxu0
        %v8751 = vpop.f32.mrb[0].mxu0
        %v8752 = vadd.f32 0.0, %v8751
        %v8753 = vpop.f32.mrb[0].mxu0
        %8754 = vmatprep.mubr.bf16.mxu0 0
        %8755 = vmatmul.mubr.bf16.gmra.mrb[0].mxu0 %v8618
        %v8756 = vpop.f32.mrb[0].mxu0
        %v8757 = vadd.f32 0.0, %v8756
        %v8758 = vpop.f32.mrb[0].mxu0
        %v8759 = vpop.f32.mrb[0].mxu0
        %v8760 = vadd.f32 0.0, %v8759
        %v8761 = vpop.f32.mrb[0].mxu0
        %8762 = vmatprep.mubr.bf16.mxu0 0
        %8763 = vmatmul.mubr.bf16.gmra.mrb[0].mxu0 %v8620
        %v8764 = vpop.f32.mrb[0].mxu0
        %v8765 = vadd.f32 0.0, %v8764
        %v8766 = vpop.f32.mrb[0].mxu0
        %v8767 = vpop.f32.mrb[0].mxu0
        %v8768 = vadd.f32 0.0, %v8767
        %v8769 = vpop.f32.mrb[0].mxu0
        %8770 = vmatprep.mubr.bf16.mxu0 0
        %8771 = vmatmul.mubr.bf16.gmra.mrb[0].mxu0 %v8622
        %v8772 = vpop.f32.mrb[0].mxu0
        %v8773 = vadd.f32 0.0, %v8772
        %v8774 = vpop.f32.mrb[0].mxu0
        %v8775 = vpop.f32.mrb[0].mxu0
        %v8776 = vadd.f32 0.0, %v8775
        %v8777 = vpop.f32.mrb[0].mxu0
        %8778 = vmatprep.mubr.bf16.mxu0 0
        %8779 = vmatmul.mubr.bf16.gmra.mrb[0].mxu0 %v8624
        %v8780 = vpop.f32.mrb[0].mxu0
        %v8781 = vadd.f32 0.0, %v8780
        %v8782 = vpop.f32.mrb[0].mxu0
        %v8783 = vpop.f32.mrb[0].mxu0
        %v8784 = vadd.f32 0.0, %v8783
        %v8785 = vpop.f32.mrb[0].mxu0
        %8786 = vdwg.mxu0
        %v8787 = vadd.f32 %v8568, %v8717
        %v8788 = vadd.f32 %v8569, %v8720
        %v8789 = vadd.f32 %v8570, %v8725
        %v8790 = vadd.f32 %v8571, %v8728
        %v8791 = vadd.f32 %v8572, %v8733
        %v8792 = vadd.f32 %v8573, %v8736
        %v8793 = vadd.f32 %v8574, %v8741
        %v8794 = vadd.f32 %v8575, %v8744
        %v8795 = vadd.f32 %v8576, %v8749
        %v8796 = vadd.f32 %v8577, %v8752
        %v8797 = vadd.f32 %v8578, %v8757
        %v8798 = vadd.f32 %v8579, %v8760
        %v8799 = vadd.f32 %v8580, %v8765
        %v8800 = vadd.f32 %v8581, %v8768
        %v8801 = vadd.f32 %v8582, %v8773
        %v8802 = vadd.f32 %v8583, %v8776
        %v8803 = vadd.f32 %v8584, %v8781
        %v8804 = vadd.f32 %v8585, %v8784
        %v8823 = vcombine.high %v8787, %v8787
        %v8825 = vunpack.c.l.s4 1983009808
        %v8826 = vunpack.c.0.s8 %v8825
        %v8827 = vlaneseq
        %v8828 = vshrl.u32 %v8827, 7
        %v8829 = vsub.s32 %v8826, %v8828
        %v8830 = vrot.slane %v8787, %v8829
        %v8832 = vunpack.c.l.s4 1983009808
        %v8833 = vunpack.c.0.s8 %v8832
        %v8834 = vlaneseq
        %v8835 = vshrl.u32 %v8834, 7
        %v8836 = vsub.s32 %v8833, %v8835
        %v8837 = vrot.slane %v8823, %v8836
        %v8838 = vcombine.high %v8830, %v8830
        %v8839 = vcombine.high %v8837, %v8837
        %v8840 = vcombine.high %v8788, %v8788
        %v8842 = vunpack.c.l.s4 1983009808
        %v8843 = vunpack.c.0.s8 %v8842
        %v8844 = vlaneseq
        %v8845 = vshrl.u32 %v8844, 7
        %v8846 = vsub.s32 %v8843, %v8845
        %v8847 = vrot.slane %v8788, %v8846
        %v8849 = vunpack.c.l.s4 1983009808
        %v8850 = vunpack.c.0.s8 %v8849
        %v8851 = vlaneseq
        %v8852 = vshrl.u32 %v8851, 7
        %v8853 = vsub.s32 %v8850, %v8852
        %v8854 = vrot.slane %v8840, %v8853
        %v8855 = vcombine.high %v8847, %v8847
        %v8856 = vcombine.high %v8854, %v8854
        %v8857 = vcombine.high %v8789, %v8789
        %v8859 = vunpack.c.l.s4 1983009808
        %v8860 = vunpack.c.0.s8 %v8859
        %v8861 = vlaneseq
        %v8862 = vshrl.u32 %v8861, 7
        %v8863 = vsub.s32 %v8860, %v8862
        %v8864 = vrot.slane %v8789, %v8863
        %v8866 = vunpack.c.l.s4 1983009808
        %v8867 = vunpack.c.0.s8 %v8866
        %v8868 = vlaneseq
        %v8869 = vshrl.u32 %v8868, 7
        %v8870 = vsub.s32 %v8867, %v8869
        %v8871 = vrot.slane %v8857, %v8870
        %v8872 = vcombine.high %v8864, %v8864
        %v8873 = vcombine.high %v8871, %v8871
        %v8874 = vcombine.high %v8790, %v8790
        %v8876 = vunpack.c.l.s4 1983009808
        %v8877 = vunpack.c.0.s8 %v8876
        %v8878 = vlaneseq
        %v8879 = vshrl.u32 %v8878, 7
        %v8880 = vsub.s32 %v8877, %v8879
        %v8881 = vrot.slane %v8790, %v8880
        %v8883 = vunpack.c.l.s4 1983009808
        %v8884 = vunpack.c.0.s8 %v8883
        %v8885 = vlaneseq
        %v8886 = vshrl.u32 %v8885, 7
        %v8887 = vsub.s32 %v8884, %v8886
        %v8888 = vrot.slane %v8874, %v8887
        %v8889 = vcombine.high %v8881, %v8881
        %v8890 = vcombine.high %v8888, %v8888
        %v8891 = vcombine.high %v8791, %v8791
        %v8893 = vunpack.c.l.s4 1983009808
        %v8894 = vunpack.c.0.s8 %v8893
        %v8895 = vlaneseq
        %v8896 = vshrl.u32 %v8895, 7
        %v8897 = vsub.s32 %v8894, %v8896
        %v8898 = vrot.slane %v8791, %v8897
        %v8900 = vunpack.c.l.s4 1983009808
        %v8901 = vunpack.c.0.s8 %v8900
        %v8902 = vlaneseq
        %v8903 = vshrl.u32 %v8902, 7
        %v8904 = vsub.s32 %v8901, %v8903
        %v8905 = vrot.slane %v8891, %v8904
        %v8906 = vcombine.high %v8905, %v8905
        %v8907 = vcombine.high %v8792, %v8792
        %v8909 = vunpack.c.l.s4 1983009808
        %v8910 = vunpack.c.0.s8 %v8909
        %v8911 = vlaneseq
        %v8912 = vshrl.u32 %v8911, 7
        %v8913 = vsub.s32 %v8910, %v8912
        %v8914 = vrot.slane %v8792, %v8913
        %v8916 = vunpack.c.l.s4 1983009808
        %v8917 = vunpack.c.0.s8 %v8916
        %v8918 = vlaneseq
        %v8919 = vshrl.u32 %v8918, 7
        %v8920 = vsub.s32 %v8917, %v8919
        %v8921 = vrot.slane %v8907, %v8920
        %v8922 = vcombine.high %v8914, %v8914
        %v8923 = vcombine.high %v8921, %v8921
        %v8924 = vcombine.high %v8793, %v8793
        %v8926 = vunpack.c.l.s4 1983009808
        %v8927 = vunpack.c.0.s8 %v8926
        %v8928 = vlaneseq
        %v8929 = vshrl.u32 %v8928, 7
        %v8930 = vsub.s32 %v8927, %v8929
        %v8931 = vrot.slane %v8793, %v8930
        %v8933 = vunpack.c.l.s4 1983009808
        %v8934 = vunpack.c.0.s8 %v8933
        %v8935 = vlaneseq
        %v8936 = vshrl.u32 %v8935, 7
        %v8937 = vsub.s32 %v8934, %v8936
        %v8938 = vrot.slane %v8924, %v8937
        %v8939 = vcombine.high %v8931, %v8931
        %v8940 = vcombine.high %v8938, %v8938
        %v8941 = vcombine.high %v8794, %v8794
        %v8943 = vunpack.c.l.s4 1983009808
        %v8944 = vunpack.c.0.s8 %v8943
        %v8945 = vlaneseq
        %v8946 = vshrl.u32 %v8945, 7
        %v8947 = vsub.s32 %v8944, %v8946
        %v8948 = vrot.slane %v8794, %v8947
        %v8950 = vunpack.c.l.s4 1983009808
        %v8951 = vunpack.c.0.s8 %v8950
        %v8952 = vlaneseq
        %v8953 = vshrl.u32 %v8952, 7
        %v8954 = vsub.s32 %v8951, %v8953
        %v8955 = vrot.slane %v8941, %v8954
        %v8956 = vcombine.high %v8948, %v8948
        %v8957 = vcombine.high %v8955, %v8955
        %v8958 = vcombine.high %v8795, %v8795
        %v8960 = vunpack.c.l.s4 1983009808
        %v8961 = vunpack.c.0.s8 %v8960
        %v8962 = vlaneseq
        %v8963 = vshrl.u32 %v8962, 7
        %v8964 = vsub.s32 %v8961, %v8963
        %v8965 = vrot.slane %v8795, %v8964
        %v8967 = vunpack.c.l.s4 1983009808
        %v8968 = vunpack.c.0.s8 %v8967
        %v8969 = vlaneseq
        %v8970 = vshrl.u32 %v8969, 7
        %v8971 = vsub.s32 %v8968, %v8970
        %v8972 = vrot.slane %v8958, %v8971
        %v8973 = vcombine.high %v8965, %v8965
        %v8974 = vcombine.high %v8796, %v8796
        %v8976 = vunpack.c.l.s4 1983009808
        %v8977 = vunpack.c.0.s8 %v8976
        %v8978 = vlaneseq
        %v8979 = vshrl.u32 %v8978, 7
        %v8980 = vsub.s32 %v8977, %v8979
        %v8981 = vrot.slane %v8796, %v8980
        %v8983 = vunpack.c.l.s4 1983009808
        %v8984 = vunpack.c.0.s8 %v8983
        %v8985 = vlaneseq
        %v8986 = vshrl.u32 %v8985, 7
        %v8987 = vsub.s32 %v8984, %v8986
        %v8988 = vrot.slane %v8974, %v8987
        %v8989 = vcombine.high %v8981, %v8981
        %v8990 = vcombine.high %v8988, %v8988
        %v8991 = vcombine.high %v8797, %v8797
        %v8993 = vunpack.c.l.s4 1983009808
        %v8994 = vunpack.c.0.s8 %v8993
        %v8995 = vlaneseq
        %v8996 = vshrl.u32 %v8995, 7
        %v8997 = vsub.s32 %v8994, %v8996
        %v8998 = vrot.slane %v8797, %v8997
        %v9000 = vunpack.c.l.s4 1983009808
        %v9001 = vunpack.c.0.s8 %v9000
        %v9002 = vlaneseq
        %v9003 = vshrl.u32 %v9002, 7
        %v9004 = vsub.s32 %v9001, %v9003
        %v9005 = vrot.slane %v8991, %v9004
        %v9006 = vcombine.high %v8998, %v8998
        %v9007 = vcombine.high %v9005, %v9005
        %v9008 = vcombine.high %v8798, %v8798
        %v9010 = vunpack.c.l.s4 1983009808
        %v9011 = vunpack.c.0.s8 %v9010
        %v9012 = vlaneseq
        %v9013 = vshrl.u32 %v9012, 7
        %v9014 = vsub.s32 %v9011, %v9013
        %v9015 = vrot.slane %v8798, %v9014
        %v9017 = vunpack.c.l.s4 1983009808
        %v9018 = vunpack.c.0.s8 %v9017
        %v9019 = vlaneseq
        %v9020 = vshrl.u32 %v9019, 7
        %v9021 = vsub.s32 %v9018, %v9020
        %v9022 = vrot.slane %v9008, %v9021
        %v9023 = vcombine.high %v9015, %v9015
        %v9024 = vcombine.high %v9022, %v9022
        %v9025 = vcombine.high %v8799, %v8799
        %v9027 = vunpack.c.l.s4 1983009808
        %v9028 = vunpack.c.0.s8 %v9027
        %v9029 = vlaneseq
        %v9030 = vshrl.u32 %v9029, 7
        %v9031 = vsub.s32 %v9028, %v9030
        %v9032 = vrot.slane %v8799, %v9031
        %v9034 = vunpack.c.l.s4 1983009808
        %v9035 = vunpack.c.0.s8 %v9034
        %v9036 = vlaneseq
        %v9037 = vshrl.u32 %v9036, 7
        %v9038 = vsub.s32 %v9035, %v9037
        %v9039 = vrot.slane %v9025, %v9038
        %v9040 = vcombine.high %v9032, %v9032
        %v9041 = vcombine.high %v9039, %v9039
        %v9042 = vcombine.high %v8800, %v8800
        %v9044 = vunpack.c.l.s4 1983009808
        %v9045 = vunpack.c.0.s8 %v9044
        %v9046 = vlaneseq
        %v9047 = vshrl.u32 %v9046, 7
        %v9048 = vsub.s32 %v9045, %v9047
        %v9049 = vrot.slane %v8800, %v9048
        %v9051 = vunpack.c.l.s4 1983009808
        %v9052 = vunpack.c.0.s8 %v9051
        %v9053 = vlaneseq
        %v9054 = vshrl.u32 %v9053, 7
        %v9055 = vsub.s32 %v9052, %v9054
        %v9056 = vrot.slane %v9042, %v9055
        %v9057 = vcombine.high %v9056, %v9056
        %v9058 = vcombine.high %v8801, %v8801
        %v9060 = vunpack.c.l.s4 1983009808
        %v9061 = vunpack.c.0.s8 %v9060
        %v9062 = vlaneseq
        %v9063 = vshrl.u32 %v9062, 7
        %v9064 = vsub.s32 %v9061, %v9063
        %v9065 = vrot.slane %v8801, %v9064
        %v9067 = vunpack.c.l.s4 1983009808
        %v9068 = vunpack.c.0.s8 %v9067
        %v9069 = vlaneseq
        %v9070 = vshrl.u32 %v9069, 7
        %v9071 = vsub.s32 %v9068, %v9070
        %v9072 = vrot.slane %v9058, %v9071
        %v9073 = vcombine.high %v9065, %v9065
        %v9074 = vcombine.high %v9072, %v9072
        %v9075 = vcombine.high %v8802, %v8802
        %v9077 = vunpack.c.l.s4 1983009808
        %v9078 = vunpack.c.0.s8 %v9077
        %v9079 = vlaneseq
        %v9080 = vshrl.u32 %v9079, 7
        %v9081 = vsub.s32 %v9078, %v9080
        %v9082 = vrot.slane %v8802, %v9081
        %v9084 = vunpack.c.l.s4 1983009808
        %v9085 = vunpack.c.0.s8 %v9084
        %v9086 = vlaneseq
        %v9087 = vshrl.u32 %v9086, 7
        %v9088 = vsub.s32 %v9085, %v9087
        %v9089 = vrot.slane %v9075, %v9088
        %v9090 = vcombine.high %v9082, %v9082
        %v9091 = vcombine.high %v9089, %v9089
        %v9092 = vcombine.high %v8803, %v8803
        %v9094 = vunpack.c.l.s4 1983009808
        %v9095 = vunpack.c.0.s8 %v9094
        %v9096 = vlaneseq
        %v9097 = vshrl.u32 %v9096, 7
        %v9098 = vsub.s32 %v9095, %v9097
        %v9099 = vrot.slane %v8803, %v9098
        %v9101 = vunpack.c.l.s4 1983009808
        %v9102 = vunpack.c.0.s8 %v9101
        %v9103 = vlaneseq
        %v9104 = vshrl.u32 %v9103, 7
        %v9105 = vsub.s32 %v9102, %v9104
        %v9106 = vrot.slane %v9092, %v9105
        %v9107 = vcombine.high %v9099, %v9099
        %v9108 = vcombine.high %v9106, %v9106
        %v9109 = vcombine.high %v8804, %v8804
        %v9111 = vunpack.c.l.s4 1983009808
        %v9112 = vunpack.c.0.s8 %v9111
        %v9113 = vlaneseq
        %v9114 = vshrl.u32 %v9113, 7
        %v9115 = vsub.s32 %v9112, %v9114
        %v9116 = vrot.slane %v8804, %v9115
        %v9118 = vunpack.c.l.s4 1983009808
        %v9119 = vunpack.c.0.s8 %v9118
        %v9120 = vlaneseq
        %v9121 = vshrl.u32 %v9120, 7
        %v9122 = vsub.s32 %v9119, %v9121
        %v9123 = vrot.slane %v9109, %v9122
        %v9124 = vcombine.high %v9116, %v9116
        %v9189 = vld [vmem:[%s5] sm:$0x1]
        %v9191 = vlaneseq
        %v9192 = vshrl.u32 %v9191, 7
        %v9193 = vsub.s32 0, %v9192
        %v9194 = vrot.slane %v9189, %v9193
        %v9195 = vcombine.high %v9194, %v9194
        %v9197 = vunpack.c.l.s4 1983009808
        %v9198 = vunpack.c.0.s8 %v9197
        %v9199 = vlaneseq
        %v9200 = vshrl.u32 %v9199, 7
        %v9201 = vsub.s32 %v9198, %v9200
        %v9202 = vrot.slane %v9194, %v9201
        %v9204 = vunpack.c.l.s4 1983009808
        %v9205 = vunpack.c.0.s8 %v9204
        %v9206 = vlaneseq
        %v9207 = vshrl.u32 %v9206, 7
        %v9208 = vsub.s32 %v9205, %v9207
        %v9209 = vrot.slane %v9195, %v9208
        %v9210 = vcombine.high %v9202, %v9202
        %v9211 = vcombine.high %v9209, %v9209
        %v9216 = vadd.f32 %v8830, %v9202
        %v9217 = vadd.f32 %v8838, %v9210
        %v9218 = vadd.f32 %v8837, %v9209
        %v9219 = vadd.f32 %v8839, %v9211
        %v9220 = vadd.f32 %v8847, %v9202
        %v9221 = vadd.f32 %v8855, %v9210
        %v9222 = vadd.f32 %v8854, %v9209
        %v9223 = vadd.f32 %v8856, %v9211
        %v9224 = vadd.f32 %v8872, %v9202
        %v9225 = vadd.f32 %v8871, %v9210
        %v9226 = vadd.f32 %v8873, %v9209
        %v9227 = vadd.f32 %v8881, %v9211
        %v9228 = vadd.f32 %v8889, %v9202
        %v9229 = vadd.f32 %v8888, %v9210
        %v9230 = vadd.f32 %v8890, %v9209
        %v9231 = vadd.f32 %v8898, %v9211
        %v9232 = vadd.f32 %v8905, %v9202
        %v9233 = vadd.f32 %v8906, %v9210
        %v9234 = vadd.f32 %v8914, %v9209
        %v9235 = vadd.f32 %v8922, %v9211
        %v9236 = vadd.f32 %v8921, %v9202
        %v9237 = vadd.f32 %v8923, %v9210
        %v9238 = vadd.f32 %v8931, %v9209
        %v9239 = vadd.f32 %v8939, %v9211
        %v9240 = vadd.f32 %v8940, %v9202
        %v9241 = vadd.f32 %v8948, %v9210
        %v9242 = vadd.f32 %v8956, %v9209
        %v9243 = vadd.f32 %v8955, %v9211
        %v9244 = vadd.f32 %v8957, %v9202
        %v9245 = vadd.f32 %v8965, %v9210
        %v9246 = vadd.f32 %v8973, %v9209
        %v9247 = vadd.f32 %v8972, %v9211
        %v9248 = vadd.f32 %v8981, %v9202
        %v9249 = vadd.f32 %v8989, %v9210
        %v9250 = vadd.f32 %v8988, %v9209
        %v9251 = vadd.f32 %v8990, %v9211
        %v9252 = vadd.f32 %v8998, %v9202
        %v9253 = vadd.f32 %v9006, %v9210
        %v9254 = vadd.f32 %v9005, %v9209
        %v9255 = vadd.f32 %v9007, %v9211
        %v9256 = vadd.f32 %v9023, %v9202
        %v9257 = vadd.f32 %v9022, %v9210
        %v9258 = vadd.f32 %v9024, %v9209
        %v9259 = vadd.f32 %v9032, %v9211
        %v9260 = vadd.f32 %v9040, %v9202
        %v9261 = vadd.f32 %v9039, %v9210
        %v9262 = vadd.f32 %v9041, %v9209
        %v9263 = vadd.f32 %v9049, %v9211
        %v9264 = vadd.f32 %v9056, %v9202
        %v9265 = vadd.f32 %v9057, %v9210
        %v9266 = vadd.f32 %v9065, %v9209
        %v9267 = vadd.f32 %v9073, %v9211
        %v9268 = vadd.f32 %v9072, %v9202
        %v9269 = vadd.f32 %v9074, %v9210
        %v9270 = vadd.f32 %v9082, %v9209
        %v9271 = vadd.f32 %v9090, %v9211
        %v9272 = vadd.f32 %v9091, %v9202
        %v9273 = vadd.f32 %v9099, %v9210
        %v9274 = vadd.f32 %v9107, %v9209
        %v9275 = vadd.f32 %v9106, %v9211
        %v9276 = vadd.f32 %v9108, %v9202
        %v9277 = vadd.f32 %v9116, %v9210
        %v9278 = vadd.f32 %v9124, %v9209
        %v9279 = vadd.f32 %v9123, %v9211
        %v9280 = vmax.f32 %v9216, 0.0
        %v9281 = vmax.f32 %v9217, 0.0
        %v9282 = vmax.f32 %v9218, 0.0
        %v9283 = vmax.f32 %v9219, 0.0
        %v9284 = vmax.f32 %v9220, 0.0
        %v9285 = vmax.f32 %v9221, 0.0
        %v9286 = vmax.f32 %v9222, 0.0
        %v9287 = vmax.f32 %v9223, 0.0
        %v9288 = vmax.f32 %v9224, 0.0
        %v9289 = vmax.f32 %v9225, 0.0
        %v9290 = vmax.f32 %v9226, 0.0
        %v9291 = vmax.f32 %v9227, 0.0
        %v9292 = vmax.f32 %v9228, 0.0
        %v9293 = vmax.f32 %v9229, 0.0
        %v9294 = vmax.f32 %v9230, 0.0
        %v9295 = vmax.f32 %v9231, 0.0
        %v9296 = vmax.f32 %v9232, 0.0
        %v9297 = vmax.f32 %v9233, 0.0
        %v9298 = vmax.f32 %v9234, 0.0
        %v9299 = vmax.f32 %v9235, 0.0
        %v9300 = vmax.f32 %v9236, 0.0
        %v9301 = vmax.f32 %v9237, 0.0
        %v9302 = vmax.f32 %v9238, 0.0
        %v9303 = vmax.f32 %v9239, 0.0
        %v9304 = vmax.f32 %v9240, 0.0
        %v9305 = vmax.f32 %v9241, 0.0
        %v9306 = vmax.f32 %v9242, 0.0
        %v9307 = vmax.f32 %v9243, 0.0
        %v9308 = vmax.f32 %v9244, 0.0
        %v9309 = vmax.f32 %v9245, 0.0
        %v9310 = vmax.f32 %v9246, 0.0
        %v9311 = vmax.f32 %v9247, 0.0
        %v9312 = vmax.f32 %v9248, 0.0
        %v9313 = vmax.f32 %v9249, 0.0
        %v9314 = vmax.f32 %v9250, 0.0
        %v9315 = vmax.f32 %v9251, 0.0
        %v9316 = vmax.f32 %v9252, 0.0
        %v9317 = vmax.f32 %v9253, 0.0
        %v9318 = vmax.f32 %v9254, 0.0
        %v9319 = vmax.f32 %v9255, 0.0
        %v9320 = vmax.f32 %v9256, 0.0
        %v9321 = vmax.f32 %v9257, 0.0
        %v9322 = vmax.f32 %v9258, 0.0
        %v9323 = vmax.f32 %v9259, 0.0
        %v9324 = vmax.f32 %v9260, 0.0
        %v9325 = vmax.f32 %v9261, 0.0
        %v9326 = vmax.f32 %v9262, 0.0
        %v9327 = vmax.f32 %v9263, 0.0
        %v9328 = vmax.f32 %v9264, 0.0
        %v9329 = vmax.f32 %v9265, 0.0
        %v9330 = vmax.f32 %v9266, 0.0
        %v9331 = vmax.f32 %v9267, 0.0
        %v9332 = vmax.f32 %v9268, 0.0
        %v9333 = vmax.f32 %v9269, 0.0
        %v9334 = vmax.f32 %v9270, 0.0
        %v9335 = vmax.f32 %v9271, 0.0
        %v9336 = vmax.f32 %v9272, 0.0
        %v9337 = vmax.f32 %v9273, 0.0
        %v9338 = vmax.f32 %v9274, 0.0
        %v9339 = vmax.f32 %v9275, 0.0
        %v9340 = vmax.f32 %v9276, 0.0
        %v9341 = vmax.f32 %v9277, 0.0
        %v9342 = vmax.f32 %v9278, 0.0
        %v9343 = vmax.f32 %v9279, 0.0
        %v9408 = vcombine.low %v9280, %v9281
        %v9409 = vcombine.low %v9282, %v9283
        %v9411 = vunpack.c.l.s4 1983009808
        %v9412 = vunpack.c.0.s8 %v9411
        %v9413 = vlaneseq
        %v9414 = vshrl.u32 %v9413, 7
        %v9415 = vsub.s32 %v9412, %v9414
        %v9416 = vrot.slane %v9408, %v9415
        %v9418 = vunpack.c.l.s4 1983009808
        %v9419 = vunpack.c.0.s8 %v9418
        %v9420 = vlaneseq
        %v9421 = vshrl.u32 %v9420, 7
        %v9422 = vsub.s32 %v9419, %v9421
        %v9423 = vrot.slane %v9409, %v9422
        %v9424 = vcombine.low %v9416, %v9423
        %v9425 = vcombine.low %v9284, %v9285
        %v9426 = vcombine.low %v9286, %v9287
        %v9428 = vunpack.c.l.s4 1983009808
        %v9429 = vunpack.c.0.s8 %v9428
        %v9430 = vlaneseq
        %v9431 = vshrl.u32 %v9430, 7
        %v9432 = vsub.s32 %v9429, %v9431
        %v9433 = vrot.slane %v9425, %v9432
        %v9435 = vunpack.c.l.s4 1983009808
        %v9436 = vunpack.c.0.s8 %v9435
        %v9437 = vlaneseq
        %v9438 = vshrl.u32 %v9437, 7
        %v9439 = vsub.s32 %v9436, %v9438
        %v9440 = vrot.slane %v9426, %v9439
        %v9441 = vcombine.low %v9433, %v9440
        %v9442 = vcombine.low %v9288, %v9289
        %v9443 = vcombine.low %v9290, %v9291
        %v9445 = vunpack.c.l.s4 1983009808
        %v9446 = vunpack.c.0.s8 %v9445
        %v9447 = vlaneseq
        %v9448 = vshrl.u32 %v9447, 7
        %v9449 = vsub.s32 %v9446, %v9448
        %v9450 = vrot.slane %v9442, %v9449
        %v9452 = vunpack.c.l.s4 1983009808
        %v9453 = vunpack.c.0.s8 %v9452
        %v9454 = vlaneseq
        %v9455 = vshrl.u32 %v9454, 7
        %v9456 = vsub.s32 %v9453, %v9455
        %v9457 = vrot.slane %v9443, %v9456
        %v9458 = vcombine.low %v9450, %v9457
        %v9459 = vcombine.low %v9292, %v9293
        %v9460 = vcombine.low %v9294, %v9295
        %v9462 = vunpack.c.l.s4 1983009808
        %v9463 = vunpack.c.0.s8 %v9462
        %v9464 = vlaneseq
        %v9465 = vshrl.u32 %v9464, 7
        %v9466 = vsub.s32 %v9463, %v9465
        %v9467 = vrot.slane %v9459, %v9466
        %v9469 = vunpack.c.l.s4 1983009808
        %v9470 = vunpack.c.0.s8 %v9469
        %v9471 = vlaneseq
        %v9472 = vshrl.u32 %v9471, 7
        %v9473 = vsub.s32 %v9470, %v9472
        %v9474 = vrot.slane %v9460, %v9473
        %v9475 = vcombine.low %v9467, %v9474
        %v9476 = vcombine.low %v9296, %v9297
        %v9477 = vcombine.low %v9298, %v9299
        %v9479 = vunpack.c.l.s4 1983009808
        %v9480 = vunpack.c.0.s8 %v9479
        %v9481 = vlaneseq
        %v9482 = vshrl.u32 %v9481, 7
        %v9483 = vsub.s32 %v9480, %v9482
        %v9484 = vrot.slane %v9476, %v9483
        %v9486 = vunpack.c.l.s4 1983009808
        %v9487 = vunpack.c.0.s8 %v9486
        %v9488 = vlaneseq
        %v9489 = vshrl.u32 %v9488, 7
        %v9490 = vsub.s32 %v9487, %v9489
        %v9491 = vrot.slane %v9477, %v9490
        %v9492 = vcombine.low %v9484, %v9491
        %v9493 = vcombine.low %v9300, %v9301
        %v9494 = vcombine.low %v9302, %v9303
        %v9496 = vunpack.c.l.s4 1983009808
        %v9497 = vunpack.c.0.s8 %v9496
        %v9498 = vlaneseq
        %v9499 = vshrl.u32 %v9498, 7
        %v9500 = vsub.s32 %v9497, %v9499
        %v9501 = vrot.slane %v9493, %v9500
        %v9503 = vunpack.c.l.s4 1983009808
        %v9504 = vunpack.c.0.s8 %v9503
        %v9505 = vlaneseq
        %v9506 = vshrl.u32 %v9505, 7
        %v9507 = vsub.s32 %v9504, %v9506
        %v9508 = vrot.slane %v9494, %v9507
        %v9509 = vcombine.low %v9501, %v9508
        %v9510 = vcombine.low %v9304, %v9305
        %v9511 = vcombine.low %v9306, %v9307
        %v9513 = vunpack.c.l.s4 1983009808
        %v9514 = vunpack.c.0.s8 %v9513
        %v9515 = vlaneseq
        %v9516 = vshrl.u32 %v9515, 7
        %v9517 = vsub.s32 %v9514, %v9516
        %v9518 = vrot.slane %v9510, %v9517
        %v9520 = vunpack.c.l.s4 1983009808
        %v9521 = vunpack.c.0.s8 %v9520
        %v9522 = vlaneseq
        %v9523 = vshrl.u32 %v9522, 7
        %v9524 = vsub.s32 %v9521, %v9523
        %v9525 = vrot.slane %v9511, %v9524
        %v9526 = vcombine.low %v9518, %v9525
        %v9527 = vcombine.low %v9308, %v9309
        %v9528 = vcombine.low %v9310, %v9311
        %v9530 = vunpack.c.l.s4 1983009808
        %v9531 = vunpack.c.0.s8 %v9530
        %v9532 = vlaneseq
        %v9533 = vshrl.u32 %v9532, 7
        %v9534 = vsub.s32 %v9531, %v9533
        %v9535 = vrot.slane %v9527, %v9534
        %v9537 = vunpack.c.l.s4 1983009808
        %v9538 = vunpack.c.0.s8 %v9537
        %v9539 = vlaneseq
        %v9540 = vshrl.u32 %v9539, 7
        %v9541 = vsub.s32 %v9538, %v9540
        %v9542 = vrot.slane %v9528, %v9541
        %v9543 = vcombine.low %v9535, %v9542
        %v9544 = vcombine.low %v9312, %v9313
        %v9545 = vcombine.low %v9314, %v9315
        %v9547 = vunpack.c.l.s4 1983009808
        %v9548 = vunpack.c.0.s8 %v9547
        %v9549 = vlaneseq
        %v9550 = vshrl.u32 %v9549, 7
        %v9551 = vsub.s32 %v9548, %v9550
        %v9552 = vrot.slane %v9544, %v9551
        %v9554 = vunpack.c.l.s4 1983009808
        %v9555 = vunpack.c.0.s8 %v9554
        %v9556 = vlaneseq
        %v9557 = vshrl.u32 %v9556, 7
        %v9558 = vsub.s32 %v9555, %v9557
        %v9559 = vrot.slane %v9545, %v9558
        %v9560 = vcombine.low %v9552, %v9559
        %v9561 = vcombine.low %v9316, %v9317
        %v9562 = vcombine.low %v9318, %v9319
        %v9564 = vunpack.c.l.s4 1983009808
        %v9565 = vunpack.c.0.s8 %v9564
        %v9566 = vlaneseq
        %v9567 = vshrl.u32 %v9566, 7
        %v9568 = vsub.s32 %v9565, %v9567
        %v9569 = vrot.slane %v9561, %v9568
        %v9571 = vunpack.c.l.s4 1983009808
        %v9572 = vunpack.c.0.s8 %v9571
        %v9573 = vlaneseq
        %v9574 = vshrl.u32 %v9573, 7
        %v9575 = vsub.s32 %v9572, %v9574
        %v9576 = vrot.slane %v9562, %v9575
        %v9577 = vcombine.low %v9569, %v9576
        %v9578 = vcombine.low %v9320, %v9321
        %v9579 = vcombine.low %v9322, %v9323
        %v9581 = vunpack.c.l.s4 1983009808
        %v9582 = vunpack.c.0.s8 %v9581
        %v9583 = vlaneseq
        %v9584 = vshrl.u32 %v9583, 7
        %v9585 = vsub.s32 %v9582, %v9584
        %v9586 = vrot.slane %v9578, %v9585
        %v9588 = vunpack.c.l.s4 1983009808
        %v9589 = vunpack.c.0.s8 %v9588
        %v9590 = vlaneseq
        %v9591 = vshrl.u32 %v9590, 7
        %v9592 = vsub.s32 %v9589, %v9591
        %v9593 = vrot.slane %v9579, %v9592
        %v9594 = vcombine.low %v9586, %v9593
        %v9595 = vcombine.low %v9324, %v9325
        %v9596 = vcombine.low %v9326, %v9327
        %v9598 = vunpack.c.l.s4 1983009808
        %v9599 = vunpack.c.0.s8 %v9598
        %v9600 = vlaneseq
        %v9601 = vshrl.u32 %v9600, 7
        %v9602 = vsub.s32 %v9599, %v9601
        %v9603 = vrot.slane %v9595, %v9602
        %v9605 = vunpack.c.l.s4 1983009808
        %v9606 = vunpack.c.0.s8 %v9605
        %v9607 = vlaneseq
        %v9608 = vshrl.u32 %v9607, 7
        %v9609 = vsub.s32 %v9606, %v9608
        %v9610 = vrot.slane %v9596, %v9609
        %v9611 = vcombine.low %v9603, %v9610
        %v9612 = vcombine.low %v9328, %v9329
        %v9613 = vcombine.low %v9330, %v9331
        %v9615 = vunpack.c.l.s4 1983009808
        %v9616 = vunpack.c.0.s8 %v9615
        %v9617 = vlaneseq
        %v9618 = vshrl.u32 %v9617, 7
        %v9619 = vsub.s32 %v9616, %v9618
        %v9620 = vrot.slane %v9612, %v9619
        %v9622 = vunpack.c.l.s4 1983009808
        %v9623 = vunpack.c.0.s8 %v9622
        %v9624 = vlaneseq
        %v9625 = vshrl.u32 %v9624, 7
        %v9626 = vsub.s32 %v9623, %v9625
        %v9627 = vrot.slane %v9613, %v9626
        %v9628 = vcombine.low %v9620, %v9627
        %v9629 = vcombine.low %v9332, %v9333
        %v9630 = vcombine.low %v9334, %v9335
        %v9632 = vunpack.c.l.s4 1983009808
        %v9633 = vunpack.c.0.s8 %v9632
        %v9634 = vlaneseq
        %v9635 = vshrl.u32 %v9634, 7
        %v9636 = vsub.s32 %v9633, %v9635
        %v9637 = vrot.slane %v9629, %v9636
        %v9639 = vunpack.c.l.s4 1983009808
        %v9640 = vunpack.c.0.s8 %v9639
        %v9641 = vlaneseq
        %v9642 = vshrl.u32 %v9641, 7
        %v9643 = vsub.s32 %v9640, %v9642
        %v9644 = vrot.slane %v9630, %v9643
        %v9645 = vcombine.low %v9637, %v9644
        %v9646 = vcombine.low %v9336, %v9337
        %v9647 = vcombine.low %v9338, %v9339
        %v9649 = vunpack.c.l.s4 1983009808
        %v9650 = vunpack.c.0.s8 %v9649
        %v9651 = vlaneseq
        %v9652 = vshrl.u32 %v9651, 7
        %v9653 = vsub.s32 %v9650, %v9652
        %v9654 = vrot.slane %v9646, %v9653
        %v9656 = vunpack.c.l.s4 1983009808
        %v9657 = vunpack.c.0.s8 %v9656
        %v9658 = vlaneseq
        %v9659 = vshrl.u32 %v9658, 7
        %v9660 = vsub.s32 %v9657, %v9659
        %v9661 = vrot.slane %v9647, %v9660
        %v9662 = vcombine.low %v9654, %v9661
        %v9663 = vcombine.low %v9340, %v9341
        %v9664 = vcombine.low %v9342, %v9343
        %v9666 = vunpack.c.l.s4 1983009808
        %v9667 = vunpack.c.0.s8 %v9666
        %v9668 = vlaneseq
        %v9669 = vshrl.u32 %v9668, 7
        %v9670 = vsub.s32 %v9667, %v9669
        %v9671 = vrot.slane %v9663, %v9670
        %v9673 = vunpack.c.l.s4 1983009808
        %v9674 = vunpack.c.0.s8 %v9673
        %v9675 = vlaneseq
        %v9676 = vshrl.u32 %v9675, 7
        %v9677 = vsub.s32 %v9674, %v9676
        %v9678 = vrot.slane %v9664, %v9677
        %v9679 = vcombine.low %v9671, %v9678
        %v9696 = vpack.c.bf16 %v9441, %v9424
        %v9697 = vpack.c.bf16 %v9475, %v9458
        %v9698 = vpack.c.bf16 %v9509, %v9492
        %v9699 = vpack.c.bf16 %v9543, %v9526
        %v9700 = vpack.c.bf16 %v9577, %v9560
        %v9701 = vpack.c.bf16 %v9611, %v9594
        %v9702 = vpack.c.bf16 %v9645, %v9628
        %v9703 = vpack.c.bf16 %v9679, %v9662
        %v9704 = vld [vmem:[%s3] sm:$0xf]
        %v9705 = vld [vmem:[%s3 + $0x4] sm:$0xf]
        %v9706 = vld [vmem:[%s3 + $0x8] sm:$0xf]
        %v9707 = vld [vmem:[%s3 + $0xc] sm:$0xf]
        %v9708 = vld [vmem:[%s3 + $0x10] sm:$0xf]
        %v9709 = vld [vmem:[%s3 + $0x14] sm:$0xf]
        %v9710 = vld [vmem:[%s3 + $0x18] sm:$0xf]
        %v9711 = vld [vmem:[%s3 + $0x1c] sm:$0xf]
        %v9712 = vld [vmem:[%s3 + $0x20] sm:$0xf]
        %v9713 = vld [vmem:[%s3 + $0x24] sm:$0xf]
        %v9714 = vld [vmem:[%s3 + $0x28] sm:$0xf]
        %v9715 = vld [vmem:[%s3 + $0x2c] sm:$0xf]
        %v9716 = vld [vmem:[%s3 + $0x30] sm:$0xf]
        %v9717 = vld [vmem:[%s3 + $0x34] sm:$0xf]
        %v9718 = vld [vmem:[%s3 + $0x38] sm:$0xf]
        %v9719 = vld [vmem:[%s3 + $0x3c] sm:$0xf]
        %v9720 = vld [vmem:[%s1635] sm:$0xf]
        %v9721 = vld [vmem:[%s1635 + $0x4] sm:$0xf]
        %v9722 = vld [vmem:[%s1635 + $0x8] sm:$0xf]
        %v9723 = vld [vmem:[%s1635 + $0xc] sm:$0xf]
        %v9724 = vld [vmem:[%s1635 + $0x10] sm:$0xf]
        %v9725 = vld [vmem:[%s1635 + $0x14] sm:$0xf]
        %v9726 = vld [vmem:[%s1635 + $0x18] sm:$0xf]
        %v9727 = vld [vmem:[%s1635 + $0x1c] sm:$0xf]
        %v9728 = vld [vmem:[%s1635 + $0x20] sm:$0xf]
        %v9729 = vld [vmem:[%s1635 + $0x24] sm:$0xf]
        %v9730 = vld [vmem:[%s1635 + $0x28] sm:$0xf]
        %v9731 = vld [vmem:[%s1635 + $0x2c] sm:$0xf]
        %v9732 = vld [vmem:[%s1635 + $0x30] sm:$0xf]
        %v9733 = vld [vmem:[%s1635 + $0x34] sm:$0xf]
        %v9734 = vld [vmem:[%s1635 + $0x38] sm:$0xf]
        %v9735 = vld [vmem:[%s1635 + $0x3c] sm:$0xf]
        %v9736 = vunpack.c.l.bf16 %v9720
        %v9737 = vunpack.c.l.bf16 %v9721
        %v9738 = vunpack.c.l.bf16 %v9722
        %v9739 = vunpack.c.l.bf16 %v9723
        %v9740 = vunpack.c.l.bf16 %v9724
        %v9741 = vunpack.c.l.bf16 %v9725
        %v9742 = vunpack.c.l.bf16 %v9726
        %v9743 = vunpack.c.l.bf16 %v9727
        %v9744 = vunpack.c.l.bf16 %v9728
        %v9745 = vunpack.c.l.bf16 %v9729
        %v9746 = vunpack.c.l.bf16 %v9730
        %v9747 = vunpack.c.l.bf16 %v9731
        %v9748 = vunpack.c.l.bf16 %v9732
        %v9749 = vunpack.c.l.bf16 %v9733
        %v9750 = vunpack.c.l.bf16 %v9734
        %v9751 = vunpack.c.l.bf16 %v9735
        %v9752 = vld [vmem:[%s6] sm:$0x1]
        %v9754 = vlaneseq
        %v9755 = vshrl.u32 %v9754, 7
        %v9756 = vsub.s32 0, %v9755
        %v9757 = vrot.slane %v9752, %v9756
        %v9775 = vunpack.c.l.b16 %v9704
        %v9776 = vunpack.c.l.b16 %v9705
        %v9777 = vunpack.c.l.b16 %v9706
        %v9778 = vunpack.c.l.b16 %v9707
        %v9779 = vunpack.c.l.b16 %v9708
        %v9780 = vunpack.c.l.b16 %v9709
        %v9781 = vunpack.c.l.b16 %v9710
        %v9782 = vunpack.c.l.b16 %v9711
        %v9783 = vunpack.c.l.b16 %v9712
        %v9784 = vunpack.c.l.b16 %v9713
        %v9785 = vunpack.c.l.b16 %v9714
        %v9786 = vunpack.c.l.b16 %v9715
        %v9787 = vunpack.c.l.b16 %v9716
        %v9788 = vunpack.c.l.b16 %v9717
        %v9789 = vunpack.c.l.b16 %v9718
        %v9790 = vunpack.c.l.b16 %v9719
        %v9791 = vpack.c.b16 %v9776, %v9775
        %v9792 = vpack.c.b16 %v9778, %v9777
        %v9793 = vpack.c.b16 %v9780, %v9779
        %v9794 = vpack.c.b16 %v9782, %v9781
        %v9795 = vpack.c.b16 %v9784, %v9783
        %v9796 = vpack.c.b16 %v9786, %v9785
        %v9797 = vpack.c.b16 %v9788, %v9787
        %v9798 = vpack.c.b16 %v9790, %v9789
        %9807 = vmatprep.subr.bf16.mxu0 0
        %9808 = vmatpush1.bf16.msra.mxu0 %v9791
        %9809 = vmatprep.subr.bf16.mxu0 0
        %9810 = vmatpush1.bf16.msra.mxu0 %v9792
        %9811 = vmatprep.subr.bf16.mxu0 0
        %9812 = vmatpush1.bf16.msra.mxu0 %v9793
        %9813 = vmatprep.subr.bf16.mxu0 0
        %9814 = vmatpush1.bf16.msra.mxu0 %v9794
        %9815 = vmatprep.subr.bf16.mxu0 0
        %9816 = vmatpush1.bf16.msra.mxu0 %v9795
        %9817 = vmatprep.subr.bf16.mxu0 0
        %9818 = vmatpush1.bf16.msra.mxu0 %v9796
        %9819 = vmatprep.subr.bf16.mxu0 0
        %9820 = vmatpush1.bf16.msra.mxu0 %v9797
        %9821 = vmatprep.subr.bf16.mxu0 0
        %9822 = vmatpush1.bf16.msra.mxu0 %v9798
        %9823 = vmatprep.subr.bf16.mxu0 0
        %9824 = vmatpush1.bf16.msra.mxu0 0
        %9825 = vmatprep.subr.bf16.mxu0 0
        %9826 = vmatpush1.bf16.msra.mxu0 0
        %9827 = vmatprep.subr.bf16.mxu0 0
        %9828 = vmatpush1.bf16.msra.mxu0 0
        %9829 = vmatprep.subr.bf16.mxu0 0
        %9830 = vmatpush1.bf16.msra.mxu0 0
        %9831 = vmatprep.subr.bf16.mxu0 0
        %9832 = vmatpush1.bf16.msra.mxu0 0
        %9833 = vmatprep.subr.bf16.mxu0 0
        %9834 = vmatpush1.bf16.msra.mxu0 0
        %9835 = vmatprep.subr.bf16.mxu0 0
        %9836 = vmatpush1.bf16.msra.mxu0 0
        %9837 = vmatprep.subr.bf16.mxu0 0
        %9838 = vmatpush1.bf16.msra.mxu0 0
        %9839 = vmatprep.mubr.bf16.mxu0 0
        %9840 = vmatmul.mubr.bf16.gmra.mrb[0].mxu0 %v9696
        %v9841 = vpop.f32.mrb[0].mxu0
        %v9842 = vadd.f32 %v9757, %v9841
        %v9843 = vpop.f32.mrb[0].mxu0
        %v9844 = vpop.f32.mrb[0].mxu0
        %v9845 = vadd.f32 %v9757, %v9844
        %v9846 = vpop.f32.mrb[0].mxu0
        %9847 = vmatprep.mubr.bf16.mxu0 0
        %9848 = vmatmul.mubr.bf16.gmra.mrb[0].mxu0 %v9697
        %v9849 = vpop.f32.mrb[0].mxu0
        %v9850 = vadd.f32 %v9757, %v9849
        %v9851 = vpop.f32.mrb[0].mxu0
        %v9852 = vpop.f32.mrb[0].mxu0
        %v9853 = vadd.f32 %v9757, %v9852
        %v9854 = vpop.f32.mrb[0].mxu0
        %9855 = vmatprep.mubr.bf16.mxu0 0
        %9856 = vmatmul.mubr.bf16.gmra.mrb[0].mxu0 %v9698
        %v9857 = vpop.f32.mrb[0].mxu0
        %v9858 = vadd.f32 %v9757, %v9857
        %v9859 = vpop.f32.mrb[0].mxu0
        %v9860 = vpop.f32.mrb[0].mxu0
        %v9861 = vadd.f32 %v9757, %v9860
        %v9862 = vpop.f32.mrb[0].mxu0
        %9863 = vmatprep.mubr.bf16.mxu0 0
        %9864 = vmatmul.mubr.bf16.gmra.mrb[0].mxu0 %v9699
        %v9865 = vpop.f32.mrb[0].mxu0
        %v9866 = vadd.f32 %v9757, %v9865
        %v9867 = vpop.f32.mrb[0].mxu0
        %v9868 = vpop.f32.mrb[0].mxu0
        %v9869 = vadd.f32 %v9757, %v9868
        %v9870 = vpop.f32.mrb[0].mxu0
        %9871 = vmatprep.mubr.bf16.mxu0 0
        %9872 = vmatmul.mubr.bf16.gmra.mrb[0].mxu0 %v9700
        %v9873 = vpop.f32.mrb[0].mxu0
        %v9874 = vadd.f32 %v9757, %v9873
        %v9875 = vpop.f32.mrb[0].mxu0
        %v9876 = vpop.f32.mrb[0].mxu0
        %v9877 = vadd.f32 %v9757, %v9876
        %v9878 = vpop.f32.mrb[0].mxu0
        %9879 = vmatprep.mubr.bf16.mxu0 0
        %9880 = vmatmul.mubr.bf16.gmra.mrb[0].mxu0 %v9701
        %v9881 = vpop.f32.mrb[0].mxu0
        %v9882 = vadd.f32 %v9757, %v9881
        %v9883 = vpop.f32.mrb[0].mxu0
        %v9884 = vpop.f32.mrb[0].mxu0
        %v9885 = vadd.f32 %v9757, %v9884
        %v9886 = vpop.f32.mrb[0].mxu0
        %9887 = vmatprep.mubr.bf16.mxu0 0
        %9888 = vmatmul.mubr.bf16.gmra.mrb[0].mxu0 %v9702
        %v9889 = vpop.f32.mrb[0].mxu0
        %v9890 = vadd.f32 %v9757, %v9889
        %v9891 = vpop.f32.mrb[0].mxu0
        %v9892 = vpop.f32.mrb[0].mxu0
        %v9893 = vadd.f32 %v9757, %v9892
        %v9894 = vpop.f32.mrb[0].mxu0
        %9895 = vmatprep.mubr.bf16.mxu0 0
        %9896 = vmatmul.mubr.bf16.gmra.mrb[0].mxu0 %v9703
        %v9897 = vpop.f32.mrb[0].mxu0
        %v9898 = vadd.f32 %v9757, %v9897
        %v9899 = vpop.f32.mrb[0].mxu0
        %v9900 = vpop.f32.mrb[0].mxu0
        %v9901 = vadd.f32 %v9757, %v9900
        %v9902 = vpop.f32.mrb[0].mxu0
        %9903 = vdwg.mxu0
        %v9904 = vadd.f32 %v9842, %v9736
        %v9905 = vadd.f32 %v9845, %v9737
        %v9906 = vadd.f32 %v9850, %v9738
        %v9907 = vadd.f32 %v9853, %v9739
        %v9908 = vadd.f32 %v9858, %v9740
        %v9909 = vadd.f32 %v9861, %v9741
        %v9910 = vadd.f32 %v9866, %v9742
        %v9911 = vadd.f32 %v9869, %v9743
        %v9912 = vadd.f32 %v9874, %v9744
        %v9913 = vadd.f32 %v9877, %v9745
        %v9914 = vadd.f32 %v9882, %v9746
        %v9915 = vadd.f32 %v9885, %v9747
        %v9916 = vadd.f32 %v9890, %v9748
        %v9917 = vadd.f32 %v9893, %v9749
        %v9918 = vadd.f32 %v9898, %v9750
        %v9919 = vadd.f32 %v9901, %v9751
        %v9920 = vmax.f32 %v9904, 0.0
        %v9921 = vmax.f32 %v9905, 0.0
        %v9922 = vmax.f32 %v9906, 0.0
        %v9923 = vmax.f32 %v9907, 0.0
        %v9924 = vmax.f32 %v9908, 0.0
        %v9925 = vmax.f32 %v9909, 0.0
        %v9926 = vmax.f32 %v9910, 0.0
        %v9927 = vmax.f32 %v9911, 0.0
        %v9928 = vmax.f32 %v9912, 0.0
        %v9929 = vmax.f32 %v9913, 0.0
        %v9930 = vmax.f32 %v9914, 0.0
        %v9931 = vmax.f32 %v9915, 0.0
        %v9932 = vmax.f32 %v9916, 0.0
        %v9933 = vmax.f32 %v9917, 0.0
        %v9934 = vmax.f32 %v9918, 0.0
        %v9935 = vmax.f32 %v9919, 0.0
        %v9936 = vpack.c.bf16 %v9921, %v9920
        %v9937 = vpack.c.bf16 %v9923, %v9922
        %v9938 = vpack.c.bf16 %v9925, %v9924
        %v9939 = vpack.c.bf16 %v9927, %v9926
        %v9940 = vpack.c.bf16 %v9929, %v9928
        %v9941 = vpack.c.bf16 %v9931, %v9930
        %v9942 = vpack.c.bf16 %v9933, %v9932
        %v9943 = vpack.c.bf16 %v9935, %v9934
        %v9952 = vunpack.c.l.b16 %v9936
        %v9953 = vunpack.c.h.b16 %v9936
        %v9954 = vunpack.c.l.b16 %v9937
        %v9955 = vunpack.c.h.b16 %v9937
        %v9956 = vunpack.c.l.b16 %v9938
        %v9957 = vunpack.c.h.b16 %v9938
        %v9958 = vunpack.c.l.b16 %v9939
        %v9959 = vunpack.c.h.b16 %v9939
        %v9960 = vunpack.c.l.b16 %v9940
        %v9961 = vunpack.c.h.b16 %v9940
        %v9962 = vunpack.c.l.b16 %v9941
        %v9963 = vunpack.c.h.b16 %v9941
        %v9964 = vunpack.c.l.b16 %v9942
        %v9965 = vunpack.c.h.b16 %v9942
        %v9966 = vunpack.c.l.b16 %v9943
        %v9967 = vunpack.c.h.b16 %v9943
        %v9968 = vpack.c.b16 %v9952, %v9952
        %v9969 = vpack.c.b16 %v9953, %v9953
        %v9970 = vpack.c.b16 %v9954, %v9954
        %v9971 = vpack.c.b16 %v9955, %v9955
        %v9972 = vpack.c.b16 %v9956, %v9956
        %v9973 = vpack.c.b16 %v9957, %v9957
        %v9974 = vpack.c.b16 %v9958, %v9958
        %v9975 = vpack.c.b16 %v9959, %v9959
        %v9976 = vpack.c.b16 %v9960, %v9960
        %v9977 = vpack.c.b16 %v9961, %v9961
        %v9978 = vpack.c.b16 %v9962, %v9962
        %v9979 = vpack.c.b16 %v9963, %v9963
        %v9980 = vpack.c.b16 %v9964, %v9964
        %v9981 = vpack.c.b16 %v9965, %v9965
        %v9982 = vpack.c.b16 %v9966, %v9966
        %v9983 = vpack.c.b16 %v9967, %v9967
        %s10000 = scalar_lea.vmem %s271, 64 [#allocation3]
        %10001 = vst [vmem:[%s10000] sm:$0xf] %v9968
        %10002 = vst [vmem:[%s10000 + $0x4] sm:$0xf] %v9969
        %10003 = vst [vmem:[%s10000 + $0x8] sm:$0xf] %v9970
        %10004 = vst [vmem:[%s10000 + $0xc] sm:$0xf] %v9971
        %10005 = vst [vmem:[%s10000 + $0x10] sm:$0xf] %v9972
        %10006 = vst [vmem:[%s10000 + $0x14] sm:$0xf] %v9973
        %10007 = vst [vmem:[%s10000 + $0x18] sm:$0xf] %v9974
        %10008 = vst [vmem:[%s10000 + $0x1c] sm:$0xf] %v9975
        %10009 = vst [vmem:[%s10000 + $0x20] sm:$0xf] %v9976
        %10010 = vst [vmem:[%s10000 + $0x24] sm:$0xf] %v9977
        %10011 = vst [vmem:[%s10000 + $0x28] sm:$0xf] %v9978
        %10012 = vst [vmem:[%s10000 + $0x2c] sm:$0xf] %v9979
        %10013 = vst [vmem:[%s10000 + $0x30] sm:$0xf] %v9980
        %10014 = vst [vmem:[%s10000 + $0x34] sm:$0xf] %v9981
        %10015 = vst [vmem:[%s10000 + $0x38] sm:$0xf] %v9982
        %10016 = vst [vmem:[%s10000 + $0x3c] sm:$0xf] %v9983
        %s10017 = sand.u32 %s181, 1
        %s10018 = scalar_lea.sflag [#allocation4], %s10017
        %s10019 = sand.u32 %s181, 1
        %s10020 = smul.addr %s10019, 128
        %s10021 = scalar_lea.vmem [#allocation3], %s10020
        // Predicated region
        $region49: #{bottleneck_pallas.1} parent=47 // pred_check
          %p10022 = pneg %p191
        $region50: #{bottleneck_pallas.1} parent=47 // pred_check_branch
          %10024 = sbr.rel (%p10022) target = $region52
        $region51: #{bottleneck_pallas.1} parent=47 // pred_region
          %s10026 = ssub.s32 2048, 2048
          %10027 = vsyncadd %s10018, %s10026
          %s10028 = smul.addr %s21, 32
          %s10029 = smul.addr %s10028, 64
          %s10030 = scalar_lea.hbm %s7, %s10029
          %s10031 = sshll.u32 %s10021, 4
          %s10032 = int_to_ptr.vmem [resolvable:$true] %s10031
          %10037 = dma.vmem_to_hbm [thread:$0]  %s10032, 2048, %s10030, %s10018, 64, 64, 4
        $region52: #{bottleneck_pallas.1} parent=47 // pred_fallthru
          _
      $region48: #{bottleneck_pallas.1} parent=5 // pred_fallthru
        _
      %p10038 = scmp.le.s32.totalorder 2, %s16
      // Predicated region
      $region53: #{bottleneck_pallas.1} parent=5 // pred_check
        %p10039 = pneg %p10038
      $region54: #{bottleneck_pallas.1} parent=5 // pred_check_branch
        %10041 = sbr.rel (%p10039) target = $region56
      $region55: #{bottleneck_pallas.1} parent=5 // pred_region
        %s10042 = ssub.s32 %s16, 2
        // Predicated region
        $region57: #{bottleneck_pallas.1} parent=55 // pred_check
          %p10043 = pneg %p197
        $region58: #{bottleneck_pallas.1} parent=55 // pred_check_branch
          %10045 = sbr.rel (%p10043) target = $region60
        $region59: #{bottleneck_pallas.1} parent=55 // pred_region
          %s10046 = sand.u32 %s182, 1
          %s10047 = scalar_lea.sflag [#allocation4], %s10046
          %s10048 = sand.u32 %s182, 1
          %s10049 = smul.addr %s10048, 128
          %s10050 = scalar_lea.vmem [#allocation3], %s10049
          %10051 = dma.done %s10047, 2048
        $region60: #{bottleneck_pallas.1} parent=55 // pred_fallthru
          _
      $region56: #{bottleneck_pallas.1} parent=5 // pred_fallthru
        _
    $region6: #{bottleneck_pallas.1} parent=1 // loop_footer
      %s20 = sadd.s32 1, %s16
    $region7: #{bottleneck_pallas.1} parent=1 // loop_footer_branch
      %15 = sbr.rel target = $region3
    $region8: #{bottleneck_pallas.1} parent=1 // loop_exit
      _
    %10052 = vsyncpa [#allocation4], 1
    %s10053 = scalar_lea.sflag [#allocation4], 1
    %10054 = vsyncpa %s10053, 1

</llo_original>
